<compile_context>
chip_gen: v7x
topology: tpu7x:2x2x1
jax: 0.10.0
libtpu: 0.0.40
codegen_flags: <defaults>
</compile_context>

<pallas_src>
import functools

import jax
import jax.numpy as jnp
import numpy as np
from jax.experimental import pallas as pl
from jax.experimental.pallas import tpu as pltpu

_PAD = 128  # lane padding on each side of the flattened spatial axis


def _m_block_kernel(x_ref, w1_ref, b1_ref, w2t_ref, b2t_ref, wcf_ref, bc_ref,
                    o_ref, pad_ref, *, W, HW, LC):
    C = x_ref.shape[0]
    PW = pad_ref.shape[1]

    x = x_ref[...].astype(jnp.float32)                      # (C, HW)

    # ---- squeeze-excite MLP (VPU/XLU only; avoids tiny 1-row MXU passes) ----
    avg = jnp.mean(x, axis=1, keepdims=True)                # (C, 1) lane reduce
    h = jnp.sum(w1_ref[...] * avg, axis=0, keepdims=True) + b1_ref[...]
    h = jnp.maximum(h, 0.0)                                 # (1, hid)
    s = jnp.sum(w2t_ref[...] * h, axis=1, keepdims=True) + b2t_ref[...]
    s = jax.nn.sigmoid(s)                                   # (C, 1)

    x5 = (x * s).astype(jnp.bfloat16)                       # (C, HW)

    # ---- stage scaled input into a lane-padded slab (zero borders only) ----
    pad_ref[:, :_PAD] = jnp.zeros((C, _PAD), jnp.bfloat16)
    pad_ref[:, _PAD + HW:PW] = jnp.zeros((C, PW - _PAD - HW), jnp.bfloat16)
    pad_ref[:, _PAD:_PAD + HW] = x5

    # x-edge masks (shared by every chunk because LC % W == 0).
    xcol = jax.lax.broadcasted_iota(jnp.int32, (1, LC), 1) % W
    left_edge = xcol == 0
    right_edge = xcol == (W - 1)

    wf = wcf_ref[...]                                       # (Cout, 9*C) bf16
    bias = bc_ref[...]                                      # (Cout, 1) f32

    # ---- 3x3 conv as a fused-K (K = 9*Cin) matmul per lane chunk ----
    for ci in range(HW // LC):
        cs = ci * LC
        taps = []
        for dy in (-1, 0, 1):
            for dx in (-1, 0, 1):
                d = dy * W + dx
                t = pad_ref[:, _PAD + cs + d:_PAD + cs + d + LC]   # (C, LC)
                if dx == -1:
                    t = jnp.where(left_edge, jnp.zeros_like(t), t)
                elif dx == 1:
                    t = jnp.where(right_edge, jnp.zeros_like(t), t)
                taps.append(t)
        patch = jnp.concatenate(taps, axis=0)               # (9*C, LC) bf16
        acc = jnp.dot(wf, patch, preferred_element_type=jnp.float32)
        o_ref[:, cs:cs + LC] = (acc + bias).astype(o_ref.dtype)


def m_block(x, params):
    """x: (B, C, H, W) NCHW. Returns (B, Cout, H, W)."""
    w1, b1, w2, b2, wc, bc = params
    B, C, H, W = x.shape
    Cout = wc.shape[-1]
    HW = H * W
    assert W + 1 <= _PAD, "image width too large for the fixed lane padding"

    # Lane-chunk size for the conv matmul (bounds vreg pressure).
    if HW > 128 and HW % 128 == 0 and 128 % W == 0:
        LC = 128
    else:
        LC = HW

    # One-time layout transforms outside the kernel.
    x_flat = x.reshape(B, C, HW)
    w2t = w2.T                                              # (C, hid)
    b2t = b2.reshape(C, 1)                                  # (C, 1)
    wcf = jnp.transpose(wc, (3, 0, 1, 2)).reshape(Cout, 9 * C)
    wcf = wcf.astype(jnp.bfloat16)                          # bf16 MXU operand
    bct = bc.reshape(Cout, 1)                               # (Cout, 1)

    kernel = functools.partial(_m_block_kernel, W=W, HW=HW, LC=LC)

    out_flat = pl.pallas_call(
        kernel,
        out_shape=jax.ShapeDtypeStruct((B, Cout, HW), x.dtype),
        grid=(B,),
        in_specs=[
            pl.BlockSpec((None, C, HW), lambda b: (b, 0, 0)),
            pl.BlockSpec(w1.shape, lambda b: (0, 0)),
            pl.BlockSpec(b1.shape, lambda b: (0, 0)),
            pl.BlockSpec(w2t.shape, lambda b: (0, 0)),
            pl.BlockSpec(b2t.shape, lambda b: (0, 0)),
            pl.BlockSpec(wcf.shape, lambda b: (0, 0)),
            pl.BlockSpec(bct.shape, lambda b: (0, 0)),
        ],
        out_specs=pl.BlockSpec((None, Cout, HW), lambda b: (b, 0, 0)),
        scratch_shapes=[pltpu.VMEM((C, _PAD + HW + _PAD), jnp.bfloat16)],
        compiler_params=pltpu.CompilerParams(
            dimension_semantics=("parallel",)),   # batch axis is independent
    )(x_flat, w1, b1, w2t, b2t, wcf, bct)

    return out_flat.reshape(B, Cout, H, W)


@jax.jit
def mblock(out_a, out_b, out_c, params_a, params_b, params_c):
    """Mblock.forward: three independent M_blocks, fused into one XLA program."""
    return (m_block(out_a, params_a),
            m_block(out_b, params_b),
            m_block(out_c, params_c))


# ------------------------- parameter init / reference -------------------------

def init_m_block_params(key, in_ch, out_ch, ratio=16, dtype=jnp.float32):
    hid = int(in_ch / ratio)
    k = jax.random.split(key, 6)
    w1 = jax.random.normal(k[0], (in_ch, hid), dtype) * 0.1
    b1 = jax.random.normal(k[1], (1, hid), dtype) * 0.01
    w2 = jax.random.normal(k[2], (hid, in_ch), dtype) * 0.1
    b2 = jax.random.normal(k[3], (1, in_ch), dtype) * 0.01
    wc = jax.random.normal(k[4], (3, 3, in_ch, out_ch), dtype) * 0.05  # HWIO
    bc = jax.random.normal(k[5], (1, out_ch), dtype) * 0.01
    return (w1, b1, w2, b2, wc, bc)


def m_block_ref(x, params):
    """Pure-JAX f32 reference (matches PyTorch M_block semantics, NCHW)."""
    w1, b1, w2, b2, wc, bc = params
    avg = jnp.mean(x, axis=(2, 3))                          # (B, C)
    h = jax.nn.relu(avg @ w1 + b1)
    s = jax.nn.sigmoid(h @ w2 + b2)                         # (B, C)
    x5 = x * s[:, :, None, None]
    out = jax.lax.conv_general_dilated(
        x5, wc, window_strides=(1, 1), padding="SAME",
        dimension_numbers=("NCHW", "HWIO", "NCHW"))
    return out + bc.reshape(1, -1, 1, 1)


if __name__ == "__main__":
    key = jax.random.PRNGKey(0)
    k_in = jax.random.split(key, 3)
    k_par = jax.random.split(jax.random.PRNGKey(1), 3)

    # Scaled-down U-net feature maps, NCHW (PyTorch layout).
    in_ch = [64, 48, 32]
    out_ch = [64, 48, 32]
    spatial = [8, 16, 32]
    B = 2

    xs = [jax.random.normal(k_in[i], (B, in_ch[i], spatial[i], spatial[i]),
                            jnp.float32) for i in range(3)]
    params = [init_m_block_params(k_par[i], in_ch[i], out_ch[i])
              for i in range(3)]

    outs = mblock(xs[0], xs[1], xs[2], params[0], params[1], params[2])
    outs = jax.block_until_ready(outs)

    # Correctness vs the pure-f32 reference.  The kernel casts the conv
    # operands to bf16 (f32 accumulation), hence the relaxed tolerance.
    for i in range(3):
        ref = m_block_ref(xs[i], params[i])
        np.testing.assert_allclose(np.asarray(outs[i]), np.asarray(ref),
                                   rtol=2e-2, atol=2e-2)

    print("KERNEL_OK")
</pallas_src>

<mosaic_0001>
module attributes {stable_mosaic.version = 11 : i64} {
  func.func @_m_block_kernel(%arg0: i32, %arg1: memref<1x48x256xf32, #tpu.memory_space<vmem>>, %arg2: memref<48x3xf32, #tpu.memory_space<vmem>>, %arg3: memref<1x3xf32, #tpu.memory_space<vmem>>, %arg4: memref<48x3xf32, #tpu.memory_space<vmem>>, %arg5: memref<48x1xf32, #tpu.memory_space<vmem>>, %arg6: memref<48x432xbf16, #tpu.memory_space<vmem>>, %arg7: memref<48x1xf32, #tpu.memory_space<vmem>>, %arg8: memref<1x48x256xf32, #tpu.memory_space<vmem>>, %arg9: memref<48x512xbf16, #tpu.memory_space<vmem>>) attributes {dimension_semantics = [#tpu.dimension_semantics<parallel>], iteration_bounds = array<i64: 2>, scalar_prefetch = 0 : i64, scratch_operands = 1 : i64, tpu.core_type = #tpu.core_type<tc>, window_params = [{transform_indices = @transform_0, window_bounds = array<i64: 1, 48, 256>}, {pipeline_mode = #tpu.pipeline_mode<synchronous>, transform_indices = @transform_1, window_bounds = array<i64: 48, 3>}, {pipeline_mode = #tpu.pipeline_mode<synchronous>, transform_indices = @transform_2, window_bounds = array<i64: 1, 3>}, {pipeline_mode = #tpu.pipeline_mode<synchronous>, transform_indices = @transform_3, window_bounds = array<i64: 48, 3>}, {pipeline_mode = #tpu.pipeline_mode<synchronous>, transform_indices = @transform_4, window_bounds = array<i64: 48, 1>}, {pipeline_mode = #tpu.pipeline_mode<synchronous>, transform_indices = @transform_5, window_bounds = array<i64: 48, 432>}, {pipeline_mode = #tpu.pipeline_mode<synchronous>, transform_indices = @transform_6, window_bounds = array<i64: 48, 1>}, {transform_indices = @transform_7, window_bounds = array<i64: 1, 48, 256>}]} {
    %c0 = arith.constant 0 : index
    %c0_0 = arith.constant 0 : index
    %c0_1 = arith.constant 0 : index
    %0 = vector.load %arg1[%c0, %c0_0, %c0_1] : memref<1x48x256xf32, #tpu.memory_space<vmem>>, vector<1x48x256xf32>
    %1 = vector.shape_cast %0 : vector<1x48x256xf32> to vector<48x256xf32>
    %cst = arith.constant dense<0.000000e+00> : vector<48xf32>
    %2 = vector.multi_reduction <add>, %1, %cst [1] : vector<48x256xf32> to vector<48xf32>
    %3 = vector.shape_cast %2 : vector<48xf32> to vector<48x1xf32>
    %cst_2 = arith.constant 2.560000e+02 : f32
    %4 = vector.broadcast %cst_2 : f32 to vector<48x1xf32>
    %5 = arith.divf %3, %4 : vector<48x1xf32>
    %c0_3 = arith.constant 0 : index
    %c0_4 = arith.constant 0 : index
    %6 = vector.load %arg2[%c0_3, %c0_4] : memref<48x3xf32, #tpu.memory_space<vmem>>, vector<48x3xf32>
    %7 = vector.broadcast %5 : vector<48x1xf32> to vector<48x3xf32>
    %8 = arith.mulf %6, %7 : vector<48x3xf32>
    %cst_5 = arith.constant dense<0.000000e+00> : vector<3xf32>
    %9 = vector.multi_reduction <add>, %8, %cst_5 [0] : vector<48x3xf32> to vector<3xf32>
    %10 = vector.shape_cast %9 : vector<3xf32> to vector<1x3xf32>
    %c0_6 = arith.constant 0 : index
    %c0_7 = arith.constant 0 : index
    %11 = vector.load %arg3[%c0_6, %c0_7] : memref<1x3xf32, #tpu.memory_space<vmem>>, vector<1x3xf32>
    %12 = arith.addf %10, %11 : vector<1x3xf32>
    %cst_8 = arith.constant 0.000000e+00 : f32
    %13 = vector.broadcast %cst_8 : f32 to vector<1x3xf32>
    %14 = arith.maximumf %12, %13 : vector<1x3xf32>
    %c0_9 = arith.constant 0 : index
    %c0_10 = arith.constant 0 : index
    %15 = vector.load %arg4[%c0_9, %c0_10] : memref<48x3xf32, #tpu.memory_space<vmem>>, vector<48x3xf32>
    %16 = vector.broadcast %14 : vector<1x3xf32> to vector<48x3xf32>
    %17 = arith.mulf %15, %16 : vector<48x3xf32>
    %cst_11 = arith.constant dense<0.000000e+00> : vector<48xf32>
    %18 = vector.multi_reduction <add>, %17, %cst_11 [1] : vector<48x3xf32> to vector<48xf32>
    %19 = vector.shape_cast %18 : vector<48xf32> to vector<48x1xf32>
    %c0_12 = arith.constant 0 : index
    %c0_13 = arith.constant 0 : index
    %20 = vector.load %arg5[%c0_12, %c0_13] : memref<48x1xf32, #tpu.memory_space<vmem>>, vector<48x1xf32>
    %21 = arith.addf %19, %20 : vector<48x1xf32>
    %22 = arith.negf %21 : vector<48x1xf32>
    %23 = math.exp %22 : vector<48x1xf32>
    %cst_14 = arith.constant 1.000000e+00 : f32
    %24 = vector.broadcast %cst_14 : f32 to vector<48x1xf32>
    %25 = arith.addf %24, %23 : vector<48x1xf32>
    %26 = arith.divf %24, %25 : vector<48x1xf32>
    %27 = vector.broadcast %26 : vector<48x1xf32> to vector<48x256xf32>
    %28 = arith.mulf %1, %27 : vector<48x256xf32>
    %29 = arith.truncf %28 : vector<48x256xf32> to vector<48x256xbf16>
    %cst_15 = arith.constant 0.000000e+00 : bf16
    %30 = vector.broadcast %cst_15 : bf16 to vector<48x128xbf16>
    %c0_16 = arith.constant 0 : index
    %c0_17 = arith.constant 0 : index
    %31 = vector.load %arg9[%c0_16, %c0_17] : memref<48x512xbf16, #tpu.memory_space<vmem>>, vector<48x128xbf16>
    tpu.vector_store %arg9[%c0_16, %c0_17], %30 {strides = array<i32>} : memref<48x512xbf16, #tpu.memory_space<vmem>>, vector<48x128xbf16>,
    %cst_18 = arith.constant 0.000000e+00 : bf16
    %32 = vector.broadcast %cst_18 : bf16 to vector<48x128xbf16>
    %c0_19 = arith.constant 0 : index
    %c384 = arith.constant 384 : index
    %33 = vector.load %arg9[%c0_19, %c384] : memref<48x512xbf16, #tpu.memory_space<vmem>>, vector<48x128xbf16>
    tpu.vector_store %arg9[%c0_19, %c384], %32 {strides = array<i32>} : memref<48x512xbf16, #tpu.memory_space<vmem>>, vector<48x128xbf16>,
    %c0_20 = arith.constant 0 : index
    %c128 = arith.constant 128 : index
    %34 = vector.load %arg9[%c0_20, %c128] : memref<48x512xbf16, #tpu.memory_space<vmem>>, vector<48x256xbf16>
    tpu.vector_store %arg9[%c0_20, %c128], %29 {strides = array<i32>} : memref<48x512xbf16, #tpu.memory_space<vmem>>, vector<48x256xbf16>,
    %35 = tpu.iota {dimensions = array<i32: 1>} : vector<1x128xi32>
    %c16_i32 = arith.constant 16 : i32
    %c0_i32 = arith.constant 0 : i32
    %36 = arith.cmpi eq, %c16_i32, %c0_i32 : i32
    %c1_i32 = arith.constant 1 : i32
    %37 = arith.select %36, %c1_i32, %c16_i32 : i32
    %38 = vector.broadcast %37 : i32 to vector<1x128xi32>
    %39 = arith.remsi %35, %38 : vector<1x128xi32>
    %c0_i32_21 = arith.constant 0 : i32
    %40 = vector.broadcast %c0_i32_21 : i32 to vector<1x128xi32>
    %41 = arith.cmpi ne, %39, %40 : vector<1x128xi32>
    %c0_i32_22 = arith.constant 0 : i32
    %42 = vector.broadcast %c0_i32_22 : i32 to vector<1x128xi32>
    %43 = arith.cmpi slt, %39, %42 : vector<1x128xi32>
    %c0_i32_23 = arith.constant 0 : i32
    %44 = arith.cmpi slt, %37, %c0_i32_23 : i32
    %45 = vector.broadcast %44 : i1 to vector<1x128xi1>
    %46 = vector.broadcast %45 : vector<1x128xi1> to vector<1x128xi1>
    %47 = arith.xori %43, %46 : vector<1x128xi1>
    %48 = arith.andi %47, %41 : vector<1x128xi1>
    %49 = vector.broadcast %37 : i32 to vector<1x128xi32>
    %50 = arith.addi %39, %49 : vector<1x128xi32>
    %51 = arith.select %48, %50, %39 : vector<1x128xi1>, vector<1x128xi32>
    %c0_i32_24 = arith.constant 0 : i32
    %52 = vector.broadcast %c0_i32_24 : i32 to vector<1x128xi32>
    %53 = arith.cmpi eq, %51, %52 : vector<1x128xi32>
    %c15_i32 = arith.constant 15 : i32
    %54 = vector.broadcast %c15_i32 : i32 to vector<1x128xi32>
    %55 = arith.cmpi eq, %51, %54 : vector<1x128xi32>
    %c0_25 = arith.constant 0 : index
    %c0_26 = arith.constant 0 : index
    %56 = vector.load %arg6[%c0_25, %c0_26] : memref<48x432xbf16, #tpu.memory_space<vmem>>, vector<48x432xbf16>
    %c0_27 = arith.constant 0 : index
    %c0_28 = arith.constant 0 : index
    %57 = vector.load %arg7[%c0_27, %c0_28] : memref<48x1xf32, #tpu.memory_space<vmem>>, vector<48x1xf32>
    %c0_29 = arith.constant 0 : index
    %c111 = arith.constant 111 : index
    %58 = vector.load %arg9[%c0_29, %c111] : memref<48x512xbf16, #tpu.memory_space<vmem>>, vector<48x128xbf16>
    %cst_30 = arith.constant 0.000000e+00 : bf16
    %59 = vector.broadcast %cst_30 : bf16 to vector<48x128xbf16>
    %60 = vector.shape_cast %53 : vector<1x128xi1> to vector<1x128xi1>
    %61 = vector.broadcast %60 : vector<1x128xi1> to vector<48x128xi1>
    %62 = arith.select %61, %59, %58 : vector<48x128xi1>, vector<48x128xbf16>
    %c0_31 = arith.constant 0 : index
    %c112 = arith.constant 112 : index
    %63 = vector.load %arg9[%c0_31, %c112] : memref<48x512xbf16, #tpu.memory_space<vmem>>, vector<48x128xbf16>
    %c0_32 = arith.constant 0 : index
    %c113 = arith.constant 113 : index
    %64 = vector.load %arg9[%c0_32, %c113] : memref<48x512xbf16, #tpu.memory_space<vmem>>, vector<48x128xbf16>
    %cst_33 = arith.constant 0.000000e+00 : bf16
    %65 = vector.broadcast %cst_33 : bf16 to vector<48x128xbf16>
    %66 = vector.shape_cast %55 : vector<1x128xi1> to vector<1x128xi1>
    %67 = vector.broadcast %66 : vector<1x128xi1> to vector<48x128xi1>
    %68 = arith.select %67, %65, %64 : vector<48x128xi1>, vector<48x128xbf16>
    %c0_34 = arith.constant 0 : index
    %c127 = arith.constant 127 : index
    %69 = vector.load %arg9[%c0_34, %c127] : memref<48x512xbf16, #tpu.memory_space<vmem>>, vector<48x128xbf16>
    %cst_35 = arith.constant 0.000000e+00 : bf16
    %70 = vector.broadcast %cst_35 : bf16 to vector<48x128xbf16>
    %71 = vector.shape_cast %53 : vector<1x128xi1> to vector<1x128xi1>
    %72 = vector.broadcast %71 : vector<1x128xi1> to vector<48x128xi1>
    %73 = arith.select %72, %70, %69 : vector<48x128xi1>, vector<48x128xbf16>
    %c0_36 = arith.constant 0 : index
    %c128_37 = arith.constant 128 : index
    %74 = vector.load %arg9[%c0_36, %c128_37] : memref<48x512xbf16, #tpu.memory_space<vmem>>, vector<48x128xbf16>
    %c0_38 = arith.constant 0 : index
    %c129 = arith.constant 129 : index
    %75 = vector.load %arg9[%c0_38, %c129] : memref<48x512xbf16, #tpu.memory_space<vmem>>, vector<48x128xbf16>
    %cst_39 = arith.constant 0.000000e+00 : bf16
    %76 = vector.broadcast %cst_39 : bf16 to vector<48x128xbf16>
    %77 = vector.shape_cast %55 : vector<1x128xi1> to vector<1x128xi1>
    %78 = vector.broadcast %77 : vector<1x128xi1> to vector<48x128xi1>
    %79 = arith.select %78, %76, %75 : vector<48x128xi1>, vector<48x128xbf16>
    %c0_40 = arith.constant 0 : index
    %c143 = arith.constant 143 : index
    %80 = vector.load %arg9[%c0_40, %c143] : memref<48x512xbf16, #tpu.memory_space<vmem>>, vector<48x128xbf16>
    %cst_41 = arith.constant 0.000000e+00 : bf16
    %81 = vector.broadcast %cst_41 : bf16 to vector<48x128xbf16>
    %82 = vector.shape_cast %53 : vector<1x128xi1> to vector<1x128xi1>
    %83 = vector.broadcast %82 : vector<1x128xi1> to vector<48x128xi1>
    %84 = arith.select %83, %81, %80 : vector<48x128xi1>, vector<48x128xbf16>
    %c0_42 = arith.constant 0 : index
    %c144 = arith.constant 144 : index
    %85 = vector.load %arg9[%c0_42, %c144] : memref<48x512xbf16, #tpu.memory_space<vmem>>, vector<48x128xbf16>
    %c0_43 = arith.constant 0 : index
    %c145 = arith.constant 145 : index
    %86 = vector.load %arg9[%c0_43, %c145] : memref<48x512xbf16, #tpu.memory_space<vmem>>, vector<48x128xbf16>
    %cst_44 = arith.constant 0.000000e+00 : bf16
    %87 = vector.broadcast %cst_44 : bf16 to vector<48x128xbf16>
    %88 = vector.shape_cast %55 : vector<1x128xi1> to vector<1x128xi1>
    %89 = vector.broadcast %88 : vector<1x128xi1> to vector<48x128xi1>
    %90 = arith.select %89, %87, %86 : vector<48x128xi1>, vector<48x128xbf16>
    %91 = tpu.concatenate %62, %63, %68, %73, %74, %79, %84, %85, %90 in 0 : vector<48x128xbf16>, vector<48x128xbf16>, vector<48x128xbf16>, vector<48x128xbf16>, vector<48x128xbf16>, vector<48x128xbf16>, vector<48x128xbf16>, vector<48x128xbf16>, vector<48x128xbf16> -> vector<432x128xbf16>
    %cst_45 = arith.constant dense<0.000000e+00> : vector<48x128xf32>
    %92 = tpu.matmul %56, %91, %cst_45 {dimension_numbers = #tpu.dot_dimension_numbers<[1], [0], [0], [1], [0, 0, 1, 1], [], []>} : vector<48x432xbf16>, vector<432x128xbf16>, vector<48x128xf32> -> vector<48x128xf32>
    %93 = vector.broadcast %57 : vector<48x1xf32> to vector<48x128xf32>
    %94 = arith.addf %92, %93 : vector<48x128xf32>
    %c0_46 = arith.constant 0 : index
    %c0_47 = arith.constant 0 : index
    %c0_48 = arith.constant 0 : index
    %95 = vector.load %arg8[%c0_46, %c0_47, %c0_48] : memref<1x48x256xf32, #tpu.memory_space<vmem>>, vector<1x48x128xf32>
    %96 = vector.shape_cast %95 : vector<1x48x128xf32> to vector<48x128xf32>
    %97 = vector.shape_cast %94 : vector<48x128xf32> to vector<1x48x128xf32>
    tpu.vector_store %arg8[%c0_46, %c0_47, %c0_48], %97 {strides = array<i32>} : memref<1x48x256xf32, #tpu.memory_space<vmem>>, vector<1x48x128xf32>,
    %c0_49 = arith.constant 0 : index
    %c239 = arith.constant 239 : index
    %98 = vector.load %arg9[%c0_49, %c239] : memref<48x512xbf16, #tpu.memory_space<vmem>>, vector<48x128xbf16>
    %cst_50 = arith.constant 0.000000e+00 : bf16
    %99 = vector.broadcast %cst_50 : bf16 to vector<48x128xbf16>
    %100 = vector.shape_cast %53 : vector<1x128xi1> to vector<1x128xi1>
    %101 = vector.broadcast %100 : vector<1x128xi1> to vector<48x128xi1>
    %102 = arith.select %101, %99, %98 : vector<48x128xi1>, vector<48x128xbf16>
    %c0_51 = arith.constant 0 : index
    %c240 = arith.constant 240 : index
    %103 = vector.load %arg9[%c0_51, %c240] : memref<48x512xbf16, #tpu.memory_space<vmem>>, vector<48x128xbf16>
    %c0_52 = arith.constant 0 : index
    %c241 = arith.constant 241 : index
    %104 = vector.load %arg9[%c0_52, %c241] : memref<48x512xbf16, #tpu.memory_space<vmem>>, vector<48x128xbf16>
    %cst_53 = arith.constant 0.000000e+00 : bf16
    %105 = vector.broadcast %cst_53 : bf16 to vector<48x128xbf16>
    %106 = vector.shape_cast %55 : vector<1x128xi1> to vector<1x128xi1>
    %107 = vector.broadcast %106 : vector<1x128xi1> to vector<48x128xi1>
    %108 = arith.select %107, %105, %104 : vector<48x128xi1>, vector<48x128xbf16>
    %c0_54 = arith.constant 0 : index
    %c255 = arith.constant 255 : index
    %109 = vector.load %arg9[%c0_54, %c255] : memref<48x512xbf16, #tpu.memory_space<vmem>>, vector<48x128xbf16>
    %cst_55 = arith.constant 0.000000e+00 : bf16
    %110 = vector.broadcast %cst_55 : bf16 to vector<48x128xbf16>
    %111 = vector.shape_cast %53 : vector<1x128xi1> to vector<1x128xi1>
    %112 = vector.broadcast %111 : vector<1x128xi1> to vector<48x128xi1>
    %113 = arith.select %112, %110, %109 : vector<48x128xi1>, vector<48x128xbf16>
    %c0_56 = arith.constant 0 : index
    %c256 = arith.constant 256 : index
    %114 = vector.load %arg9[%c0_56, %c256] : memref<48x512xbf16, #tpu.memory_space<vmem>>, vector<48x128xbf16>
    %c0_57 = arith.constant 0 : index
    %c257 = arith.constant 257 : index
    %115 = vector.load %arg9[%c0_57, %c257] : memref<48x512xbf16, #tpu.memory_space<vmem>>, vector<48x128xbf16>
    %cst_58 = arith.constant 0.000000e+00 : bf16
    %116 = vector.broadcast %cst_58 : bf16 to vector<48x128xbf16>
    %117 = vector.shape_cast %55 : vector<1x128xi1> to vector<1x128xi1>
    %118 = vector.broadcast %117 : vector<1x128xi1> to vector<48x128xi1>
    %119 = arith.select %118, %116, %115 : vector<48x128xi1>, vector<48x128xbf16>
    %c0_59 = arith.constant 0 : index
    %c271 = arith.constant 271 : index
    %120 = vector.load %arg9[%c0_59, %c271] : memref<48x512xbf16, #tpu.memory_space<vmem>>, vector<48x128xbf16>
    %cst_60 = arith.constant 0.000000e+00 : bf16
    %121 = vector.broadcast %cst_60 : bf16 to vector<48x128xbf16>
    %122 = vector.shape_cast %53 : vector<1x128xi1> to vector<1x128xi1>
    %123 = vector.broadcast %122 : vector<1x128xi1> to vector<48x128xi1>
    %124 = arith.select %123, %121, %120 : vector<48x128xi1>, vector<48x128xbf16>
    %c0_61 = arith.constant 0 : index
    %c272 = arith.constant 272 : index
    %125 = vector.load %arg9[%c0_61, %c272] : memref<48x512xbf16, #tpu.memory_space<vmem>>, vector<48x128xbf16>
    %c0_62 = arith.constant 0 : index
    %c273 = arith.constant 273 : index
    %126 = vector.load %arg9[%c0_62, %c273] : memref<48x512xbf16, #tpu.memory_space<vmem>>, vector<48x128xbf16>
    %cst_63 = arith.constant 0.000000e+00 : bf16
    %127 = vector.broadcast %cst_63 : bf16 to vector<48x128xbf16>
    %128 = vector.shape_cast %55 : vector<1x128xi1> to vector<1x128xi1>
    %129 = vector.broadcast %128 : vector<1x128xi1> to vector<48x128xi1>
    %130 = arith.select %129, %127, %126 : vector<48x128xi1>, vector<48x128xbf16>
    %131 = tpu.concatenate %102, %103, %108, %113, %114, %119, %124, %125, %130 in 0 : vector<48x128xbf16>, vector<48x128xbf16>, vector<48x128xbf16>, vector<48x128xbf16>, vector<48x128xbf16>, vector<48x128xbf16>, vector<48x128xbf16>, vector<48x128xbf16>, vector<48x128xbf16> -> vector<432x128xbf16>
    %cst_64 = arith.constant dense<0.000000e+00> : vector<48x128xf32>
    %132 = tpu.matmul %56, %131, %cst_64 {dimension_numbers = #tpu.dot_dimension_numbers<[1], [0], [0], [1], [0, 0, 1, 1], [], []>} : vector<48x432xbf16>, vector<432x128xbf16>, vector<48x128xf32> -> vector<48x128xf32>
    %133 = vector.broadcast %57 : vector<48x1xf32> to vector<48x128xf32>
    %134 = arith.addf %132, %133 : vector<48x128xf32>
    %c0_65 = arith.constant 0 : index
    %c0_66 = arith.constant 0 : index
    %c128_67 = arith.constant 128 : index
    %135 = vector.load %arg8[%c0_65, %c0_66, %c128_67] : memref<1x48x256xf32, #tpu.memory_space<vmem>>, vector<1x48x128xf32>
    %136 = vector.shape_cast %135 : vector<1x48x128xf32> to vector<48x128xf32>
    %137 = vector.shape_cast %134 : vector<48x128xf32> to vector<1x48x128xf32>
    tpu.vector_store %arg8[%c0_65, %c0_66, %c128_67], %137 {strides = array<i32>} : memref<1x48x256xf32, #tpu.memory_space<vmem>>, vector<1x48x128xf32>,
    return
  }
  func.func @transform_0(%arg0: i32) -> (i32, i32, i32) {
    %c0_i32 = arith.constant 0 : i32
    %c0_i32_0 = arith.constant 0 : i32
    %c0_i32_1 = arith.constant 0 : i32
    return %arg0, %c0_i32, %c0_i32_0 : i32, i32, i32
  }
  func.func @transform_1(%arg0: i32) -> (i32, i32) {
    %c0_i32 = arith.constant 0 : i32
    %c0_i32_0 = arith.constant 0 : i32
    %c0_i32_1 = arith.constant 0 : i32
    return %c0_i32, %c0_i32_0 : i32, i32
  }
  func.func @transform_2(%arg0: i32) -> (i32, i32) {
    %c0_i32 = arith.constant 0 : i32
    %c0_i32_0 = arith.constant 0 : i32
    %c0_i32_1 = arith.constant 0 : i32
    return %c0_i32, %c0_i32_0 : i32, i32
  }
  func.func @transform_3(%arg0: i32) -> (i32, i32) {
    %c0_i32 = arith.constant 0 : i32
    %c0_i32_0 = arith.constant 0 : i32
    %c0_i32_1 = arith.constant 0 : i32
    return %c0_i32, %c0_i32_0 : i32, i32
  }
  func.func @transform_4(%arg0: i32) -> (i32, i32) {
    %c0_i32 = arith.constant 0 : i32
    %c0_i32_0 = arith.constant 0 : i32
    %c0_i32_1 = arith.constant 0 : i32
    return %c0_i32, %c0_i32_0 : i32, i32
  }
  func.func @transform_5(%arg0: i32) -> (i32, i32) {
    %c0_i32 = arith.constant 0 : i32
    %c0_i32_0 = arith.constant 0 : i32
    %c0_i32_1 = arith.constant 0 : i32
    return %c0_i32, %c0_i32_0 : i32, i32
  }
  func.func @transform_6(%arg0: i32) -> (i32, i32) {
    %c0_i32 = arith.constant 0 : i32
    %c0_i32_0 = arith.constant 0 : i32
    %c0_i32_1 = arith.constant 0 : i32
    return %c0_i32, %c0_i32_0 : i32, i32
  }
  func.func @transform_7(%arg0: i32) -> (i32, i32, i32) {
    %c0_i32 = arith.constant 0 : i32
    %c0_i32_0 = arith.constant 0 : i32
    %c0_i32_1 = arith.constant 0 : i32
    return %arg0, %c0_i32, %c0_i32_0 : i32, i32, i32
  }
}

module attributes {stable_mosaic.version = 11 : i64} {
  func.func @_m_block_kernel(%arg0: i32, %arg1: memref<1x64x64xf32, #tpu.memory_space<vmem>>, %arg2: memref<64x4xf32, #tpu.memory_space<vmem>>, %arg3: memref<1x4xf32, #tpu.memory_space<vmem>>, %arg4: memref<64x4xf32, #tpu.memory_space<vmem>>, %arg5: memref<64x1xf32, #tpu.memory_space<vmem>>, %arg6: memref<64x576xbf16, #tpu.memory_space<vmem>>, %arg7: memref<64x1xf32, #tpu.memory_space<vmem>>, %arg8: memref<1x64x64xf32, #tpu.memory_space<vmem>>, %arg9: memref<64x320xbf16, #tpu.memory_space<vmem>>) attributes {dimension_semantics = [#tpu.dimension_semantics<parallel>], iteration_bounds = array<i64: 2>, scalar_prefetch = 0 : i64, scratch_operands = 1 : i64, tpu.core_type = #tpu.core_type<tc>, window_params = [{transform_indices = @transform_0, window_bounds = array<i64: 1, 64, 64>}, {pipeline_mode = #tpu.pipeline_mode<synchronous>, transform_indices = @transform_1, window_bounds = array<i64: 64, 4>}, {pipeline_mode = #tpu.pipeline_mode<synchronous>, transform_indices = @transform_2, window_bounds = array<i64: 1, 4>}, {pipeline_mode = #tpu.pipeline_mode<synchronous>, transform_indices = @transform_3, window_bounds = array<i64: 64, 4>}, {pipeline_mode = #tpu.pipeline_mode<synchronous>, transform_indices = @transform_4, window_bounds = array<i64: 64, 1>}, {pipeline_mode = #tpu.pipeline_mode<synchronous>, transform_indices = @transform_5, window_bounds = array<i64: 64, 576>}, {pipeline_mode = #tpu.pipeline_mode<synchronous>, transform_indices = @transform_6, window_bounds = array<i64: 64, 1>}, {transform_indices = @transform_7, window_bounds = array<i64: 1, 64, 64>}]} {
    %c0 = arith.constant 0 : index
    %c0_0 = arith.constant 0 : index
    %c0_1 = arith.constant 0 : index
    %0 = vector.load %arg1[%c0, %c0_0, %c0_1] : memref<1x64x64xf32, #tpu.memory_space<vmem>>, vector<1x64x64xf32>
    %1 = vector.shape_cast %0 : vector<1x64x64xf32> to vector<64x64xf32>
    %cst = arith.constant dense<0.000000e+00> : vector<64xf32>
    %2 = vector.multi_reduction <add>, %1, %cst [1] : vector<64x64xf32> to vector<64xf32>
    %3 = vector.shape_cast %2 : vector<64xf32> to vector<64x1xf32>
    %cst_2 = arith.constant 6.400000e+01 : f32
    %4 = vector.broadcast %cst_2 : f32 to vector<64x1xf32>
    %5 = arith.divf %3, %4 : vector<64x1xf32>
    %c0_3 = arith.constant 0 : index
    %c0_4 = arith.constant 0 : index
    %6 = vector.load %arg2[%c0_3, %c0_4] : memref<64x4xf32, #tpu.memory_space<vmem>>, vector<64x4xf32>
    %7 = vector.broadcast %5 : vector<64x1xf32> to vector<64x4xf32>
    %8 = arith.mulf %6, %7 : vector<64x4xf32>
    %cst_5 = arith.constant dense<0.000000e+00> : vector<4xf32>
    %9 = vector.multi_reduction <add>, %8, %cst_5 [0] : vector<64x4xf32> to vector<4xf32>
    %10 = vector.shape_cast %9 : vector<4xf32> to vector<1x4xf32>
    %c0_6 = arith.constant 0 : index
    %c0_7 = arith.constant 0 : index
    %11 = vector.load %arg3[%c0_6, %c0_7] : memref<1x4xf32, #tpu.memory_space<vmem>>, vector<1x4xf32>
    %12 = arith.addf %10, %11 : vector<1x4xf32>
    %cst_8 = arith.constant 0.000000e+00 : f32
    %13 = vector.broadcast %cst_8 : f32 to vector<1x4xf32>
    %14 = arith.maximumf %12, %13 : vector<1x4xf32>
    %c0_9 = arith.constant 0 : index
    %c0_10 = arith.constant 0 : index
    %15 = vector.load %arg4[%c0_9, %c0_10] : memref<64x4xf32, #tpu.memory_space<vmem>>, vector<64x4xf32>
    %16 = vector.broadcast %14 : vector<1x4xf32> to vector<64x4xf32>
    %17 = arith.mulf %15, %16 : vector<64x4xf32>
    %cst_11 = arith.constant dense<0.000000e+00> : vector<64xf32>
    %18 = vector.multi_reduction <add>, %17, %cst_11 [1] : vector<64x4xf32> to vector<64xf32>
    %19 = vector.shape_cast %18 : vector<64xf32> to vector<64x1xf32>
    %c0_12 = arith.constant 0 : index
    %c0_13 = arith.constant 0 : index
    %20 = vector.load %arg5[%c0_12, %c0_13] : memref<64x1xf32, #tpu.memory_space<vmem>>, vector<64x1xf32>
    %21 = arith.addf %19, %20 : vector<64x1xf32>
    %22 = arith.negf %21 : vector<64x1xf32>
    %23 = math.exp %22 : vector<64x1xf32>
    %cst_14 = arith.constant 1.000000e+00 : f32
    %24 = vector.broadcast %cst_14 : f32 to vector<64x1xf32>
    %25 = arith.addf %24, %23 : vector<64x1xf32>
    %26 = arith.divf %24, %25 : vector<64x1xf32>
    %27 = vector.broadcast %26 : vector<64x1xf32> to vector<64x64xf32>
    %28 = arith.mulf %1, %27 : vector<64x64xf32>
    %29 = arith.truncf %28 : vector<64x64xf32> to vector<64x64xbf16>
    %cst_15 = arith.constant 0.000000e+00 : bf16
    %30 = vector.broadcast %cst_15 : bf16 to vector<64x128xbf16>
    %c0_16 = arith.constant 0 : index
    %c0_17 = arith.constant 0 : index
    %31 = vector.load %arg9[%c0_16, %c0_17] : memref<64x320xbf16, #tpu.memory_space<vmem>>, vector<64x128xbf16>
    tpu.vector_store %arg9[%c0_16, %c0_17], %30 {strides = array<i32>} : memref<64x320xbf16, #tpu.memory_space<vmem>>, vector<64x128xbf16>,
    %cst_18 = arith.constant 0.000000e+00 : bf16
    %32 = vector.broadcast %cst_18 : bf16 to vector<64x128xbf16>
    %c0_19 = arith.constant 0 : index
    %c192 = arith.constant 192 : index
    %33 = vector.load %arg9[%c0_19, %c192] : memref<64x320xbf16, #tpu.memory_space<vmem>>, vector<64x128xbf16>
    tpu.vector_store %arg9[%c0_19, %c192], %32 {strides = array<i32>} : memref<64x320xbf16, #tpu.memory_space<vmem>>, vector<64x128xbf16>,
    %c0_20 = arith.constant 0 : index
    %c128 = arith.constant 128 : index
    %34 = vector.load %arg9[%c0_20, %c128] : memref<64x320xbf16, #tpu.memory_space<vmem>>, vector<64x64xbf16>
    tpu.vector_store %arg9[%c0_20, %c128], %29 {strides = array<i32>} : memref<64x320xbf16, #tpu.memory_space<vmem>>, vector<64x64xbf16>,
    %35 = tpu.iota {dimensions = array<i32: 1>} : vector<1x64xi32>
    %c8_i32 = arith.constant 8 : i32
    %c0_i32 = arith.constant 0 : i32
    %36 = arith.cmpi eq, %c8_i32, %c0_i32 : i32
    %c1_i32 = arith.constant 1 : i32
    %37 = arith.select %36, %c1_i32, %c8_i32 : i32
    %38 = vector.broadcast %37 : i32 to vector<1x64xi32>
    %39 = arith.remsi %35, %38 : vector<1x64xi32>
    %c0_i32_21 = arith.constant 0 : i32
    %40 = vector.broadcast %c0_i32_21 : i32 to vector<1x64xi32>
    %41 = arith.cmpi ne, %39, %40 : vector<1x64xi32>
    %c0_i32_22 = arith.constant 0 : i32
    %42 = vector.broadcast %c0_i32_22 : i32 to vector<1x64xi32>
    %43 = arith.cmpi slt, %39, %42 : vector<1x64xi32>
    %c0_i32_23 = arith.constant 0 : i32
    %44 = arith.cmpi slt, %37, %c0_i32_23 : i32
    %45 = vector.broadcast %44 : i1 to vector<1x64xi1>
    %46 = vector.broadcast %45 : vector<1x64xi1> to vector<1x64xi1>
    %47 = arith.xori %43, %46 : vector<1x64xi1>
    %48 = arith.andi %47, %41 : vector<1x64xi1>
    %49 = vector.broadcast %37 : i32 to vector<1x64xi32>
    %50 = arith.addi %39, %49 : vector<1x64xi32>
    %51 = arith.select %48, %50, %39 : vector<1x64xi1>, vector<1x64xi32>
    %c0_i32_24 = arith.constant 0 : i32
    %52 = vector.broadcast %c0_i32_24 : i32 to vector<1x64xi32>
    %53 = arith.cmpi eq, %51, %52 : vector<1x64xi32>
    %c7_i32 = arith.constant 7 : i32
    %54 = vector.broadcast %c7_i32 : i32 to vector<1x64xi32>
    %55 = arith.cmpi eq, %51, %54 : vector<1x64xi32>
    %c0_25 = arith.constant 0 : index
    %c0_26 = arith.constant 0 : index
    %56 = vector.load %arg6[%c0_25, %c0_26] : memref<64x576xbf16, #tpu.memory_space<vmem>>, vector<64x576xbf16>
    %c0_27 = arith.constant 0 : index
    %c0_28 = arith.constant 0 : index
    %57 = vector.load %arg7[%c0_27, %c0_28] : memref<64x1xf32, #tpu.memory_space<vmem>>, vector<64x1xf32>
    %c0_29 = arith.constant 0 : index
    %c119 = arith.constant 119 : index
    %58 = vector.load %arg9[%c0_29, %c119] : memref<64x320xbf16, #tpu.memory_space<vmem>>, vector<64x64xbf16>
    %cst_30 = arith.constant 0.000000e+00 : bf16
    %59 = vector.broadcast %cst_30 : bf16 to vector<64x64xbf16>
    %60 = vector.shape_cast %53 : vector<1x64xi1> to vector<1x64xi1>
    %61 = vector.broadcast %60 : vector<1x64xi1> to vector<64x64xi1>
    %62 = arith.select %61, %59, %58 : vector<64x64xi1>, vector<64x64xbf16>
    %c0_31 = arith.constant 0 : index
    %c120 = arith.constant 120 : index
    %63 = vector.load %arg9[%c0_31, %c120] : memref<64x320xbf16, #tpu.memory_space<vmem>>, vector<64x64xbf16>
    %c0_32 = arith.constant 0 : index
    %c121 = arith.constant 121 : index
    %64 = vector.load %arg9[%c0_32, %c121] : memref<64x320xbf16, #tpu.memory_space<vmem>>, vector<64x64xbf16>
    %cst_33 = arith.constant 0.000000e+00 : bf16
    %65 = vector.broadcast %cst_33 : bf16 to vector<64x64xbf16>
    %66 = vector.shape_cast %55 : vector<1x64xi1> to vector<1x64xi1>
    %67 = vector.broadcast %66 : vector<1x64xi1> to vector<64x64xi1>
    %68 = arith.select %67, %65, %64 : vector<64x64xi1>, vector<64x64xbf16>
    %c0_34 = arith.constant 0 : index
    %c127 = arith.constant 127 : index
    %69 = vector.load %arg9[%c0_34, %c127] : memref<64x320xbf16, #tpu.memory_space<vmem>>, vector<64x64xbf16>
    %cst_35 = arith.constant 0.000000e+00 : bf16
    %70 = vector.broadcast %cst_35 : bf16 to vector<64x64xbf16>
    %71 = vector.shape_cast %53 : vector<1x64xi1> to vector<1x64xi1>
    %72 = vector.broadcast %71 : vector<1x64xi1> to vector<64x64xi1>
    %73 = arith.select %72, %70, %69 : vector<64x64xi1>, vector<64x64xbf16>
    %c0_36 = arith.constant 0 : index
    %c128_37 = arith.constant 128 : index
    %74 = vector.load %arg9[%c0_36, %c128_37] : memref<64x320xbf16, #tpu.memory_space<vmem>>, vector<64x64xbf16>
    %c0_38 = arith.constant 0 : index
    %c129 = arith.constant 129 : index
    %75 = vector.load %arg9[%c0_38, %c129] : memref<64x320xbf16, #tpu.memory_space<vmem>>, vector<64x64xbf16>
    %cst_39 = arith.constant 0.000000e+00 : bf16
    %76 = vector.broadcast %cst_39 : bf16 to vector<64x64xbf16>
    %77 = vector.shape_cast %55 : vector<1x64xi1> to vector<1x64xi1>
    %78 = vector.broadcast %77 : vector<1x64xi1> to vector<64x64xi1>
    %79 = arith.select %78, %76, %75 : vector<64x64xi1>, vector<64x64xbf16>
    %c0_40 = arith.constant 0 : index
    %c135 = arith.constant 135 : index
    %80 = vector.load %arg9[%c0_40, %c135] : memref<64x320xbf16, #tpu.memory_space<vmem>>, vector<64x64xbf16>
    %cst_41 = arith.constant 0.000000e+00 : bf16
    %81 = vector.broadcast %cst_41 : bf16 to vector<64x64xbf16>
    %82 = vector.shape_cast %53 : vector<1x64xi1> to vector<1x64xi1>
    %83 = vector.broadcast %82 : vector<1x64xi1> to vector<64x64xi1>
    %84 = arith.select %83, %81, %80 : vector<64x64xi1>, vector<64x64xbf16>
    %c0_42 = arith.constant 0 : index
    %c136 = arith.constant 136 : index
    %85 = vector.load %arg9[%c0_42, %c136] : memref<64x320xbf16, #tpu.memory_space<vmem>>, vector<64x64xbf16>
    %c0_43 = arith.constant 0 : index
    %c137 = arith.constant 137 : index
    %86 = vector.load %arg9[%c0_43, %c137] : memref<64x320xbf16, #tpu.memory_space<vmem>>, vector<64x64xbf16>
    %cst_44 = arith.constant 0.000000e+00 : bf16
    %87 = vector.broadcast %cst_44 : bf16 to vector<64x64xbf16>
    %88 = vector.shape_cast %55 : vector<1x64xi1> to vector<1x64xi1>
    %89 = vector.broadcast %88 : vector<1x64xi1> to vector<64x64xi1>
    %90 = arith.select %89, %87, %86 : vector<64x64xi1>, vector<64x64xbf16>
    %91 = tpu.concatenate %62, %63, %68, %73, %74, %79, %84, %85, %90 in 0 : vector<64x64xbf16>, vector<64x64xbf16>, vector<64x64xbf16>, vector<64x64xbf16>, vector<64x64xbf16>, vector<64x64xbf16>, vector<64x64xbf16>, vector<64x64xbf16>, vector<64x64xbf16> -> vector<576x64xbf16>
    %cst_45 = arith.constant dense<0.000000e+00> : vector<64x64xf32>
    %92 = tpu.matmul %56, %91, %cst_45 {dimension_numbers = #tpu.dot_dimension_numbers<[1], [0], [0], [1], [0, 0, 1, 1], [], []>} : vector<64x576xbf16>, vector<576x64xbf16>, vector<64x64xf32> -> vector<64x64xf32>
    %93 = vector.broadcast %57 : vector<64x1xf32> to vector<64x64xf32>
    %94 = arith.addf %92, %93 : vector<64x64xf32>
    %c0_46 = arith.constant 0 : index
    %c0_47 = arith.constant 0 : index
    %c0_48 = arith.constant 0 : index
    %95 = vector.load %arg8[%c0_46, %c0_47, %c0_48] : memref<1x64x64xf32, #tpu.memory_space<vmem>>, vector<1x64x64xf32>
    %96 = vector.shape_cast %95 : vector<1x64x64xf32> to vector<64x64xf32>
    %97 = vector.shape_cast %94 : vector<64x64xf32> to vector<1x64x64xf32>
    tpu.vector_store %arg8[%c0_46, %c0_47, %c0_48], %97 {strides = array<i32>} : memref<1x64x64xf32, #tpu.memory_space<vmem>>, vector<1x64x64xf32>,
    return
  }
  func.func @transform_0(%arg0: i32) -> (i32, i32, i32) {
    %c0_i32 = arith.constant 0 : i32
    %c0_i32_0 = arith.constant 0 : i32
    %c0_i32_1 = arith.constant 0 : i32
    return %arg0, %c0_i32, %c0_i32_0 : i32, i32, i32
  }
  func.func @transform_1(%arg0: i32) -> (i32, i32) {
    %c0_i32 = arith.constant 0 : i32
    %c0_i32_0 = arith.constant 0 : i32
    %c0_i32_1 = arith.constant 0 : i32
    return %c0_i32, %c0_i32_0 : i32, i32
  }
  func.func @transform_2(%arg0: i32) -> (i32, i32) {
    %c0_i32 = arith.constant 0 : i32
    %c0_i32_0 = arith.constant 0 : i32
    %c0_i32_1 = arith.constant 0 : i32
    return %c0_i32, %c0_i32_0 : i32, i32
  }
  func.func @transform_3(%arg0: i32) -> (i32, i32) {
    %c0_i32 = arith.constant 0 : i32
    %c0_i32_0 = arith.constant 0 : i32
    %c0_i32_1 = arith.constant 0 : i32
    return %c0_i32, %c0_i32_0 : i32, i32
  }
  func.func @transform_4(%arg0: i32) -> (i32, i32) {
    %c0_i32 = arith.constant 0 : i32
    %c0_i32_0 = arith.constant 0 : i32
    %c0_i32_1 = arith.constant 0 : i32
    return %c0_i32, %c0_i32_0 : i32, i32
  }
  func.func @transform_5(%arg0: i32) -> (i32, i32) {
    %c0_i32 = arith.constant 0 : i32
    %c0_i32_0 = arith.constant 0 : i32
    %c0_i32_1 = arith.constant 0 : i32
    return %c0_i32, %c0_i32_0 : i32, i32
  }
  func.func @transform_6(%arg0: i32) -> (i32, i32) {
    %c0_i32 = arith.constant 0 : i32
    %c0_i32_0 = arith.constant 0 : i32
    %c0_i32_1 = arith.constant 0 : i32
    return %c0_i32, %c0_i32_0 : i32, i32
  }
  func.func @transform_7(%arg0: i32) -> (i32, i32, i32) {
    %c0_i32 = arith.constant 0 : i32
    %c0_i32_0 = arith.constant 0 : i32
    %c0_i32_1 = arith.constant 0 : i32
    return %arg0, %c0_i32, %c0_i32_0 : i32, i32, i32
  }
}

module attributes {stable_mosaic.version = 11 : i64} {
  func.func @_m_block_kernel(%arg0: i32, %arg1: memref<1x32x1024xf32, #tpu.memory_space<vmem>>, %arg2: memref<32x2xf32, #tpu.memory_space<vmem>>, %arg3: memref<1x2xf32, #tpu.memory_space<vmem>>, %arg4: memref<32x2xf32, #tpu.memory_space<vmem>>, %arg5: memref<32x1xf32, #tpu.memory_space<vmem>>, %arg6: memref<32x288xbf16, #tpu.memory_space<vmem>>, %arg7: memref<32x1xf32, #tpu.memory_space<vmem>>, %arg8: memref<1x32x1024xf32, #tpu.memory_space<vmem>>, %arg9: memref<32x1280xbf16, #tpu.memory_space<vmem>>) attributes {dimension_semantics = [#tpu.dimension_semantics<parallel>], iteration_bounds = array<i64: 2>, scalar_prefetch = 0 : i64, scratch_operands = 1 : i64, tpu.core_type = #tpu.core_type<tc>, window_params = [{transform_indices = @transform_0, window_bounds = array<i64: 1, 32, 1024>}, {pipeline_mode = #tpu.pipeline_mode<synchronous>, transform_indices = @transform_1, window_bounds = array<i64: 32, 2>}, {pipeline_mode = #tpu.pipeline_mode<synchronous>, transform_indices = @transform_2, window_bounds = array<i64: 1, 2>}, {pipeline_mode = #tpu.pipeline_mode<synchronous>, transform_indices = @transform_3, window_bounds = array<i64: 32, 2>}, {pipeline_mode = #tpu.pipeline_mode<synchronous>, transform_indices = @transform_4, window_bounds = array<i64: 32, 1>}, {pipeline_mode = #tpu.pipeline_mode<synchronous>, transform_indices = @transform_5, window_bounds = array<i64: 32, 288>}, {pipeline_mode = #tpu.pipeline_mode<synchronous>, transform_indices = @transform_6, window_bounds = array<i64: 32, 1>}, {transform_indices = @transform_7, window_bounds = array<i64: 1, 32, 1024>}]} {
    %c0 = arith.constant 0 : index
    %c0_0 = arith.constant 0 : index
    %c0_1 = arith.constant 0 : index
    %0 = vector.load %arg1[%c0, %c0_0, %c0_1] : memref<1x32x1024xf32, #tpu.memory_space<vmem>>, vector<1x32x1024xf32>
    %1 = vector.shape_cast %0 : vector<1x32x1024xf32> to vector<32x1024xf32>
    %cst = arith.constant dense<0.000000e+00> : vector<32xf32>
    %2 = vector.multi_reduction <add>, %1, %cst [1] : vector<32x1024xf32> to vector<32xf32>
    %3 = vector.shape_cast %2 : vector<32xf32> to vector<32x1xf32>
    %cst_2 = arith.constant 1.024000e+03 : f32
    %4 = vector.broadcast %cst_2 : f32 to vector<32x1xf32>
    %5 = arith.divf %3, %4 : vector<32x1xf32>
    %c0_3 = arith.constant 0 : index
    %c0_4 = arith.constant 0 : index
    %6 = vector.load %arg2[%c0_3, %c0_4] : memref<32x2xf32, #tpu.memory_space<vmem>>, vector<32x2xf32>
    %7 = vector.broadcast %5 : vector<32x1xf32> to vector<32x2xf32>
    %8 = arith.mulf %6, %7 : vector<32x2xf32>
    %cst_5 = arith.constant dense<0.000000e+00> : vector<2xf32>
    %9 = vector.multi_reduction <add>, %8, %cst_5 [0] : vector<32x2xf32> to vector<2xf32>
    %10 = vector.shape_cast %9 : vector<2xf32> to vector<1x2xf32>
    %c0_6 = arith.constant 0 : index
    %c0_7 = arith.constant 0 : index
    %11 = vector.load %arg3[%c0_6, %c0_7] : memref<1x2xf32, #tpu.memory_space<vmem>>, vector<1x2xf32>
    %12 = arith.addf %10, %11 : vector<1x2xf32>
    %cst_8 = arith.constant 0.000000e+00 : f32
    %13 = vector.broadcast %cst_8 : f32 to vector<1x2xf32>
    %14 = arith.maximumf %12, %13 : vector<1x2xf32>
    %c0_9 = arith.constant 0 : index
    %c0_10 = arith.constant 0 : index
    %15 = vector.load %arg4[%c0_9, %c0_10] : memref<32x2xf32, #tpu.memory_space<vmem>>, vector<32x2xf32>
    %16 = vector.broadcast %14 : vector<1x2xf32> to vector<32x2xf32>
    %17 = arith.mulf %15, %16 : vector<32x2xf32>
    %cst_11 = arith.constant dense<0.000000e+00> : vector<32xf32>
    %18 = vector.multi_reduction <add>, %17, %cst_11 [1] : vector<32x2xf32> to vector<32xf32>
    %19 = vector.shape_cast %18 : vector<32xf32> to vector<32x1xf32>
    %c0_12 = arith.constant 0 : index
    %c0_13 = arith.constant 0 : index
    %20 = vector.load %arg5[%c0_12, %c0_13] : memref<32x1xf32, #tpu.memory_space<vmem>>, vector<32x1xf32>
    %21 = arith.addf %19, %20 : vector<32x1xf32>
    %22 = arith.negf %21 : vector<32x1xf32>
    %23 = math.exp %22 : vector<32x1xf32>
    %cst_14 = arith.constant 1.000000e+00 : f32
    %24 = vector.broadcast %cst_14 : f32 to vector<32x1xf32>
    %25 = arith.addf %24, %23 : vector<32x1xf32>
    %26 = arith.divf %24, %25 : vector<32x1xf32>
    %27 = vector.broadcast %26 : vector<32x1xf32> to vector<32x1024xf32>
    %28 = arith.mulf %1, %27 : vector<32x1024xf32>
    %29 = arith.truncf %28 : vector<32x1024xf32> to vector<32x1024xbf16>
    %cst_15 = arith.constant 0.000000e+00 : bf16
    %30 = vector.broadcast %cst_15 : bf16 to vector<32x128xbf16>
    %c0_16 = arith.constant 0 : index
    %c0_17 = arith.constant 0 : index
    %31 = vector.load %arg9[%c0_16, %c0_17] : memref<32x1280xbf16, #tpu.memory_space<vmem>>, vector<32x128xbf16>
    tpu.vector_store %arg9[%c0_16, %c0_17], %30 {strides = array<i32>} : memref<32x1280xbf16, #tpu.memory_space<vmem>>, vector<32x128xbf16>,
    %cst_18 = arith.constant 0.000000e+00 : bf16
    %32 = vector.broadcast %cst_18 : bf16 to vector<32x128xbf16>
    %c0_19 = arith.constant 0 : index
    %c1152 = arith.constant 1152 : index
    %33 = vector.load %arg9[%c0_19, %c1152] : memref<32x1280xbf16, #tpu.memory_space<vmem>>, vector<32x128xbf16>
    tpu.vector_store %arg9[%c0_19, %c1152], %32 {strides = array<i32>} : memref<32x1280xbf16, #tpu.memory_space<vmem>>, vector<32x128xbf16>,
    %c0_20 = arith.constant 0 : index
    %c128 = arith.constant 128 : index
    %34 = vector.load %arg9[%c0_20, %c128] : memref<32x1280xbf16, #tpu.memory_space<vmem>>, vector<32x1024xbf16>
    tpu.vector_store %arg9[%c0_20, %c128], %29 {strides = array<i32>} : memref<32x1280xbf16, #tpu.memory_space<vmem>>, vector<32x1024xbf16>,
    %35 = tpu.iota {dimensions = array<i32: 1>} : vector<1x128xi32>
    %c32_i32 = arith.constant 32 : i32
    %c0_i32 = arith.constant 0 : i32
    %36 = arith.cmpi eq, %c32_i32, %c0_i32 : i32
    %c1_i32 = arith.constant 1 : i32
    %37 = arith.select %36, %c1_i32, %c32_i32 : i32
    %38 = vector.broadcast %37 : i32 to vector<1x128xi32>
    %39 = arith.remsi %35, %38 : vector<1x128xi32>
    %c0_i32_21 = arith.constant 0 : i32
    %40 = vector.broadcast %c0_i32_21 : i32 to vector<1x128xi32>
    %41 = arith.cmpi ne, %39, %40 : vector<1x128xi32>
    %c0_i32_22 = arith.constant 0 : i32
    %42 = vector.broadcast %c0_i32_22 : i32 to vector<1x128xi32>
    %43 = arith.cmpi slt, %39, %42 : vector<1x128xi32>
    %c0_i32_23 = arith.constant 0 : i32
    %44 = arith.cmpi slt, %37, %c0_i32_23 : i32
    %45 = vector.broadcast %44 : i1 to vector<1x128xi1>
    %46 = vector.broadcast %45 : vector<1x128xi1> to vector<1x128xi1>
    %47 = arith.xori %43, %46 : vector<1x128xi1>
    %48 = arith.andi %47, %41 : vector<1x128xi1>
    %49 = vector.broadcast %37 : i32 to vector<1x128xi32>
    %50 = arith.addi %39, %49 : vector<1x128xi32>
    %51 = arith.select %48, %50, %39 : vector<1x128xi1>, vector<1x128xi32>
    %c0_i32_24 = arith.constant 0 : i32
    %52 = vector.broadcast %c0_i32_24 : i32 to vector<1x128xi32>
    %53 = arith.cmpi eq, %51, %52 : vector<1x128xi32>
    %c31_i32 = arith.constant 31 : i32
    %54 = vector.broadcast %c31_i32 : i32 to vector<1x128xi32>
    %55 = arith.cmpi eq, %51, %54 : vector<1x128xi32>
    %c0_25 = arith.constant 0 : index
    %c0_26 = arith.constant 0 : index
    %56 = vector.load %arg6[%c0_25, %c0_26] : memref<32x288xbf16, #tpu.memory_space<vmem>>, vector<32x288xbf16>
    %c0_27 = arith.constant 0 : index
    %c0_28 = arith.constant 0 : index
    %57 = vector.load %arg7[%c0_27, %c0_28] : memref<32x1xf32, #tpu.memory_space<vmem>>, vector<32x1xf32>
    %c0_29 = arith.constant 0 : index
    %c95 = arith.constant 95 : index
    %58 = vector.load %arg9[%c0_29, %c95] : memref<32x1280xbf16, #tpu.memory_space<vmem>>, vector<32x128xbf16>
    %cst_30 = arith.constant 0.000000e+00 : bf16
    %59 = vector.broadcast %cst_30 : bf16 to vector<32x128xbf16>
    %60 = vector.shape_cast %53 : vector<1x128xi1> to vector<1x128xi1>
    %61 = vector.broadcast %60 : vector<1x128xi1> to vector<32x128xi1>
    %62 = arith.select %61, %59, %58 : vector<32x128xi1>, vector<32x128xbf16>
    %c0_31 = arith.constant 0 : index
    %c96 = arith.constant 96 : index
    %63 = vector.load %arg9[%c0_31, %c96] : memref<32x1280xbf16, #tpu.memory_space<vmem>>, vector<32x128xbf16>
    %c0_32 = arith.constant 0 : index
    %c97 = arith.constant 97 : index
    %64 = vector.load %arg9[%c0_32, %c97] : memref<32x1280xbf16, #tpu.memory_space<vmem>>, vector<32x128xbf16>
    %cst_33 = arith.constant 0.000000e+00 : bf16
    %65 = vector.broadcast %cst_33 : bf16 to vector<32x128xbf16>
    %66 = vector.shape_cast %55 : vector<1x128xi1> to vector<1x128xi1>
    %67 = vector.broadcast %66 : vector<1x128xi1> to vector<32x128xi1>
    %68 = arith.select %67, %65, %64 : vector<32x128xi1>, vector<32x128xbf16>
    %c0_34 = arith.constant 0 : index
    %c127 = arith.constant 127 : index
    %69 = vector.load %arg9[%c0_34, %c127] : memref<32x1280xbf16, #tpu.memory_space<vmem>>, vector<32x128xbf16>
    %cst_35 = arith.constant 0.000000e+00 : bf16
    %70 = vector.broadcast %cst_35 : bf16 to vector<32x128xbf16>
    %71 = vector.shape_cast %53 : vector<1x128xi1> to vector<1x128xi1>
    %72 = vector.broadcast %71 : vector<1x128xi1> to vector<32x128xi1>
    %73 = arith.select %72, %70, %69 : vector<32x128xi1>, vector<32x128xbf16>
    %c0_36 = arith.constant 0 : index
    %c128_37 = arith.constant 128 : index
    %74 = vector.load %arg9[%c0_36, %c128_37] : memref<32x1280xbf16, #tpu.memory_space<vmem>>, vector<32x128xbf16>
    %c0_38 = arith.constant 0 : index
    %c129 = arith.constant 129 : index
    %75 = vector.load %arg9[%c0_38, %c129] : memref<32x1280xbf16, #tpu.memory_space<vmem>>, vector<32x128xbf16>
    %cst_39 = arith.constant 0.000000e+00 : bf16
    %76 = vector.broadcast %cst_39 : bf16 to vector<32x128xbf16>
    %77 = vector.shape_cast %55 : vector<1x128xi1> to vector<1x128xi1>
    %78 = vector.broadcast %77 : vector<1x128xi1> to vector<32x128xi1>
    %79 = arith.select %78, %76, %75 : vector<32x128xi1>, vector<32x128xbf16>
    %c0_40 = arith.constant 0 : index
    %c159 = arith.constant 159 : index
    %80 = vector.load %arg9[%c0_40, %c159] : memref<32x1280xbf16, #tpu.memory_space<vmem>>, vector<32x128xbf16>
    %cst_41 = arith.constant 0.000000e+00 : bf16
    %81 = vector.broadcast %cst_41 : bf16 to vector<32x128xbf16>
    %82 = vector.shape_cast %53 : vector<1x128xi1> to vector<1x128xi1>
    %83 = vector.broadcast %82 : vector<1x128xi1> to vector<32x128xi1>
    %84 = arith.select %83, %81, %80 : vector<32x128xi1>, vector<32x128xbf16>
    %c0_42 = arith.constant 0 : index
    %c160 = arith.constant 160 : index
    %85 = vector.load %arg9[%c0_42, %c160] : memref<32x1280xbf16, #tpu.memory_space<vmem>>, vector<32x128xbf16>
    %c0_43 = arith.constant 0 : index
    %c161 = arith.constant 161 : index
    %86 = vector.load %arg9[%c0_43, %c161] : memref<32x1280xbf16, #tpu.memory_space<vmem>>, vector<32x128xbf16>
    %cst_44 = arith.constant 0.000000e+00 : bf16
    %87 = vector.broadcast %cst_44 : bf16 to vector<32x128xbf16>
    %88 = vector.shape_cast %55 : vector<1x128xi1> to vector<1x128xi1>
    %89 = vector.broadcast %88 : vector<1x128xi1> to vector<32x128xi1>
    %90 = arith.select %89, %87, %86 : vector<32x128xi1>, vector<32x128xbf16>
    %91 = tpu.concatenate %62, %63, %68, %73, %74, %79, %84, %85, %90 in 0 : vector<32x128xbf16>, vector<32x128xbf16>, vector<32x128xbf16>, vector<32x128xbf16>, vector<32x128xbf16>, vector<32x128xbf16>, vector<32x128xbf16>, vector<32x128xbf16>, vector<32x128xbf16> -> vector<288x128xbf16>
    %cst_45 = arith.constant dense<0.000000e+00> : vector<32x128xf32>
    %92 = tpu.matmul %56, %91, %cst_45 {dimension_numbers = #tpu.dot_dimension_numbers<[1], [0], [0], [1], [0, 0, 1, 1], [], []>} : vector<32x288xbf16>, vector<288x128xbf16>, vector<32x128xf32> -> vector<32x128xf32>
    %93 = vector.broadcast %57 : vector<32x1xf32> to vector<32x128xf32>
    %94 = arith.addf %92, %93 : vector<32x128xf32>
    %c0_46 = arith.constant 0 : index
    %c0_47 = arith.constant 0 : index
    %c0_48 = arith.constant 0 : index
    %95 = vector.load %arg8[%c0_46, %c0_47, %c0_48] : memref<1x32x1024xf32, #tpu.memory_space<vmem>>, vector<1x32x128xf32>
    %96 = vector.shape_cast %95 : vector<1x32x128xf32> to vector<32x128xf32>
    %97 = vector.shape_cast %94 : vector<32x128xf32> to vector<1x32x128xf32>
    tpu.vector_store %arg8[%c0_46, %c0_47, %c0_48], %97 {strides = array<i32>} : memref<1x32x1024xf32, #tpu.memory_space<vmem>>, vector<1x32x128xf32>,
    %c0_49 = arith.constant 0 : index
    %c223 = arith.constant 223 : index
    %98 = vector.load %arg9[%c0_49, %c223] : memref<32x1280xbf16, #tpu.memory_space<vmem>>, vector<32x128xbf16>
    %cst_50 = arith.constant 0.000000e+00 : bf16
    %99 = vector.broadcast %cst_50 : bf16 to vector<32x128xbf16>
    %100 = vector.shape_cast %53 : vector<1x128xi1> to vector<1x128xi1>
    %101 = vector.broadcast %100 : vector<1x128xi1> to vector<32x128xi1>
    %102 = arith.select %101, %99, %98 : vector<32x128xi1>, vector<32x128xbf16>
    %c0_51 = arith.constant 0 : index
    %c224 = arith.constant 224 : index
    %103 = vector.load %arg9[%c0_51, %c224] : memref<32x1280xbf16, #tpu.memory_space<vmem>>, vector<32x128xbf16>
    %c0_52 = arith.constant 0 : index
    %c225 = arith.constant 225 : index
    %104 = vector.load %arg9[%c0_52, %c225] : memref<32x1280xbf16, #tpu.memory_space<vmem>>, vector<32x128xbf16>
    %cst_53 = arith.constant 0.000000e+00 : bf16
    %105 = vector.broadcast %cst_53 : bf16 to vector<32x128xbf16>
    %106 = vector.shape_cast %55 : vector<1x128xi1> to vector<1x128xi1>
    %107 = vector.broadcast %106 : vector<1x128xi1> to vector<32x128xi1>
    %108 = arith.select %107, %105, %104 : vector<32x128xi1>, vector<32x128xbf16>
    %c0_54 = arith.constant 0 : index
    %c255 = arith.constant 255 : index
    %109 = vector.load %arg9[%c0_54, %c255] : memref<32x1280xbf16, #tpu.memory_space<vmem>>, vector<32x128xbf16>
    %cst_55 = arith.constant 0.000000e+00 : bf16
    %110 = vector.broadcast %cst_55 : bf16 to vector<32x128xbf16>
    %111 = vector.shape_cast %53 : vector<1x128xi1> to vector<1x128xi1>
    %112 = vector.broadcast %111 : vector<1x128xi1> to vector<32x128xi1>
    %113 = arith.select %112, %110, %109 : vector<32x128xi1>, vector<32x128xbf16>
    %c0_56 = arith.constant 0 : index
    %c256 = arith.constant 256 : index
    %114 = vector.load %arg9[%c0_56, %c256] : memref<32x1280xbf16, #tpu.memory_space<vmem>>, vector<32x128xbf16>
    %c0_57 = arith.constant 0 : index
    %c257 = arith.constant 257 : index
    %115 = vector.load %arg9[%c0_57, %c257] : memref<32x1280xbf16, #tpu.memory_space<vmem>>, vector<32x128xbf16>
    %cst_58 = arith.constant 0.000000e+00 : bf16
    %116 = vector.broadcast %cst_58 : bf16 to vector<32x128xbf16>
    %117 = vector.shape_cast %55 : vector<1x128xi1> to vector<1x128xi1>
    %118 = vector.broadcast %117 : vector<1x128xi1> to vector<32x128xi1>
    %119 = arith.select %118, %116, %115 : vector<32x128xi1>, vector<32x128xbf16>
    %c0_59 = arith.constant 0 : index
    %c287 = arith.constant 287 : index
    %120 = vector.load %arg9[%c0_59, %c287] : memref<32x1280xbf16, #tpu.memory_space<vmem>>, vector<32x128xbf16>
    %cst_60 = arith.constant 0.000000e+00 : bf16
    %121 = vector.broadcast %cst_60 : bf16 to vector<32x128xbf16>
    %122 = vector.shape_cast %53 : vector<1x128xi1> to vector<1x128xi1>
    %123 = vector.broadcast %122 : vector<1x128xi1> to vector<32x128xi1>
    %124 = arith.select %123, %121, %120 : vector<32x128xi1>, vector<32x128xbf16>
    %c0_61 = arith.constant 0 : index
    %c288 = arith.constant 288 : index
    %125 = vector.load %arg9[%c0_61, %c288] : memref<32x1280xbf16, #tpu.memory_space<vmem>>, vector<32x128xbf16>
    %c0_62 = arith.constant 0 : index
    %c289 = arith.constant 289 : index
    %126 = vector.load %arg9[%c0_62, %c289] : memref<32x1280xbf16, #tpu.memory_space<vmem>>, vector<32x128xbf16>
    %cst_63 = arith.constant 0.000000e+00 : bf16
    %127 = vector.broadcast %cst_63 : bf16 to vector<32x128xbf16>
    %128 = vector.shape_cast %55 : vector<1x128xi1> to vector<1x128xi1>
    %129 = vector.broadcast %128 : vector<1x128xi1> to vector<32x128xi1>
    %130 = arith.select %129, %127, %126 : vector<32x128xi1>, vector<32x128xbf16>
    %131 = tpu.concatenate %102, %103, %108, %113, %114, %119, %124, %125, %130 in 0 : vector<32x128xbf16>, vector<32x128xbf16>, vector<32x128xbf16>, vector<32x128xbf16>, vector<32x128xbf16>, vector<32x128xbf16>, vector<32x128xbf16>, vector<32x128xbf16>, vector<32x128xbf16> -> vector<288x128xbf16>
    %cst_64 = arith.constant dense<0.000000e+00> : vector<32x128xf32>
    %132 = tpu.matmul %56, %131, %cst_64 {dimension_numbers = #tpu.dot_dimension_numbers<[1], [0], [0], [1], [0, 0, 1, 1], [], []>} : vector<32x288xbf16>, vector<288x128xbf16>, vector<32x128xf32> -> vector<32x128xf32>
    %133 = vector.broadcast %57 : vector<32x1xf32> to vector<32x128xf32>
    %134 = arith.addf %132, %133 : vector<32x128xf32>
    %c0_65 = arith.constant 0 : index
    %c0_66 = arith.constant 0 : index
    %c128_67 = arith.constant 128 : index
    %135 = vector.load %arg8[%c0_65, %c0_66, %c128_67] : memref<1x32x1024xf32, #tpu.memory_space<vmem>>, vector<1x32x128xf32>
    %136 = vector.shape_cast %135 : vector<1x32x128xf32> to vector<32x128xf32>
    %137 = vector.shape_cast %134 : vector<32x128xf32> to vector<1x32x128xf32>
    tpu.vector_store %arg8[%c0_65, %c0_66, %c128_67], %137 {strides = array<i32>} : memref<1x32x1024xf32, #tpu.memory_space<vmem>>, vector<1x32x128xf32>,
    %c0_68 = arith.constant 0 : index
    %c351 = arith.constant 351 : index
    %138 = vector.load %arg9[%c0_68, %c351] : memref<32x1280xbf16, #tpu.memory_space<vmem>>, vector<32x128xbf16>
    %cst_69 = arith.constant 0.000000e+00 : bf16
    %139 = vector.broadcast %cst_69 : bf16 to vector<32x128xbf16>
    %140 = vector.shape_cast %53 : vector<1x128xi1> to vector<1x128xi1>
    %141 = vector.broadcast %140 : vector<1x128xi1> to vector<32x128xi1>
    %142 = arith.select %141, %139, %138 : vector<32x128xi1>, vector<32x128xbf16>
    %c0_70 = arith.constant 0 : index
    %c352 = arith.constant 352 : index
    %143 = vector.load %arg9[%c0_70, %c352] : memref<32x1280xbf16, #tpu.memory_space<vmem>>, vector<32x128xbf16>
    %c0_71 = arith.constant 0 : index
    %c353 = arith.constant 353 : index
    %144 = vector.load %arg9[%c0_71, %c353] : memref<32x1280xbf16, #tpu.memory_space<vmem>>, vector<32x128xbf16>
    %cst_72 = arith.constant 0.000000e+00 : bf16
    %145 = vector.broadcast %cst_72 : bf16 to vector<32x128xbf16>
    %146 = vector.shape_cast %55 : vector<1x128xi1> to vector<1x128xi1>
    %147 = vector.broadcast %146 : vector<1x128xi1> to vector<32x128xi1>
    %148 = arith.select %147, %145, %144 : vector<32x128xi1>, vector<32x128xbf16>
    %c0_73 = arith.constant 0 : index
    %c383 = arith.constant 383 : index
    %149 = vector.load %arg9[%c0_73, %c383] : memref<32x1280xbf16, #tpu.memory_space<vmem>>, vector<32x128xbf16>
    %cst_74 = arith.constant 0.000000e+00 : bf16
    %150 = vector.broadcast %cst_74 : bf16 to vector<32x128xbf16>
    %151 = vector.shape_cast %53 : vector<1x128xi1> to vector<1x128xi1>
    %152 = vector.broadcast %151 : vector<1x128xi1> to vector<32x128xi1>
    %153 = arith.select %152, %150, %149 : vector<32x128xi1>, vector<32x128xbf16>
    %c0_75 = arith.constant 0 : index
    %c384 = arith.constant 384 : index
    %154 = vector.load %arg9[%c0_75, %c384] : memref<32x1280xbf16, #tpu.memory_space<vmem>>, vector<32x128xbf16>
    %c0_76 = arith.constant 0 : index
    %c385 = arith.constant 385 : index
    %155 = vector.load %arg9[%c0_76, %c385] : memref<32x1280xbf16, #tpu.memory_space<vmem>>, vector<32x128xbf16>
    %cst_77 = arith.constant 0.000000e+00 : bf16
    %156 = vector.broadcast %cst_77 : bf16 to vector<32x128xbf16>
    %157 = vector.shape_cast %55 : vector<1x128xi1> to vector<1x128xi1>
    %158 = vector.broadcast %157 : vector<1x128xi1> to vector<32x128xi1>
    %159 = arith.select %158, %156, %155 : vector<32x128xi1>, vector<32x128xbf16>
    %c0_78 = arith.constant 0 : index
    %c415 = arith.constant 415 : index
    %160 = vector.load %arg9[%c0_78, %c415] : memref<32x1280xbf16, #tpu.memory_space<vmem>>, vector<32x128xbf16>
    %cst_79 = arith.constant 0.000000e+00 : bf16
    %161 = vector.broadcast %cst_79 : bf16 to vector<32x128xbf16>
    %162 = vector.shape_cast %53 : vector<1x128xi1> to vector<1x128xi1>
    %163 = vector.broadcast %162 : vector<1x128xi1> to vector<32x128xi1>
    %164 = arith.select %163, %161, %160 : vector<32x128xi1>, vector<32x128xbf16>
    %c0_80 = arith.constant 0 : index
    %c416 = arith.constant 416 : index
    %165 = vector.load %arg9[%c0_80, %c416] : memref<32x1280xbf16, #tpu.memory_space<vmem>>, vector<32x128xbf16>
    %c0_81 = arith.constant 0 : index
    %c417 = arith.constant 417 : index
    %166 = vector.load %arg9[%c0_81, %c417] : memref<32x1280xbf16, #tpu.memory_space<vmem>>, vector<32x128xbf16>
    %cst_82 = arith.constant 0.000000e+00 : bf16
    %167 = vector.broadcast %cst_82 : bf16 to vector<32x128xbf16>
    %168 = vector.shape_cast %55 : vector<1x128xi1> to vector<1x128xi1>
    %169 = vector.broadcast %168 : vector<1x128xi1> to vector<32x128xi1>
    %170 = arith.select %169, %167, %166 : vector<32x128xi1>, vector<32x128xbf16>
    %171 = tpu.concatenate %142, %143, %148, %153, %154, %159, %164, %165, %170 in 0 : vector<32x128xbf16>, vector<32x128xbf16>, vector<32x128xbf16>, vector<32x128xbf16>, vector<32x128xbf16>, vector<32x128xbf16>, vector<32x128xbf16>, vector<32x128xbf16>, vector<32x128xbf16> -> vector<288x128xbf16>
    %cst_83 = arith.constant dense<0.000000e+00> : vector<32x128xf32>
    %172 = tpu.matmul %56, %171, %cst_83 {dimension_numbers = #tpu.dot_dimension_numbers<[1], [0], [0], [1], [0, 0, 1, 1], [], []>} : vector<32x288xbf16>, vector<288x128xbf16>, vector<32x128xf32> -> vector<32x128xf32>
    %173 = vector.broadcast %57 : vector<32x1xf32> to vector<32x128xf32>
    %174 = arith.addf %172, %173 : vector<32x128xf32>
    %c0_84 = arith.constant 0 : index
    %c0_85 = arith.constant 0 : index
    %c256_86 = arith.constant 256 : index
    %175 = vector.load %arg8[%c0_84, %c0_85, %c256_86] : memref<1x32x1024xf32, #tpu.memory_space<vmem>>, vector<1x32x128xf32>
    %176 = vector.shape_cast %175 : vector<1x32x128xf32> to vector<32x128xf32>
    %177 = vector.shape_cast %174 : vector<32x128xf32> to vector<1x32x128xf32>
    tpu.vector_store %arg8[%c0_84, %c0_85, %c256_86], %177 {strides = array<i32>} : memref<1x32x1024xf32, #tpu.memory_space<vmem>>, vector<1x32x128xf32>,
    %c0_87 = arith.constant 0 : index
    %c479 = arith.constant 479 : index
    %178 = vector.load %arg9[%c0_87, %c479] : memref<32x1280xbf16, #tpu.memory_space<vmem>>, vector<32x128xbf16>
    %cst_88 = arith.constant 0.000000e+00 : bf16
    %179 = vector.broadcast %cst_88 : bf16 to vector<32x128xbf16>
    %180 = vector.shape_cast %53 : vector<1x128xi1> to vector<1x128xi1>
    %181 = vector.broadcast %180 : vector<1x128xi1> to vector<32x128xi1>
    %182 = arith.select %181, %179, %178 : vector<32x128xi1>, vector<32x128xbf16>
    %c0_89 = arith.constant 0 : index
    %c480 = arith.constant 480 : index
    %183 = vector.load %arg9[%c0_89, %c480] : memref<32x1280xbf16, #tpu.memory_space<vmem>>, vector<32x128xbf16>
    %c0_90 = arith.constant 0 : index
    %c481 = arith.constant 481 : index
    %184 = vector.load %arg9[%c0_90, %c481] : memref<32x1280xbf16, #tpu.memory_space<vmem>>, vector<32x128xbf16>
    %cst_91 = arith.constant 0.000000e+00 : bf16
    %185 = vector.broadcast %cst_91 : bf16 to vector<32x128xbf16>
    %186 = vector.shape_cast %55 : vector<1x128xi1> to vector<1x128xi1>
    %187 = vector.broadcast %186 : vector<1x128xi1> to vector<32x128xi1>
    %188 = arith.select %187, %185, %184 : vector<32x128xi1>, vector<32x128xbf16>
    %c0_92 = arith.constant 0 : index
    %c511 = arith.constant 511 : index
    %189 = vector.load %arg9[%c0_92, %c511] : memref<32x1280xbf16, #tpu.memory_space<vmem>>, vector<32x128xbf16>
    %cst_93 = arith.constant 0.000000e+00 : bf16
    %190 = vector.broadcast %cst_93 : bf16 to vector<32x128xbf16>
    %191 = vector.shape_cast %53 : vector<1x128xi1> to vector<1x128xi1>
    %192 = vector.broadcast %191 : vector<1x128xi1> to vector<32x128xi1>
    %193 = arith.select %192, %190, %189 : vector<32x128xi1>, vector<32x128xbf16>
    %c0_94 = arith.constant 0 : index
    %c512 = arith.constant 512 : index
    %194 = vector.load %arg9[%c0_94, %c512] : memref<32x1280xbf16, #tpu.memory_space<vmem>>, vector<32x128xbf16>
    %c0_95 = arith.constant 0 : index
    %c513 = arith.constant 513 : index
    %195 = vector.load %arg9[%c0_95, %c513] : memref<32x1280xbf16, #tpu.memory_space<vmem>>, vector<32x128xbf16>
    %cst_96 = arith.constant 0.000000e+00 : bf16
    %196 = vector.broadcast %cst_96 : bf16 to vector<32x128xbf16>
    %197 = vector.shape_cast %55 : vector<1x128xi1> to vector<1x128xi1>
    %198 = vector.broadcast %197 : vector<1x128xi1> to vector<32x128xi1>
    %199 = arith.select %198, %196, %195 : vector<32x128xi1>, vector<32x128xbf16>
    %c0_97 = arith.constant 0 : index
    %c543 = arith.constant 543 : index
    %200 = vector.load %arg9[%c0_97, %c543] : memref<32x1280xbf16, #tpu.memory_space<vmem>>, vector<32x128xbf16>
    %cst_98 = arith.constant 0.000000e+00 : bf16
    %201 = vector.broadcast %cst_98 : bf16 to vector<32x128xbf16>
    %202 = vector.shape_cast %53 : vector<1x128xi1> to vector<1x128xi1>
    %203 = vector.broadcast %202 : vector<1x128xi1> to vector<32x128xi1>
    %204 = arith.select %203, %201, %200 : vector<32x128xi1>, vector<32x128xbf16>
    %c0_99 = arith.constant 0 : index
    %c544 = arith.constant 544 : index
    %205 = vector.load %arg9[%c0_99, %c544] : memref<32x1280xbf16, #tpu.memory_space<vmem>>, vector<32x128xbf16>
    %c0_100 = arith.constant 0 : index
    %c545 = arith.constant 545 : index
    %206 = vector.load %arg9[%c0_100, %c545] : memref<32x1280xbf16, #tpu.memory_space<vmem>>, vector<32x128xbf16>
    %cst_101 = arith.constant 0.000000e+00 : bf16
    %207 = vector.broadcast %cst_101 : bf16 to vector<32x128xbf16>
    %208 = vector.shape_cast %55 : vector<1x128xi1> to vector<1x128xi1>
    %209 = vector.broadcast %208 : vector<1x128xi1> to vector<32x128xi1>
    %210 = arith.select %209, %207, %206 : vector<32x128xi1>, vector<32x128xbf16>
    %211 = tpu.concatenate %182, %183, %188, %193, %194, %199, %204, %205, %210 in 0 : vector<32x128xbf16>, vector<32x128xbf16>, vector<32x128xbf16>, vector<32x128xbf16>, vector<32x128xbf16>, vector<32x128xbf16>, vector<32x128xbf16>, vector<32x128xbf16>, vector<32x128xbf16> -> vector<288x128xbf16>
    %cst_102 = arith.constant dense<0.000000e+00> : vector<32x128xf32>
    %212 = tpu.matmul %56, %211, %cst_102 {dimension_numbers = #tpu.dot_dimension_numbers<[1], [0], [0], [1], [0, 0, 1, 1], [], []>} : vector<32x288xbf16>, vector<288x128xbf16>, vector<32x128xf32> -> vector<32x128xf32>
    %213 = vector.broadcast %57 : vector<32x1xf32> to vector<32x128xf32>
    %214 = arith.addf %212, %213 : vector<32x128xf32>
    %c0_103 = arith.constant 0 : index
    %c0_104 = arith.constant 0 : index
    %c384_105 = arith.constant 384 : index
    %215 = vector.load %arg8[%c0_103, %c0_104, %c384_105] : memref<1x32x1024xf32, #tpu.memory_space<vmem>>, vector<1x32x128xf32>
    %216 = vector.shape_cast %215 : vector<1x32x128xf32> to vector<32x128xf32>
    %217 = vector.shape_cast %214 : vector<32x128xf32> to vector<1x32x128xf32>
    tpu.vector_store %arg8[%c0_103, %c0_104, %c384_105], %217 {strides = array<i32>} : memref<1x32x1024xf32, #tpu.memory_space<vmem>>, vector<1x32x128xf32>,
    %c0_106 = arith.constant 0 : index
    %c607 = arith.constant 607 : index
    %218 = vector.load %arg9[%c0_106, %c607] : memref<32x1280xbf16, #tpu.memory_space<vmem>>, vector<32x128xbf16>
    %cst_107 = arith.constant 0.000000e+00 : bf16
    %219 = vector.broadcast %cst_107 : bf16 to vector<32x128xbf16>
    %220 = vector.shape_cast %53 : vector<1x128xi1> to vector<1x128xi1>
    %221 = vector.broadcast %220 : vector<1x128xi1> to vector<32x128xi1>
    %222 = arith.select %221, %219, %218 : vector<32x128xi1>, vector<32x128xbf16>
    %c0_108 = arith.constant 0 : index
    %c608 = arith.constant 608 : index
    %223 = vector.load %arg9[%c0_108, %c608] : memref<32x1280xbf16, #tpu.memory_space<vmem>>, vector<32x128xbf16>
    %c0_109 = arith.constant 0 : index
    %c609 = arith.constant 609 : index
    %224 = vector.load %arg9[%c0_109, %c609] : memref<32x1280xbf16, #tpu.memory_space<vmem>>, vector<32x128xbf16>
    %cst_110 = arith.constant 0.000000e+00 : bf16
    %225 = vector.broadcast %cst_110 : bf16 to vector<32x128xbf16>
    %226 = vector.shape_cast %55 : vector<1x128xi1> to vector<1x128xi1>
    %227 = vector.broadcast %226 : vector<1x128xi1> to vector<32x128xi1>
    %228 = arith.select %227, %225, %224 : vector<32x128xi1>, vector<32x128xbf16>
    %c0_111 = arith.constant 0 : index
    %c639 = arith.constant 639 : index
    %229 = vector.load %arg9[%c0_111, %c639] : memref<32x1280xbf16, #tpu.memory_space<vmem>>, vector<32x128xbf16>
    %cst_112 = arith.constant 0.000000e+00 : bf16
    %230 = vector.broadcast %cst_112 : bf16 to vector<32x128xbf16>
    %231 = vector.shape_cast %53 : vector<1x128xi1> to vector<1x128xi1>
    %232 = vector.broadcast %231 : vector<1x128xi1> to vector<32x128xi1>
    %233 = arith.select %232, %230, %229 : vector<32x128xi1>, vector<32x128xbf16>
    %c0_113 = arith.constant 0 : index
    %c640 = arith.constant 640 : index
    %234 = vector.load %arg9[%c0_113, %c640] : memref<32x1280xbf16, #tpu.memory_space<vmem>>, vector<32x128xbf16>
    %c0_114 = arith.constant 0 : index
    %c641 = arith.constant 641 : index
    %235 = vector.load %arg9[%c0_114, %c641] : memref<32x1280xbf16, #tpu.memory_space<vmem>>, vector<32x128xbf16>
    %cst_115 = arith.constant 0.000000e+00 : bf16
    %236 = vector.broadcast %cst_115 : bf16 to vector<32x128xbf16>
    %237 = vector.shape_cast %55 : vector<1x128xi1> to vector<1x128xi1>
    %238 = vector.broadcast %237 : vector<1x128xi1> to vector<32x128xi1>
    %239 = arith.select %238, %236, %235 : vector<32x128xi1>, vector<32x128xbf16>
    %c0_116 = arith.constant 0 : index
    %c671 = arith.constant 671 : index
    %240 = vector.load %arg9[%c0_116, %c671] : memref<32x1280xbf16, #tpu.memory_space<vmem>>, vector<32x128xbf16>
    %cst_117 = arith.constant 0.000000e+00 : bf16
    %241 = vector.broadcast %cst_117 : bf16 to vector<32x128xbf16>
    %242 = vector.shape_cast %53 : vector<1x128xi1> to vector<1x128xi1>
    %243 = vector.broadcast %242 : vector<1x128xi1> to vector<32x128xi1>
    %244 = arith.select %243, %241, %240 : vector<32x128xi1>, vector<32x128xbf16>
    %c0_118 = arith.constant 0 : index
    %c672 = arith.constant 672 : index
    %245 = vector.load %arg9[%c0_118, %c672] : memref<32x1280xbf16, #tpu.memory_space<vmem>>, vector<32x128xbf16>
    %c0_119 = arith.constant 0 : index
    %c673 = arith.constant 673 : index
    %246 = vector.load %arg9[%c0_119, %c673] : memref<32x1280xbf16, #tpu.memory_space<vmem>>, vector<32x128xbf16>
    %cst_120 = arith.constant 0.000000e+00 : bf16
    %247 = vector.broadcast %cst_120 : bf16 to vector<32x128xbf16>
    %248 = vector.shape_cast %55 : vector<1x128xi1> to vector<1x128xi1>
    %249 = vector.broadcast %248 : vector<1x128xi1> to vector<32x128xi1>
    %250 = arith.select %249, %247, %246 : vector<32x128xi1>, vector<32x128xbf16>
    %251 = tpu.concatenate %222, %223, %228, %233, %234, %239, %244, %245, %250 in 0 : vector<32x128xbf16>, vector<32x128xbf16>, vector<32x128xbf16>, vector<32x128xbf16>, vector<32x128xbf16>, vector<32x128xbf16>, vector<32x128xbf16>, vector<32x128xbf16>, vector<32x128xbf16> -> vector<288x128xbf16>
    %cst_121 = arith.constant dense<0.000000e+00> : vector<32x128xf32>
    %252 = tpu.matmul %56, %251, %cst_121 {dimension_numbers = #tpu.dot_dimension_numbers<[1], [0], [0], [1], [0, 0, 1, 1], [], []>} : vector<32x288xbf16>, vector<288x128xbf16>, vector<32x128xf32> -> vector<32x128xf32>
    %253 = vector.broadcast %57 : vector<32x1xf32> to vector<32x128xf32>
    %254 = arith.addf %252, %253 : vector<32x128xf32>
    %c0_122 = arith.constant 0 : index
    %c0_123 = arith.constant 0 : index
    %c512_124 = arith.constant 512 : index
    %255 = vector.load %arg8[%c0_122, %c0_123, %c512_124] : memref<1x32x1024xf32, #tpu.memory_space<vmem>>, vector<1x32x128xf32>
    %256 = vector.shape_cast %255 : vector<1x32x128xf32> to vector<32x128xf32>
    %257 = vector.shape_cast %254 : vector<32x128xf32> to vector<1x32x128xf32>
    tpu.vector_store %arg8[%c0_122, %c0_123, %c512_124], %257 {strides = array<i32>} : memref<1x32x1024xf32, #tpu.memory_space<vmem>>, vector<1x32x128xf32>,
    %c0_125 = arith.constant 0 : index
    %c735 = arith.constant 735 : index
    %258 = vector.load %arg9[%c0_125, %c735] : memref<32x1280xbf16, #tpu.memory_space<vmem>>, vector<32x128xbf16>
    %cst_126 = arith.constant 0.000000e+00 : bf16
    %259 = vector.broadcast %cst_126 : bf16 to vector<32x128xbf16>
    %260 = vector.shape_cast %53 : vector<1x128xi1> to vector<1x128xi1>
    %261 = vector.broadcast %260 : vector<1x128xi1> to vector<32x128xi1>
    %262 = arith.select %261, %259, %258 : vector<32x128xi1>, vector<32x128xbf16>
    %c0_127 = arith.constant 0 : index
    %c736 = arith.constant 736 : index
    %263 = vector.load %arg9[%c0_127, %c736] : memref<32x1280xbf16, #tpu.memory_space<vmem>>, vector<32x128xbf16>
    %c0_128 = arith.constant 0 : index
    %c737 = arith.constant 737 : index
    %264 = vector.load %arg9[%c0_128, %c737] : memref<32x1280xbf16, #tpu.memory_space<vmem>>, vector<32x128xbf16>
    %cst_129 = arith.constant 0.000000e+00 : bf16
    %265 = vector.broadcast %cst_129 : bf16 to vector<32x128xbf16>
    %266 = vector.shape_cast %55 : vector<1x128xi1> to vector<1x128xi1>
    %267 = vector.broadcast %266 : vector<1x128xi1> to vector<32x128xi1>
    %268 = arith.select %267, %265, %264 : vector<32x128xi1>, vector<32x128xbf16>
    %c0_130 = arith.constant 0 : index
    %c767 = arith.constant 767 : index
    %269 = vector.load %arg9[%c0_130, %c767] : memref<32x1280xbf16, #tpu.memory_space<vmem>>, vector<32x128xbf16>
    %cst_131 = arith.constant 0.000000e+00 : bf16
    %270 = vector.broadcast %cst_131 : bf16 to vector<32x128xbf16>
    %271 = vector.shape_cast %53 : vector<1x128xi1> to vector<1x128xi1>
    %272 = vector.broadcast %271 : vector<1x128xi1> to vector<32x128xi1>
    %273 = arith.select %272, %270, %269 : vector<32x128xi1>, vector<32x128xbf16>
    %c0_132 = arith.constant 0 : index
    %c768 = arith.constant 768 : index
    %274 = vector.load %arg9[%c0_132, %c768] : memref<32x1280xbf16, #tpu.memory_space<vmem>>, vector<32x128xbf16>
    %c0_133 = arith.constant 0 : index
    %c769 = arith.constant 769 : index
    %275 = vector.load %arg9[%c0_133, %c769] : memref<32x1280xbf16, #tpu.memory_space<vmem>>, vector<32x128xbf16>
    %cst_134 = arith.constant 0.000000e+00 : bf16
    %276 = vector.broadcast %cst_134 : bf16 to vector<32x128xbf16>
    %277 = vector.shape_cast %55 : vector<1x128xi1> to vector<1x128xi1>
    %278 = vector.broadcast %277 : vector<1x128xi1> to vector<32x128xi1>
    %279 = arith.select %278, %276, %275 : vector<32x128xi1>, vector<32x128xbf16>
    %c0_135 = arith.constant 0 : index
    %c799 = arith.constant 799 : index
    %280 = vector.load %arg9[%c0_135, %c799] : memref<32x1280xbf16, #tpu.memory_space<vmem>>, vector<32x128xbf16>
    %cst_136 = arith.constant 0.000000e+00 : bf16
    %281 = vector.broadcast %cst_136 : bf16 to vector<32x128xbf16>
    %282 = vector.shape_cast %53 : vector<1x128xi1> to vector<1x128xi1>
    %283 = vector.broadcast %282 : vector<1x128xi1> to vector<32x128xi1>
    %284 = arith.select %283, %281, %280 : vector<32x128xi1>, vector<32x128xbf16>
    %c0_137 = arith.constant 0 : index
    %c800 = arith.constant 800 : index
    %285 = vector.load %arg9[%c0_137, %c800] : memref<32x1280xbf16, #tpu.memory_space<vmem>>, vector<32x128xbf16>
    %c0_138 = arith.constant 0 : index
    %c801 = arith.constant 801 : index
    %286 = vector.load %arg9[%c0_138, %c801] : memref<32x1280xbf16, #tpu.memory_space<vmem>>, vector<32x128xbf16>
    %cst_139 = arith.constant 0.000000e+00 : bf16
    %287 = vector.broadcast %cst_139 : bf16 to vector<32x128xbf16>
    %288 = vector.shape_cast %55 : vector<1x128xi1> to vector<1x128xi1>
    %289 = vector.broadcast %288 : vector<1x128xi1> to vector<32x128xi1>
    %290 = arith.select %289, %287, %286 : vector<32x128xi1>, vector<32x128xbf16>
    %291 = tpu.concatenate %262, %263, %268, %273, %274, %279, %284, %285, %290 in 0 : vector<32x128xbf16>, vector<32x128xbf16>, vector<32x128xbf16>, vector<32x128xbf16>, vector<32x128xbf16>, vector<32x128xbf16>, vector<32x128xbf16>, vector<32x128xbf16>, vector<32x128xbf16> -> vector<288x128xbf16>
    %cst_140 = arith.constant dense<0.000000e+00> : vector<32x128xf32>
    %292 = tpu.matmul %56, %291, %cst_140 {dimension_numbers = #tpu.dot_dimension_numbers<[1], [0], [0], [1], [0, 0, 1, 1], [], []>} : vector<32x288xbf16>, vector<288x128xbf16>, vector<32x128xf32> -> vector<32x128xf32>
    %293 = vector.broadcast %57 : vector<32x1xf32> to vector<32x128xf32>
    %294 = arith.addf %292, %293 : vector<32x128xf32>
    %c0_141 = arith.constant 0 : index
    %c0_142 = arith.constant 0 : index
    %c640_143 = arith.constant 640 : index
    %295 = vector.load %arg8[%c0_141, %c0_142, %c640_143] : memref<1x32x1024xf32, #tpu.memory_space<vmem>>, vector<1x32x128xf32>
    %296 = vector.shape_cast %295 : vector<1x32x128xf32> to vector<32x128xf32>
    %297 = vector.shape_cast %294 : vector<32x128xf32> to vector<1x32x128xf32>
    tpu.vector_store %arg8[%c0_141, %c0_142, %c640_143], %297 {strides = array<i32>} : memref<1x32x1024xf32, #tpu.memory_space<vmem>>, vector<1x32x128xf32>,
    %c0_144 = arith.constant 0 : index
    %c863 = arith.constant 863 : index
    %298 = vector.load %arg9[%c0_144, %c863] : memref<32x1280xbf16, #tpu.memory_space<vmem>>, vector<32x128xbf16>
    %cst_145 = arith.constant 0.000000e+00 : bf16
    %299 = vector.broadcast %cst_145 : bf16 to vector<32x128xbf16>
    %300 = vector.shape_cast %53 : vector<1x128xi1> to vector<1x128xi1>
    %301 = vector.broadcast %300 : vector<1x128xi1> to vector<32x128xi1>
    %302 = arith.select %301, %299, %298 : vector<32x128xi1>, vector<32x128xbf16>
    %c0_146 = arith.constant 0 : index
    %c864 = arith.constant 864 : index
    %303 = vector.load %arg9[%c0_146, %c864] : memref<32x1280xbf16, #tpu.memory_space<vmem>>, vector<32x128xbf16>
    %c0_147 = arith.constant 0 : index
    %c865 = arith.constant 865 : index
    %304 = vector.load %arg9[%c0_147, %c865] : memref<32x1280xbf16, #tpu.memory_space<vmem>>, vector<32x128xbf16>
    %cst_148 = arith.constant 0.000000e+00 : bf16
    %305 = vector.broadcast %cst_148 : bf16 to vector<32x128xbf16>
    %306 = vector.shape_cast %55 : vector<1x128xi1> to vector<1x128xi1>
    %307 = vector.broadcast %306 : vector<1x128xi1> to vector<32x128xi1>
    %308 = arith.select %307, %305, %304 : vector<32x128xi1>, vector<32x128xbf16>
    %c0_149 = arith.constant 0 : index
    %c895 = arith.constant 895 : index
    %309 = vector.load %arg9[%c0_149, %c895] : memref<32x1280xbf16, #tpu.memory_space<vmem>>, vector<32x128xbf16>
    %cst_150 = arith.constant 0.000000e+00 : bf16
    %310 = vector.broadcast %cst_150 : bf16 to vector<32x128xbf16>
    %311 = vector.shape_cast %53 : vector<1x128xi1> to vector<1x128xi1>
    %312 = vector.broadcast %311 : vector<1x128xi1> to vector<32x128xi1>
    %313 = arith.select %312, %310, %309 : vector<32x128xi1>, vector<32x128xbf16>
    %c0_151 = arith.constant 0 : index
    %c896 = arith.constant 896 : index
    %314 = vector.load %arg9[%c0_151, %c896] : memref<32x1280xbf16, #tpu.memory_space<vmem>>, vector<32x128xbf16>
    %c0_152 = arith.constant 0 : index
    %c897 = arith.constant 897 : index
    %315 = vector.load %arg9[%c0_152, %c897] : memref<32x1280xbf16, #tpu.memory_space<vmem>>, vector<32x128xbf16>
    %cst_153 = arith.constant 0.000000e+00 : bf16
    %316 = vector.broadcast %cst_153 : bf16 to vector<32x128xbf16>
    %317 = vector.shape_cast %55 : vector<1x128xi1> to vector<1x128xi1>
    %318 = vector.broadcast %317 : vector<1x128xi1> to vector<32x128xi1>
    %319 = arith.select %318, %316, %315 : vector<32x128xi1>, vector<32x128xbf16>
    %c0_154 = arith.constant 0 : index
    %c927 = arith.constant 927 : index
    %320 = vector.load %arg9[%c0_154, %c927] : memref<32x1280xbf16, #tpu.memory_space<vmem>>, vector<32x128xbf16>
    %cst_155 = arith.constant 0.000000e+00 : bf16
    %321 = vector.broadcast %cst_155 : bf16 to vector<32x128xbf16>
    %322 = vector.shape_cast %53 : vector<1x128xi1> to vector<1x128xi1>
    %323 = vector.broadcast %322 : vector<1x128xi1> to vector<32x128xi1>
    %324 = arith.select %323, %321, %320 : vector<32x128xi1>, vector<32x128xbf16>
    %c0_156 = arith.constant 0 : index
    %c928 = arith.constant 928 : index
    %325 = vector.load %arg9[%c0_156, %c928] : memref<32x1280xbf16, #tpu.memory_space<vmem>>, vector<32x128xbf16>
    %c0_157 = arith.constant 0 : index
    %c929 = arith.constant 929 : index
    %326 = vector.load %arg9[%c0_157, %c929] : memref<32x1280xbf16, #tpu.memory_space<vmem>>, vector<32x128xbf16>
    %cst_158 = arith.constant 0.000000e+00 : bf16
    %327 = vector.broadcast %cst_158 : bf16 to vector<32x128xbf16>
    %328 = vector.shape_cast %55 : vector<1x128xi1> to vector<1x128xi1>
    %329 = vector.broadcast %328 : vector<1x128xi1> to vector<32x128xi1>
    %330 = arith.select %329, %327, %326 : vector<32x128xi1>, vector<32x128xbf16>
    %331 = tpu.concatenate %302, %303, %308, %313, %314, %319, %324, %325, %330 in 0 : vector<32x128xbf16>, vector<32x128xbf16>, vector<32x128xbf16>, vector<32x128xbf16>, vector<32x128xbf16>, vector<32x128xbf16>, vector<32x128xbf16>, vector<32x128xbf16>, vector<32x128xbf16> -> vector<288x128xbf16>
    %cst_159 = arith.constant dense<0.000000e+00> : vector<32x128xf32>
    %332 = tpu.matmul %56, %331, %cst_159 {dimension_numbers = #tpu.dot_dimension_numbers<[1], [0], [0], [1], [0, 0, 1, 1], [], []>} : vector<32x288xbf16>, vector<288x128xbf16>, vector<32x128xf32> -> vector<32x128xf32>
    %333 = vector.broadcast %57 : vector<32x1xf32> to vector<32x128xf32>
    %334 = arith.addf %332, %333 : vector<32x128xf32>
    %c0_160 = arith.constant 0 : index
    %c0_161 = arith.constant 0 : index
    %c768_162 = arith.constant 768 : index
    %335 = vector.load %arg8[%c0_160, %c0_161, %c768_162] : memref<1x32x1024xf32, #tpu.memory_space<vmem>>, vector<1x32x128xf32>
    %336 = vector.shape_cast %335 : vector<1x32x128xf32> to vector<32x128xf32>
    %337 = vector.shape_cast %334 : vector<32x128xf32> to vector<1x32x128xf32>
    tpu.vector_store %arg8[%c0_160, %c0_161, %c768_162], %337 {strides = array<i32>} : memref<1x32x1024xf32, #tpu.memory_space<vmem>>, vector<1x32x128xf32>,
    %c0_163 = arith.constant 0 : index
    %c991 = arith.constant 991 : index
    %338 = vector.load %arg9[%c0_163, %c991] : memref<32x1280xbf16, #tpu.memory_space<vmem>>, vector<32x128xbf16>
    %cst_164 = arith.constant 0.000000e+00 : bf16
    %339 = vector.broadcast %cst_164 : bf16 to vector<32x128xbf16>
    %340 = vector.shape_cast %53 : vector<1x128xi1> to vector<1x128xi1>
    %341 = vector.broadcast %340 : vector<1x128xi1> to vector<32x128xi1>
    %342 = arith.select %341, %339, %338 : vector<32x128xi1>, vector<32x128xbf16>
    %c0_165 = arith.constant 0 : index
    %c992 = arith.constant 992 : index
    %343 = vector.load %arg9[%c0_165, %c992] : memref<32x1280xbf16, #tpu.memory_space<vmem>>, vector<32x128xbf16>
    %c0_166 = arith.constant 0 : index
    %c993 = arith.constant 993 : index
    %344 = vector.load %arg9[%c0_166, %c993] : memref<32x1280xbf16, #tpu.memory_space<vmem>>, vector<32x128xbf16>
    %cst_167 = arith.constant 0.000000e+00 : bf16
    %345 = vector.broadcast %cst_167 : bf16 to vector<32x128xbf16>
    %346 = vector.shape_cast %55 : vector<1x128xi1> to vector<1x128xi1>
    %347 = vector.broadcast %346 : vector<1x128xi1> to vector<32x128xi1>
    %348 = arith.select %347, %345, %344 : vector<32x128xi1>, vector<32x128xbf16>
    %c0_168 = arith.constant 0 : index
    %c1023 = arith.constant 1023 : index
    %349 = vector.load %arg9[%c0_168, %c1023] : memref<32x1280xbf16, #tpu.memory_space<vmem>>, vector<32x128xbf16>
    %cst_169 = arith.constant 0.000000e+00 : bf16
    %350 = vector.broadcast %cst_169 : bf16 to vector<32x128xbf16>
    %351 = vector.shape_cast %53 : vector<1x128xi1> to vector<1x128xi1>
    %352 = vector.broadcast %351 : vector<1x128xi1> to vector<32x128xi1>
    %353 = arith.select %352, %350, %349 : vector<32x128xi1>, vector<32x128xbf16>
    %c0_170 = arith.constant 0 : index
    %c1024 = arith.constant 1024 : index
    %354 = vector.load %arg9[%c0_170, %c1024] : memref<32x1280xbf16, #tpu.memory_space<vmem>>, vector<32x128xbf16>
    %c0_171 = arith.constant 0 : index
    %c1025 = arith.constant 1025 : index
    %355 = vector.load %arg9[%c0_171, %c1025] : memref<32x1280xbf16, #tpu.memory_space<vmem>>, vector<32x128xbf16>
    %cst_172 = arith.constant 0.000000e+00 : bf16
    %356 = vector.broadcast %cst_172 : bf16 to vector<32x128xbf16>
    %357 = vector.shape_cast %55 : vector<1x128xi1> to vector<1x128xi1>
    %358 = vector.broadcast %357 : vector<1x128xi1> to vector<32x128xi1>
    %359 = arith.select %358, %356, %355 : vector<32x128xi1>, vector<32x128xbf16>
    %c0_173 = arith.constant 0 : index
    %c1055 = arith.constant 1055 : index
    %360 = vector.load %arg9[%c0_173, %c1055] : memref<32x1280xbf16, #tpu.memory_space<vmem>>, vector<32x128xbf16>
    %cst_174 = arith.constant 0.000000e+00 : bf16
    %361 = vector.broadcast %cst_174 : bf16 to vector<32x128xbf16>
    %362 = vector.shape_cast %53 : vector<1x128xi1> to vector<1x128xi1>
    %363 = vector.broadcast %362 : vector<1x128xi1> to vector<32x128xi1>
    %364 = arith.select %363, %361, %360 : vector<32x128xi1>, vector<32x128xbf16>
    %c0_175 = arith.constant 0 : index
    %c1056 = arith.constant 1056 : index
    %365 = vector.load %arg9[%c0_175, %c1056] : memref<32x1280xbf16, #tpu.memory_space<vmem>>, vector<32x128xbf16>
    %c0_176 = arith.constant 0 : index
    %c1057 = arith.constant 1057 : index
    %366 = vector.load %arg9[%c0_176, %c1057] : memref<32x1280xbf16, #tpu.memory_space<vmem>>, vector<32x128xbf16>
    %cst_177 = arith.constant 0.000000e+00 : bf16
    %367 = vector.broadcast %cst_177 : bf16 to vector<32x128xbf16>
    %368 = vector.shape_cast %55 : vector<1x128xi1> to vector<1x128xi1>
    %369 = vector.broadcast %368 : vector<1x128xi1> to vector<32x128xi1>
    %370 = arith.select %369, %367, %366 : vector<32x128xi1>, vector<32x128xbf16>
    %371 = tpu.concatenate %342, %343, %348, %353, %354, %359, %364, %365, %370 in 0 : vector<32x128xbf16>, vector<32x128xbf16>, vector<32x128xbf16>, vector<32x128xbf16>, vector<32x128xbf16>, vector<32x128xbf16>, vector<32x128xbf16>, vector<32x128xbf16>, vector<32x128xbf16> -> vector<288x128xbf16>
    %cst_178 = arith.constant dense<0.000000e+00> : vector<32x128xf32>
    %372 = tpu.matmul %56, %371, %cst_178 {dimension_numbers = #tpu.dot_dimension_numbers<[1], [0], [0], [1], [0, 0, 1, 1], [], []>} : vector<32x288xbf16>, vector<288x128xbf16>, vector<32x128xf32> -> vector<32x128xf32>
    %373 = vector.broadcast %57 : vector<32x1xf32> to vector<32x128xf32>
    %374 = arith.addf %372, %373 : vector<32x128xf32>
    %c0_179 = arith.constant 0 : index
    %c0_180 = arith.constant 0 : index
    %c896_181 = arith.constant 896 : index
    %375 = vector.load %arg8[%c0_179, %c0_180, %c896_181] : memref<1x32x1024xf32, #tpu.memory_space<vmem>>, vector<1x32x128xf32>
    %376 = vector.shape_cast %375 : vector<1x32x128xf32> to vector<32x128xf32>
    %377 = vector.shape_cast %374 : vector<32x128xf32> to vector<1x32x128xf32>
    tpu.vector_store %arg8[%c0_179, %c0_180, %c896_181], %377 {strides = array<i32>} : memref<1x32x1024xf32, #tpu.memory_space<vmem>>, vector<1x32x128xf32>,
    return
  }
  func.func @transform_0(%arg0: i32) -> (i32, i32, i32) {
    %c0_i32 = arith.constant 0 : i32
    %c0_i32_0 = arith.constant 0 : i32
    %c0_i32_1 = arith.constant 0 : i32
    return %arg0, %c0_i32, %c0_i32_0 : i32, i32, i32
  }
  func.func @transform_1(%arg0: i32) -> (i32, i32) {
    %c0_i32 = arith.constant 0 : i32
    %c0_i32_0 = arith.constant 0 : i32
    %c0_i32_1 = arith.constant 0 : i32
    return %c0_i32, %c0_i32_0 : i32, i32
  }
  func.func @transform_2(%arg0: i32) -> (i32, i32) {
    %c0_i32 = arith.constant 0 : i32
    %c0_i32_0 = arith.constant 0 : i32
    %c0_i32_1 = arith.constant 0 : i32
    return %c0_i32, %c0_i32_0 : i32, i32
  }
  func.func @transform_3(%arg0: i32) -> (i32, i32) {
    %c0_i32 = arith.constant 0 : i32
    %c0_i32_0 = arith.constant 0 : i32
    %c0_i32_1 = arith.constant 0 : i32
    return %c0_i32, %c0_i32_0 : i32, i32
  }
  func.func @transform_4(%arg0: i32) -> (i32, i32) {
    %c0_i32 = arith.constant 0 : i32
    %c0_i32_0 = arith.constant 0 : i32
    %c0_i32_1 = arith.constant 0 : i32
    return %c0_i32, %c0_i32_0 : i32, i32
  }
  func.func @transform_5(%arg0: i32) -> (i32, i32) {
    %c0_i32 = arith.constant 0 : i32
    %c0_i32_0 = arith.constant 0 : i32
    %c0_i32_1 = arith.constant 0 : i32
    return %c0_i32, %c0_i32_0 : i32, i32
  }
  func.func @transform_6(%arg0: i32) -> (i32, i32) {
    %c0_i32 = arith.constant 0 : i32
    %c0_i32_0 = arith.constant 0 : i32
    %c0_i32_1 = arith.constant 0 : i32
    return %c0_i32, %c0_i32_0 : i32, i32
  }
  func.func @transform_7(%arg0: i32) -> (i32, i32, i32) {
    %c0_i32 = arith.constant 0 : i32
    %c0_i32_0 = arith.constant 0 : i32
    %c0_i32_1 = arith.constant 0 : i32
    return %arg0, %c0_i32, %c0_i32_0 : i32, i32, i32
  }
}

</mosaic_0001>

<llo_original>
// kernel: mblock.4
$region0: #{mblock.4}
  #allocation0 [shape = 'u32[]', space=smem, size = 0x4, offset = 0x4, fixed_abs, tag = 'smem constant byte address 0x4 - core index']
  #allocation1 [shape = 'u32[144,128]{1,0:T(1,128)}', space=vmem, size = 0x12000, scoped, tag = 'internal scratch']
  #allocation2 [shape = 'bf16[48,512]{1,0:T(16,128)(2,1)}', space=vmem, size = 0xc000, scoped, tag = 'scratch operand']
  %s0 = inlined_call_operand.vmem [shape: f32[2,48,256], index: 0, kind: input, shape index: {}]
  %s1 = inlined_call_operand.vmem [shape: f32[48,3], index: 1, kind: input, shape index: {}]
  %s2 = inlined_call_operand.vmem [shape: f32[1,3], index: 2, kind: input, shape index: {}]
  %s3 = inlined_call_operand.vmem [shape: f32[48,3], index: 3, kind: input, shape index: {}]
  %s4 = inlined_call_operand.vmem [shape: f32[48,1], index: 4, kind: input, shape index: {}]
  %s5 = inlined_call_operand.vmem [shape: bf16[48,432], index: 5, kind: input, shape index: {}]
  %s6 = inlined_call_operand.vmem [shape: f32[48,1], index: 6, kind: input, shape index: {}]
  %s7 = inlined_call_operand.vmem [shape: f32[2,48,256], index: 7, kind: output, shape index: {}]
  %s8 = sld [smem:[#allocation0]]
  $region61: #{mblock.4} parent=0
    _
  %s10 = ssub.s32 1, %s8
  %s11 = scalar_select 0, %s10, %s8
  loop: start=0, step=1, limit=4
  $region2: #{mblock.4} parent=0 // loop_pre_header
    _
  $region3: #{mblock.4} parent=0 // loop_header
    %s13 = sphi 0, %s17
    %p14 = scmp.ge.s32.totalorder %s13, 4
    %s23 = sphi 0, %s25
    %s26 = sphi 0, %s23
    %s27 = sphi 0, %s26
    %s43 = sphi 0, %s27
    %s47 = sphi 0, %s47
    %s49 = sphi 0, %s47
    %s50 = sphi 0, %s49
    %s64 = sphi 0, %s50
    %s68 = sphi 0, %s68
    %s70 = sphi 0, %s68
    %s71 = sphi 0, %s70
    %s85 = sphi 0, %s71
    %s89 = sphi 0, %s89
    %s91 = sphi 0, %s89
    %s92 = sphi 0, %s91
    %s106 = sphi 0, %s92
    %s110 = sphi 0, %s110
    %s112 = sphi 0, %s110
    %s113 = sphi 0, %s112
    %s127 = sphi 0, %s113
    %s131 = sphi 0, %s131
    %s133 = sphi 0, %s131
    %s134 = sphi 0, %s133
    %s148 = sphi 0, %s134
    %s152 = sphi 0, %s152
    %s154 = sphi 0, %s152
    %s155 = sphi 0, %s154
    %s169 = sphi 0, %s155
    %s175 = sphi 0, %s177
    %s178 = sphi 0, %s175
    %s179 = sphi 0, %s178
    %s195 = sphi 0, %s179
  $region4: #{mblock.4} parent=0 // loop_header_branch
    %16 = sbr.rel (%p14) target = $region8
  $region5: #{mblock.4} parent=0 // loop_body
    %s18 = ssub.s32 %s13, 1
    %s19 = ssub.s32 %s13, 2
    %s20 = sadd.s32 %s13, 1
    %s21 = ssub.s32 %s13, %s20
    %p22 = scmp.eq.s32.totalorder %s21, 0
    %s24 = sadd.s32 %s23, 1
    %s25 = scalar_select %p22, %s23, %s24
    %p28 = pneg %p22
    %p29 = scmp.eq.s32.totalorder %s13, 1
    %p30 = por %p28, %p29
    %p31 = scmp.ne.s32.totalorder %s23, %s26
    %p32 = scmp.eq.s32.totalorder %s13, 0
    %p33 = por %p31, %p32
    %p34 = scmp.ne.s32.totalorder %s23, %s26
    %p35 = scmp.eq.s32.totalorder %s18, 1
    %p36 = por %p34, %p35
    %p37 = scmp.ne.s32.totalorder %s26, %s27
    %p38 = scmp.eq.s32.totalorder %s18, 0
    %p39 = por %p37, %p38
    %p40 = scmp.ne.s32.totalorder %s26, %s27
    %p41 = scmp.eq.s32.totalorder %s19, 1
    %p42 = por %p40, %p41
    %p44 = scmp.ne.s32.totalorder %s27, %s43
    %p45 = scmp.eq.s32.totalorder %s19, 0
    %p46 = por %p44, %p45
    %s48 = sadd.s32 %s47, 1
    %p51 = scmp.eq.s32.totalorder %s13, 1
    %p52 = scmp.ne.s32.totalorder %s47, %s49
    %p53 = scmp.eq.s32.totalorder %s13, 0
    %p54 = por %p52, %p53
    %p55 = scmp.ne.s32.totalorder %s47, %s49
    %p56 = scmp.eq.s32.totalorder %s18, 1
    %p57 = por %p55, %p56
    %p58 = scmp.ne.s32.totalorder %s49, %s50
    %p59 = scmp.eq.s32.totalorder %s18, 0
    %p60 = por %p58, %p59
    %p61 = scmp.ne.s32.totalorder %s49, %s50
    %p62 = scmp.eq.s32.totalorder %s19, 1
    %p63 = por %p61, %p62
    %p65 = scmp.ne.s32.totalorder %s50, %s64
    %p66 = scmp.eq.s32.totalorder %s19, 0
    %p67 = por %p65, %p66
    %s69 = sadd.s32 %s68, 1
    %p72 = scmp.eq.s32.totalorder %s13, 1
    %p73 = scmp.ne.s32.totalorder %s68, %s70
    %p74 = scmp.eq.s32.totalorder %s13, 0
    %p75 = por %p73, %p74
    %p76 = scmp.ne.s32.totalorder %s68, %s70
    %p77 = scmp.eq.s32.totalorder %s18, 1
    %p78 = por %p76, %p77
    %p79 = scmp.ne.s32.totalorder %s70, %s71
    %p80 = scmp.eq.s32.totalorder %s18, 0
    %p81 = por %p79, %p80
    %p82 = scmp.ne.s32.totalorder %s70, %s71
    %p83 = scmp.eq.s32.totalorder %s19, 1
    %p84 = por %p82, %p83
    %p86 = scmp.ne.s32.totalorder %s71, %s85
    %p87 = scmp.eq.s32.totalorder %s19, 0
    %p88 = por %p86, %p87
    %s90 = sadd.s32 %s89, 1
    %p93 = scmp.eq.s32.totalorder %s13, 1
    %p94 = scmp.ne.s32.totalorder %s89, %s91
    %p95 = scmp.eq.s32.totalorder %s13, 0
    %p96 = por %p94, %p95
    %p97 = scmp.ne.s32.totalorder %s89, %s91
    %p98 = scmp.eq.s32.totalorder %s18, 1
    %p99 = por %p97, %p98
    %p100 = scmp.ne.s32.totalorder %s91, %s92
    %p101 = scmp.eq.s32.totalorder %s18, 0
    %p102 = por %p100, %p101
    %p103 = scmp.ne.s32.totalorder %s91, %s92
    %p104 = scmp.eq.s32.totalorder %s19, 1
    %p105 = por %p103, %p104
    %p107 = scmp.ne.s32.totalorder %s92, %s106
    %p108 = scmp.eq.s32.totalorder %s19, 0
    %p109 = por %p107, %p108
    %s111 = sadd.s32 %s110, 1
    %p114 = scmp.eq.s32.totalorder %s13, 1
    %p115 = scmp.ne.s32.totalorder %s110, %s112
    %p116 = scmp.eq.s32.totalorder %s13, 0
    %p117 = por %p115, %p116
    %p118 = scmp.ne.s32.totalorder %s110, %s112
    %p119 = scmp.eq.s32.totalorder %s18, 1
    %p120 = por %p118, %p119
    %p121 = scmp.ne.s32.totalorder %s112, %s113
    %p122 = scmp.eq.s32.totalorder %s18, 0
    %p123 = por %p121, %p122
    %p124 = scmp.ne.s32.totalorder %s112, %s113
    %p125 = scmp.eq.s32.totalorder %s19, 1
    %p126 = por %p124, %p125
    %p128 = scmp.ne.s32.totalorder %s113, %s127
    %p129 = scmp.eq.s32.totalorder %s19, 0
    %p130 = por %p128, %p129
    %s132 = sadd.s32 %s131, 1
    %p135 = scmp.eq.s32.totalorder %s13, 1
    %p136 = scmp.ne.s32.totalorder %s131, %s133
    %p137 = scmp.eq.s32.totalorder %s13, 0
    %p138 = por %p136, %p137
    %p139 = scmp.ne.s32.totalorder %s131, %s133
    %p140 = scmp.eq.s32.totalorder %s18, 1
    %p141 = por %p139, %p140
    %p142 = scmp.ne.s32.totalorder %s133, %s134
    %p143 = scmp.eq.s32.totalorder %s18, 0
    %p144 = por %p142, %p143
    %p145 = scmp.ne.s32.totalorder %s133, %s134
    %p146 = scmp.eq.s32.totalorder %s19, 1
    %p147 = por %p145, %p146
    %p149 = scmp.ne.s32.totalorder %s134, %s148
    %p150 = scmp.eq.s32.totalorder %s19, 0
    %p151 = por %p149, %p150
    %s153 = sadd.s32 %s152, 1
    %p156 = scmp.eq.s32.totalorder %s13, 1
    %p157 = scmp.ne.s32.totalorder %s152, %s154
    %p158 = scmp.eq.s32.totalorder %s13, 0
    %p159 = por %p157, %p158
    %p160 = scmp.ne.s32.totalorder %s152, %s154
    %p161 = scmp.eq.s32.totalorder %s18, 1
    %p162 = por %p160, %p161
    %p163 = scmp.ne.s32.totalorder %s154, %s155
    %p164 = scmp.eq.s32.totalorder %s18, 0
    %p165 = por %p163, %p164
    %p166 = scmp.ne.s32.totalorder %s154, %s155
    %p167 = scmp.eq.s32.totalorder %s19, 1
    %p168 = por %p166, %p167
    %p170 = scmp.ne.s32.totalorder %s155, %s169
    %p171 = scmp.eq.s32.totalorder %s19, 0
    %p172 = por %p170, %p171
    %s173 = ssub.s32 %s13, %s20
    %p174 = scmp.eq.s32.totalorder %s173, 0
    %s176 = sadd.s32 %s175, 1
    %s177 = scalar_select %p174, %s175, %s176
    %p180 = pneg %p174
    %p181 = scmp.eq.s32.totalorder %s13, 1
    %p182 = por %p180, %p181
    %p183 = scmp.ne.s32.totalorder %s175, %s178
    %p184 = scmp.eq.s32.totalorder %s13, 0
    %p185 = por %p183, %p184
    %p186 = scmp.ne.s32.totalorder %s175, %s178
    %p187 = scmp.eq.s32.totalorder %s18, 1
    %p188 = por %p186, %p187
    %p189 = scmp.ne.s32.totalorder %s178, %s179
    %p190 = scmp.eq.s32.totalorder %s18, 0
    %p191 = por %p189, %p190
    %p192 = scmp.ne.s32.totalorder %s178, %s179
    %p193 = scmp.eq.s32.totalorder %s19, 1
    %p194 = por %p192, %p193
    %p196 = scmp.ne.s32.totalorder %s179, %s195
    %p197 = scmp.eq.s32.totalorder %s19, 0
    %p198 = por %p196, %p197
    %p199 = scmp.le.s32.totalorder 1, %s13
    %p200 = scmp.lt.s32.totalorder %s13, 3
    %p201 = pnand %p199, %p200
    %p202 = pneg %p201
    // Predicated region
    $region9: #{mblock.4} parent=5 // pred_check
      _
    $region10: #{mblock.4} parent=5 // pred_check_branch
      %204 = sbr.rel (%p201) target = $region12
    $region11: #{mblock.4} parent=5 // pred_region
      %s205 = ssub.s32 %s13, 1
      // Predicated region
      $region13: #{mblock.4} parent=11 // pred_check
        %p206 = pneg %p60
      $region14: #{mblock.4} parent=11 // pred_check_branch
        %208 = sbr.rel (%p206) target = $region16
      $region15: #{mblock.4} parent=11 // pred_region
        _
      $region16: #{mblock.4} parent=11 // pred_fallthru
        _
      // Predicated region
      $region17: #{mblock.4} parent=11 // pred_check
        %p209 = pneg %p81
      $region18: #{mblock.4} parent=11 // pred_check_branch
        %211 = sbr.rel (%p209) target = $region20
      $region19: #{mblock.4} parent=11 // pred_region
        _
      $region20: #{mblock.4} parent=11 // pred_fallthru
        _
      // Predicated region
      $region21: #{mblock.4} parent=11 // pred_check
        %p212 = pneg %p102
      $region22: #{mblock.4} parent=11 // pred_check_branch
        %214 = sbr.rel (%p212) target = $region24
      $region23: #{mblock.4} parent=11 // pred_region
        _
      $region24: #{mblock.4} parent=11 // pred_fallthru
        _
      // Predicated region
      $region25: #{mblock.4} parent=11 // pred_check
        %p215 = pneg %p123
      $region26: #{mblock.4} parent=11 // pred_check_branch
        %217 = sbr.rel (%p215) target = $region28
      $region27: #{mblock.4} parent=11 // pred_region
        _
      $region28: #{mblock.4} parent=11 // pred_fallthru
        _
      // Predicated region
      $region29: #{mblock.4} parent=11 // pred_check
        %p218 = pneg %p144
      $region30: #{mblock.4} parent=11 // pred_check_branch
        %220 = sbr.rel (%p218) target = $region32
      $region31: #{mblock.4} parent=11 // pred_region
        _
      $region32: #{mblock.4} parent=11 // pred_fallthru
        _
      // Predicated region
      $region33: #{mblock.4} parent=11 // pred_check
        %p221 = pneg %p165
      $region34: #{mblock.4} parent=11 // pred_check_branch
        %223 = sbr.rel (%p221) target = $region36
      $region35: #{mblock.4} parent=11 // pred_region
        _
      $region36: #{mblock.4} parent=11 // pred_fallthru
        _
    $region12: #{mblock.4} parent=5 // pred_fallthru
      _
    %p224 = scmp.lt.s32.totalorder %s13, 2
    // Predicated region
    $region37: #{mblock.4} parent=5 // pred_check
      %p225 = pneg %p224
    $region38: #{mblock.4} parent=5 // pred_check_branch
      %227 = sbr.rel (%p225) target = $region40
    $region39: #{mblock.4} parent=5 // pred_region
      // Predicated region
      $region41: #{mblock.4} parent=39 // pred_check
        %p228 = pneg %p33
      $region42: #{mblock.4} parent=39 // pred_check_branch
        %230 = sbr.rel (%p228) target = $region44
      $region43: #{mblock.4} parent=39 // pred_region
        %p231 = scmp.lt.s32.totalorder %s13, 1
        %s232 = scalar_select %p231, %s13, 1
        %s233 = smul.addr %s232, 12
        %s234 = smul.addr %s233, 8
        %s235 = scalar_lea.vmem %s0, %s234
      $region44: #{mblock.4} parent=39 // pred_fallthru
        _
    $region40: #{mblock.4} parent=5 // pred_fallthru
      _
    %p236 = scmp.le.s32.totalorder 1, %s13
    %p237 = scmp.lt.s32.totalorder %s13, 3
    %p238 = pnand %p236, %p237
    %p239 = pneg %p238
    // Predicated region
    $region45: #{mblock.4} parent=5 // pred_check
      _
    $region46: #{mblock.4} parent=5 // pred_check_branch
      %241 = sbr.rel (%p238) target = $region48
    $region47: #{mblock.4} parent=5 // pred_region
      %s242 = ssub.s32 %s13, 1
      %p243 = scmp.lt.s32.totalorder %s18, 1
      %s244 = scalar_select %p243, %s18, 1
      %s245 = smul.addr %s244, 12
      %s246 = smul.addr %s245, 8
      %s247 = scalar_lea.vmem %s0, %s246
      %p248 = pneg %p39
      %p249 = pneg %p36
      %p250 = pneg %p60
      %p251 = pneg %p57
      %p252 = pneg %p81
      %p253 = pneg %p78
      %p254 = pneg %p102
      %p255 = pneg %p99
      %p256 = pneg %p123
      %p257 = pneg %p120
      %p258 = pneg %p144
      %p259 = pneg %p141
      %p260 = pneg %p165
      %p261 = pneg %p162
      %p262 = pneg %p191
      %p263 = pneg %p188
      %p264 = scmp.lt.s32.totalorder %s18, 1
      %s265 = scalar_select %p264, %s18, 1
      %s266 = smul.addr %s265, 12
      %s267 = smul.addr %s266, 8
      %s268 = scalar_lea.vmem %s7, %s267
      %p269 = scmp.lt.s32.totalorder %s18, 1
      %s270 = scalar_select %p269, %s18, 1
      %s271 = smul.addr %s270, 12
      %s272 = smul.addr %s271, 8
      %s273 = scalar_lea.vmem %s0, %s272
      %p274 = scmp.lt.s32.totalorder %s18, 1
      %s275 = scalar_select %p274, %s18, 1
      %s276 = smul.addr %s275, 12
      %s277 = smul.addr %s276, 8
      %s278 = scalar_lea.vmem %s7, %s277
      %v282 = vld [vmem:[%s273] sm:$0xff]
      %v283 = vld [vmem:[%s273 + $0x8] sm:$0xff]
      %v284 = vld [vmem:[%s273 + $0x10] sm:$0xff]
      %v285 = vld [vmem:[%s273 + $0x18] sm:$0xff]
      %v286 = vld [vmem:[%s273 + $0x20] sm:$0xff]
      %v287 = vld [vmem:[%s273 + $0x28] sm:$0xff]
      %v288 = vld [vmem:[%s273 + $0x30] sm:$0xff]
      %v289 = vld [vmem:[%s273 + $0x38] sm:$0xff]
      %v290 = vld [vmem:[%s273 + $0x40] sm:$0xff]
      %v291 = vld [vmem:[%s273 + $0x48] sm:$0xff]
      %v292 = vld [vmem:[%s273 + $0x50] sm:$0xff]
      %v293 = vld [vmem:[%s273 + $0x58] sm:$0xff]
      %v294 = vadd.f32 %v282, %v283
      %295 = vadd.xlane.f32.xlu0 %v294
      %v296 = vpop.xlane.xlu0 %295
      %v297 = vadd.f32 %v284, %v285
      %298 = vadd.xlane.f32.xlu0 %v297
      %v299 = vpop.xlane.xlu0 %298
      %v300 = vadd.f32 %v286, %v287
      %301 = vadd.xlane.f32.xlu0 %v300
      %v302 = vpop.xlane.xlu0 %301
      %v303 = vadd.f32 %v288, %v289
      %304 = vadd.xlane.f32.xlu0 %v303
      %v305 = vpop.xlane.xlu0 %304
      %v306 = vadd.f32 %v290, %v291
      %307 = vadd.xlane.f32.xlu0 %v306
      %v308 = vpop.xlane.xlu0 %307
      %v309 = vadd.f32 %v292, %v293
      %310 = vadd.xlane.f32.xlu0 %v309
      %v311 = vpop.xlane.xlu0 %310
      %v312 = vrcp.pop 256.0
      %v313 = vmul.f32 %v296, %v312
      %v314 = vmul.f32 %v299, %v312
      %v315 = vmul.f32 %v302, %v312
      %v316 = vmul.f32 %v305, %v312
      %v317 = vmul.f32 %v308, %v312
      %v318 = vmul.f32 %v311, %v312
      %v319 = vld [vmem:[%s1] sm:$0xff]
      %v320 = vld [vmem:[%s1 + $0x8] sm:$0xff]
      %v321 = vld [vmem:[%s1 + $0x10] sm:$0xff]
      %v322 = vld [vmem:[%s1 + $0x18] sm:$0xff]
      %v323 = vld [vmem:[%s1 + $0x20] sm:$0xff]
      %v324 = vld [vmem:[%s1 + $0x28] sm:$0xff]
      %v325 = vmul.f32 %v319, %v313
      %v326 = vmul.f32 %v320, %v314
      %v327 = vmul.f32 %v321, %v315
      %v328 = vmul.f32 %v322, %v316
      %v329 = vmul.f32 %v323, %v317
      %v330 = vmul.f32 %v324, %v318
      %vm331 = vcmask 23552
      %v332 = vsel %vm331, %v325, 0.0
      %v333 = vsel %vm331, %v326, 0.0
      %v334 = vadd.f32 %v332, %v333
      %v335 = vsel %vm331, %v327, 0.0
      %v336 = vadd.f32 %v334, %v335
      %v337 = vsel %vm331, %v328, 0.0
      %v338 = vadd.f32 %v336, %v337
      %v339 = vsel %vm331, %v329, 0.0
      %v340 = vadd.f32 %v338, %v339
      %v341 = vsel %vm331, %v330, 0.0
      %v342 = vadd.f32 %v340, %v341
      %v343 = vrot.slane %v342, 4
      %v344 = vadd.f32 %v342, %v343
      %v345 = vrot.slane %v344, 2
      %v346 = vadd.f32 %v344, %v345
      %v347 = vrot.slane %v346, 1
      %v348 = vadd.f32 %v346, %v347
      %v349 = vld [vmem:[%s2] sm:$0x1]
      %v350 = vadd.f32 %v348, %v349
      %v351 = vmax.f32 %v350, 0.0
      %v352 = vld [vmem:[%s3] sm:$0xff]
      %v353 = vld [vmem:[%s3 + $0x8] sm:$0xff]
      %v354 = vld [vmem:[%s3 + $0x10] sm:$0xff]
      %v355 = vld [vmem:[%s3 + $0x18] sm:$0xff]
      %v356 = vld [vmem:[%s3 + $0x20] sm:$0xff]
      %v357 = vld [vmem:[%s3 + $0x28] sm:$0xff]
      %v358 = vlaneseq
      %v359 = vshrl.u32 %v358, 7
      %v360 = vsub.s32 0, %v359
      %v361 = vrot.slane %v351, %v360
      %v362 = vmul.f32 %v352, %v361
      %v363 = vmul.f32 %v353, %v361
      %v364 = vmul.f32 %v354, %v361
      %v365 = vmul.f32 %v355, %v361
      %v366 = vmul.f32 %v356, %v361
      %v367 = vmul.f32 %v357, %v361
      %v368 = vsel %vm331, %v362, 0.0
      %369 = vadd.xlane.f32.xlu0 %v368
      %v370 = vpop.xlane.xlu0 %369
      %v371 = vsel %vm331, %v363, 0.0
      %372 = vadd.xlane.f32.xlu0 %v371
      %v373 = vpop.xlane.xlu0 %372
      %v374 = vsel %vm331, %v364, 0.0
      %375 = vadd.xlane.f32.xlu0 %v374
      %v376 = vpop.xlane.xlu0 %375
      %v377 = vsel %vm331, %v365, 0.0
      %378 = vadd.xlane.f32.xlu0 %v377
      %v379 = vpop.xlane.xlu0 %378
      %v380 = vsel %vm331, %v366, 0.0
      %381 = vadd.xlane.f32.xlu0 %v380
      %v382 = vpop.xlane.xlu0 %381
      %v383 = vsel %vm331, %v367, 0.0
      %384 = vadd.xlane.f32.xlu0 %v383
      %v385 = vpop.xlane.xlu0 %384
      %v386 = vld [vmem:[%s4] sm:$0xff]
      %v387 = vld [vmem:[%s4 + $0x8] sm:$0xff]
      %v388 = vld [vmem:[%s4 + $0x10] sm:$0xff]
      %v389 = vld [vmem:[%s4 + $0x18] sm:$0xff]
      %v390 = vld [vmem:[%s4 + $0x20] sm:$0xff]
      %v391 = vld [vmem:[%s4 + $0x28] sm:$0xff]
      %v392 = vadd.f32 %v370, %v386
      %v393 = vadd.f32 %v373, %v387
      %v394 = vadd.f32 %v376, %v388
      %v395 = vadd.f32 %v379, %v389
      %v396 = vadd.f32 %v382, %v390
      %v397 = vadd.f32 %v385, %v391
      %v398 = vxor.u32 %v392, 2147483648
      %v399 = vxor.u32 %v393, 2147483648
      %v400 = vxor.u32 %v394, 2147483648
      %v401 = vxor.u32 %v395, 2147483648
      %v402 = vxor.u32 %v396, 2147483648
      %v403 = vxor.u32 %v397, 2147483648
      %v404 = vmul.f32 %v398, 1.442695
      %v405 = vpow.pop %v404
      %v406 = vmul.f32 %v399, 1.442695
      %v407 = vpow.pop %v406
      %v408 = vmul.f32 %v400, 1.442695
      %v409 = vpow.pop %v408
      %v410 = vmul.f32 %v401, 1.442695
      %v411 = vpow.pop %v410
      %v412 = vmul.f32 %v402, 1.442695
      %v413 = vpow.pop %v412
      %v414 = vmul.f32 %v403, 1.442695
      %v415 = vpow.pop %v414
      %v416 = vadd.f32 %v405, 1.0
      %v417 = vadd.f32 %v407, 1.0
      %v418 = vadd.f32 %v409, 1.0
      %v419 = vadd.f32 %v411, 1.0
      %v420 = vadd.f32 %v413, 1.0
      %v421 = vadd.f32 %v415, 1.0
      %v422 = vrcp.pop %v416
      %v423 = vmul.f32 1.0, %v422
      %v424 = vrcp.pop %v417
      %v425 = vmul.f32 1.0, %v424
      %v426 = vrcp.pop %v418
      %v427 = vmul.f32 1.0, %v426
      %v428 = vrcp.pop %v419
      %v429 = vmul.f32 1.0, %v428
      %v430 = vrcp.pop %v420
      %v431 = vmul.f32 1.0, %v430
      %v432 = vrcp.pop %v421
      %v433 = vmul.f32 1.0, %v432
      %435 = vset.pattern.permute.xlu0 0
      %436 = vperm.xlu0 %435, %v423
      %v437 = vpop.permute.xlu0 %436
      %440 = vset.pattern.permute.xlu0 0
      %441 = vperm.xlu0 %440, %v425
      %v442 = vpop.permute.xlu0 %441
      %445 = vset.pattern.permute.xlu0 0
      %446 = vperm.xlu0 %445, %v427
      %v447 = vpop.permute.xlu0 %446
      %450 = vset.pattern.permute.xlu0 0
      %451 = vperm.xlu0 %450, %v429
      %v452 = vpop.permute.xlu0 %451
      %455 = vset.pattern.permute.xlu0 0
      %456 = vperm.xlu0 %455, %v431
      %v457 = vpop.permute.xlu0 %456
      %460 = vset.pattern.permute.xlu0 0
      %461 = vperm.xlu0 %460, %v433
      %v462 = vpop.permute.xlu0 %461
      %v464 = vmul.f32 %v282, %v437
      %v465 = vmul.f32 %v283, %v437
      %v466 = vmul.f32 %v284, %v442
      %v467 = vmul.f32 %v285, %v442
      %v468 = vmul.f32 %v286, %v447
      %v469 = vmul.f32 %v287, %v447
      %v470 = vmul.f32 %v288, %v452
      %v471 = vmul.f32 %v289, %v452
      %v472 = vmul.f32 %v290, %v457
      %v473 = vmul.f32 %v291, %v457
      %v474 = vmul.f32 %v292, %v462
      %v475 = vmul.f32 %v293, %v462
      %v476 = vpack.c.bf16 %v466, %v464
      %v477 = vpack.c.bf16 %v467, %v465
      %v478 = vpack.c.bf16 %v470, %v468
      %v479 = vpack.c.bf16 %v471, %v469
      %v480 = vpack.c.bf16 %v474, %v472
      %v481 = vpack.c.bf16 %v475, %v473
      %482 = vst [vmem:[#allocation2] sm:$0xff] 0
      %483 = vst [vmem:[#allocation2 + $0x20] sm:$0xff] 0
      %484 = vst [vmem:[#allocation2 + $0x40] sm:$0xff] 0
      %485 = vst [vmem:[#allocation2 + $0x18] sm:$0xff] 0
      %486 = vst [vmem:[#allocation2 + $0x38] sm:$0xff] 0
      %487 = vst [vmem:[#allocation2 + $0x58] sm:$0xff] 0
      %488 = vst [vmem:[#allocation2 + $0x8] sm:$0xff] %v476
      %489 = vst [vmem:[#allocation2 + $0x10] sm:$0xff] %v477
      %490 = vst [vmem:[#allocation2 + $0x28] sm:$0xff] %v478
      %491 = vst [vmem:[#allocation2 + $0x30] sm:$0xff] %v479
      %492 = vst [vmem:[#allocation2 + $0x48] sm:$0xff] %v480
      %493 = vst [vmem:[#allocation2 + $0x50] sm:$0xff] %v481
      %v494 = vlaneseq
      %v495 = vand.u32 %v494, 127
      %vm496 = vcmp.lt.s32.totalorder %v495, 0
      %v497 = vsub.s32 0, %v495
      %v498 = vsel %vm496, %v497, %v495
      %v499 = vshrl.u32 %v498, 4
      %v500 = vand.u32 %v498, 15
      %v501 = vsub.s32 0, %v500
      %v502 = vsel %vm496, %v501, %v500
      %vm503 = vcmp.ne.s32.totalorder %v502, 0
      %vm504 = vcmp.lt.s32.totalorder %v502, 0
      %vm505 = vmand %vm504, %vm503
      %v506 = vadd.s32 %v502, 16
      %v507 = vsel %vm505, %v506, %v502
      %vm508 = vcmp.eq.s32.totalorder %v507, 0
      %vm509 = vcmp.eq.s32.totalorder %v507, 15
      %v510 = vld [vmem:[%s5] sm:$0xff]
      %v511 = vld [vmem:[%s5 + $0x8] sm:$0xff]
      %v512 = vld [vmem:[%s5 + $0x10] sm:$0xff]
      %v513 = vld [vmem:[%s5 + $0x18] sm:$0xff]
      %v514 = vld [vmem:[%s5 + $0x20] sm:$0xff]
      %v515 = vld [vmem:[%s5 + $0x28] sm:$0xff]
      %v516 = vld [vmem:[%s5 + $0x30] sm:$0xff]
      %v517 = vld [vmem:[%s5 + $0x38] sm:$0xff]
      %v518 = vld [vmem:[%s5 + $0x40] sm:$0xff]
      %v519 = vld [vmem:[%s5 + $0x48] sm:$0xff]
      %v520 = vld [vmem:[%s5 + $0x50] sm:$0xff]
      %v521 = vld [vmem:[%s5 + $0x58] sm:$0xff]
      %v522 = vld [vmem:[%s6] sm:$0xff]
      %v523 = vld [vmem:[%s6 + $0x8] sm:$0xff]
      %v524 = vld [vmem:[%s6 + $0x10] sm:$0xff]
      %v525 = vld [vmem:[%s6 + $0x18] sm:$0xff]
      %v526 = vld [vmem:[%s6 + $0x20] sm:$0xff]
      %v527 = vld [vmem:[%s6 + $0x28] sm:$0xff]
      %v528 = vld [vmem:[#allocation2] sm:$0xff]
      %v529 = vld [vmem:[#allocation2 + $0x8] sm:$0xff]
      %v530 = vld [vmem:[#allocation2 + $0x20] sm:$0xff]
      %v531 = vld [vmem:[#allocation2 + $0x28] sm:$0xff]
      %v532 = vld [vmem:[#allocation2 + $0x40] sm:$0xff]
      %v533 = vld [vmem:[#allocation2 + $0x48] sm:$0xff]
      %v534 = vsel %vm508, 1, 0
      %vm535 = vcmp.eq.s32.totalorder %v534, 1
      %vm536 = vmpackc.low %vm535, %vm535
      %v537 = vsel %vm536, 65537, 0
      %v538 = vlaneseq
      %v539 = vshrl.u32 %v538, 7
      %v540 = vsub.s32 0, %v539
      %v541 = vrot.slane %v537, %v540
      %542 = vrot.lane.b32.xlu0 %v541, 111
      %v543 = vpop.permute.xlu0 %542
      %vm544 = vcmp.ne.s16.totalorder %v543, 0
      %v545 = vsel %vm544, 0, %v528
      %v546 = vsel %vm544, 0, %v529
      %v547 = vsel %vm544, 0, %v530
      %v548 = vsel %vm544, 0, %v531
      %v549 = vsel %vm544, 0, %v532
      %v550 = vsel %vm544, 0, %v533
      %v551 = vsel %vm509, 1, 0
      %vm552 = vcmp.eq.s32.totalorder %v551, 1
      %vm553 = vmpackc.low %vm552, %vm552
      %v554 = vsel %vm553, 65537, 0
      %v555 = vlaneseq
      %v556 = vshrl.u32 %v555, 7
      %v557 = vsub.s32 0, %v556
      %v558 = vrot.slane %v554, %v557
      %559 = vrot.lane.b32.xlu0 %v558, 113
      %v560 = vpop.permute.xlu0 %559
      %vm561 = vcmp.ne.s16.totalorder %v560, 0
      %v562 = vsel %vm561, 0, %v528
      %v563 = vsel %vm561, 0, %v529
      %v564 = vsel %vm561, 0, %v530
      %v565 = vsel %vm561, 0, %v531
      %v566 = vsel %vm561, 0, %v532
      %v567 = vsel %vm561, 0, %v533
      %568 = vrot.lane.b32.xlu0 %v541, 127
      %v569 = vpop.permute.xlu0 %568
      %vm570 = vcmp.ne.s16.totalorder %v569, 0
      %v571 = vsel %vm570, 0, %v528
      %v572 = vsel %vm570, 0, %v529
      %v573 = vsel %vm570, 0, %v530
      %v574 = vsel %vm570, 0, %v531
      %v575 = vsel %vm570, 0, %v532
      %v576 = vsel %vm570, 0, %v533
      %v577 = vld [vmem:[#allocation2 + $0x10] sm:$0xff]
      %v578 = vld [vmem:[#allocation2 + $0x30] sm:$0xff]
      %v579 = vld [vmem:[#allocation2 + $0x50] sm:$0xff]
      %580 = vrot.lane.b32.xlu0 %v558, 1
      %v581 = vpop.permute.xlu0 %580
      %vm582 = vcmp.ne.s16.totalorder %v581, 0
      %v583 = vsel %vm582, 0, %v529
      %v584 = vsel %vm582, 0, %v577
      %v585 = vsel %vm582, 0, %v531
      %v586 = vsel %vm582, 0, %v578
      %v587 = vsel %vm582, 0, %v533
      %v588 = vsel %vm582, 0, %v579
      %589 = vrot.lane.b32.xlu0 %v541, 15
      %v590 = vpop.permute.xlu0 %589
      %vm591 = vcmp.ne.s16.totalorder %v590, 0
      %v592 = vsel %vm591, 0, %v529
      %v593 = vsel %vm591, 0, %v577
      %v594 = vsel %vm591, 0, %v531
      %v595 = vsel %vm591, 0, %v578
      %v596 = vsel %vm591, 0, %v533
      %v597 = vsel %vm591, 0, %v579
      %598 = vrot.lane.b32.xlu0 %v558, 17
      %v599 = vpop.permute.xlu0 %598
      %vm600 = vcmp.ne.s16.totalorder %v599, 0
      %v601 = vsel %vm600, 0, %v529
      %v602 = vsel %vm600, 0, %v577
      %v603 = vsel %vm600, 0, %v531
      %v604 = vsel %vm600, 0, %v578
      %v605 = vsel %vm600, 0, %v533
      %v606 = vsel %vm600, 0, %v579
      %613 = vrot.lane.b32.xlu0 %v528, 127
      %v614 = vpop.permute.xlu0 %613
      %615 = vrot.lane.b32.xlu0 %v529, 127
      %v616 = vpop.permute.xlu0 %615
      %617 = vrot.lane.b32.xlu0 %v530, 127
      %v618 = vpop.permute.xlu0 %617
      %619 = vrot.lane.b32.xlu0 %v531, 127
      %v620 = vpop.permute.xlu0 %619
      %621 = vrot.lane.b32.xlu0 %v532, 127
      %v622 = vpop.permute.xlu0 %621
      %623 = vrot.lane.b32.xlu0 %v533, 127
      %v624 = vpop.permute.xlu0 %623
      %vm625 = vcmask 1039360
      %v626 = vsel %vm625, %v614, %v616
      %v627 = vsel %vm625, %v618, %v620
      %v628 = vsel %vm625, %v622, %v624
      %635 = vrot.lane.b32.xlu0 %v562, 126
      %v636 = vpop.permute.xlu0 %635
      %637 = vrot.lane.b32.xlu0 %v563, 126
      %v638 = vpop.permute.xlu0 %637
      %639 = vrot.lane.b32.xlu0 %v564, 126
      %v640 = vpop.permute.xlu0 %639
      %641 = vrot.lane.b32.xlu0 %v565, 126
      %v642 = vpop.permute.xlu0 %641
      %643 = vrot.lane.b32.xlu0 %v566, 126
      %v644 = vpop.permute.xlu0 %643
      %645 = vrot.lane.b32.xlu0 %v567, 126
      %v646 = vpop.permute.xlu0 %645
      %vm647 = vcmask 1031168
      %v648 = vsel %vm647, %v636, %v638
      %v649 = vsel %vm647, %v640, %v642
      %v650 = vsel %vm647, %v644, %v646
      %657 = vrot.lane.b32.xlu0 %v571, 112
      %v658 = vpop.permute.xlu0 %657
      %659 = vrot.lane.b32.xlu0 %v572, 112
      %v660 = vpop.permute.xlu0 %659
      %661 = vrot.lane.b32.xlu0 %v573, 112
      %v662 = vpop.permute.xlu0 %661
      %663 = vrot.lane.b32.xlu0 %v574, 112
      %v664 = vpop.permute.xlu0 %663
      %665 = vrot.lane.b32.xlu0 %v575, 112
      %v666 = vpop.permute.xlu0 %665
      %667 = vrot.lane.b32.xlu0 %v576, 112
      %v668 = vpop.permute.xlu0 %667
      %vm669 = vcmask 916480
      %v670 = vsel %vm669, %v658, %v660
      %v671 = vsel %vm669, %v662, %v664
      %v672 = vsel %vm669, %v666, %v668
      %673 = vrot.lane.b32.xlu0 %v529, 111
      %v674 = vpop.permute.xlu0 %673
      %675 = vrot.lane.b32.xlu0 %v531, 111
      %v676 = vpop.permute.xlu0 %675
      %677 = vrot.lane.b32.xlu0 %v533, 111
      %v678 = vpop.permute.xlu0 %677
      %685 = vrot.lane.b32.xlu0 %v583, 110
      %v686 = vpop.permute.xlu0 %685
      %687 = vrot.lane.b32.xlu0 %v584, 110
      %v688 = vpop.permute.xlu0 %687
      %689 = vrot.lane.b32.xlu0 %v585, 110
      %v690 = vpop.permute.xlu0 %689
      %691 = vrot.lane.b32.xlu0 %v586, 110
      %v692 = vpop.permute.xlu0 %691
      %693 = vrot.lane.b32.xlu0 %v587, 110
      %v694 = vpop.permute.xlu0 %693
      %695 = vrot.lane.b32.xlu0 %v588, 110
      %v696 = vpop.permute.xlu0 %695
      %vm697 = vcmask 900096
      %v698 = vsel %vm697, %v686, %v688
      %v699 = vsel %vm697, %v690, %v692
      %v700 = vsel %vm697, %v694, %v696
      %707 = vrot.lane.b32.xlu0 %v592, 96
      %v708 = vpop.permute.xlu0 %707
      %709 = vrot.lane.b32.xlu0 %v593, 96
      %v710 = vpop.permute.xlu0 %709
      %711 = vrot.lane.b32.xlu0 %v594, 96
      %v712 = vpop.permute.xlu0 %711
      %713 = vrot.lane.b32.xlu0 %v595, 96
      %v714 = vpop.permute.xlu0 %713
      %715 = vrot.lane.b32.xlu0 %v596, 96
      %v716 = vpop.permute.xlu0 %715
      %717 = vrot.lane.b32.xlu0 %v597, 96
      %v718 = vpop.permute.xlu0 %717
      %vm719 = vcmask 785408
      %v720 = vsel %vm719, %v708, %v710
      %v721 = vsel %vm719, %v712, %v714
      %v722 = vsel %vm719, %v716, %v718
      %726 = vrot.lane.b32.xlu0 %v529, 95
      %v727 = vpop.permute.xlu0 %726
      %728 = vrot.lane.b32.xlu0 %v577, 95
      %v729 = vpop.permute.xlu0 %728
      %730 = vrot.lane.b32.xlu0 %v531, 95
      %v731 = vpop.permute.xlu0 %730
      %732 = vrot.lane.b32.xlu0 %v578, 95
      %v733 = vpop.permute.xlu0 %732
      %734 = vrot.lane.b32.xlu0 %v533, 95
      %v735 = vpop.permute.xlu0 %734
      %736 = vrot.lane.b32.xlu0 %v579, 95
      %v737 = vpop.permute.xlu0 %736
      %vm738 = vcmask 777216
      %v739 = vsel %vm738, %v727, %v729
      %v740 = vsel %vm738, %v731, %v733
      %v741 = vsel %vm738, %v735, %v737
      %748 = vrot.lane.b32.xlu0 %v601, 94
      %v749 = vpop.permute.xlu0 %748
      %750 = vrot.lane.b32.xlu0 %v602, 94
      %v751 = vpop.permute.xlu0 %750
      %752 = vrot.lane.b32.xlu0 %v603, 94
      %v753 = vpop.permute.xlu0 %752
      %754 = vrot.lane.b32.xlu0 %v604, 94
      %v755 = vpop.permute.xlu0 %754
      %756 = vrot.lane.b32.xlu0 %v605, 94
      %v757 = vpop.permute.xlu0 %756
      %758 = vrot.lane.b32.xlu0 %v606, 94
      %v759 = vpop.permute.xlu0 %758
      %vm760 = vcmask 769024
      %v761 = vsel %vm760, %v749, %v751
      %v762 = vsel %vm760, %v753, %v755
      %v763 = vsel %vm760, %v757, %v759
      %765 = vset.pattern.permute.xlu0 0
      %766 = vperm.xlu0 %765, %v522
      %v767 = vpop.permute.xlu0 %766
      %770 = vset.pattern.permute.xlu0 0
      %771 = vperm.xlu0 %770, %v523
      %v772 = vpop.permute.xlu0 %771
      %775 = vset.pattern.permute.xlu0 0
      %776 = vperm.xlu0 %775, %v524
      %v777 = vpop.permute.xlu0 %776
      %780 = vset.pattern.permute.xlu0 0
      %781 = vperm.xlu0 %780, %v525
      %v782 = vpop.permute.xlu0 %781
      %785 = vset.pattern.permute.xlu0 0
      %786 = vperm.xlu0 %785, %v526
      %v787 = vpop.permute.xlu0 %786
      %790 = vset.pattern.permute.xlu0 0
      %791 = vperm.xlu0 %790, %v527
      %v792 = vpop.permute.xlu0 %791
      %v806 = vunpack.c.l.b16 %v510
      %v807 = vunpack.c.h.b16 %v510
      %v808 = vunpack.c.l.b16 %v511
      %v809 = vunpack.c.h.b16 %v511
      %v810 = vunpack.c.l.b16 %v512
      %v811 = vunpack.c.h.b16 %v512
      %v812 = vunpack.c.l.b16 %v513
      %v813 = vunpack.c.h.b16 %v513
      %v814 = vunpack.c.l.b16 %v514
      %v815 = vunpack.c.h.b16 %v514
      %v816 = vunpack.c.l.b16 %v515
      %v817 = vunpack.c.h.b16 %v515
      %v818 = vunpack.c.l.b16 %v516
      %v819 = vunpack.c.h.b16 %v516
      %v820 = vunpack.c.l.b16 %v517
      %v821 = vunpack.c.h.b16 %v517
      %v822 = vunpack.c.l.b16 %v518
      %v823 = vunpack.c.h.b16 %v518
      %v824 = vunpack.c.l.b16 %v519
      %v825 = vunpack.c.h.b16 %v519
      %v826 = vunpack.c.l.b16 %v520
      %v827 = vunpack.c.h.b16 %v520
      %v828 = vunpack.c.l.b16 %v521
      %v829 = vunpack.c.h.b16 %v521
      %v830 = vpack.c.b16 %v810, %v806
      %v831 = vpack.c.b16 %v811, %v807
      %v832 = vpack.c.b16 %v812, %v808
      %v833 = vpack.c.b16 %v813, %v809
      %v834 = vpack.c.b16 %v818, %v814
      %v835 = vpack.c.b16 %v819, %v815
      %v836 = vpack.c.b16 %v820, %v816
      %v837 = vpack.c.b16 %v821, %v817
      %v838 = vpack.c.b16 %v826, %v822
      %v839 = vpack.c.b16 %v827, %v823
      %v840 = vpack.c.b16 %v828, %v824
      %v841 = vpack.c.b16 %v829, %v825
      %857 = vrot.lane.b32.xlu0 %v545, 17
      %v858 = vpop.permute.xlu0 %857
      %859 = vrot.lane.b32.xlu0 %v546, 17
      %v860 = vpop.permute.xlu0 %859
      %861 = vrot.lane.b32.xlu0 %v547, 17
      %v862 = vpop.permute.xlu0 %861
      %863 = vrot.lane.b32.xlu0 %v548, 17
      %v864 = vpop.permute.xlu0 %863
      %865 = vrot.lane.b32.xlu0 %v549, 17
      %v866 = vpop.permute.xlu0 %865
      %867 = vrot.lane.b32.xlu0 %v550, 17
      %v868 = vpop.permute.xlu0 %867
      %869 = vrot.lane.b32.xlu0 %v626, 17
      %v870 = vpop.permute.xlu0 %869
      %871 = vrot.lane.b32.xlu0 %v616, 17
      %v872 = vpop.permute.xlu0 %871
      %873 = vrot.lane.b32.xlu0 %v627, 17
      %v874 = vpop.permute.xlu0 %873
      %875 = vrot.lane.b32.xlu0 %v620, 17
      %v876 = vpop.permute.xlu0 %875
      %877 = vrot.lane.b32.xlu0 %v628, 17
      %v878 = vpop.permute.xlu0 %877
      %879 = vrot.lane.b32.xlu0 %v624, 17
      %v880 = vpop.permute.xlu0 %879
      %881 = vrot.lane.b32.xlu0 %v648, 17
      %v882 = vpop.permute.xlu0 %881
      %883 = vrot.lane.b32.xlu0 %v638, 17
      %v884 = vpop.permute.xlu0 %883
      %885 = vrot.lane.b32.xlu0 %v649, 17
      %v886 = vpop.permute.xlu0 %885
      %887 = vrot.lane.b32.xlu0 %v642, 17
      %v888 = vpop.permute.xlu0 %887
      %889 = vrot.lane.b32.xlu0 %v650, 17
      %v890 = vpop.permute.xlu0 %889
      %891 = vrot.lane.b32.xlu0 %v646, 17
      %v892 = vpop.permute.xlu0 %891
      %893 = vrot.lane.b32.xlu0 %v670, 17
      %v894 = vpop.permute.xlu0 %893
      %895 = vrot.lane.b32.xlu0 %v660, 17
      %v896 = vpop.permute.xlu0 %895
      %897 = vrot.lane.b32.xlu0 %v671, 17
      %v898 = vpop.permute.xlu0 %897
      %899 = vrot.lane.b32.xlu0 %v664, 17
      %v900 = vpop.permute.xlu0 %899
      %901 = vrot.lane.b32.xlu0 %v672, 17
      %v902 = vpop.permute.xlu0 %901
      %903 = vrot.lane.b32.xlu0 %v668, 17
      %v904 = vpop.permute.xlu0 %903
      %905 = vrot.lane.b32.xlu0 %v674, 17
      %v906 = vpop.permute.xlu0 %905
      %907 = vrot.lane.b32.xlu0 %v676, 17
      %v908 = vpop.permute.xlu0 %907
      %909 = vrot.lane.b32.xlu0 %v678, 17
      %v910 = vpop.permute.xlu0 %909
      %911 = vrot.lane.b32.xlu0 %v686, 17
      %v912 = vpop.permute.xlu0 %911
      %913 = vrot.lane.b32.xlu0 %v698, 17
      %v914 = vpop.permute.xlu0 %913
      %915 = vrot.lane.b32.xlu0 %v690, 17
      %v916 = vpop.permute.xlu0 %915
      %917 = vrot.lane.b32.xlu0 %v699, 17
      %v918 = vpop.permute.xlu0 %917
      %919 = vrot.lane.b32.xlu0 %v694, 17
      %v920 = vpop.permute.xlu0 %919
      %921 = vrot.lane.b32.xlu0 %v700, 17
      %v922 = vpop.permute.xlu0 %921
      %923 = vrot.lane.b32.xlu0 %v708, 17
      %v924 = vpop.permute.xlu0 %923
      %925 = vrot.lane.b32.xlu0 %v720, 17
      %v926 = vpop.permute.xlu0 %925
      %927 = vrot.lane.b32.xlu0 %v712, 17
      %v928 = vpop.permute.xlu0 %927
      %929 = vrot.lane.b32.xlu0 %v721, 17
      %v930 = vpop.permute.xlu0 %929
      %931 = vrot.lane.b32.xlu0 %v716, 17
      %v932 = vpop.permute.xlu0 %931
      %933 = vrot.lane.b32.xlu0 %v722, 17
      %v934 = vpop.permute.xlu0 %933
      %935 = vrot.lane.b32.xlu0 %v727, 17
      %v936 = vpop.permute.xlu0 %935
      %937 = vrot.lane.b32.xlu0 %v739, 17
      %v938 = vpop.permute.xlu0 %937
      %939 = vrot.lane.b32.xlu0 %v731, 17
      %v940 = vpop.permute.xlu0 %939
      %941 = vrot.lane.b32.xlu0 %v740, 17
      %v942 = vpop.permute.xlu0 %941
      %943 = vrot.lane.b32.xlu0 %v735, 17
      %v944 = vpop.permute.xlu0 %943
      %945 = vrot.lane.b32.xlu0 %v741, 17
      %v946 = vpop.permute.xlu0 %945
      %947 = vrot.lane.b32.xlu0 %v749, 17
      %v948 = vpop.permute.xlu0 %947
      %949 = vrot.lane.b32.xlu0 %v761, 17
      %v950 = vpop.permute.xlu0 %949
      %951 = vrot.lane.b32.xlu0 %v753, 17
      %v952 = vpop.permute.xlu0 %951
      %953 = vrot.lane.b32.xlu0 %v762, 17
      %v954 = vpop.permute.xlu0 %953
      %955 = vrot.lane.b32.xlu0 %v757, 17
      %v956 = vpop.permute.xlu0 %955
      %957 = vrot.lane.b32.xlu0 %v763, 17
      %v958 = vpop.permute.xlu0 %957
      %vm959 = vcmask 138240
      %v960 = vsel %vm959, %v858, %v860
      %v961 = vsel %vm959, %v862, %v864
      %v962 = vsel %vm959, %v866, %v868
      %v963 = vsel %vm959, %v870, %v872
      %v964 = vsel %vm959, %v874, %v876
      %v965 = vsel %vm959, %v878, %v880
      %v966 = vsel %vm959, %v882, %v884
      %v967 = vsel %vm959, %v886, %v888
      %v968 = vsel %vm959, %v890, %v892
      %v969 = vsel %vm959, %v894, %v896
      %v970 = vsel %vm959, %v898, %v900
      %v971 = vsel %vm959, %v902, %v904
      %v972 = vsel %vm959, %v912, %v914
      %v973 = vsel %vm959, %v916, %v918
      %v974 = vsel %vm959, %v920, %v922
      %v975 = vsel %vm959, %v924, %v926
      %v976 = vsel %vm959, %v928, %v930
      %v977 = vsel %vm959, %v932, %v934
      %v978 = vsel %vm959, %v936, %v938
      %v979 = vsel %vm959, %v940, %v942
      %v980 = vsel %vm959, %v944, %v946
      %v981 = vsel %vm959, %v948, %v950
      %v982 = vsel %vm959, %v952, %v954
      %v983 = vsel %vm959, %v956, %v958
      %vm1011 = vcmask 392192
      %v1013 = vsel %vm1011, %v833, 0
      %v1016 = vsel %vm1011, %v837, 0
      %v1019 = vsel %vm1011, %v841, 0
      %1021 = vmatprep.subr.bf16.mxu0 0
      %1022 = vmatpush1.bf16.msra.mxu0 %v960
      %1023 = vmatprep.subr.bf16.mxu0 0
      %1024 = vmatpush1.bf16.msra.mxu0 %v961
      %1025 = vmatprep.subr.bf16.mxu0 0
      %1026 = vmatpush1.bf16.msra.mxu0 %v962
      %1027 = vmatprep.subr.bf16.mxu0 0
      %1028 = vmatpush1.bf16.msra.mxu0 %v963
      %1029 = vmatprep.subr.bf16.mxu0 0
      %1030 = vmatpush1.bf16.msra.mxu0 %v964
      %1031 = vmatprep.subr.bf16.mxu0 0
      %1032 = vmatpush1.bf16.msra.mxu0 %v965
      %1033 = vmatprep.subr.bf16.mxu0 0
      %1034 = vmatpush1.bf16.msra.mxu0 %v966
      %1035 = vmatprep.subr.bf16.mxu0 0
      %1036 = vmatpush1.bf16.msra.mxu0 %v967
      %1037 = vmatprep.subr.bf16.mxu0 0
      %1038 = vmatpush1.bf16.msra.mxu0 %v968
      %1039 = vmatprep.subr.bf16.mxu0 0
      %1040 = vmatpush1.bf16.msra.mxu0 %v969
      %1041 = vmatprep.subr.bf16.mxu0 0
      %1042 = vmatpush1.bf16.msra.mxu0 %v970
      %1043 = vmatprep.subr.bf16.mxu0 0
      %1044 = vmatpush1.bf16.msra.mxu0 %v971
      %1045 = vmatprep.subr.bf16.mxu0 0
      %1046 = vmatpush1.bf16.msra.mxu0 %v906
      %1047 = vmatprep.subr.bf16.mxu0 0
      %1048 = vmatpush1.bf16.msra.mxu0 %v908
      %1049 = vmatprep.subr.bf16.mxu0 0
      %1050 = vmatpush1.bf16.msra.mxu0 %v910
      %1051 = vmatprep.subr.bf16.mxu0 0
      %1052 = vmatpush1.bf16.msra.mxu0 %v972
      %1053 = vmatprep.mubr.bf16.mxu0 %v831
      %1054 = vmatmul.mubr.bf16.gmra.mrb[0].mxu0 %v830
      %v1055 = vpop.f32.mrb[0].mxu0
      %v1056 = vadd.f32 %v767, %v1055
      %v1057 = vpop.f32.mrb[0].mxu0
      %v1058 = vpop.f32.mrb[0].mxu0
      %v1059 = vadd.f32 %v772, %v1058
      %v1060 = vpop.f32.mrb[0].mxu0
      %1061 = vmatprep.mubr.bf16.mxu0 %v835
      %1062 = vmatmul.mubr.bf16.gmra.mrb[0].mxu0 %v834
      %v1063 = vpop.f32.mrb[0].mxu0
      %v1064 = vadd.f32 %v777, %v1063
      %v1065 = vpop.f32.mrb[0].mxu0
      %v1066 = vpop.f32.mrb[0].mxu0
      %v1067 = vadd.f32 %v782, %v1066
      %v1068 = vpop.f32.mrb[0].mxu0
      %1069 = vmatprep.mubr.bf16.mxu0 %v839
      %1070 = vmatmul.mubr.bf16.gmra.mrb[0].mxu0 %v838
      %v1071 = vpop.f32.mrb[0].mxu0
      %v1072 = vadd.f32 %v787, %v1071
      %v1073 = vpop.f32.mrb[0].mxu0
      %v1074 = vpop.f32.mrb[0].mxu0
      %v1075 = vadd.f32 %v792, %v1074
      %v1076 = vpop.f32.mrb[0].mxu0
      %1077 = vdwg.mxu0
      %1078 = vmatprep.subr.bf16.mxu0 0
      %1079 = vmatpush1.bf16.msra.mxu0 %v973
      %1080 = vmatprep.subr.bf16.mxu0 0
      %1081 = vmatpush1.bf16.msra.mxu0 %v974
      %1082 = vmatprep.subr.bf16.mxu0 0
      %1083 = vmatpush1.bf16.msra.mxu0 %v975
      %1084 = vmatprep.subr.bf16.mxu0 0
      %1085 = vmatpush1.bf16.msra.mxu0 %v976
      %1086 = vmatprep.subr.bf16.mxu0 0
      %1087 = vmatpush1.bf16.msra.mxu0 %v977
      %1088 = vmatprep.subr.bf16.mxu0 0
      %1089 = vmatpush1.bf16.msra.mxu0 %v978
      %1090 = vmatprep.subr.bf16.mxu0 0
      %1091 = vmatpush1.bf16.msra.mxu0 %v979
      %1092 = vmatprep.subr.bf16.mxu0 0
      %1093 = vmatpush1.bf16.msra.mxu0 %v980
      %1094 = vmatprep.subr.bf16.mxu0 0
      %1095 = vmatpush1.bf16.msra.mxu0 %v981
      %1096 = vmatprep.subr.bf16.mxu0 0
      %1097 = vmatpush1.bf16.msra.mxu0 %v982
      %1098 = vmatprep.subr.bf16.mxu0 0
      %1099 = vmatpush1.bf16.msra.mxu0 %v983
      %1100 = vmatprep.subr.bf16.mxu0 0
      %1101 = vmatpush1.bf16.msra.mxu0 0
      %1102 = vmatprep.subr.bf16.mxu0 0
      %1103 = vmatpush1.bf16.msra.mxu0 0
      %1104 = vmatprep.subr.bf16.mxu0 0
      %1105 = vmatpush1.bf16.msra.mxu0 0
      %1106 = vmatprep.subr.bf16.mxu0 0
      %1107 = vmatpush1.bf16.msra.mxu0 0
      %1108 = vmatprep.subr.bf16.mxu0 0
      %1109 = vmatpush1.bf16.msra.mxu0 0
      %1110 = vmatprep.mubr.bf16.mxu0 %v1013
      %1111 = vmatmul.mubr.bf16.gmra.mrb[0].mxu0 %v832
      %v1112 = vpop.f32.mrb[0].mxu0
      %v1113 = vadd.f32 %v1056, %v1112
      %v1114 = vpop.f32.mrb[0].mxu0
      %v1115 = vpop.f32.mrb[0].mxu0
      %v1116 = vadd.f32 %v1059, %v1115
      %v1117 = vpop.f32.mrb[0].mxu0
      %1118 = vmatprep.mubr.bf16.mxu0 %v1016
      %1119 = vmatmul.mubr.bf16.gmra.mrb[0].mxu0 %v836
      %v1120 = vpop.f32.mrb[0].mxu0
      %v1121 = vadd.f32 %v1064, %v1120
      %v1122 = vpop.f32.mrb[0].mxu0
      %v1123 = vpop.f32.mrb[0].mxu0
      %v1124 = vadd.f32 %v1067, %v1123
      %v1125 = vpop.f32.mrb[0].mxu0
      %1126 = vmatprep.mubr.bf16.mxu0 %v1019
      %1127 = vmatmul.mubr.bf16.gmra.mrb[0].mxu0 %v840
      %v1128 = vpop.f32.mrb[0].mxu0
      %v1129 = vadd.f32 %v1072, %v1128
      %v1130 = vpop.f32.mrb[0].mxu0
      %v1131 = vpop.f32.mrb[0].mxu0
      %v1132 = vadd.f32 %v1075, %v1131
      %v1133 = vpop.f32.mrb[0].mxu0
      %1134 = vdwg.mxu0
      %1135 = vst [vmem:[%s278] sm:$0xff] %v1113
      %1136 = vst [vmem:[%s278 + $0x10] sm:$0xff] %v1116
      %1137 = vst [vmem:[%s278 + $0x20] sm:$0xff] %v1121
      %1138 = vst [vmem:[%s278 + $0x30] sm:$0xff] %v1124
      %1139 = vst [vmem:[%s278 + $0x40] sm:$0xff] %v1129
      %1140 = vst [vmem:[%s278 + $0x50] sm:$0xff] %v1132
      %v1141 = vld [vmem:[#allocation2 + $0x8] sm:$0xff]
      %v1142 = vld [vmem:[#allocation2 + $0x10] sm:$0xff]
      %v1143 = vld [vmem:[#allocation2 + $0x28] sm:$0xff]
      %v1144 = vld [vmem:[#allocation2 + $0x30] sm:$0xff]
      %v1145 = vld [vmem:[#allocation2 + $0x48] sm:$0xff]
      %v1146 = vld [vmem:[#allocation2 + $0x50] sm:$0xff]
      %v1147 = vsel %vm544, 0, %v1141
      %v1148 = vsel %vm544, 0, %v1142
      %v1149 = vsel %vm544, 0, %v1143
      %v1150 = vsel %vm544, 0, %v1144
      %v1151 = vsel %vm544, 0, %v1145
      %v1152 = vsel %vm544, 0, %v1146
      %v1153 = vsel %vm561, 0, %v1141
      %v1154 = vsel %vm561, 0, %v1142
      %v1155 = vsel %vm561, 0, %v1143
      %v1156 = vsel %vm561, 0, %v1144
      %v1157 = vsel %vm561, 0, %v1145
      %v1158 = vsel %vm561, 0, %v1146
      %v1159 = vsel %vm570, 0, %v1141
      %v1160 = vsel %vm570, 0, %v1142
      %v1161 = vsel %vm570, 0, %v1143
      %v1162 = vsel %vm570, 0, %v1144
      %v1163 = vsel %vm570, 0, %v1145
      %v1164 = vsel %vm570, 0, %v1146
      %v1165 = vld [vmem:[#allocation2 + $0x10] sm:$0xff]
      %v1166 = vld [vmem:[#allocation2 + $0x18] sm:$0xff]
      %v1167 = vld [vmem:[#allocation2 + $0x30] sm:$0xff]
      %v1168 = vld [vmem:[#allocation2 + $0x38] sm:$0xff]
      %v1169 = vld [vmem:[#allocation2 + $0x50] sm:$0xff]
      %v1170 = vld [vmem:[#allocation2 + $0x58] sm:$0xff]
      %v1171 = vsel %vm582, 0, %v1165
      %v1172 = vsel %vm582, 0, %v1166
      %v1173 = vsel %vm582, 0, %v1167
      %v1174 = vsel %vm582, 0, %v1168
      %v1175 = vsel %vm582, 0, %v1169
      %v1176 = vsel %vm582, 0, %v1170
      %v1177 = vsel %vm591, 0, %v1165
      %v1178 = vsel %vm591, 0, %v1166
      %v1179 = vsel %vm591, 0, %v1167
      %v1180 = vsel %vm591, 0, %v1168
      %v1181 = vsel %vm591, 0, %v1169
      %v1182 = vsel %vm591, 0, %v1170
      %v1183 = vsel %vm600, 0, %v1165
      %v1184 = vsel %vm600, 0, %v1166
      %v1185 = vsel %vm600, 0, %v1167
      %v1186 = vsel %vm600, 0, %v1168
      %v1187 = vsel %vm600, 0, %v1169
      %v1188 = vsel %vm600, 0, %v1170
      %1195 = vrot.lane.b32.xlu0 %v1141, 127
      %v1196 = vpop.permute.xlu0 %1195
      %1197 = vrot.lane.b32.xlu0 %v1142, 127
      %v1198 = vpop.permute.xlu0 %1197
      %1199 = vrot.lane.b32.xlu0 %v1143, 127
      %v1200 = vpop.permute.xlu0 %1199
      %1201 = vrot.lane.b32.xlu0 %v1144, 127
      %v1202 = vpop.permute.xlu0 %1201
      %1203 = vrot.lane.b32.xlu0 %v1145, 127
      %v1204 = vpop.permute.xlu0 %1203
      %1205 = vrot.lane.b32.xlu0 %v1146, 127
      %v1206 = vpop.permute.xlu0 %1205
      %v1207 = vsel %vm625, %v1196, %v1198
      %v1208 = vsel %vm625, %v1200, %v1202
      %v1209 = vsel %vm625, %v1204, %v1206
      %1216 = vrot.lane.b32.xlu0 %v1153, 126
      %v1217 = vpop.permute.xlu0 %1216
      %1218 = vrot.lane.b32.xlu0 %v1154, 126
      %v1219 = vpop.permute.xlu0 %1218
      %1220 = vrot.lane.b32.xlu0 %v1155, 126
      %v1221 = vpop.permute.xlu0 %1220
      %1222 = vrot.lane.b32.xlu0 %v1156, 126
      %v1223 = vpop.permute.xlu0 %1222
      %1224 = vrot.lane.b32.xlu0 %v1157, 126
      %v1225 = vpop.permute.xlu0 %1224
      %1226 = vrot.lane.b32.xlu0 %v1158, 126
      %v1227 = vpop.permute.xlu0 %1226
      %v1228 = vsel %vm647, %v1217, %v1219
      %v1229 = vsel %vm647, %v1221, %v1223
      %v1230 = vsel %vm647, %v1225, %v1227
      %1237 = vrot.lane.b32.xlu0 %v1159, 112
      %v1238 = vpop.permute.xlu0 %1237
      %1239 = vrot.lane.b32.xlu0 %v1160, 112
      %v1240 = vpop.permute.xlu0 %1239
      %1241 = vrot.lane.b32.xlu0 %v1161, 112
      %v1242 = vpop.permute.xlu0 %1241
      %1243 = vrot.lane.b32.xlu0 %v1162, 112
      %v1244 = vpop.permute.xlu0 %1243
      %1245 = vrot.lane.b32.xlu0 %v1163, 112
      %v1246 = vpop.permute.xlu0 %1245
      %1247 = vrot.lane.b32.xlu0 %v1164, 112
      %v1248 = vpop.permute.xlu0 %1247
      %v1249 = vsel %vm669, %v1238, %v1240
      %v1250 = vsel %vm669, %v1242, %v1244
      %v1251 = vsel %vm669, %v1246, %v1248
      %1252 = vrot.lane.b32.xlu0 %v1142, 111
      %v1253 = vpop.permute.xlu0 %1252
      %1254 = vrot.lane.b32.xlu0 %v1144, 111
      %v1255 = vpop.permute.xlu0 %1254
      %1256 = vrot.lane.b32.xlu0 %v1146, 111
      %v1257 = vpop.permute.xlu0 %1256
      %1264 = vrot.lane.b32.xlu0 %v1171, 110
      %v1265 = vpop.permute.xlu0 %1264
      %1266 = vrot.lane.b32.xlu0 %v1172, 110
      %v1267 = vpop.permute.xlu0 %1266
      %1268 = vrot.lane.b32.xlu0 %v1173, 110
      %v1269 = vpop.permute.xlu0 %1268
      %1270 = vrot.lane.b32.xlu0 %v1174, 110
      %v1271 = vpop.permute.xlu0 %1270
      %1272 = vrot.lane.b32.xlu0 %v1175, 110
      %v1273 = vpop.permute.xlu0 %1272
      %1274 = vrot.lane.b32.xlu0 %v1176, 110
      %v1275 = vpop.permute.xlu0 %1274
      %v1276 = vsel %vm697, %v1265, %v1267
      %v1277 = vsel %vm697, %v1269, %v1271
      %v1278 = vsel %vm697, %v1273, %v1275
      %1285 = vrot.lane.b32.xlu0 %v1177, 96
      %v1286 = vpop.permute.xlu0 %1285
      %1287 = vrot.lane.b32.xlu0 %v1178, 96
      %v1288 = vpop.permute.xlu0 %1287
      %1289 = vrot.lane.b32.xlu0 %v1179, 96
      %v1290 = vpop.permute.xlu0 %1289
      %1291 = vrot.lane.b32.xlu0 %v1180, 96
      %v1292 = vpop.permute.xlu0 %1291
      %1293 = vrot.lane.b32.xlu0 %v1181, 96
      %v1294 = vpop.permute.xlu0 %1293
      %1295 = vrot.lane.b32.xlu0 %v1182, 96
      %v1296 = vpop.permute.xlu0 %1295
      %v1297 = vsel %vm719, %v1286, %v1288
      %v1298 = vsel %vm719, %v1290, %v1292
      %v1299 = vsel %vm719, %v1294, %v1296
      %1306 = vrot.lane.b32.xlu0 %v1165, 95
      %v1307 = vpop.permute.xlu0 %1306
      %1308 = vrot.lane.b32.xlu0 %v1166, 95
      %v1309 = vpop.permute.xlu0 %1308
      %1310 = vrot.lane.b32.xlu0 %v1167, 95
      %v1311 = vpop.permute.xlu0 %1310
      %1312 = vrot.lane.b32.xlu0 %v1168, 95
      %v1313 = vpop.permute.xlu0 %1312
      %1314 = vrot.lane.b32.xlu0 %v1169, 95
      %v1315 = vpop.permute.xlu0 %1314
      %1316 = vrot.lane.b32.xlu0 %v1170, 95
      %v1317 = vpop.permute.xlu0 %1316
      %v1318 = vsel %vm738, %v1307, %v1309
      %v1319 = vsel %vm738, %v1311, %v1313
      %v1320 = vsel %vm738, %v1315, %v1317
      %1327 = vrot.lane.b32.xlu0 %v1183, 94
      %v1328 = vpop.permute.xlu0 %1327
      %1329 = vrot.lane.b32.xlu0 %v1184, 94
      %v1330 = vpop.permute.xlu0 %1329
      %1331 = vrot.lane.b32.xlu0 %v1185, 94
      %v1332 = vpop.permute.xlu0 %1331
      %1333 = vrot.lane.b32.xlu0 %v1186, 94
      %v1334 = vpop.permute.xlu0 %1333
      %1335 = vrot.lane.b32.xlu0 %v1187, 94
      %v1336 = vpop.permute.xlu0 %1335
      %1337 = vrot.lane.b32.xlu0 %v1188, 94
      %v1338 = vpop.permute.xlu0 %1337
      %v1339 = vsel %vm760, %v1328, %v1330
      %v1340 = vsel %vm760, %v1332, %v1334
      %v1341 = vsel %vm760, %v1336, %v1338
      %1348 = vrot.lane.b32.xlu0 %v1147, 17
      %v1349 = vpop.permute.xlu0 %1348
      %1350 = vrot.lane.b32.xlu0 %v1148, 17
      %v1351 = vpop.permute.xlu0 %1350
      %1352 = vrot.lane.b32.xlu0 %v1149, 17
      %v1353 = vpop.permute.xlu0 %1352
      %1354 = vrot.lane.b32.xlu0 %v1150, 17
      %v1355 = vpop.permute.xlu0 %1354
      %1356 = vrot.lane.b32.xlu0 %v1151, 17
      %v1357 = vpop.permute.xlu0 %1356
      %1358 = vrot.lane.b32.xlu0 %v1152, 17
      %v1359 = vpop.permute.xlu0 %1358
      %1360 = vrot.lane.b32.xlu0 %v1207, 17
      %v1361 = vpop.permute.xlu0 %1360
      %1362 = vrot.lane.b32.xlu0 %v1198, 17
      %v1363 = vpop.permute.xlu0 %1362
      %1364 = vrot.lane.b32.xlu0 %v1208, 17
      %v1365 = vpop.permute.xlu0 %1364
      %1366 = vrot.lane.b32.xlu0 %v1202, 17
      %v1367 = vpop.permute.xlu0 %1366
      %1368 = vrot.lane.b32.xlu0 %v1209, 17
      %v1369 = vpop.permute.xlu0 %1368
      %1370 = vrot.lane.b32.xlu0 %v1206, 17
      %v1371 = vpop.permute.xlu0 %1370
      %1372 = vrot.lane.b32.xlu0 %v1228, 17
      %v1373 = vpop.permute.xlu0 %1372
      %1374 = vrot.lane.b32.xlu0 %v1219, 17
      %v1375 = vpop.permute.xlu0 %1374
      %1376 = vrot.lane.b32.xlu0 %v1229, 17
      %v1377 = vpop.permute.xlu0 %1376
      %1378 = vrot.lane.b32.xlu0 %v1223, 17
      %v1379 = vpop.permute.xlu0 %1378
      %1380 = vrot.lane.b32.xlu0 %v1230, 17
      %v1381 = vpop.permute.xlu0 %1380
      %1382 = vrot.lane.b32.xlu0 %v1227, 17
      %v1383 = vpop.permute.xlu0 %1382
      %1384 = vrot.lane.b32.xlu0 %v1249, 17
      %v1385 = vpop.permute.xlu0 %1384
      %1386 = vrot.lane.b32.xlu0 %v1240, 17
      %v1387 = vpop.permute.xlu0 %1386
      %1388 = vrot.lane.b32.xlu0 %v1250, 17
      %v1389 = vpop.permute.xlu0 %1388
      %1390 = vrot.lane.b32.xlu0 %v1244, 17
      %v1391 = vpop.permute.xlu0 %1390
      %1392 = vrot.lane.b32.xlu0 %v1251, 17
      %v1393 = vpop.permute.xlu0 %1392
      %1394 = vrot.lane.b32.xlu0 %v1248, 17
      %v1395 = vpop.permute.xlu0 %1394
      %1396 = vrot.lane.b32.xlu0 %v1253, 17
      %v1397 = vpop.permute.xlu0 %1396
      %1398 = vrot.lane.b32.xlu0 %v1255, 17
      %v1399 = vpop.permute.xlu0 %1398
      %1400 = vrot.lane.b32.xlu0 %v1257, 17
      %v1401 = vpop.permute.xlu0 %1400
      %1402 = vrot.lane.b32.xlu0 %v1265, 17
      %v1403 = vpop.permute.xlu0 %1402
      %1404 = vrot.lane.b32.xlu0 %v1276, 17
      %v1405 = vpop.permute.xlu0 %1404
      %1406 = vrot.lane.b32.xlu0 %v1269, 17
      %v1407 = vpop.permute.xlu0 %1406
      %1408 = vrot.lane.b32.xlu0 %v1277, 17
      %v1409 = vpop.permute.xlu0 %1408
      %1410 = vrot.lane.b32.xlu0 %v1273, 17
      %v1411 = vpop.permute.xlu0 %1410
      %1412 = vrot.lane.b32.xlu0 %v1278, 17
      %v1413 = vpop.permute.xlu0 %1412
      %1414 = vrot.lane.b32.xlu0 %v1286, 17
      %v1415 = vpop.permute.xlu0 %1414
      %1416 = vrot.lane.b32.xlu0 %v1297, 17
      %v1417 = vpop.permute.xlu0 %1416
      %1418 = vrot.lane.b32.xlu0 %v1290, 17
      %v1419 = vpop.permute.xlu0 %1418
      %1420 = vrot.lane.b32.xlu0 %v1298, 17
      %v1421 = vpop.permute.xlu0 %1420
      %1422 = vrot.lane.b32.xlu0 %v1294, 17
      %v1423 = vpop.permute.xlu0 %1422
      %1424 = vrot.lane.b32.xlu0 %v1299, 17
      %v1425 = vpop.permute.xlu0 %1424
      %1426 = vrot.lane.b32.xlu0 %v1307, 17
      %v1427 = vpop.permute.xlu0 %1426
      %1428 = vrot.lane.b32.xlu0 %v1318, 17
      %v1429 = vpop.permute.xlu0 %1428
      %1430 = vrot.lane.b32.xlu0 %v1311, 17
      %v1431 = vpop.permute.xlu0 %1430
      %1432 = vrot.lane.b32.xlu0 %v1319, 17
      %v1433 = vpop.permute.xlu0 %1432
      %1434 = vrot.lane.b32.xlu0 %v1315, 17
      %v1435 = vpop.permute.xlu0 %1434
      %1436 = vrot.lane.b32.xlu0 %v1320, 17
      %v1437 = vpop.permute.xlu0 %1436
      %1438 = vrot.lane.b32.xlu0 %v1328, 17
      %v1439 = vpop.permute.xlu0 %1438
      %1440 = vrot.lane.b32.xlu0 %v1339, 17
      %v1441 = vpop.permute.xlu0 %1440
      %1442 = vrot.lane.b32.xlu0 %v1332, 17
      %v1443 = vpop.permute.xlu0 %1442
      %1444 = vrot.lane.b32.xlu0 %v1340, 17
      %v1445 = vpop.permute.xlu0 %1444
      %1446 = vrot.lane.b32.xlu0 %v1336, 17
      %v1447 = vpop.permute.xlu0 %1446
      %1448 = vrot.lane.b32.xlu0 %v1341, 17
      %v1449 = vpop.permute.xlu0 %1448
      %v1450 = vsel %vm959, %v1349, %v1351
      %v1451 = vsel %vm959, %v1353, %v1355
      %v1452 = vsel %vm959, %v1357, %v1359
      %v1453 = vsel %vm959, %v1361, %v1363
      %v1454 = vsel %vm959, %v1365, %v1367
      %v1455 = vsel %vm959, %v1369, %v1371
      %v1456 = vsel %vm959, %v1373, %v1375
      %v1457 = vsel %vm959, %v1377, %v1379
      %v1458 = vsel %vm959, %v1381, %v1383
      %v1459 = vsel %vm959, %v1385, %v1387
      %v1460 = vsel %vm959, %v1389, %v1391
      %v1461 = vsel %vm959, %v1393, %v1395
      %v1462 = vsel %vm959, %v1403, %v1405
      %v1463 = vsel %vm959, %v1407, %v1409
      %v1464 = vsel %vm959, %v1411, %v1413
      %v1465 = vsel %vm959, %v1415, %v1417
      %v1466 = vsel %vm959, %v1419, %v1421
      %v1467 = vsel %vm959, %v1423, %v1425
      %v1468 = vsel %vm959, %v1427, %v1429
      %v1469 = vsel %vm959, %v1431, %v1433
      %v1470 = vsel %vm959, %v1435, %v1437
      %v1471 = vsel %vm959, %v1439, %v1441
      %v1472 = vsel %vm959, %v1443, %v1445
      %v1473 = vsel %vm959, %v1447, %v1449
      %1501 = vmatprep.subr.bf16.mxu0 0
      %1502 = vmatpush1.bf16.msra.mxu0 %v1450
      %1503 = vmatprep.subr.bf16.mxu0 0
      %1504 = vmatpush1.bf16.msra.mxu0 %v1451
      %1505 = vmatprep.subr.bf16.mxu0 0
      %1506 = vmatpush1.bf16.msra.mxu0 %v1452
      %1507 = vmatprep.subr.bf16.mxu0 0
      %1508 = vmatpush1.bf16.msra.mxu0 %v1453
      %1509 = vmatprep.subr.bf16.mxu0 0
      %1510 = vmatpush1.bf16.msra.mxu0 %v1454
      %1511 = vmatprep.subr.bf16.mxu0 0
      %1512 = vmatpush1.bf16.msra.mxu0 %v1455
      %1513 = vmatprep.subr.bf16.mxu0 0
      %1514 = vmatpush1.bf16.msra.mxu0 %v1456
      %1515 = vmatprep.subr.bf16.mxu0 0
      %1516 = vmatpush1.bf16.msra.mxu0 %v1457
      %1517 = vmatprep.subr.bf16.mxu0 0
      %1518 = vmatpush1.bf16.msra.mxu0 %v1458
      %1519 = vmatprep.subr.bf16.mxu0 0
      %1520 = vmatpush1.bf16.msra.mxu0 %v1459
      %1521 = vmatprep.subr.bf16.mxu0 0
      %1522 = vmatpush1.bf16.msra.mxu0 %v1460
      %1523 = vmatprep.subr.bf16.mxu0 0
      %1524 = vmatpush1.bf16.msra.mxu0 %v1461
      %1525 = vmatprep.subr.bf16.mxu0 0
      %1526 = vmatpush1.bf16.msra.mxu0 %v1397
      %1527 = vmatprep.subr.bf16.mxu0 0
      %1528 = vmatpush1.bf16.msra.mxu0 %v1399
      %1529 = vmatprep.subr.bf16.mxu0 0
      %1530 = vmatpush1.bf16.msra.mxu0 %v1401
      %1531 = vmatprep.subr.bf16.mxu0 0
      %1532 = vmatpush1.bf16.msra.mxu0 %v1462
      %1533 = vmatprep.mubr.bf16.mxu0 %v831
      %1534 = vmatmul.mubr.bf16.gmra.mrb[0].mxu0 %v830
      %v1535 = vpop.f32.mrb[0].mxu0
      %v1536 = vadd.f32 %v767, %v1535
      %v1537 = vpop.f32.mrb[0].mxu0
      %v1538 = vpop.f32.mrb[0].mxu0
      %v1539 = vadd.f32 %v772, %v1538
      %v1540 = vpop.f32.mrb[0].mxu0
      %1541 = vmatprep.mubr.bf16.mxu0 %v835
      %1542 = vmatmul.mubr.bf16.gmra.mrb[0].mxu0 %v834
      %v1543 = vpop.f32.mrb[0].mxu0
      %v1544 = vadd.f32 %v777, %v1543
      %v1545 = vpop.f32.mrb[0].mxu0
      %v1546 = vpop.f32.mrb[0].mxu0
      %v1547 = vadd.f32 %v782, %v1546
      %v1548 = vpop.f32.mrb[0].mxu0
      %1549 = vmatprep.mubr.bf16.mxu0 %v839
      %1550 = vmatmul.mubr.bf16.gmra.mrb[0].mxu0 %v838
      %v1551 = vpop.f32.mrb[0].mxu0
      %v1552 = vadd.f32 %v787, %v1551
      %v1553 = vpop.f32.mrb[0].mxu0
      %v1554 = vpop.f32.mrb[0].mxu0
      %v1555 = vadd.f32 %v792, %v1554
      %v1556 = vpop.f32.mrb[0].mxu0
      %1557 = vdwg.mxu0
      %1558 = vmatprep.subr.bf16.mxu0 0
      %1559 = vmatpush1.bf16.msra.mxu0 %v1463
      %1560 = vmatprep.subr.bf16.mxu0 0
      %1561 = vmatpush1.bf16.msra.mxu0 %v1464
      %1562 = vmatprep.subr.bf16.mxu0 0
      %1563 = vmatpush1.bf16.msra.mxu0 %v1465
      %1564 = vmatprep.subr.bf16.mxu0 0
      %1565 = vmatpush1.bf16.msra.mxu0 %v1466
      %1566 = vmatprep.subr.bf16.mxu0 0
      %1567 = vmatpush1.bf16.msra.mxu0 %v1467
      %1568 = vmatprep.subr.bf16.mxu0 0
      %1569 = vmatpush1.bf16.msra.mxu0 %v1468
      %1570 = vmatprep.subr.bf16.mxu0 0
      %1571 = vmatpush1.bf16.msra.mxu0 %v1469
      %1572 = vmatprep.subr.bf16.mxu0 0
      %1573 = vmatpush1.bf16.msra.mxu0 %v1470
      %1574 = vmatprep.subr.bf16.mxu0 0
      %1575 = vmatpush1.bf16.msra.mxu0 %v1471
      %1576 = vmatprep.subr.bf16.mxu0 0
      %1577 = vmatpush1.bf16.msra.mxu0 %v1472
      %1578 = vmatprep.subr.bf16.mxu0 0
      %1579 = vmatpush1.bf16.msra.mxu0 %v1473
      %1580 = vmatprep.subr.bf16.mxu0 0
      %1581 = vmatpush1.bf16.msra.mxu0 0
      %1582 = vmatprep.subr.bf16.mxu0 0
      %1583 = vmatpush1.bf16.msra.mxu0 0
      %1584 = vmatprep.subr.bf16.mxu0 0
      %1585 = vmatpush1.bf16.msra.mxu0 0
      %1586 = vmatprep.subr.bf16.mxu0 0
      %1587 = vmatpush1.bf16.msra.mxu0 0
      %1588 = vmatprep.subr.bf16.mxu0 0
      %1589 = vmatpush1.bf16.msra.mxu0 0
      %1590 = vmatprep.mubr.bf16.mxu0 %v1013
      %1591 = vmatmul.mubr.bf16.gmra.mrb[0].mxu0 %v832
      %v1592 = vpop.f32.mrb[0].mxu0
      %v1593 = vadd.f32 %v1536, %v1592
      %v1594 = vpop.f32.mrb[0].mxu0
      %v1595 = vpop.f32.mrb[0].mxu0
      %v1596 = vadd.f32 %v1539, %v1595
      %v1597 = vpop.f32.mrb[0].mxu0
      %1598 = vmatprep.mubr.bf16.mxu0 %v1016
      %1599 = vmatmul.mubr.bf16.gmra.mrb[0].mxu0 %v836
      %v1600 = vpop.f32.mrb[0].mxu0
      %v1601 = vadd.f32 %v1544, %v1600
      %v1602 = vpop.f32.mrb[0].mxu0
      %v1603 = vpop.f32.mrb[0].mxu0
      %v1604 = vadd.f32 %v1547, %v1603
      %v1605 = vpop.f32.mrb[0].mxu0
      %1606 = vmatprep.mubr.bf16.mxu0 %v1019
      %1607 = vmatmul.mubr.bf16.gmra.mrb[0].mxu0 %v840
      %v1608 = vpop.f32.mrb[0].mxu0
      %v1609 = vadd.f32 %v1552, %v1608
      %v1610 = vpop.f32.mrb[0].mxu0
      %v1611 = vpop.f32.mrb[0].mxu0
      %v1612 = vadd.f32 %v1555, %v1611
      %v1613 = vpop.f32.mrb[0].mxu0
      %1614 = vdwg.mxu0
      %1615 = vst [vmem:[%s278 + $0x8] sm:$0xff] %v1593
      %1616 = vst [vmem:[%s278 + $0x18] sm:$0xff] %v1596
      %1617 = vst [vmem:[%s278 + $0x28] sm:$0xff] %v1601
      %1618 = vst [vmem:[%s278 + $0x38] sm:$0xff] %v1604
      %1619 = vst [vmem:[%s278 + $0x48] sm:$0xff] %v1609
      %1620 = vst [vmem:[%s278 + $0x58] sm:$0xff] %v1612
      %p1621 = scmp.lt.s32.totalorder %s18, 1
      %s1622 = scalar_select %p1621, %s18, 1
      %s1623 = smul.addr %s1622, 12
      %s1624 = smul.addr %s1623, 8
      %s1625 = scalar_lea.vmem %s7, %s1624
      // Predicated region
      $region49: #{mblock.4} parent=47 // pred_check
        %p1626 = pneg %p188
      $region50: #{mblock.4} parent=47 // pred_check_branch
        %1628 = sbr.rel (%p1626) target = $region52
      $region51: #{mblock.4} parent=47 // pred_region
        _
      $region52: #{mblock.4} parent=47 // pred_fallthru
        _
    $region48: #{mblock.4} parent=5 // pred_fallthru
      _
    %p1629 = scmp.le.s32.totalorder 2, %s13
    // Predicated region
    $region53: #{mblock.4} parent=5 // pred_check
      %p1630 = pneg %p1629
    $region54: #{mblock.4} parent=5 // pred_check_branch
      %1632 = sbr.rel (%p1630) target = $region56
    $region55: #{mblock.4} parent=5 // pred_region
      %s1633 = ssub.s32 %s13, 2
      // Predicated region
      $region57: #{mblock.4} parent=55 // pred_check
        %p1634 = pneg %p194
      $region58: #{mblock.4} parent=55 // pred_check_branch
        %1636 = sbr.rel (%p1634) target = $region60
      $region59: #{mblock.4} parent=55 // pred_region
        %p1637 = scmp.lt.s32.totalorder %s19, 1
        %s1638 = scalar_select %p1637, %s19, 1
        %s1639 = smul.addr %s1638, 12
        %s1640 = smul.addr %s1639, 8
        %s1641 = scalar_lea.vmem %s7, %s1640
      $region60: #{mblock.4} parent=55 // pred_fallthru
        _
    $region56: #{mblock.4} parent=5 // pred_fallthru
      _
  $region6: #{mblock.4} parent=0 // loop_footer
    %s17 = sadd.s32 1, %s13
  $region7: #{mblock.4} parent=0 // loop_footer_branch
    %12 = sbr.rel target = $region3
  $region8: #{mblock.4} parent=0 // loop_exit
    _

// kernel: mblock.3
$region0: #{mblock.3}
  #allocation0 [shape = 'u32[]', space=smem, size = 0x4, offset = 0x4, fixed_abs, tag = 'smem constant byte address 0x4 - core index']
  #allocation1 [shape = 'u32[144,128]{1,0:T(1,128)}', space=vmem, size = 0x12000, scoped, tag = 'internal scratch']
  #allocation2 [shape = 'bf16[64,320]{1,0:T(16,128)(2,1)}', space=vmem, size = 0xc000, scoped, tag = 'scratch operand']
  %s0 = inlined_call_operand.vmem [shape: f32[2,64,64], index: 0, kind: input, shape index: {}]
  %s1 = inlined_call_operand.vmem [shape: f32[64,4], index: 1, kind: input, shape index: {}]
  %s2 = inlined_call_operand.vmem [shape: f32[1,4], index: 2, kind: input, shape index: {}]
  %s3 = inlined_call_operand.vmem [shape: f32[64,4], index: 3, kind: input, shape index: {}]
  %s4 = inlined_call_operand.vmem [shape: f32[64,1], index: 4, kind: input, shape index: {}]
  %s5 = inlined_call_operand.vmem [shape: bf16[64,576], index: 5, kind: input, shape index: {}]
  %s6 = inlined_call_operand.vmem [shape: f32[64,1], index: 6, kind: input, shape index: {}]
  %s7 = inlined_call_operand.vmem [shape: f32[2,64,64], index: 7, kind: output, shape index: {}]
  %s8 = sld [smem:[#allocation0]]
  $region61: #{mblock.3} parent=0
    _
  %s10 = ssub.s32 1, %s8
  %s11 = scalar_select 0, %s10, %s8
  loop: start=0, step=1, limit=4
  $region2: #{mblock.3} parent=0 // loop_pre_header
    _
  $region3: #{mblock.3} parent=0 // loop_header
    %s13 = sphi 0, %s17
    %p14 = scmp.ge.s32.totalorder %s13, 4
    %s23 = sphi 0, %s25
    %s26 = sphi 0, %s23
    %s27 = sphi 0, %s26
    %s43 = sphi 0, %s27
    %s47 = sphi 0, %s47
    %s49 = sphi 0, %s47
    %s50 = sphi 0, %s49
    %s64 = sphi 0, %s50
    %s68 = sphi 0, %s68
    %s70 = sphi 0, %s68
    %s71 = sphi 0, %s70
    %s85 = sphi 0, %s71
    %s89 = sphi 0, %s89
    %s91 = sphi 0, %s89
    %s92 = sphi 0, %s91
    %s106 = sphi 0, %s92
    %s110 = sphi 0, %s110
    %s112 = sphi 0, %s110
    %s113 = sphi 0, %s112
    %s127 = sphi 0, %s113
    %s131 = sphi 0, %s131
    %s133 = sphi 0, %s131
    %s134 = sphi 0, %s133
    %s148 = sphi 0, %s134
    %s152 = sphi 0, %s152
    %s154 = sphi 0, %s152
    %s155 = sphi 0, %s154
    %s169 = sphi 0, %s155
    %s175 = sphi 0, %s177
    %s178 = sphi 0, %s175
    %s179 = sphi 0, %s178
    %s195 = sphi 0, %s179
  $region4: #{mblock.3} parent=0 // loop_header_branch
    %16 = sbr.rel (%p14) target = $region8
  $region5: #{mblock.3} parent=0 // loop_body
    %s18 = ssub.s32 %s13, 1
    %s19 = ssub.s32 %s13, 2
    %s20 = sadd.s32 %s13, 1
    %s21 = ssub.s32 %s13, %s20
    %p22 = scmp.eq.s32.totalorder %s21, 0
    %s24 = sadd.s32 %s23, 1
    %s25 = scalar_select %p22, %s23, %s24
    %p28 = pneg %p22
    %p29 = scmp.eq.s32.totalorder %s13, 1
    %p30 = por %p28, %p29
    %p31 = scmp.ne.s32.totalorder %s23, %s26
    %p32 = scmp.eq.s32.totalorder %s13, 0
    %p33 = por %p31, %p32
    %p34 = scmp.ne.s32.totalorder %s23, %s26
    %p35 = scmp.eq.s32.totalorder %s18, 1
    %p36 = por %p34, %p35
    %p37 = scmp.ne.s32.totalorder %s26, %s27
    %p38 = scmp.eq.s32.totalorder %s18, 0
    %p39 = por %p37, %p38
    %p40 = scmp.ne.s32.totalorder %s26, %s27
    %p41 = scmp.eq.s32.totalorder %s19, 1
    %p42 = por %p40, %p41
    %p44 = scmp.ne.s32.totalorder %s27, %s43
    %p45 = scmp.eq.s32.totalorder %s19, 0
    %p46 = por %p44, %p45
    %s48 = sadd.s32 %s47, 1
    %p51 = scmp.eq.s32.totalorder %s13, 1
    %p52 = scmp.ne.s32.totalorder %s47, %s49
    %p53 = scmp.eq.s32.totalorder %s13, 0
    %p54 = por %p52, %p53
    %p55 = scmp.ne.s32.totalorder %s47, %s49
    %p56 = scmp.eq.s32.totalorder %s18, 1
    %p57 = por %p55, %p56
    %p58 = scmp.ne.s32.totalorder %s49, %s50
    %p59 = scmp.eq.s32.totalorder %s18, 0
    %p60 = por %p58, %p59
    %p61 = scmp.ne.s32.totalorder %s49, %s50
    %p62 = scmp.eq.s32.totalorder %s19, 1
    %p63 = por %p61, %p62
    %p65 = scmp.ne.s32.totalorder %s50, %s64
    %p66 = scmp.eq.s32.totalorder %s19, 0
    %p67 = por %p65, %p66
    %s69 = sadd.s32 %s68, 1
    %p72 = scmp.eq.s32.totalorder %s13, 1
    %p73 = scmp.ne.s32.totalorder %s68, %s70
    %p74 = scmp.eq.s32.totalorder %s13, 0
    %p75 = por %p73, %p74
    %p76 = scmp.ne.s32.totalorder %s68, %s70
    %p77 = scmp.eq.s32.totalorder %s18, 1
    %p78 = por %p76, %p77
    %p79 = scmp.ne.s32.totalorder %s70, %s71
    %p80 = scmp.eq.s32.totalorder %s18, 0
    %p81 = por %p79, %p80
    %p82 = scmp.ne.s32.totalorder %s70, %s71
    %p83 = scmp.eq.s32.totalorder %s19, 1
    %p84 = por %p82, %p83
    %p86 = scmp.ne.s32.totalorder %s71, %s85
    %p87 = scmp.eq.s32.totalorder %s19, 0
    %p88 = por %p86, %p87
    %s90 = sadd.s32 %s89, 1
    %p93 = scmp.eq.s32.totalorder %s13, 1
    %p94 = scmp.ne.s32.totalorder %s89, %s91
    %p95 = scmp.eq.s32.totalorder %s13, 0
    %p96 = por %p94, %p95
    %p97 = scmp.ne.s32.totalorder %s89, %s91
    %p98 = scmp.eq.s32.totalorder %s18, 1
    %p99 = por %p97, %p98
    %p100 = scmp.ne.s32.totalorder %s91, %s92
    %p101 = scmp.eq.s32.totalorder %s18, 0
    %p102 = por %p100, %p101
    %p103 = scmp.ne.s32.totalorder %s91, %s92
    %p104 = scmp.eq.s32.totalorder %s19, 1
    %p105 = por %p103, %p104
    %p107 = scmp.ne.s32.totalorder %s92, %s106
    %p108 = scmp.eq.s32.totalorder %s19, 0
    %p109 = por %p107, %p108
    %s111 = sadd.s32 %s110, 1
    %p114 = scmp.eq.s32.totalorder %s13, 1
    %p115 = scmp.ne.s32.totalorder %s110, %s112
    %p116 = scmp.eq.s32.totalorder %s13, 0
    %p117 = por %p115, %p116
    %p118 = scmp.ne.s32.totalorder %s110, %s112
    %p119 = scmp.eq.s32.totalorder %s18, 1
    %p120 = por %p118, %p119
    %p121 = scmp.ne.s32.totalorder %s112, %s113
    %p122 = scmp.eq.s32.totalorder %s18, 0
    %p123 = por %p121, %p122
    %p124 = scmp.ne.s32.totalorder %s112, %s113
    %p125 = scmp.eq.s32.totalorder %s19, 1
    %p126 = por %p124, %p125
    %p128 = scmp.ne.s32.totalorder %s113, %s127
    %p129 = scmp.eq.s32.totalorder %s19, 0
    %p130 = por %p128, %p129
    %s132 = sadd.s32 %s131, 1
    %p135 = scmp.eq.s32.totalorder %s13, 1
    %p136 = scmp.ne.s32.totalorder %s131, %s133
    %p137 = scmp.eq.s32.totalorder %s13, 0
    %p138 = por %p136, %p137
    %p139 = scmp.ne.s32.totalorder %s131, %s133
    %p140 = scmp.eq.s32.totalorder %s18, 1
    %p141 = por %p139, %p140
    %p142 = scmp.ne.s32.totalorder %s133, %s134
    %p143 = scmp.eq.s32.totalorder %s18, 0
    %p144 = por %p142, %p143
    %p145 = scmp.ne.s32.totalorder %s133, %s134
    %p146 = scmp.eq.s32.totalorder %s19, 1
    %p147 = por %p145, %p146
    %p149 = scmp.ne.s32.totalorder %s134, %s148
    %p150 = scmp.eq.s32.totalorder %s19, 0
    %p151 = por %p149, %p150
    %s153 = sadd.s32 %s152, 1
    %p156 = scmp.eq.s32.totalorder %s13, 1
    %p157 = scmp.ne.s32.totalorder %s152, %s154
    %p158 = scmp.eq.s32.totalorder %s13, 0
    %p159 = por %p157, %p158
    %p160 = scmp.ne.s32.totalorder %s152, %s154
    %p161 = scmp.eq.s32.totalorder %s18, 1
    %p162 = por %p160, %p161
    %p163 = scmp.ne.s32.totalorder %s154, %s155
    %p164 = scmp.eq.s32.totalorder %s18, 0
    %p165 = por %p163, %p164
    %p166 = scmp.ne.s32.totalorder %s154, %s155
    %p167 = scmp.eq.s32.totalorder %s19, 1
    %p168 = por %p166, %p167
    %p170 = scmp.ne.s32.totalorder %s155, %s169
    %p171 = scmp.eq.s32.totalorder %s19, 0
    %p172 = por %p170, %p171
    %s173 = ssub.s32 %s13, %s20
    %p174 = scmp.eq.s32.totalorder %s173, 0
    %s176 = sadd.s32 %s175, 1
    %s177 = scalar_select %p174, %s175, %s176
    %p180 = pneg %p174
    %p181 = scmp.eq.s32.totalorder %s13, 1
    %p182 = por %p180, %p181
    %p183 = scmp.ne.s32.totalorder %s175, %s178
    %p184 = scmp.eq.s32.totalorder %s13, 0
    %p185 = por %p183, %p184
    %p186 = scmp.ne.s32.totalorder %s175, %s178
    %p187 = scmp.eq.s32.totalorder %s18, 1
    %p188 = por %p186, %p187
    %p189 = scmp.ne.s32.totalorder %s178, %s179
    %p190 = scmp.eq.s32.totalorder %s18, 0
    %p191 = por %p189, %p190
    %p192 = scmp.ne.s32.totalorder %s178, %s179
    %p193 = scmp.eq.s32.totalorder %s19, 1
    %p194 = por %p192, %p193
    %p196 = scmp.ne.s32.totalorder %s179, %s195
    %p197 = scmp.eq.s32.totalorder %s19, 0
    %p198 = por %p196, %p197
    %p199 = scmp.le.s32.totalorder 1, %s13
    %p200 = scmp.lt.s32.totalorder %s13, 3
    %p201 = pnand %p199, %p200
    %p202 = pneg %p201
    // Predicated region
    $region9: #{mblock.3} parent=5 // pred_check
      _
    $region10: #{mblock.3} parent=5 // pred_check_branch
      %204 = sbr.rel (%p201) target = $region12
    $region11: #{mblock.3} parent=5 // pred_region
      %s205 = ssub.s32 %s13, 1
      // Predicated region
      $region13: #{mblock.3} parent=11 // pred_check
        %p206 = pneg %p60
      $region14: #{mblock.3} parent=11 // pred_check_branch
        %208 = sbr.rel (%p206) target = $region16
      $region15: #{mblock.3} parent=11 // pred_region
        _
      $region16: #{mblock.3} parent=11 // pred_fallthru
        _
      // Predicated region
      $region17: #{mblock.3} parent=11 // pred_check
        %p209 = pneg %p81
      $region18: #{mblock.3} parent=11 // pred_check_branch
        %211 = sbr.rel (%p209) target = $region20
      $region19: #{mblock.3} parent=11 // pred_region
        _
      $region20: #{mblock.3} parent=11 // pred_fallthru
        _
      // Predicated region
      $region21: #{mblock.3} parent=11 // pred_check
        %p212 = pneg %p102
      $region22: #{mblock.3} parent=11 // pred_check_branch
        %214 = sbr.rel (%p212) target = $region24
      $region23: #{mblock.3} parent=11 // pred_region
        _
      $region24: #{mblock.3} parent=11 // pred_fallthru
        _
      // Predicated region
      $region25: #{mblock.3} parent=11 // pred_check
        %p215 = pneg %p123
      $region26: #{mblock.3} parent=11 // pred_check_branch
        %217 = sbr.rel (%p215) target = $region28
      $region27: #{mblock.3} parent=11 // pred_region
        _
      $region28: #{mblock.3} parent=11 // pred_fallthru
        _
      // Predicated region
      $region29: #{mblock.3} parent=11 // pred_check
        %p218 = pneg %p144
      $region30: #{mblock.3} parent=11 // pred_check_branch
        %220 = sbr.rel (%p218) target = $region32
      $region31: #{mblock.3} parent=11 // pred_region
        _
      $region32: #{mblock.3} parent=11 // pred_fallthru
        _
      // Predicated region
      $region33: #{mblock.3} parent=11 // pred_check
        %p221 = pneg %p165
      $region34: #{mblock.3} parent=11 // pred_check_branch
        %223 = sbr.rel (%p221) target = $region36
      $region35: #{mblock.3} parent=11 // pred_region
        _
      $region36: #{mblock.3} parent=11 // pred_fallthru
        _
    $region12: #{mblock.3} parent=5 // pred_fallthru
      _
    %p224 = scmp.lt.s32.totalorder %s13, 2
    // Predicated region
    $region37: #{mblock.3} parent=5 // pred_check
      %p225 = pneg %p224
    $region38: #{mblock.3} parent=5 // pred_check_branch
      %227 = sbr.rel (%p225) target = $region40
    $region39: #{mblock.3} parent=5 // pred_region
      // Predicated region
      $region41: #{mblock.3} parent=39 // pred_check
        %p228 = pneg %p33
      $region42: #{mblock.3} parent=39 // pred_check_branch
        %230 = sbr.rel (%p228) target = $region44
      $region43: #{mblock.3} parent=39 // pred_region
        %p231 = scmp.lt.s32.totalorder %s13, 1
        %s232 = scalar_select %p231, %s13, 1
        %s233 = smul.addr %s232, 8
        %s234 = smul.addr %s233, 8
        %s235 = scalar_lea.vmem %s0, %s234
      $region44: #{mblock.3} parent=39 // pred_fallthru
        _
    $region40: #{mblock.3} parent=5 // pred_fallthru
      _
    %p236 = scmp.le.s32.totalorder 1, %s13
    %p237 = scmp.lt.s32.totalorder %s13, 3
    %p238 = pnand %p236, %p237
    %p239 = pneg %p238
    // Predicated region
    $region45: #{mblock.3} parent=5 // pred_check
      _
    $region46: #{mblock.3} parent=5 // pred_check_branch
      %241 = sbr.rel (%p238) target = $region48
    $region47: #{mblock.3} parent=5 // pred_region
      %s242 = ssub.s32 %s13, 1
      %p243 = scmp.lt.s32.totalorder %s18, 1
      %s244 = scalar_select %p243, %s18, 1
      %s245 = smul.addr %s244, 8
      %s246 = smul.addr %s245, 8
      %s247 = scalar_lea.vmem %s0, %s246
      %p248 = pneg %p39
      %p249 = pneg %p36
      %p250 = pneg %p60
      %p251 = pneg %p57
      %p252 = pneg %p81
      %p253 = pneg %p78
      %p254 = pneg %p102
      %p255 = pneg %p99
      %p256 = pneg %p123
      %p257 = pneg %p120
      %p258 = pneg %p144
      %p259 = pneg %p141
      %p260 = pneg %p165
      %p261 = pneg %p162
      %p262 = pneg %p191
      %p263 = pneg %p188
      %p264 = scmp.lt.s32.totalorder %s18, 1
      %s265 = scalar_select %p264, %s18, 1
      %s266 = smul.addr %s265, 8
      %s267 = smul.addr %s266, 8
      %s268 = scalar_lea.vmem %s7, %s267
      %p269 = scmp.lt.s32.totalorder %s18, 1
      %s270 = scalar_select %p269, %s18, 1
      %s271 = smul.addr %s270, 8
      %s272 = smul.addr %s271, 8
      %s273 = scalar_lea.vmem %s0, %s272
      %p274 = scmp.lt.s32.totalorder %s18, 1
      %s275 = scalar_select %p274, %s18, 1
      %s276 = smul.addr %s275, 8
      %s277 = smul.addr %s276, 8
      %s278 = scalar_lea.vmem %s7, %s277
      %v282 = vld [vmem:[%s273] sm:$0xff]
      %v283 = vld [vmem:[%s273 + $0x8] sm:$0xff]
      %v284 = vld [vmem:[%s273 + $0x10] sm:$0xff]
      %v285 = vld [vmem:[%s273 + $0x18] sm:$0xff]
      %v286 = vld [vmem:[%s273 + $0x20] sm:$0xff]
      %v287 = vld [vmem:[%s273 + $0x28] sm:$0xff]
      %v288 = vld [vmem:[%s273 + $0x30] sm:$0xff]
      %v289 = vld [vmem:[%s273 + $0x38] sm:$0xff]
      %vm290 = vcmask 523264
      %v291 = vsel %vm290, %v282, 0.0
      %292 = vadd.xlane.f32.xlu0 %v291
      %v293 = vpop.xlane.xlu0 %292
      %v294 = vsel %vm290, %v283, 0.0
      %295 = vadd.xlane.f32.xlu0 %v294
      %v296 = vpop.xlane.xlu0 %295
      %v297 = vsel %vm290, %v284, 0.0
      %298 = vadd.xlane.f32.xlu0 %v297
      %v299 = vpop.xlane.xlu0 %298
      %v300 = vsel %vm290, %v285, 0.0
      %301 = vadd.xlane.f32.xlu0 %v300
      %v302 = vpop.xlane.xlu0 %301
      %v303 = vsel %vm290, %v286, 0.0
      %304 = vadd.xlane.f32.xlu0 %v303
      %v305 = vpop.xlane.xlu0 %304
      %v306 = vsel %vm290, %v287, 0.0
      %307 = vadd.xlane.f32.xlu0 %v306
      %v308 = vpop.xlane.xlu0 %307
      %v309 = vsel %vm290, %v288, 0.0
      %310 = vadd.xlane.f32.xlu0 %v309
      %v311 = vpop.xlane.xlu0 %310
      %v312 = vsel %vm290, %v289, 0.0
      %313 = vadd.xlane.f32.xlu0 %v312
      %v314 = vpop.xlane.xlu0 %313
      %v315 = vrcp.pop 64.0
      %v316 = vmul.f32 %v293, %v315
      %v317 = vmul.f32 %v296, %v315
      %v318 = vmul.f32 %v299, %v315
      %v319 = vmul.f32 %v302, %v315
      %v320 = vmul.f32 %v305, %v315
      %v321 = vmul.f32 %v308, %v315
      %v322 = vmul.f32 %v311, %v315
      %v323 = vmul.f32 %v314, %v315
      %v324 = vld [vmem:[%s1] sm:$0xff]
      %v325 = vld [vmem:[%s1 + $0x8] sm:$0xff]
      %v326 = vld [vmem:[%s1 + $0x10] sm:$0xff]
      %v327 = vld [vmem:[%s1 + $0x18] sm:$0xff]
      %v328 = vld [vmem:[%s1 + $0x20] sm:$0xff]
      %v329 = vld [vmem:[%s1 + $0x28] sm:$0xff]
      %v330 = vld [vmem:[%s1 + $0x30] sm:$0xff]
      %v331 = vld [vmem:[%s1 + $0x38] sm:$0xff]
      %v332 = vmul.f32 %v324, %v316
      %v333 = vmul.f32 %v325, %v317
      %v334 = vmul.f32 %v326, %v318
      %v335 = vmul.f32 %v327, %v319
      %v336 = vmul.f32 %v328, %v320
      %v337 = vmul.f32 %v329, %v321
      %v338 = vmul.f32 %v330, %v322
      %v339 = vmul.f32 %v331, %v323
      %vm340 = vcmask 31744
      %v341 = vsel %vm340, %v332, 0.0
      %v342 = vsel %vm340, %v333, 0.0
      %v343 = vadd.f32 %v341, %v342
      %v344 = vsel %vm340, %v334, 0.0
      %v345 = vadd.f32 %v343, %v344
      %v346 = vsel %vm340, %v335, 0.0
      %v347 = vadd.f32 %v345, %v346
      %v348 = vsel %vm340, %v336, 0.0
      %v349 = vadd.f32 %v347, %v348
      %v350 = vsel %vm340, %v337, 0.0
      %v351 = vadd.f32 %v349, %v350
      %v352 = vsel %vm340, %v338, 0.0
      %v353 = vadd.f32 %v351, %v352
      %v354 = vsel %vm340, %v339, 0.0
      %v355 = vadd.f32 %v353, %v354
      %v356 = vrot.slane %v355, 4
      %v357 = vadd.f32 %v355, %v356
      %v358 = vrot.slane %v357, 2
      %v359 = vadd.f32 %v357, %v358
      %v360 = vrot.slane %v359, 1
      %v361 = vadd.f32 %v359, %v360
      %v362 = vld [vmem:[%s2] sm:$0x1]
      %v363 = vadd.f32 %v361, %v362
      %v364 = vmax.f32 %v363, 0.0
      %v365 = vld [vmem:[%s3] sm:$0xff]
      %v366 = vld [vmem:[%s3 + $0x8] sm:$0xff]
      %v367 = vld [vmem:[%s3 + $0x10] sm:$0xff]
      %v368 = vld [vmem:[%s3 + $0x18] sm:$0xff]
      %v369 = vld [vmem:[%s3 + $0x20] sm:$0xff]
      %v370 = vld [vmem:[%s3 + $0x28] sm:$0xff]
      %v371 = vld [vmem:[%s3 + $0x30] sm:$0xff]
      %v372 = vld [vmem:[%s3 + $0x38] sm:$0xff]
      %v373 = vlaneseq
      %v374 = vshrl.u32 %v373, 7
      %v375 = vsub.s32 0, %v374
      %v376 = vrot.slane %v364, %v375
      %v377 = vmul.f32 %v365, %v376
      %v378 = vmul.f32 %v366, %v376
      %v379 = vmul.f32 %v367, %v376
      %v380 = vmul.f32 %v368, %v376
      %v381 = vmul.f32 %v369, %v376
      %v382 = vmul.f32 %v370, %v376
      %v383 = vmul.f32 %v371, %v376
      %v384 = vmul.f32 %v372, %v376
      %v385 = vsel %vm340, %v377, 0.0
      %386 = vadd.xlane.f32.xlu0 %v385
      %v387 = vpop.xlane.xlu0 %386
      %v388 = vsel %vm340, %v378, 0.0
      %389 = vadd.xlane.f32.xlu0 %v388
      %v390 = vpop.xlane.xlu0 %389
      %v391 = vsel %vm340, %v379, 0.0
      %392 = vadd.xlane.f32.xlu0 %v391
      %v393 = vpop.xlane.xlu0 %392
      %v394 = vsel %vm340, %v380, 0.0
      %395 = vadd.xlane.f32.xlu0 %v394
      %v396 = vpop.xlane.xlu0 %395
      %v397 = vsel %vm340, %v381, 0.0
      %398 = vadd.xlane.f32.xlu0 %v397
      %v399 = vpop.xlane.xlu0 %398
      %v400 = vsel %vm340, %v382, 0.0
      %401 = vadd.xlane.f32.xlu0 %v400
      %v402 = vpop.xlane.xlu0 %401
      %v403 = vsel %vm340, %v383, 0.0
      %404 = vadd.xlane.f32.xlu0 %v403
      %v405 = vpop.xlane.xlu0 %404
      %v406 = vsel %vm340, %v384, 0.0
      %407 = vadd.xlane.f32.xlu0 %v406
      %v408 = vpop.xlane.xlu0 %407
      %v409 = vld [vmem:[%s4] sm:$0xff]
      %v410 = vld [vmem:[%s4 + $0x8] sm:$0xff]
      %v411 = vld [vmem:[%s4 + $0x10] sm:$0xff]
      %v412 = vld [vmem:[%s4 + $0x18] sm:$0xff]
      %v413 = vld [vmem:[%s4 + $0x20] sm:$0xff]
      %v414 = vld [vmem:[%s4 + $0x28] sm:$0xff]
      %v415 = vld [vmem:[%s4 + $0x30] sm:$0xff]
      %v416 = vld [vmem:[%s4 + $0x38] sm:$0xff]
      %v417 = vadd.f32 %v387, %v409
      %v418 = vadd.f32 %v390, %v410
      %v419 = vadd.f32 %v393, %v411
      %v420 = vadd.f32 %v396, %v412
      %v421 = vadd.f32 %v399, %v413
      %v422 = vadd.f32 %v402, %v414
      %v423 = vadd.f32 %v405, %v415
      %v424 = vadd.f32 %v408, %v416
      %v425 = vxor.u32 %v417, 2147483648
      %v426 = vxor.u32 %v418, 2147483648
      %v427 = vxor.u32 %v419, 2147483648
      %v428 = vxor.u32 %v420, 2147483648
      %v429 = vxor.u32 %v421, 2147483648
      %v430 = vxor.u32 %v422, 2147483648
      %v431 = vxor.u32 %v423, 2147483648
      %v432 = vxor.u32 %v424, 2147483648
      %v433 = vmul.f32 %v425, 1.442695
      %v434 = vpow.pop %v433
      %v435 = vmul.f32 %v426, 1.442695
      %v436 = vpow.pop %v435
      %v437 = vmul.f32 %v427, 1.442695
      %v438 = vpow.pop %v437
      %v439 = vmul.f32 %v428, 1.442695
      %v440 = vpow.pop %v439
      %v441 = vmul.f32 %v429, 1.442695
      %v442 = vpow.pop %v441
      %v443 = vmul.f32 %v430, 1.442695
      %v444 = vpow.pop %v443
      %v445 = vmul.f32 %v431, 1.442695
      %v446 = vpow.pop %v445
      %v447 = vmul.f32 %v432, 1.442695
      %v448 = vpow.pop %v447
      %v449 = vadd.f32 %v434, 1.0
      %v450 = vadd.f32 %v436, 1.0
      %v451 = vadd.f32 %v438, 1.0
      %v452 = vadd.f32 %v440, 1.0
      %v453 = vadd.f32 %v442, 1.0
      %v454 = vadd.f32 %v444, 1.0
      %v455 = vadd.f32 %v446, 1.0
      %v456 = vadd.f32 %v448, 1.0
      %v457 = vrcp.pop %v449
      %v458 = vmul.f32 1.0, %v457
      %v459 = vrcp.pop %v450
      %v460 = vmul.f32 1.0, %v459
      %v461 = vrcp.pop %v451
      %v462 = vmul.f32 1.0, %v461
      %v463 = vrcp.pop %v452
      %v464 = vmul.f32 1.0, %v463
      %v465 = vrcp.pop %v453
      %v466 = vmul.f32 1.0, %v465
      %v467 = vrcp.pop %v454
      %v468 = vmul.f32 1.0, %v467
      %v469 = vrcp.pop %v455
      %v470 = vmul.f32 1.0, %v469
      %v471 = vrcp.pop %v456
      %v472 = vmul.f32 1.0, %v471
      %474 = vset.pattern.permute.xlu0 0
      %475 = vperm.xlu0 %474, %v458
      %v476 = vpop.permute.xlu0 %475
      %479 = vset.pattern.permute.xlu0 0
      %480 = vperm.xlu0 %479, %v460
      %v481 = vpop.permute.xlu0 %480
      %484 = vset.pattern.permute.xlu0 0
      %485 = vperm.xlu0 %484, %v462
      %v486 = vpop.permute.xlu0 %485
      %489 = vset.pattern.permute.xlu0 0
      %490 = vperm.xlu0 %489, %v464
      %v491 = vpop.permute.xlu0 %490
      %494 = vset.pattern.permute.xlu0 0
      %495 = vperm.xlu0 %494, %v466
      %v496 = vpop.permute.xlu0 %495
      %499 = vset.pattern.permute.xlu0 0
      %500 = vperm.xlu0 %499, %v468
      %v501 = vpop.permute.xlu0 %500
      %504 = vset.pattern.permute.xlu0 0
      %505 = vperm.xlu0 %504, %v470
      %v506 = vpop.permute.xlu0 %505
      %509 = vset.pattern.permute.xlu0 0
      %510 = vperm.xlu0 %509, %v472
      %v511 = vpop.permute.xlu0 %510
      %v513 = vmul.f32 %v282, %v476
      %v514 = vmul.f32 %v283, %v481
      %v515 = vmul.f32 %v284, %v486
      %v516 = vmul.f32 %v285, %v491
      %v517 = vmul.f32 %v286, %v496
      %v518 = vmul.f32 %v287, %v501
      %v519 = vmul.f32 %v288, %v506
      %v520 = vmul.f32 %v289, %v511
      %v521 = vpack.c.bf16 %v514, %v513
      %v522 = vpack.c.bf16 %v516, %v515
      %v523 = vpack.c.bf16 %v518, %v517
      %v524 = vpack.c.bf16 %v520, %v519
      %525 = vst [vmem:[#allocation2] sm:$0xff] 0
      %526 = vst [vmem:[#allocation2 + $0x18] sm:$0xff] 0
      %527 = vst [vmem:[#allocation2 + $0x30] sm:$0xff] 0
      %528 = vst [vmem:[#allocation2 + $0x48] sm:$0xff] 0
      %vm529 = vcmask 1048064
      %530 = vst.msk [vmem:[#allocation2 + $0x8] sm:$0xff] %vm529, 0
      %531 = vst.msk [vmem:[#allocation2 + $0x10] sm:$0xff] %vm290, 0
      %532 = vst.msk [vmem:[#allocation2 + $0x20] sm:$0xff] %vm529, 0
      %533 = vst.msk [vmem:[#allocation2 + $0x28] sm:$0xff] %vm290, 0
      %534 = vst.msk [vmem:[#allocation2 + $0x38] sm:$0xff] %vm529, 0
      %535 = vst.msk [vmem:[#allocation2 + $0x40] sm:$0xff] %vm290, 0
      %536 = vst.msk [vmem:[#allocation2 + $0x50] sm:$0xff] %vm529, 0
      %537 = vst.msk [vmem:[#allocation2 + $0x58] sm:$0xff] %vm290, 0
      %538 = vst.msk [vmem:[#allocation2 + $0x8] sm:$0xff] %vm290, %v521
      %539 = vst.msk [vmem:[#allocation2 + $0x20] sm:$0xff] %vm290, %v522
      %540 = vst.msk [vmem:[#allocation2 + $0x38] sm:$0xff] %vm290, %v523
      %541 = vst.msk [vmem:[#allocation2 + $0x50] sm:$0xff] %vm290, %v524
      %v542 = vlaneseq
      %v543 = vand.u32 %v542, 127
      %vm544 = vcmp.lt.s32.totalorder %v543, 0
      %v545 = vsub.s32 0, %v543
      %v546 = vsel %vm544, %v545, %v543
      %v547 = vshrl.u32 %v546, 3
      %v548 = vand.u32 %v546, 7
      %v549 = vsub.s32 0, %v548
      %v550 = vsel %vm544, %v549, %v548
      %vm551 = vcmp.ne.s32.totalorder %v550, 0
      %vm552 = vcmp.lt.s32.totalorder %v550, 0
      %vm553 = vmand %vm552, %vm551
      %v554 = vadd.s32 %v550, 8
      %v555 = vsel %vm553, %v554, %v550
      %vm556 = vcmp.eq.s32.totalorder %v555, 0
      %vm557 = vcmp.eq.s32.totalorder %v555, 7
      %v558 = vld [vmem:[%s5] sm:$0xff]
      %v559 = vld [vmem:[%s5 + $0x8] sm:$0xff]
      %v560 = vld [vmem:[%s5 + $0x10] sm:$0xf]
      %v561 = vld [vmem:[%s5 + $0x14] sm:$0xff]
      %v562 = vld [vmem:[%s5 + $0x1c] sm:$0xff]
      %v563 = vld [vmem:[%s5 + $0x24] sm:$0xf]
      %v564 = vld [vmem:[%s5 + $0x28] sm:$0xff]
      %v565 = vld [vmem:[%s5 + $0x30] sm:$0xff]
      %v566 = vld [vmem:[%s5 + $0x38] sm:$0xf]
      %v567 = vld [vmem:[%s5 + $0x3c] sm:$0xff]
      %v568 = vld [vmem:[%s5 + $0x44] sm:$0xff]
      %v569 = vld [vmem:[%s5 + $0x4c] sm:$0xf]
      %v570 = vld [vmem:[%s5 + $0x50] sm:$0xff]
      %v571 = vld [vmem:[%s5 + $0x58] sm:$0xff]
      %v572 = vld [vmem:[%s5 + $0x60] sm:$0xf]
      %v573 = vld [vmem:[%s5 + $0x64] sm:$0xff]
      %v574 = vld [vmem:[%s5 + $0x6c] sm:$0xff]
      %v575 = vld [vmem:[%s5 + $0x74] sm:$0xf]
      %v576 = vld [vmem:[%s5 + $0x78] sm:$0xff]
      %v577 = vld [vmem:[%s5 + $0x80] sm:$0xff]
      %v578 = vld [vmem:[%s5 + $0x88] sm:$0xf]
      %v579 = vld [vmem:[%s5 + $0x8c] sm:$0xff]
      %v580 = vld [vmem:[%s5 + $0x94] sm:$0xff]
      %v581 = vld [vmem:[%s5 + $0x9c] sm:$0xf]
      %v582 = vld [vmem:[%s6] sm:$0xff]
      %v583 = vld [vmem:[%s6 + $0x8] sm:$0xff]
      %v584 = vld [vmem:[%s6 + $0x10] sm:$0xff]
      %v585 = vld [vmem:[%s6 + $0x18] sm:$0xff]
      %v586 = vld [vmem:[%s6 + $0x20] sm:$0xff]
      %v587 = vld [vmem:[%s6 + $0x28] sm:$0xff]
      %v588 = vld [vmem:[%s6 + $0x30] sm:$0xff]
      %v589 = vld [vmem:[%s6 + $0x38] sm:$0xff]
      %v590 = vld [vmem:[#allocation2] sm:$0xff]
      %v591 = vld [vmem:[#allocation2 + $0x8] sm:$0xff]
      %v592 = vld [vmem:[#allocation2 + $0x18] sm:$0xff]
      %v593 = vld [vmem:[#allocation2 + $0x20] sm:$0xff]
      %v594 = vld [vmem:[#allocation2 + $0x30] sm:$0xff]
      %v595 = vld [vmem:[#allocation2 + $0x38] sm:$0xff]
      %v596 = vld [vmem:[#allocation2 + $0x48] sm:$0xff]
      %v597 = vld [vmem:[#allocation2 + $0x50] sm:$0xff]
      %v598 = vsel %vm556, 1, 0
      %vm599 = vcmp.eq.s32.totalorder %v598, 1
      %vm600 = vmpackc.low %vm599, %vm599
      %v601 = vsel %vm600, 65537, 0
      %v602 = vlaneseq
      %v603 = vshrl.u32 %v602, 7
      %v604 = vsub.s32 0, %v603
      %v605 = vrot.slane %v601, %v604
      %606 = vrot.lane.b32.xlu0 %v605, 119
      %v607 = vpop.permute.xlu0 %606
      %vm608 = vcmp.ne.s16.totalorder %v607, 0
      %v609 = vsel %vm608, 0, %v590
      %v610 = vsel %vm608, 0, %v591
      %v611 = vsel %vm608, 0, %v592
      %v612 = vsel %vm608, 0, %v593
      %v613 = vsel %vm608, 0, %v594
      %v614 = vsel %vm608, 0, %v595
      %v615 = vsel %vm608, 0, %v596
      %v616 = vsel %vm608, 0, %v597
      %v617 = vsel %vm557, 1, 0
      %vm618 = vcmp.eq.s32.totalorder %v617, 1
      %vm619 = vmpackc.low %vm618, %vm618
      %v620 = vsel %vm619, 65537, 0
      %v621 = vlaneseq
      %v622 = vshrl.u32 %v621, 7
      %v623 = vsub.s32 0, %v622
      %v624 = vrot.slane %v620, %v623
      %625 = vrot.lane.b32.xlu0 %v624, 121
      %v626 = vpop.permute.xlu0 %625
      %vm627 = vcmp.ne.s16.totalorder %v626, 0
      %v628 = vsel %vm627, 0, %v590
      %v629 = vsel %vm627, 0, %v591
      %v630 = vsel %vm627, 0, %v592
      %v631 = vsel %vm627, 0, %v593
      %v632 = vsel %vm627, 0, %v594
      %v633 = vsel %vm627, 0, %v595
      %v634 = vsel %vm627, 0, %v596
      %v635 = vsel %vm627, 0, %v597
      %636 = vrot.lane.b32.xlu0 %v605, 127
      %v637 = vpop.permute.xlu0 %636
      %vm638 = vcmp.ne.s16.totalorder %v637, 0
      %v639 = vsel %vm638, 0, %v590
      %v640 = vsel %vm638, 0, %v591
      %v641 = vsel %vm638, 0, %v592
      %v642 = vsel %vm638, 0, %v593
      %v643 = vsel %vm638, 0, %v594
      %v644 = vsel %vm638, 0, %v595
      %v645 = vsel %vm638, 0, %v596
      %v646 = vsel %vm638, 0, %v597
      %647 = vrot.lane.b32.xlu0 %v624, 1
      %v648 = vpop.permute.xlu0 %647
      %vm649 = vcmp.ne.s16.totalorder %v648, 0
      %v650 = vsel %vm649, 0, %v591
      %v651 = vsel %vm649, 0, %v593
      %v652 = vsel %vm649, 0, %v595
      %v653 = vsel %vm649, 0, %v597
      %654 = vrot.lane.b32.xlu0 %v605, 7
      %v655 = vpop.permute.xlu0 %654
      %vm656 = vcmp.ne.s16.totalorder %v655, 0
      %v657 = vsel %vm656, 0, %v591
      %v658 = vsel %vm656, 0, %v593
      %v659 = vsel %vm656, 0, %v595
      %v660 = vsel %vm656, 0, %v597
      %661 = vrot.lane.b32.xlu0 %v624, 9
      %v662 = vpop.permute.xlu0 %661
      %vm663 = vcmp.ne.s16.totalorder %v662, 0
      %v664 = vsel %vm663, 0, %v591
      %v665 = vsel %vm663, 0, %v593
      %v666 = vsel %vm663, 0, %v595
      %v667 = vsel %vm663, 0, %v597
      %676 = vrot.lane.b32.xlu0 %v590, 127
      %v677 = vpop.permute.xlu0 %676
      %678 = vrot.lane.b32.xlu0 %v591, 127
      %v679 = vpop.permute.xlu0 %678
      %680 = vrot.lane.b32.xlu0 %v592, 127
      %v681 = vpop.permute.xlu0 %680
      %682 = vrot.lane.b32.xlu0 %v593, 127
      %v683 = vpop.permute.xlu0 %682
      %684 = vrot.lane.b32.xlu0 %v594, 127
      %v685 = vpop.permute.xlu0 %684
      %686 = vrot.lane.b32.xlu0 %v595, 127
      %v687 = vpop.permute.xlu0 %686
      %688 = vrot.lane.b32.xlu0 %v596, 127
      %v689 = vpop.permute.xlu0 %688
      %690 = vrot.lane.b32.xlu0 %v597, 127
      %v691 = vpop.permute.xlu0 %690
      %vm692 = vcmask 1039360
      %v693 = vsel %vm692, %v677, %v679
      %v694 = vsel %vm692, %v681, %v683
      %v695 = vsel %vm692, %v685, %v687
      %v696 = vsel %vm692, %v689, %v691
      %705 = vrot.lane.b32.xlu0 %v628, 126
      %v706 = vpop.permute.xlu0 %705
      %707 = vrot.lane.b32.xlu0 %v629, 126
      %v708 = vpop.permute.xlu0 %707
      %709 = vrot.lane.b32.xlu0 %v630, 126
      %v710 = vpop.permute.xlu0 %709
      %711 = vrot.lane.b32.xlu0 %v631, 126
      %v712 = vpop.permute.xlu0 %711
      %713 = vrot.lane.b32.xlu0 %v632, 126
      %v714 = vpop.permute.xlu0 %713
      %715 = vrot.lane.b32.xlu0 %v633, 126
      %v716 = vpop.permute.xlu0 %715
      %717 = vrot.lane.b32.xlu0 %v634, 126
      %v718 = vpop.permute.xlu0 %717
      %719 = vrot.lane.b32.xlu0 %v635, 126
      %v720 = vpop.permute.xlu0 %719
      %vm721 = vcmask 1031168
      %v722 = vsel %vm721, %v706, %v708
      %v723 = vsel %vm721, %v710, %v712
      %v724 = vsel %vm721, %v714, %v716
      %v725 = vsel %vm721, %v718, %v720
      %734 = vrot.lane.b32.xlu0 %v639, 120
      %v735 = vpop.permute.xlu0 %734
      %736 = vrot.lane.b32.xlu0 %v640, 120
      %v737 = vpop.permute.xlu0 %736
      %738 = vrot.lane.b32.xlu0 %v641, 120
      %v739 = vpop.permute.xlu0 %738
      %740 = vrot.lane.b32.xlu0 %v642, 120
      %v741 = vpop.permute.xlu0 %740
      %742 = vrot.lane.b32.xlu0 %v643, 120
      %v743 = vpop.permute.xlu0 %742
      %744 = vrot.lane.b32.xlu0 %v644, 120
      %v745 = vpop.permute.xlu0 %744
      %746 = vrot.lane.b32.xlu0 %v645, 120
      %v747 = vpop.permute.xlu0 %746
      %748 = vrot.lane.b32.xlu0 %v646, 120
      %v749 = vpop.permute.xlu0 %748
      %vm750 = vcmask 982016
      %v751 = vsel %vm750, %v735, %v737
      %v752 = vsel %vm750, %v739, %v741
      %v753 = vsel %vm750, %v743, %v745
      %v754 = vsel %vm750, %v747, %v749
      %755 = vrot.lane.b32.xlu0 %v591, 119
      %v756 = vpop.permute.xlu0 %755
      %757 = vrot.lane.b32.xlu0 %v593, 119
      %v758 = vpop.permute.xlu0 %757
      %759 = vrot.lane.b32.xlu0 %v595, 119
      %v760 = vpop.permute.xlu0 %759
      %761 = vrot.lane.b32.xlu0 %v597, 119
      %v762 = vpop.permute.xlu0 %761
      %767 = vrot.lane.b32.xlu0 %v650, 118
      %v768 = vpop.permute.xlu0 %767
      %769 = vrot.lane.b32.xlu0 %v651, 118
      %v770 = vpop.permute.xlu0 %769
      %771 = vrot.lane.b32.xlu0 %v652, 118
      %v772 = vpop.permute.xlu0 %771
      %773 = vrot.lane.b32.xlu0 %v653, 118
      %v774 = vpop.permute.xlu0 %773
      %779 = vrot.lane.b32.xlu0 %v657, 112
      %v780 = vpop.permute.xlu0 %779
      %781 = vrot.lane.b32.xlu0 %v658, 112
      %v782 = vpop.permute.xlu0 %781
      %783 = vrot.lane.b32.xlu0 %v659, 112
      %v784 = vpop.permute.xlu0 %783
      %785 = vrot.lane.b32.xlu0 %v660, 112
      %v786 = vpop.permute.xlu0 %785
      %787 = vrot.lane.b32.xlu0 %v591, 111
      %v788 = vpop.permute.xlu0 %787
      %789 = vrot.lane.b32.xlu0 %v593, 111
      %v790 = vpop.permute.xlu0 %789
      %791 = vrot.lane.b32.xlu0 %v595, 111
      %v792 = vpop.permute.xlu0 %791
      %793 = vrot.lane.b32.xlu0 %v597, 111
      %v794 = vpop.permute.xlu0 %793
      %799 = vrot.lane.b32.xlu0 %v664, 110
      %v800 = vpop.permute.xlu0 %799
      %801 = vrot.lane.b32.xlu0 %v665, 110
      %v802 = vpop.permute.xlu0 %801
      %803 = vrot.lane.b32.xlu0 %v666, 110
      %v804 = vpop.permute.xlu0 %803
      %805 = vrot.lane.b32.xlu0 %v667, 110
      %v806 = vpop.permute.xlu0 %805
      %808 = vset.pattern.permute.xlu0 0
      %809 = vperm.xlu0 %808, %v582
      %v810 = vpop.permute.xlu0 %809
      %813 = vset.pattern.permute.xlu0 0
      %814 = vperm.xlu0 %813, %v583
      %v815 = vpop.permute.xlu0 %814
      %818 = vset.pattern.permute.xlu0 0
      %819 = vperm.xlu0 %818, %v584
      %v820 = vpop.permute.xlu0 %819
      %823 = vset.pattern.permute.xlu0 0
      %824 = vperm.xlu0 %823, %v585
      %v825 = vpop.permute.xlu0 %824
      %828 = vset.pattern.permute.xlu0 0
      %829 = vperm.xlu0 %828, %v586
      %v830 = vpop.permute.xlu0 %829
      %833 = vset.pattern.permute.xlu0 0
      %834 = vperm.xlu0 %833, %v587
      %v835 = vpop.permute.xlu0 %834
      %838 = vset.pattern.permute.xlu0 0
      %839 = vperm.xlu0 %838, %v588
      %v840 = vpop.permute.xlu0 %839
      %843 = vset.pattern.permute.xlu0 0
      %844 = vperm.xlu0 %843, %v589
      %v845 = vpop.permute.xlu0 %844
      %v871 = vunpack.c.l.b16 %v558
      %v872 = vunpack.c.h.b16 %v558
      %v873 = vunpack.c.l.b16 %v559
      %v874 = vunpack.c.h.b16 %v559
      %v875 = vunpack.c.l.b16 %v560
      %v876 = vunpack.c.l.b16 %v561
      %v877 = vunpack.c.h.b16 %v561
      %v878 = vunpack.c.l.b16 %v562
      %v879 = vunpack.c.h.b16 %v562
      %v880 = vunpack.c.l.b16 %v563
      %v881 = vunpack.c.l.b16 %v564
      %v882 = vunpack.c.h.b16 %v564
      %v883 = vunpack.c.l.b16 %v565
      %v884 = vunpack.c.h.b16 %v565
      %v885 = vunpack.c.l.b16 %v566
      %v886 = vunpack.c.l.b16 %v567
      %v887 = vunpack.c.h.b16 %v567
      %v888 = vunpack.c.l.b16 %v568
      %v889 = vunpack.c.h.b16 %v568
      %v890 = vunpack.c.l.b16 %v569
      %v891 = vunpack.c.l.b16 %v570
      %v892 = vunpack.c.h.b16 %v570
      %v893 = vunpack.c.l.b16 %v571
      %v894 = vunpack.c.h.b16 %v571
      %v895 = vunpack.c.l.b16 %v572
      %v896 = vunpack.c.l.b16 %v573
      %v897 = vunpack.c.h.b16 %v573
      %v898 = vunpack.c.l.b16 %v574
      %v899 = vunpack.c.h.b16 %v574
      %v900 = vunpack.c.l.b16 %v575
      %v901 = vunpack.c.l.b16 %v576
      %v902 = vunpack.c.h.b16 %v576
      %v903 = vunpack.c.l.b16 %v577
      %v904 = vunpack.c.h.b16 %v577
      %v905 = vunpack.c.l.b16 %v578
      %v906 = vunpack.c.l.b16 %v579
      %v907 = vunpack.c.h.b16 %v579
      %v908 = vunpack.c.l.b16 %v580
      %v909 = vunpack.c.h.b16 %v580
      %v910 = vunpack.c.l.b16 %v581
      %v911 = vpack.c.b16 %v876, %v871
      %v912 = vpack.c.b16 %v877, %v872
      %v913 = vpack.c.b16 %v878, %v873
      %v914 = vpack.c.b16 %v879, %v874
      %v915 = vpack.c.b16 %v880, %v875
      %v916 = vpack.c.b16 %v886, %v881
      %v917 = vpack.c.b16 %v887, %v882
      %v918 = vpack.c.b16 %v888, %v883
      %v919 = vpack.c.b16 %v889, %v884
      %v920 = vpack.c.b16 %v890, %v885
      %v921 = vpack.c.b16 %v896, %v891
      %v922 = vpack.c.b16 %v897, %v892
      %v923 = vpack.c.b16 %v898, %v893
      %v924 = vpack.c.b16 %v899, %v894
      %v925 = vpack.c.b16 %v900, %v895
      %v926 = vpack.c.b16 %v906, %v901
      %v927 = vpack.c.b16 %v907, %v902
      %v928 = vpack.c.b16 %v908, %v903
      %v929 = vpack.c.b16 %v909, %v904
      %v930 = vpack.c.b16 %v910, %v905
      %955 = vrot.lane.b32.xlu0 %v609, 9
      %v956 = vpop.permute.xlu0 %955
      %957 = vrot.lane.b32.xlu0 %v610, 9
      %v958 = vpop.permute.xlu0 %957
      %959 = vrot.lane.b32.xlu0 %v611, 9
      %v960 = vpop.permute.xlu0 %959
      %961 = vrot.lane.b32.xlu0 %v612, 9
      %v962 = vpop.permute.xlu0 %961
      %963 = vrot.lane.b32.xlu0 %v613, 9
      %v964 = vpop.permute.xlu0 %963
      %965 = vrot.lane.b32.xlu0 %v614, 9
      %v966 = vpop.permute.xlu0 %965
      %967 = vrot.lane.b32.xlu0 %v615, 9
      %v968 = vpop.permute.xlu0 %967
      %969 = vrot.lane.b32.xlu0 %v616, 9
      %v970 = vpop.permute.xlu0 %969
      %971 = vrot.lane.b32.xlu0 %v693, 9
      %v972 = vpop.permute.xlu0 %971
      %973 = vrot.lane.b32.xlu0 %v679, 9
      %v974 = vpop.permute.xlu0 %973
      %975 = vrot.lane.b32.xlu0 %v694, 9
      %v976 = vpop.permute.xlu0 %975
      %977 = vrot.lane.b32.xlu0 %v683, 9
      %v978 = vpop.permute.xlu0 %977
      %979 = vrot.lane.b32.xlu0 %v695, 9
      %v980 = vpop.permute.xlu0 %979
      %981 = vrot.lane.b32.xlu0 %v687, 9
      %v982 = vpop.permute.xlu0 %981
      %983 = vrot.lane.b32.xlu0 %v696, 9
      %v984 = vpop.permute.xlu0 %983
      %985 = vrot.lane.b32.xlu0 %v691, 9
      %v986 = vpop.permute.xlu0 %985
      %987 = vrot.lane.b32.xlu0 %v722, 9
      %v988 = vpop.permute.xlu0 %987
      %989 = vrot.lane.b32.xlu0 %v708, 9
      %v990 = vpop.permute.xlu0 %989
      %991 = vrot.lane.b32.xlu0 %v723, 9
      %v992 = vpop.permute.xlu0 %991
      %993 = vrot.lane.b32.xlu0 %v712, 9
      %v994 = vpop.permute.xlu0 %993
      %995 = vrot.lane.b32.xlu0 %v724, 9
      %v996 = vpop.permute.xlu0 %995
      %997 = vrot.lane.b32.xlu0 %v716, 9
      %v998 = vpop.permute.xlu0 %997
      %999 = vrot.lane.b32.xlu0 %v725, 9
      %v1000 = vpop.permute.xlu0 %999
      %1001 = vrot.lane.b32.xlu0 %v720, 9
      %v1002 = vpop.permute.xlu0 %1001
      %1003 = vrot.lane.b32.xlu0 %v751, 9
      %v1004 = vpop.permute.xlu0 %1003
      %1005 = vrot.lane.b32.xlu0 %v737, 9
      %v1006 = vpop.permute.xlu0 %1005
      %1007 = vrot.lane.b32.xlu0 %v752, 9
      %v1008 = vpop.permute.xlu0 %1007
      %1009 = vrot.lane.b32.xlu0 %v741, 9
      %v1010 = vpop.permute.xlu0 %1009
      %1011 = vrot.lane.b32.xlu0 %v753, 9
      %v1012 = vpop.permute.xlu0 %1011
      %1013 = vrot.lane.b32.xlu0 %v745, 9
      %v1014 = vpop.permute.xlu0 %1013
      %1015 = vrot.lane.b32.xlu0 %v754, 9
      %v1016 = vpop.permute.xlu0 %1015
      %1017 = vrot.lane.b32.xlu0 %v749, 9
      %v1018 = vpop.permute.xlu0 %1017
      %1019 = vrot.lane.b32.xlu0 %v756, 9
      %v1020 = vpop.permute.xlu0 %1019
      %1021 = vrot.lane.b32.xlu0 %v758, 9
      %v1022 = vpop.permute.xlu0 %1021
      %1023 = vrot.lane.b32.xlu0 %v760, 9
      %v1024 = vpop.permute.xlu0 %1023
      %1025 = vrot.lane.b32.xlu0 %v762, 9
      %v1026 = vpop.permute.xlu0 %1025
      %1027 = vrot.lane.b32.xlu0 %v768, 9
      %v1028 = vpop.permute.xlu0 %1027
      %1029 = vrot.lane.b32.xlu0 %v770, 9
      %v1030 = vpop.permute.xlu0 %1029
      %1031 = vrot.lane.b32.xlu0 %v772, 9
      %v1032 = vpop.permute.xlu0 %1031
      %1033 = vrot.lane.b32.xlu0 %v774, 9
      %v1034 = vpop.permute.xlu0 %1033
      %1035 = vrot.lane.b32.xlu0 %v780, 9
      %v1036 = vpop.permute.xlu0 %1035
      %1037 = vrot.lane.b32.xlu0 %v782, 9
      %v1038 = vpop.permute.xlu0 %1037
      %1039 = vrot.lane.b32.xlu0 %v784, 9
      %v1040 = vpop.permute.xlu0 %1039
      %1041 = vrot.lane.b32.xlu0 %v786, 9
      %v1042 = vpop.permute.xlu0 %1041
      %1043 = vrot.lane.b32.xlu0 %v788, 9
      %v1044 = vpop.permute.xlu0 %1043
      %1045 = vrot.lane.b32.xlu0 %v790, 9
      %v1046 = vpop.permute.xlu0 %1045
      %1047 = vrot.lane.b32.xlu0 %v792, 9
      %v1048 = vpop.permute.xlu0 %1047
      %1049 = vrot.lane.b32.xlu0 %v794, 9
      %v1050 = vpop.permute.xlu0 %1049
      %1051 = vrot.lane.b32.xlu0 %v800, 9
      %v1052 = vpop.permute.xlu0 %1051
      %1053 = vrot.lane.b32.xlu0 %v802, 9
      %v1054 = vpop.permute.xlu0 %1053
      %1055 = vrot.lane.b32.xlu0 %v804, 9
      %v1056 = vpop.permute.xlu0 %1055
      %1057 = vrot.lane.b32.xlu0 %v806, 9
      %v1058 = vpop.permute.xlu0 %1057
      %vm1059 = vcmask 72704
      %v1060 = vsel %vm1059, %v956, %v958
      %v1061 = vsel %vm1059, %v960, %v962
      %v1062 = vsel %vm1059, %v964, %v966
      %v1063 = vsel %vm1059, %v968, %v970
      %v1064 = vsel %vm1059, %v972, %v974
      %v1065 = vsel %vm1059, %v976, %v978
      %v1066 = vsel %vm1059, %v980, %v982
      %v1067 = vsel %vm1059, %v984, %v986
      %v1068 = vsel %vm1059, %v988, %v990
      %v1069 = vsel %vm1059, %v992, %v994
      %v1070 = vsel %vm1059, %v996, %v998
      %v1071 = vsel %vm1059, %v1000, %v1002
      %v1072 = vsel %vm1059, %v1004, %v1006
      %v1073 = vsel %vm1059, %v1008, %v1010
      %v1074 = vsel %vm1059, %v1012, %v1014
      %v1075 = vsel %vm1059, %v1016, %v1018
      %v1113 = vsel %vm290, %v915, 0
      %v1116 = vsel %vm290, %v920, 0
      %v1119 = vsel %vm290, %v925, 0
      %v1122 = vsel %vm290, %v930, 0
      %1124 = vmatprep.subr.bf16.mxu0 0
      %1125 = vmatpush1.bf16.msra.mxu0 %v1060
      %1126 = vmatprep.subr.bf16.mxu0 0
      %1127 = vmatpush1.bf16.msra.mxu0 %v1061
      %1128 = vmatprep.subr.bf16.mxu0 0
      %1129 = vmatpush1.bf16.msra.mxu0 %v1062
      %1130 = vmatprep.subr.bf16.mxu0 0
      %1131 = vmatpush1.bf16.msra.mxu0 %v1063
      %1132 = vmatprep.subr.bf16.mxu0 0
      %1133 = vmatpush1.bf16.msra.mxu0 %v1064
      %1134 = vmatprep.subr.bf16.mxu0 0
      %1135 = vmatpush1.bf16.msra.mxu0 %v1065
      %1136 = vmatprep.subr.bf16.mxu0 0
      %1137 = vmatpush1.bf16.msra.mxu0 %v1066
      %1138 = vmatprep.subr.bf16.mxu0 0
      %1139 = vmatpush1.bf16.msra.mxu0 %v1067
      %1140 = vmatprep.subr.bf16.mxu0 0
      %1141 = vmatpush1.bf16.msra.mxu0 %v1068
      %1142 = vmatprep.subr.bf16.mxu0 0
      %1143 = vmatpush1.bf16.msra.mxu0 %v1069
      %1144 = vmatprep.subr.bf16.mxu0 0
      %1145 = vmatpush1.bf16.msra.mxu0 %v1070
      %1146 = vmatprep.subr.bf16.mxu0 0
      %1147 = vmatpush1.bf16.msra.mxu0 %v1071
      %1148 = vmatprep.subr.bf16.mxu0 0
      %1149 = vmatpush1.bf16.msra.mxu0 %v1072
      %1150 = vmatprep.subr.bf16.mxu0 0
      %1151 = vmatpush1.bf16.msra.mxu0 %v1073
      %1152 = vmatprep.subr.bf16.mxu0 0
      %1153 = vmatpush1.bf16.msra.mxu0 %v1074
      %1154 = vmatprep.subr.bf16.mxu0 0
      %1155 = vmatpush1.bf16.msra.mxu0 %v1075
      %1156 = vmatprep.mubr.bf16.mxu0 %v912
      %1157 = vmatmul.mubr.bf16.gmra.mrb[0].mxu0 %v911
      %v1158 = vpop.f32.mrb[0].mxu0
      %v1159 = vadd.f32 %v810, %v1158
      %v1160 = vpop.f32.mrb[0].mxu0
      %v1161 = vpop.f32.mrb[0].mxu0
      %v1162 = vadd.f32 %v815, %v1161
      %v1163 = vpop.f32.mrb[0].mxu0
      %1164 = vmatprep.mubr.bf16.mxu0 %v917
      %1165 = vmatmul.mubr.bf16.gmra.mrb[0].mxu0 %v916
      %v1166 = vpop.f32.mrb[0].mxu0
      %v1167 = vadd.f32 %v820, %v1166
      %v1168 = vpop.f32.mrb[0].mxu0
      %v1169 = vpop.f32.mrb[0].mxu0
      %v1170 = vadd.f32 %v825, %v1169
      %v1171 = vpop.f32.mrb[0].mxu0
      %1172 = vmatprep.mubr.bf16.mxu0 %v922
      %1173 = vmatmul.mubr.bf16.gmra.mrb[0].mxu0 %v921
      %v1174 = vpop.f32.mrb[0].mxu0
      %v1175 = vadd.f32 %v830, %v1174
      %v1176 = vpop.f32.mrb[0].mxu0
      %v1177 = vpop.f32.mrb[0].mxu0
      %v1178 = vadd.f32 %v835, %v1177
      %v1179 = vpop.f32.mrb[0].mxu0
      %1180 = vmatprep.mubr.bf16.mxu0 %v927
      %1181 = vmatmul.mubr.bf16.gmra.mrb[0].mxu0 %v926
      %v1182 = vpop.f32.mrb[0].mxu0
      %v1183 = vadd.f32 %v840, %v1182
      %v1184 = vpop.f32.mrb[0].mxu0
      %v1185 = vpop.f32.mrb[0].mxu0
      %v1186 = vadd.f32 %v845, %v1185
      %v1187 = vpop.f32.mrb[0].mxu0
      %1188 = vdwg.mxu0
      %1189 = vmatprep.subr.bf16.mxu0 0
      %1190 = vmatpush1.bf16.msra.mxu0 %v1020
      %1191 = vmatprep.subr.bf16.mxu0 0
      %1192 = vmatpush1.bf16.msra.mxu0 %v1022
      %1193 = vmatprep.subr.bf16.mxu0 0
      %1194 = vmatpush1.bf16.msra.mxu0 %v1024
      %1195 = vmatprep.subr.bf16.mxu0 0
      %1196 = vmatpush1.bf16.msra.mxu0 %v1026
      %1197 = vmatprep.subr.bf16.mxu0 0
      %1198 = vmatpush1.bf16.msra.mxu0 %v1028
      %1199 = vmatprep.subr.bf16.mxu0 0
      %1200 = vmatpush1.bf16.msra.mxu0 %v1030
      %1201 = vmatprep.subr.bf16.mxu0 0
      %1202 = vmatpush1.bf16.msra.mxu0 %v1032
      %1203 = vmatprep.subr.bf16.mxu0 0
      %1204 = vmatpush1.bf16.msra.mxu0 %v1034
      %1205 = vmatprep.subr.bf16.mxu0 0
      %1206 = vmatpush1.bf16.msra.mxu0 %v1036
      %1207 = vmatprep.subr.bf16.mxu0 0
      %1208 = vmatpush1.bf16.msra.mxu0 %v1038
      %1209 = vmatprep.subr.bf16.mxu0 0
      %1210 = vmatpush1.bf16.msra.mxu0 %v1040
      %1211 = vmatprep.subr.bf16.mxu0 0
      %1212 = vmatpush1.bf16.msra.mxu0 %v1042
      %1213 = vmatprep.subr.bf16.mxu0 0
      %1214 = vmatpush1.bf16.msra.mxu0 %v1044
      %1215 = vmatprep.subr.bf16.mxu0 0
      %1216 = vmatpush1.bf16.msra.mxu0 %v1046
      %1217 = vmatprep.subr.bf16.mxu0 0
      %1218 = vmatpush1.bf16.msra.mxu0 %v1048
      %1219 = vmatprep.subr.bf16.mxu0 0
      %1220 = vmatpush1.bf16.msra.mxu0 %v1050
      %1221 = vmatprep.mubr.bf16.mxu0 %v914
      %1222 = vmatmul.mubr.bf16.gmra.mrb[0].mxu0 %v913
      %v1223 = vpop.f32.mrb[0].mxu0
      %v1224 = vadd.f32 %v1159, %v1223
      %v1225 = vpop.f32.mrb[0].mxu0
      %v1226 = vpop.f32.mrb[0].mxu0
      %v1227 = vadd.f32 %v1162, %v1226
      %v1228 = vpop.f32.mrb[0].mxu0
      %1229 = vmatprep.mubr.bf16.mxu0 %v919
      %1230 = vmatmul.mubr.bf16.gmra.mrb[0].mxu0 %v918
      %v1231 = vpop.f32.mrb[0].mxu0
      %v1232 = vadd.f32 %v1167, %v1231
      %v1233 = vpop.f32.mrb[0].mxu0
      %v1234 = vpop.f32.mrb[0].mxu0
      %v1235 = vadd.f32 %v1170, %v1234
      %v1236 = vpop.f32.mrb[0].mxu0
      %1237 = vmatprep.mubr.bf16.mxu0 %v924
      %1238 = vmatmul.mubr.bf16.gmra.mrb[0].mxu0 %v923
      %v1239 = vpop.f32.mrb[0].mxu0
      %v1240 = vadd.f32 %v1175, %v1239
      %v1241 = vpop.f32.mrb[0].mxu0
      %v1242 = vpop.f32.mrb[0].mxu0
      %v1243 = vadd.f32 %v1178, %v1242
      %v1244 = vpop.f32.mrb[0].mxu0
      %1245 = vmatprep.mubr.bf16.mxu0 %v929
      %1246 = vmatmul.mubr.bf16.gmra.mrb[0].mxu0 %v928
      %v1247 = vpop.f32.mrb[0].mxu0
      %v1248 = vadd.f32 %v1183, %v1247
      %v1249 = vpop.f32.mrb[0].mxu0
      %v1250 = vpop.f32.mrb[0].mxu0
      %v1251 = vadd.f32 %v1186, %v1250
      %v1252 = vpop.f32.mrb[0].mxu0
      %1253 = vdwg.mxu0
      %1254 = vmatprep.subr.bf16.mxu0 0
      %1255 = vmatpush1.bf16.msra.mxu0 %v1052
      %1256 = vmatprep.subr.bf16.mxu0 0
      %1257 = vmatpush1.bf16.msra.mxu0 %v1054
      %1258 = vmatprep.subr.bf16.mxu0 0
      %1259 = vmatpush1.bf16.msra.mxu0 %v1056
      %1260 = vmatprep.subr.bf16.mxu0 0
      %1261 = vmatpush1.bf16.msra.mxu0 %v1058
      %1262 = vmatprep.subr.bf16.mxu0 0
      %1263 = vmatpush1.bf16.msra.mxu0 0
      %1264 = vmatprep.subr.bf16.mxu0 0
      %1265 = vmatpush1.bf16.msra.mxu0 0
      %1266 = vmatprep.subr.bf16.mxu0 0
      %1267 = vmatpush1.bf16.msra.mxu0 0
      %1268 = vmatprep.subr.bf16.mxu0 0
      %1269 = vmatpush1.bf16.msra.mxu0 0
      %1270 = vmatprep.subr.bf16.mxu0 0
      %1271 = vmatpush1.bf16.msra.mxu0 0
      %1272 = vmatprep.subr.bf16.mxu0 0
      %1273 = vmatpush1.bf16.msra.mxu0 0
      %1274 = vmatprep.subr.bf16.mxu0 0
      %1275 = vmatpush1.bf16.msra.mxu0 0
      %1276 = vmatprep.subr.bf16.mxu0 0
      %1277 = vmatpush1.bf16.msra.mxu0 0
      %1278 = vmatprep.subr.bf16.mxu0 0
      %1279 = vmatpush1.bf16.msra.mxu0 0
      %1280 = vmatprep.subr.bf16.mxu0 0
      %1281 = vmatpush1.bf16.msra.mxu0 0
      %1282 = vmatprep.subr.bf16.mxu0 0
      %1283 = vmatpush1.bf16.msra.mxu0 0
      %1284 = vmatprep.subr.bf16.mxu0 0
      %1285 = vmatpush1.bf16.msra.mxu0 0
      %1286 = vmatprep.mubr.bf16.mxu0 0
      %1287 = vmatmul.mubr.bf16.gmra.mrb[0].mxu0 %v1113
      %v1288 = vpop.f32.mrb[0].mxu0
      %v1289 = vadd.f32 %v1224, %v1288
      %v1290 = vpop.f32.mrb[0].mxu0
      %v1291 = vpop.f32.mrb[0].mxu0
      %v1292 = vadd.f32 %v1227, %v1291
      %v1293 = vpop.f32.mrb[0].mxu0
      %1294 = vmatprep.mubr.bf16.mxu0 0
      %1295 = vmatmul.mubr.bf16.gmra.mrb[0].mxu0 %v1116
      %v1296 = vpop.f32.mrb[0].mxu0
      %v1297 = vadd.f32 %v1232, %v1296
      %v1298 = vpop.f32.mrb[0].mxu0
      %v1299 = vpop.f32.mrb[0].mxu0
      %v1300 = vadd.f32 %v1235, %v1299
      %v1301 = vpop.f32.mrb[0].mxu0
      %1302 = vmatprep.mubr.bf16.mxu0 0
      %1303 = vmatmul.mubr.bf16.gmra.mrb[0].mxu0 %v1119
      %v1304 = vpop.f32.mrb[0].mxu0
      %v1305 = vadd.f32 %v1240, %v1304
      %v1306 = vpop.f32.mrb[0].mxu0
      %v1307 = vpop.f32.mrb[0].mxu0
      %v1308 = vadd.f32 %v1243, %v1307
      %v1309 = vpop.f32.mrb[0].mxu0
      %1310 = vmatprep.mubr.bf16.mxu0 0
      %1311 = vmatmul.mubr.bf16.gmra.mrb[0].mxu0 %v1122
      %v1312 = vpop.f32.mrb[0].mxu0
      %v1313 = vadd.f32 %v1248, %v1312
      %v1314 = vpop.f32.mrb[0].mxu0
      %v1315 = vpop.f32.mrb[0].mxu0
      %v1316 = vadd.f32 %v1251, %v1315
      %v1317 = vpop.f32.mrb[0].mxu0
      %1318 = vdwg.mxu0
      %1319 = vst.msk [vmem:[%s278] sm:$0xff] %vm290, %v1289
      %1320 = vst.msk [vmem:[%s278 + $0x8] sm:$0xff] %vm290, %v1292
      %1321 = vst.msk [vmem:[%s278 + $0x10] sm:$0xff] %vm290, %v1297
      %1322 = vst.msk [vmem:[%s278 + $0x18] sm:$0xff] %vm290, %v1300
      %1323 = vst.msk [vmem:[%s278 + $0x20] sm:$0xff] %vm290, %v1305
      %1324 = vst.msk [vmem:[%s278 + $0x28] sm:$0xff] %vm290, %v1308
      %1325 = vst.msk [vmem:[%s278 + $0x30] sm:$0xff] %vm290, %v1313
      %1326 = vst.msk [vmem:[%s278 + $0x38] sm:$0xff] %vm290, %v1316
      %p1327 = scmp.lt.s32.totalorder %s18, 1
      %s1328 = scalar_select %p1327, %s18, 1
      %s1329 = smul.addr %s1328, 8
      %s1330 = smul.addr %s1329, 8
      %s1331 = scalar_lea.vmem %s7, %s1330
      // Predicated region
      $region49: #{mblock.3} parent=47 // pred_check
        %p1332 = pneg %p188
      $region50: #{mblock.3} parent=47 // pred_check_branch
        %1334 = sbr.rel (%p1332) target = $region52
      $region51: #{mblock.3} parent=47 // pred_region
        _
      $region52: #{mblock.3} parent=47 // pred_fallthru
        _
    $region48: #{mblock.3} parent=5 // pred_fallthru
      _
    %p1335 = scmp.le.s32.totalorder 2, %s13
    // Predicated region
    $region53: #{mblock.3} parent=5 // pred_check
      %p1336 = pneg %p1335
    $region54: #{mblock.3} parent=5 // pred_check_branch
      %1338 = sbr.rel (%p1336) target = $region56
    $region55: #{mblock.3} parent=5 // pred_region
      %s1339 = ssub.s32 %s13, 2
      // Predicated region
      $region57: #{mblock.3} parent=55 // pred_check
        %p1340 = pneg %p194
      $region58: #{mblock.3} parent=55 // pred_check_branch
        %1342 = sbr.rel (%p1340) target = $region60
      $region59: #{mblock.3} parent=55 // pred_region
        %p1343 = scmp.lt.s32.totalorder %s19, 1
        %s1344 = scalar_select %p1343, %s19, 1
        %s1345 = smul.addr %s1344, 8
        %s1346 = smul.addr %s1345, 8
        %s1347 = scalar_lea.vmem %s7, %s1346
      $region60: #{mblock.3} parent=55 // pred_fallthru
        _
    $region56: #{mblock.3} parent=5 // pred_fallthru
      _
  $region6: #{mblock.3} parent=0 // loop_footer
    %s17 = sadd.s32 1, %s13
  $region7: #{mblock.3} parent=0 // loop_footer_branch
    %12 = sbr.rel target = $region3
  $region8: #{mblock.3} parent=0 // loop_exit
    _

// kernel: mblock.5
$region0: #{mblock.5}
  #allocation0 [shape = 'u32[]', space=smem, size = 0x4, offset = 0x4, fixed_abs, tag = 'smem constant byte address 0x4 - core index']
  #allocation1 [shape = 'u32[144,128]{1,0:T(1,128)}', space=vmem, size = 0x12000, scoped, tag = 'internal scratch']
  #allocation2 [shape = 'bf16[32,1280]{1,0:T(16,128)(2,1)}', space=vmem, size = 0x14000, scoped, tag = 'scratch operand']
  %s0 = inlined_call_operand.vmem [shape: f32[2,32,1024], index: 0, kind: input, shape index: {}]
  %s1 = inlined_call_operand.vmem [shape: f32[32,2], index: 1, kind: input, shape index: {}]
  %s2 = inlined_call_operand.vmem [shape: f32[1,2], index: 2, kind: input, shape index: {}]
  %s3 = inlined_call_operand.vmem [shape: f32[32,2], index: 3, kind: input, shape index: {}]
  %s4 = inlined_call_operand.vmem [shape: f32[32,1], index: 4, kind: input, shape index: {}]
  %s5 = inlined_call_operand.vmem [shape: bf16[32,288], index: 5, kind: input, shape index: {}]
  %s6 = inlined_call_operand.vmem [shape: f32[32,1], index: 6, kind: input, shape index: {}]
  %s7 = inlined_call_operand.vmem [shape: f32[2,32,1024], index: 7, kind: output, shape index: {}]
  %s8 = sld [smem:[#allocation0]]
  $region61: #{mblock.5} parent=0
    _
  %s10 = ssub.s32 1, %s8
  %s11 = scalar_select 0, %s10, %s8
  loop: start=0, step=1, limit=4
  $region2: #{mblock.5} parent=0 // loop_pre_header
    _
  $region3: #{mblock.5} parent=0 // loop_header
    %s13 = sphi 0, %s17
    %p14 = scmp.ge.s32.totalorder %s13, 4
    %s23 = sphi 0, %s25
    %s26 = sphi 0, %s23
    %s27 = sphi 0, %s26
    %s43 = sphi 0, %s27
    %s47 = sphi 0, %s47
    %s49 = sphi 0, %s47
    %s50 = sphi 0, %s49
    %s64 = sphi 0, %s50
    %s68 = sphi 0, %s68
    %s70 = sphi 0, %s68
    %s71 = sphi 0, %s70
    %s85 = sphi 0, %s71
    %s89 = sphi 0, %s89
    %s91 = sphi 0, %s89
    %s92 = sphi 0, %s91
    %s106 = sphi 0, %s92
    %s110 = sphi 0, %s110
    %s112 = sphi 0, %s110
    %s113 = sphi 0, %s112
    %s127 = sphi 0, %s113
    %s131 = sphi 0, %s131
    %s133 = sphi 0, %s131
    %s134 = sphi 0, %s133
    %s148 = sphi 0, %s134
    %s152 = sphi 0, %s152
    %s154 = sphi 0, %s152
    %s155 = sphi 0, %s154
    %s169 = sphi 0, %s155
    %s175 = sphi 0, %s177
    %s178 = sphi 0, %s175
    %s179 = sphi 0, %s178
    %s195 = sphi 0, %s179
  $region4: #{mblock.5} parent=0 // loop_header_branch
    %16 = sbr.rel (%p14) target = $region8
  $region5: #{mblock.5} parent=0 // loop_body
    %s18 = ssub.s32 %s13, 1
    %s19 = ssub.s32 %s13, 2
    %s20 = sadd.s32 %s13, 1
    %s21 = ssub.s32 %s13, %s20
    %p22 = scmp.eq.s32.totalorder %s21, 0
    %s24 = sadd.s32 %s23, 1
    %s25 = scalar_select %p22, %s23, %s24
    %p28 = pneg %p22
    %p29 = scmp.eq.s32.totalorder %s13, 1
    %p30 = por %p28, %p29
    %p31 = scmp.ne.s32.totalorder %s23, %s26
    %p32 = scmp.eq.s32.totalorder %s13, 0
    %p33 = por %p31, %p32
    %p34 = scmp.ne.s32.totalorder %s23, %s26
    %p35 = scmp.eq.s32.totalorder %s18, 1
    %p36 = por %p34, %p35
    %p37 = scmp.ne.s32.totalorder %s26, %s27
    %p38 = scmp.eq.s32.totalorder %s18, 0
    %p39 = por %p37, %p38
    %p40 = scmp.ne.s32.totalorder %s26, %s27
    %p41 = scmp.eq.s32.totalorder %s19, 1
    %p42 = por %p40, %p41
    %p44 = scmp.ne.s32.totalorder %s27, %s43
    %p45 = scmp.eq.s32.totalorder %s19, 0
    %p46 = por %p44, %p45
    %s48 = sadd.s32 %s47, 1
    %p51 = scmp.eq.s32.totalorder %s13, 1
    %p52 = scmp.ne.s32.totalorder %s47, %s49
    %p53 = scmp.eq.s32.totalorder %s13, 0
    %p54 = por %p52, %p53
    %p55 = scmp.ne.s32.totalorder %s47, %s49
    %p56 = scmp.eq.s32.totalorder %s18, 1
    %p57 = por %p55, %p56
    %p58 = scmp.ne.s32.totalorder %s49, %s50
    %p59 = scmp.eq.s32.totalorder %s18, 0
    %p60 = por %p58, %p59
    %p61 = scmp.ne.s32.totalorder %s49, %s50
    %p62 = scmp.eq.s32.totalorder %s19, 1
    %p63 = por %p61, %p62
    %p65 = scmp.ne.s32.totalorder %s50, %s64
    %p66 = scmp.eq.s32.totalorder %s19, 0
    %p67 = por %p65, %p66
    %s69 = sadd.s32 %s68, 1
    %p72 = scmp.eq.s32.totalorder %s13, 1
    %p73 = scmp.ne.s32.totalorder %s68, %s70
    %p74 = scmp.eq.s32.totalorder %s13, 0
    %p75 = por %p73, %p74
    %p76 = scmp.ne.s32.totalorder %s68, %s70
    %p77 = scmp.eq.s32.totalorder %s18, 1
    %p78 = por %p76, %p77
    %p79 = scmp.ne.s32.totalorder %s70, %s71
    %p80 = scmp.eq.s32.totalorder %s18, 0
    %p81 = por %p79, %p80
    %p82 = scmp.ne.s32.totalorder %s70, %s71
    %p83 = scmp.eq.s32.totalorder %s19, 1
    %p84 = por %p82, %p83
    %p86 = scmp.ne.s32.totalorder %s71, %s85
    %p87 = scmp.eq.s32.totalorder %s19, 0
    %p88 = por %p86, %p87
    %s90 = sadd.s32 %s89, 1
    %p93 = scmp.eq.s32.totalorder %s13, 1
    %p94 = scmp.ne.s32.totalorder %s89, %s91
    %p95 = scmp.eq.s32.totalorder %s13, 0
    %p96 = por %p94, %p95
    %p97 = scmp.ne.s32.totalorder %s89, %s91
    %p98 = scmp.eq.s32.totalorder %s18, 1
    %p99 = por %p97, %p98
    %p100 = scmp.ne.s32.totalorder %s91, %s92
    %p101 = scmp.eq.s32.totalorder %s18, 0
    %p102 = por %p100, %p101
    %p103 = scmp.ne.s32.totalorder %s91, %s92
    %p104 = scmp.eq.s32.totalorder %s19, 1
    %p105 = por %p103, %p104
    %p107 = scmp.ne.s32.totalorder %s92, %s106
    %p108 = scmp.eq.s32.totalorder %s19, 0
    %p109 = por %p107, %p108
    %s111 = sadd.s32 %s110, 1
    %p114 = scmp.eq.s32.totalorder %s13, 1
    %p115 = scmp.ne.s32.totalorder %s110, %s112
    %p116 = scmp.eq.s32.totalorder %s13, 0
    %p117 = por %p115, %p116
    %p118 = scmp.ne.s32.totalorder %s110, %s112
    %p119 = scmp.eq.s32.totalorder %s18, 1
    %p120 = por %p118, %p119
    %p121 = scmp.ne.s32.totalorder %s112, %s113
    %p122 = scmp.eq.s32.totalorder %s18, 0
    %p123 = por %p121, %p122
    %p124 = scmp.ne.s32.totalorder %s112, %s113
    %p125 = scmp.eq.s32.totalorder %s19, 1
    %p126 = por %p124, %p125
    %p128 = scmp.ne.s32.totalorder %s113, %s127
    %p129 = scmp.eq.s32.totalorder %s19, 0
    %p130 = por %p128, %p129
    %s132 = sadd.s32 %s131, 1
    %p135 = scmp.eq.s32.totalorder %s13, 1
    %p136 = scmp.ne.s32.totalorder %s131, %s133
    %p137 = scmp.eq.s32.totalorder %s13, 0
    %p138 = por %p136, %p137
    %p139 = scmp.ne.s32.totalorder %s131, %s133
    %p140 = scmp.eq.s32.totalorder %s18, 1
    %p141 = por %p139, %p140
    %p142 = scmp.ne.s32.totalorder %s133, %s134
    %p143 = scmp.eq.s32.totalorder %s18, 0
    %p144 = por %p142, %p143
    %p145 = scmp.ne.s32.totalorder %s133, %s134
    %p146 = scmp.eq.s32.totalorder %s19, 1
    %p147 = por %p145, %p146
    %p149 = scmp.ne.s32.totalorder %s134, %s148
    %p150 = scmp.eq.s32.totalorder %s19, 0
    %p151 = por %p149, %p150
    %s153 = sadd.s32 %s152, 1
    %p156 = scmp.eq.s32.totalorder %s13, 1
    %p157 = scmp.ne.s32.totalorder %s152, %s154
    %p158 = scmp.eq.s32.totalorder %s13, 0
    %p159 = por %p157, %p158
    %p160 = scmp.ne.s32.totalorder %s152, %s154
    %p161 = scmp.eq.s32.totalorder %s18, 1
    %p162 = por %p160, %p161
    %p163 = scmp.ne.s32.totalorder %s154, %s155
    %p164 = scmp.eq.s32.totalorder %s18, 0
    %p165 = por %p163, %p164
    %p166 = scmp.ne.s32.totalorder %s154, %s155
    %p167 = scmp.eq.s32.totalorder %s19, 1
    %p168 = por %p166, %p167
    %p170 = scmp.ne.s32.totalorder %s155, %s169
    %p171 = scmp.eq.s32.totalorder %s19, 0
    %p172 = por %p170, %p171
    %s173 = ssub.s32 %s13, %s20
    %p174 = scmp.eq.s32.totalorder %s173, 0
    %s176 = sadd.s32 %s175, 1
    %s177 = scalar_select %p174, %s175, %s176
    %p180 = pneg %p174
    %p181 = scmp.eq.s32.totalorder %s13, 1
    %p182 = por %p180, %p181
    %p183 = scmp.ne.s32.totalorder %s175, %s178
    %p184 = scmp.eq.s32.totalorder %s13, 0
    %p185 = por %p183, %p184
    %p186 = scmp.ne.s32.totalorder %s175, %s178
    %p187 = scmp.eq.s32.totalorder %s18, 1
    %p188 = por %p186, %p187
    %p189 = scmp.ne.s32.totalorder %s178, %s179
    %p190 = scmp.eq.s32.totalorder %s18, 0
    %p191 = por %p189, %p190
    %p192 = scmp.ne.s32.totalorder %s178, %s179
    %p193 = scmp.eq.s32.totalorder %s19, 1
    %p194 = por %p192, %p193
    %p196 = scmp.ne.s32.totalorder %s179, %s195
    %p197 = scmp.eq.s32.totalorder %s19, 0
    %p198 = por %p196, %p197
    %p199 = scmp.le.s32.totalorder 1, %s13
    %p200 = scmp.lt.s32.totalorder %s13, 3
    %p201 = pnand %p199, %p200
    %p202 = pneg %p201
    // Predicated region
    $region9: #{mblock.5} parent=5 // pred_check
      _
    $region10: #{mblock.5} parent=5 // pred_check_branch
      %204 = sbr.rel (%p201) target = $region12
    $region11: #{mblock.5} parent=5 // pred_region
      %s205 = ssub.s32 %s13, 1
      // Predicated region
      $region13: #{mblock.5} parent=11 // pred_check
        %p206 = pneg %p60
      $region14: #{mblock.5} parent=11 // pred_check_branch
        %208 = sbr.rel (%p206) target = $region16
      $region15: #{mblock.5} parent=11 // pred_region
        _
      $region16: #{mblock.5} parent=11 // pred_fallthru
        _
      // Predicated region
      $region17: #{mblock.5} parent=11 // pred_check
        %p209 = pneg %p81
      $region18: #{mblock.5} parent=11 // pred_check_branch
        %211 = sbr.rel (%p209) target = $region20
      $region19: #{mblock.5} parent=11 // pred_region
        _
      $region20: #{mblock.5} parent=11 // pred_fallthru
        _
      // Predicated region
      $region21: #{mblock.5} parent=11 // pred_check
        %p212 = pneg %p102
      $region22: #{mblock.5} parent=11 // pred_check_branch
        %214 = sbr.rel (%p212) target = $region24
      $region23: #{mblock.5} parent=11 // pred_region
        _
      $region24: #{mblock.5} parent=11 // pred_fallthru
        _
      // Predicated region
      $region25: #{mblock.5} parent=11 // pred_check
        %p215 = pneg %p123
      $region26: #{mblock.5} parent=11 // pred_check_branch
        %217 = sbr.rel (%p215) target = $region28
      $region27: #{mblock.5} parent=11 // pred_region
        _
      $region28: #{mblock.5} parent=11 // pred_fallthru
        _
      // Predicated region
      $region29: #{mblock.5} parent=11 // pred_check
        %p218 = pneg %p144
      $region30: #{mblock.5} parent=11 // pred_check_branch
        %220 = sbr.rel (%p218) target = $region32
      $region31: #{mblock.5} parent=11 // pred_region
        _
      $region32: #{mblock.5} parent=11 // pred_fallthru
        _
      // Predicated region
      $region33: #{mblock.5} parent=11 // pred_check
        %p221 = pneg %p165
      $region34: #{mblock.5} parent=11 // pred_check_branch
        %223 = sbr.rel (%p221) target = $region36
      $region35: #{mblock.5} parent=11 // pred_region
        _
      $region36: #{mblock.5} parent=11 // pred_fallthru
        _
    $region12: #{mblock.5} parent=5 // pred_fallthru
      _
    %p224 = scmp.lt.s32.totalorder %s13, 2
    // Predicated region
    $region37: #{mblock.5} parent=5 // pred_check
      %p225 = pneg %p224
    $region38: #{mblock.5} parent=5 // pred_check_branch
      %227 = sbr.rel (%p225) target = $region40
    $region39: #{mblock.5} parent=5 // pred_region
      // Predicated region
      $region41: #{mblock.5} parent=39 // pred_check
        %p228 = pneg %p33
      $region42: #{mblock.5} parent=39 // pred_check_branch
        %230 = sbr.rel (%p228) target = $region44
      $region43: #{mblock.5} parent=39 // pred_region
        %p231 = scmp.lt.s32.totalorder %s13, 1
        %s232 = scalar_select %p231, %s13, 1
        %s233 = smul.addr %s232, 32
        %s234 = smul.addr %s233, 8
        %s235 = scalar_lea.vmem %s0, %s234
      $region44: #{mblock.5} parent=39 // pred_fallthru
        _
    $region40: #{mblock.5} parent=5 // pred_fallthru
      _
    %p236 = scmp.le.s32.totalorder 1, %s13
    %p237 = scmp.lt.s32.totalorder %s13, 3
    %p238 = pnand %p236, %p237
    %p239 = pneg %p238
    // Predicated region
    $region45: #{mblock.5} parent=5 // pred_check
      _
    $region46: #{mblock.5} parent=5 // pred_check_branch
      %241 = sbr.rel (%p238) target = $region48
    $region47: #{mblock.5} parent=5 // pred_region
      %s242 = ssub.s32 %s13, 1
      %p243 = scmp.lt.s32.totalorder %s18, 1
      %s244 = scalar_select %p243, %s18, 1
      %s245 = smul.addr %s244, 32
      %s246 = smul.addr %s245, 8
      %s247 = scalar_lea.vmem %s0, %s246
      %p248 = pneg %p39
      %p249 = pneg %p36
      %p250 = pneg %p60
      %p251 = pneg %p57
      %p252 = pneg %p81
      %p253 = pneg %p78
      %p254 = pneg %p102
      %p255 = pneg %p99
      %p256 = pneg %p123
      %p257 = pneg %p120
      %p258 = pneg %p144
      %p259 = pneg %p141
      %p260 = pneg %p165
      %p261 = pneg %p162
      %p262 = pneg %p191
      %p263 = pneg %p188
      %p264 = scmp.lt.s32.totalorder %s18, 1
      %s265 = scalar_select %p264, %s18, 1
      %s266 = smul.addr %s265, 32
      %s267 = smul.addr %s266, 8
      %s268 = scalar_lea.vmem %s7, %s267
      %p269 = scmp.lt.s32.totalorder %s18, 1
      %s270 = scalar_select %p269, %s18, 1
      %s271 = smul.addr %s270, 32
      %s272 = smul.addr %s271, 8
      %s273 = scalar_lea.vmem %s0, %s272
      %p274 = scmp.lt.s32.totalorder %s18, 1
      %s275 = scalar_select %p274, %s18, 1
      %s276 = smul.addr %s275, 32
      %s277 = smul.addr %s276, 8
      %s278 = scalar_lea.vmem %s7, %s277
      %v282 = vld [vmem:[%s273] sm:$0xff]
      %v283 = vld [vmem:[%s273 + $0x8] sm:$0xff]
      %v284 = vld [vmem:[%s273 + $0x10] sm:$0xff]
      %v285 = vld [vmem:[%s273 + $0x18] sm:$0xff]
      %v286 = vld [vmem:[%s273 + $0x20] sm:$0xff]
      %v287 = vld [vmem:[%s273 + $0x28] sm:$0xff]
      %v288 = vld [vmem:[%s273 + $0x30] sm:$0xff]
      %v289 = vld [vmem:[%s273 + $0x38] sm:$0xff]
      %v290 = vld [vmem:[%s273 + $0x40] sm:$0xff]
      %v291 = vld [vmem:[%s273 + $0x48] sm:$0xff]
      %v292 = vld [vmem:[%s273 + $0x50] sm:$0xff]
      %v293 = vld [vmem:[%s273 + $0x58] sm:$0xff]
      %v294 = vld [vmem:[%s273 + $0x60] sm:$0xff]
      %v295 = vld [vmem:[%s273 + $0x68] sm:$0xff]
      %v296 = vld [vmem:[%s273 + $0x70] sm:$0xff]
      %v297 = vld [vmem:[%s273 + $0x78] sm:$0xff]
      %v298 = vld [vmem:[%s273 + $0x80] sm:$0xff]
      %v299 = vld [vmem:[%s273 + $0x88] sm:$0xff]
      %v300 = vld [vmem:[%s273 + $0x90] sm:$0xff]
      %v301 = vld [vmem:[%s273 + $0x98] sm:$0xff]
      %v302 = vld [vmem:[%s273 + $0xa0] sm:$0xff]
      %v303 = vld [vmem:[%s273 + $0xa8] sm:$0xff]
      %v304 = vld [vmem:[%s273 + $0xb0] sm:$0xff]
      %v305 = vld [vmem:[%s273 + $0xb8] sm:$0xff]
      %v306 = vld [vmem:[%s273 + $0xc0] sm:$0xff]
      %v307 = vld [vmem:[%s273 + $0xc8] sm:$0xff]
      %v308 = vld [vmem:[%s273 + $0xd0] sm:$0xff]
      %v309 = vld [vmem:[%s273 + $0xd8] sm:$0xff]
      %v310 = vld [vmem:[%s273 + $0xe0] sm:$0xff]
      %v311 = vld [vmem:[%s273 + $0xe8] sm:$0xff]
      %v312 = vld [vmem:[%s273 + $0xf0] sm:$0xff]
      %v313 = vld [vmem:[%s273 + $0xf8] sm:$0xff]
      %v314 = vadd.f32 %v282, %v283
      %v315 = vadd.f32 %v314, %v284
      %v316 = vadd.f32 %v315, %v285
      %v317 = vadd.f32 %v316, %v286
      %v318 = vadd.f32 %v317, %v287
      %v319 = vadd.f32 %v318, %v288
      %v320 = vadd.f32 %v319, %v289
      %321 = vadd.xlane.f32.xlu0 %v320
      %v322 = vpop.xlane.xlu0 %321
      %v323 = vadd.f32 %v290, %v291
      %v324 = vadd.f32 %v323, %v292
      %v325 = vadd.f32 %v324, %v293
      %v326 = vadd.f32 %v325, %v294
      %v327 = vadd.f32 %v326, %v295
      %v328 = vadd.f32 %v327, %v296
      %v329 = vadd.f32 %v328, %v297
      %330 = vadd.xlane.f32.xlu0 %v329
      %v331 = vpop.xlane.xlu0 %330
      %v332 = vadd.f32 %v298, %v299
      %v333 = vadd.f32 %v332, %v300
      %v334 = vadd.f32 %v333, %v301
      %v335 = vadd.f32 %v334, %v302
      %v336 = vadd.f32 %v335, %v303
      %v337 = vadd.f32 %v336, %v304
      %v338 = vadd.f32 %v337, %v305
      %339 = vadd.xlane.f32.xlu0 %v338
      %v340 = vpop.xlane.xlu0 %339
      %v341 = vadd.f32 %v306, %v307
      %v342 = vadd.f32 %v341, %v308
      %v343 = vadd.f32 %v342, %v309
      %v344 = vadd.f32 %v343, %v310
      %v345 = vadd.f32 %v344, %v311
      %v346 = vadd.f32 %v345, %v312
      %v347 = vadd.f32 %v346, %v313
      %348 = vadd.xlane.f32.xlu0 %v347
      %v349 = vpop.xlane.xlu0 %348
      %v350 = vrcp.pop 1024.0
      %v351 = vmul.f32 %v322, %v350
      %v352 = vmul.f32 %v331, %v350
      %v353 = vmul.f32 %v340, %v350
      %v354 = vmul.f32 %v349, %v350
      %v355 = vld [vmem:[%s1] sm:$0xff]
      %v356 = vld [vmem:[%s1 + $0x8] sm:$0xff]
      %v357 = vld [vmem:[%s1 + $0x10] sm:$0xff]
      %v358 = vld [vmem:[%s1 + $0x18] sm:$0xff]
      %v359 = vmul.f32 %v355, %v351
      %v360 = vmul.f32 %v356, %v352
      %v361 = vmul.f32 %v357, %v353
      %v362 = vmul.f32 %v358, %v354
      %vm363 = vcmask 15360
      %v364 = vsel %vm363, %v359, 0.0
      %v365 = vsel %vm363, %v360, 0.0
      %v366 = vadd.f32 %v364, %v365
      %v367 = vsel %vm363, %v361, 0.0
      %v368 = vadd.f32 %v366, %v367
      %v369 = vsel %vm363, %v362, 0.0
      %v370 = vadd.f32 %v368, %v369
      %v371 = vrot.slane %v370, 4
      %v372 = vadd.f32 %v370, %v371
      %v373 = vrot.slane %v372, 2
      %v374 = vadd.f32 %v372, %v373
      %v375 = vrot.slane %v374, 1
      %v376 = vadd.f32 %v374, %v375
      %v377 = vld [vmem:[%s2] sm:$0x1]
      %v378 = vadd.f32 %v376, %v377
      %v379 = vmax.f32 %v378, 0.0
      %v380 = vld [vmem:[%s3] sm:$0xff]
      %v381 = vld [vmem:[%s3 + $0x8] sm:$0xff]
      %v382 = vld [vmem:[%s3 + $0x10] sm:$0xff]
      %v383 = vld [vmem:[%s3 + $0x18] sm:$0xff]
      %v384 = vlaneseq
      %v385 = vshrl.u32 %v384, 7
      %v386 = vsub.s32 0, %v385
      %v387 = vrot.slane %v379, %v386
      %v388 = vmul.f32 %v380, %v387
      %v389 = vmul.f32 %v381, %v387
      %v390 = vmul.f32 %v382, %v387
      %v391 = vmul.f32 %v383, %v387
      %v392 = vsel %vm363, %v388, 0.0
      %393 = vadd.xlane.f32.xlu0 %v392
      %v394 = vpop.xlane.xlu0 %393
      %v395 = vsel %vm363, %v389, 0.0
      %396 = vadd.xlane.f32.xlu0 %v395
      %v397 = vpop.xlane.xlu0 %396
      %v398 = vsel %vm363, %v390, 0.0
      %399 = vadd.xlane.f32.xlu0 %v398
      %v400 = vpop.xlane.xlu0 %399
      %v401 = vsel %vm363, %v391, 0.0
      %402 = vadd.xlane.f32.xlu0 %v401
      %v403 = vpop.xlane.xlu0 %402
      %v404 = vld [vmem:[%s4] sm:$0xff]
      %v405 = vld [vmem:[%s4 + $0x8] sm:$0xff]
      %v406 = vld [vmem:[%s4 + $0x10] sm:$0xff]
      %v407 = vld [vmem:[%s4 + $0x18] sm:$0xff]
      %v408 = vadd.f32 %v394, %v404
      %v409 = vadd.f32 %v397, %v405
      %v410 = vadd.f32 %v400, %v406
      %v411 = vadd.f32 %v403, %v407
      %v412 = vxor.u32 %v408, 2147483648
      %v413 = vxor.u32 %v409, 2147483648
      %v414 = vxor.u32 %v410, 2147483648
      %v415 = vxor.u32 %v411, 2147483648
      %v416 = vmul.f32 %v412, 1.442695
      %v417 = vpow.pop %v416
      %v418 = vmul.f32 %v413, 1.442695
      %v419 = vpow.pop %v418
      %v420 = vmul.f32 %v414, 1.442695
      %v421 = vpow.pop %v420
      %v422 = vmul.f32 %v415, 1.442695
      %v423 = vpow.pop %v422
      %v424 = vadd.f32 %v417, 1.0
      %v425 = vadd.f32 %v419, 1.0
      %v426 = vadd.f32 %v421, 1.0
      %v427 = vadd.f32 %v423, 1.0
      %v428 = vrcp.pop %v424
      %v429 = vmul.f32 1.0, %v428
      %v430 = vrcp.pop %v425
      %v431 = vmul.f32 1.0, %v430
      %v432 = vrcp.pop %v426
      %v433 = vmul.f32 1.0, %v432
      %v434 = vrcp.pop %v427
      %v435 = vmul.f32 1.0, %v434
      %437 = vset.pattern.permute.xlu0 0
      %438 = vperm.xlu0 %437, %v429
      %v439 = vpop.permute.xlu0 %438
      %442 = vset.pattern.permute.xlu0 0
      %443 = vperm.xlu0 %442, %v431
      %v444 = vpop.permute.xlu0 %443
      %447 = vset.pattern.permute.xlu0 0
      %448 = vperm.xlu0 %447, %v433
      %v449 = vpop.permute.xlu0 %448
      %452 = vset.pattern.permute.xlu0 0
      %453 = vperm.xlu0 %452, %v435
      %v454 = vpop.permute.xlu0 %453
      %v456 = vmul.f32 %v282, %v439
      %v457 = vmul.f32 %v283, %v439
      %v458 = vmul.f32 %v284, %v439
      %v459 = vmul.f32 %v285, %v439
      %v460 = vmul.f32 %v286, %v439
      %v461 = vmul.f32 %v287, %v439
      %v462 = vmul.f32 %v288, %v439
      %v463 = vmul.f32 %v289, %v439
      %v464 = vmul.f32 %v290, %v444
      %v465 = vmul.f32 %v291, %v444
      %v466 = vmul.f32 %v292, %v444
      %v467 = vmul.f32 %v293, %v444
      %v468 = vmul.f32 %v294, %v444
      %v469 = vmul.f32 %v295, %v444
      %v470 = vmul.f32 %v296, %v444
      %v471 = vmul.f32 %v297, %v444
      %v472 = vmul.f32 %v298, %v449
      %v473 = vmul.f32 %v299, %v449
      %v474 = vmul.f32 %v300, %v449
      %v475 = vmul.f32 %v301, %v449
      %v476 = vmul.f32 %v302, %v449
      %v477 = vmul.f32 %v303, %v449
      %v478 = vmul.f32 %v304, %v449
      %v479 = vmul.f32 %v305, %v449
      %v480 = vmul.f32 %v306, %v454
      %v481 = vmul.f32 %v307, %v454
      %v482 = vmul.f32 %v308, %v454
      %v483 = vmul.f32 %v309, %v454
      %v484 = vmul.f32 %v310, %v454
      %v485 = vmul.f32 %v311, %v454
      %v486 = vmul.f32 %v312, %v454
      %v487 = vmul.f32 %v313, %v454
      %v488 = vpack.c.bf16 %v464, %v456
      %v489 = vpack.c.bf16 %v465, %v457
      %v490 = vpack.c.bf16 %v466, %v458
      %v491 = vpack.c.bf16 %v467, %v459
      %v492 = vpack.c.bf16 %v468, %v460
      %v493 = vpack.c.bf16 %v469, %v461
      %v494 = vpack.c.bf16 %v470, %v462
      %v495 = vpack.c.bf16 %v471, %v463
      %v496 = vpack.c.bf16 %v480, %v472
      %v497 = vpack.c.bf16 %v481, %v473
      %v498 = vpack.c.bf16 %v482, %v474
      %v499 = vpack.c.bf16 %v483, %v475
      %v500 = vpack.c.bf16 %v484, %v476
      %v501 = vpack.c.bf16 %v485, %v477
      %v502 = vpack.c.bf16 %v486, %v478
      %v503 = vpack.c.bf16 %v487, %v479
      %504 = vst [vmem:[#allocation2] sm:$0xff] 0
      %505 = vst [vmem:[#allocation2 + $0x50] sm:$0xff] 0
      %506 = vst [vmem:[#allocation2 + $0x48] sm:$0xff] 0
      %507 = vst [vmem:[#allocation2 + $0x98] sm:$0xff] 0
      %508 = vst [vmem:[#allocation2 + $0x8] sm:$0xff] %v488
      %509 = vst [vmem:[#allocation2 + $0x10] sm:$0xff] %v489
      %510 = vst [vmem:[#allocation2 + $0x18] sm:$0xff] %v490
      %511 = vst [vmem:[#allocation2 + $0x20] sm:$0xff] %v491
      %512 = vst [vmem:[#allocation2 + $0x28] sm:$0xff] %v492
      %513 = vst [vmem:[#allocation2 + $0x30] sm:$0xff] %v493
      %514 = vst [vmem:[#allocation2 + $0x38] sm:$0xff] %v494
      %515 = vst [vmem:[#allocation2 + $0x40] sm:$0xff] %v495
      %516 = vst [vmem:[#allocation2 + $0x58] sm:$0xff] %v496
      %517 = vst [vmem:[#allocation2 + $0x60] sm:$0xff] %v497
      %518 = vst [vmem:[#allocation2 + $0x68] sm:$0xff] %v498
      %519 = vst [vmem:[#allocation2 + $0x70] sm:$0xff] %v499
      %520 = vst [vmem:[#allocation2 + $0x78] sm:$0xff] %v500
      %521 = vst [vmem:[#allocation2 + $0x80] sm:$0xff] %v501
      %522 = vst [vmem:[#allocation2 + $0x88] sm:$0xff] %v502
      %523 = vst [vmem:[#allocation2 + $0x90] sm:$0xff] %v503
      %v524 = vlaneseq
      %v525 = vand.u32 %v524, 127
      %vm526 = vcmp.lt.s32.totalorder %v525, 0
      %v527 = vsub.s32 0, %v525
      %v528 = vsel %vm526, %v527, %v525
      %v529 = vshrl.u32 %v528, 5
      %v530 = vand.u32 %v528, 31
      %v531 = vsub.s32 0, %v530
      %v532 = vsel %vm526, %v531, %v530
      %vm533 = vcmp.ne.s32.totalorder %v532, 0
      %vm534 = vcmp.lt.s32.totalorder %v532, 0
      %vm535 = vmand %vm534, %vm533
      %v536 = vadd.s32 %v532, 32
      %v537 = vsel %vm535, %v536, %v532
      %vm538 = vcmp.eq.s32.totalorder %v537, 0
      %vm539 = vcmp.eq.s32.totalorder %v537, 31
      %v540 = vld [vmem:[%s5] sm:$0xff]
      %v541 = vld [vmem:[%s5 + $0x8] sm:$0xf]
      %v542 = vld [vmem:[%s5 + $0xc] sm:$0xff]
      %v543 = vld [vmem:[%s5 + $0x14] sm:$0xf]
      %v544 = vld [vmem:[%s5 + $0x18] sm:$0xff]
      %v545 = vld [vmem:[%s5 + $0x20] sm:$0xf]
      %v546 = vld [vmem:[%s5 + $0x24] sm:$0xff]
      %v547 = vld [vmem:[%s5 + $0x2c] sm:$0xf]
      %v548 = vld [vmem:[%s6] sm:$0xff]
      %v549 = vld [vmem:[%s6 + $0x8] sm:$0xff]
      %v550 = vld [vmem:[%s6 + $0x10] sm:$0xff]
      %v551 = vld [vmem:[%s6 + $0x18] sm:$0xff]
      %v552 = vld [vmem:[#allocation2] sm:$0xff]
      %v553 = vld [vmem:[#allocation2 + $0x8] sm:$0xff]
      %v554 = vld [vmem:[#allocation2 + $0x50] sm:$0xff]
      %v555 = vld [vmem:[#allocation2 + $0x58] sm:$0xff]
      %v556 = vsel %vm538, 1, 0
      %vm557 = vcmp.eq.s32.totalorder %v556, 1
      %vm558 = vmpackc.low %vm557, %vm557
      %v559 = vsel %vm558, 65537, 0
      %v560 = vlaneseq
      %v561 = vshrl.u32 %v560, 7
      %v562 = vsub.s32 0, %v561
      %v563 = vrot.slane %v559, %v562
      %564 = vrot.lane.b32.xlu0 %v563, 95
      %v565 = vpop.permute.xlu0 %564
      %vm566 = vcmp.ne.s16.totalorder %v565, 0
      %v567 = vsel %vm566, 0, %v552
      %v568 = vsel %vm566, 0, %v553
      %v569 = vsel %vm566, 0, %v554
      %v570 = vsel %vm566, 0, %v555
      %v571 = vsel %vm539, 1, 0
      %vm572 = vcmp.eq.s32.totalorder %v571, 1
      %vm573 = vmpackc.low %vm572, %vm572
      %v574 = vsel %vm573, 65537, 0
      %v575 = vlaneseq
      %v576 = vshrl.u32 %v575, 7
      %v577 = vsub.s32 0, %v576
      %v578 = vrot.slane %v574, %v577
      %579 = vrot.lane.b32.xlu0 %v578, 97
      %v580 = vpop.permute.xlu0 %579
      %vm581 = vcmp.ne.s16.totalorder %v580, 0
      %v582 = vsel %vm581, 0, %v552
      %v583 = vsel %vm581, 0, %v553
      %v584 = vsel %vm581, 0, %v554
      %v585 = vsel %vm581, 0, %v555
      %586 = vrot.lane.b32.xlu0 %v563, 127
      %v587 = vpop.permute.xlu0 %586
      %vm588 = vcmp.ne.s16.totalorder %v587, 0
      %v589 = vsel %vm588, 0, %v552
      %v590 = vsel %vm588, 0, %v553
      %v591 = vsel %vm588, 0, %v554
      %v592 = vsel %vm588, 0, %v555
      %v593 = vld [vmem:[#allocation2 + $0x10] sm:$0xff]
      %v594 = vld [vmem:[#allocation2 + $0x60] sm:$0xff]
      %595 = vrot.lane.b32.xlu0 %v578, 1
      %v596 = vpop.permute.xlu0 %595
      %vm597 = vcmp.ne.s16.totalorder %v596, 0
      %v598 = vsel %vm597, 0, %v553
      %v599 = vsel %vm597, 0, %v593
      %v600 = vsel %vm597, 0, %v555
      %v601 = vsel %vm597, 0, %v594
      %602 = vrot.lane.b32.xlu0 %v563, 31
      %v603 = vpop.permute.xlu0 %602
      %vm604 = vcmp.ne.s16.totalorder %v603, 0
      %v605 = vsel %vm604, 0, %v553
      %v606 = vsel %vm604, 0, %v593
      %v607 = vsel %vm604, 0, %v555
      %v608 = vsel %vm604, 0, %v594
      %609 = vrot.lane.b32.xlu0 %v578, 33
      %v610 = vpop.permute.xlu0 %609
      %vm611 = vcmp.ne.s16.totalorder %v610, 0
      %v612 = vsel %vm611, 0, %v553
      %v613 = vsel %vm611, 0, %v593
      %v614 = vsel %vm611, 0, %v555
      %v615 = vsel %vm611, 0, %v594
      %620 = vrot.lane.b32.xlu0 %v552, 127
      %v621 = vpop.permute.xlu0 %620
      %622 = vrot.lane.b32.xlu0 %v553, 127
      %v623 = vpop.permute.xlu0 %622
      %624 = vrot.lane.b32.xlu0 %v554, 127
      %v625 = vpop.permute.xlu0 %624
      %626 = vrot.lane.b32.xlu0 %v555, 127
      %v627 = vpop.permute.xlu0 %626
      %vm628 = vcmask 1039360
      %v629 = vsel %vm628, %v621, %v623
      %v630 = vsel %vm628, %v625, %v627
      %635 = vrot.lane.b32.xlu0 %v582, 126
      %v636 = vpop.permute.xlu0 %635
      %637 = vrot.lane.b32.xlu0 %v583, 126
      %v638 = vpop.permute.xlu0 %637
      %639 = vrot.lane.b32.xlu0 %v584, 126
      %v640 = vpop.permute.xlu0 %639
      %641 = vrot.lane.b32.xlu0 %v585, 126
      %v642 = vpop.permute.xlu0 %641
      %vm643 = vcmask 1031168
      %v644 = vsel %vm643, %v636, %v638
      %v645 = vsel %vm643, %v640, %v642
      %650 = vrot.lane.b32.xlu0 %v589, 96
      %v651 = vpop.permute.xlu0 %650
      %652 = vrot.lane.b32.xlu0 %v590, 96
      %v653 = vpop.permute.xlu0 %652
      %654 = vrot.lane.b32.xlu0 %v591, 96
      %v655 = vpop.permute.xlu0 %654
      %656 = vrot.lane.b32.xlu0 %v592, 96
      %v657 = vpop.permute.xlu0 %656
      %vm658 = vcmask 785408
      %v659 = vsel %vm658, %v651, %v653
      %v660 = vsel %vm658, %v655, %v657
      %661 = vrot.lane.b32.xlu0 %v553, 95
      %v662 = vpop.permute.xlu0 %661
      %663 = vrot.lane.b32.xlu0 %v555, 95
      %v664 = vpop.permute.xlu0 %663
      %669 = vrot.lane.b32.xlu0 %v598, 94
      %v670 = vpop.permute.xlu0 %669
      %671 = vrot.lane.b32.xlu0 %v599, 94
      %v672 = vpop.permute.xlu0 %671
      %673 = vrot.lane.b32.xlu0 %v600, 94
      %v674 = vpop.permute.xlu0 %673
      %675 = vrot.lane.b32.xlu0 %v601, 94
      %v676 = vpop.permute.xlu0 %675
      %vm677 = vcmask 769024
      %v678 = vsel %vm677, %v670, %v672
      %v679 = vsel %vm677, %v674, %v676
      %684 = vrot.lane.b32.xlu0 %v605, 64
      %v685 = vpop.permute.xlu0 %684
      %686 = vrot.lane.b32.xlu0 %v606, 64
      %v687 = vpop.permute.xlu0 %686
      %688 = vrot.lane.b32.xlu0 %v607, 64
      %v689 = vpop.permute.xlu0 %688
      %690 = vrot.lane.b32.xlu0 %v608, 64
      %v691 = vpop.permute.xlu0 %690
      %vm692 = vcmask 523264
      %v693 = vsel %vm692, %v685, %v687
      %v694 = vsel %vm692, %v689, %v691
      %697 = vrot.lane.b32.xlu0 %v553, 63
      %v698 = vpop.permute.xlu0 %697
      %699 = vrot.lane.b32.xlu0 %v593, 63
      %v700 = vpop.permute.xlu0 %699
      %701 = vrot.lane.b32.xlu0 %v555, 63
      %v702 = vpop.permute.xlu0 %701
      %703 = vrot.lane.b32.xlu0 %v594, 63
      %v704 = vpop.permute.xlu0 %703
      %vm705 = vcmask 515072
      %v706 = vsel %vm705, %v698, %v700
      %v707 = vsel %vm705, %v702, %v704
      %712 = vrot.lane.b32.xlu0 %v612, 62
      %v713 = vpop.permute.xlu0 %712
      %714 = vrot.lane.b32.xlu0 %v613, 62
      %v715 = vpop.permute.xlu0 %714
      %716 = vrot.lane.b32.xlu0 %v614, 62
      %v717 = vpop.permute.xlu0 %716
      %718 = vrot.lane.b32.xlu0 %v615, 62
      %v719 = vpop.permute.xlu0 %718
      %vm720 = vcmask 506880
      %v721 = vsel %vm720, %v713, %v715
      %v722 = vsel %vm720, %v717, %v719
      %724 = vset.pattern.permute.xlu0 0
      %725 = vperm.xlu0 %724, %v548
      %v726 = vpop.permute.xlu0 %725
      %729 = vset.pattern.permute.xlu0 0
      %730 = vperm.xlu0 %729, %v549
      %v731 = vpop.permute.xlu0 %730
      %734 = vset.pattern.permute.xlu0 0
      %735 = vperm.xlu0 %734, %v550
      %v736 = vpop.permute.xlu0 %735
      %739 = vset.pattern.permute.xlu0 0
      %740 = vperm.xlu0 %739, %v551
      %v741 = vpop.permute.xlu0 %740
      %v751 = vunpack.c.l.b16 %v540
      %v752 = vunpack.c.h.b16 %v540
      %v753 = vunpack.c.l.b16 %v541
      %v754 = vunpack.c.l.b16 %v542
      %v755 = vunpack.c.h.b16 %v542
      %v756 = vunpack.c.l.b16 %v543
      %v757 = vunpack.c.l.b16 %v544
      %v758 = vunpack.c.h.b16 %v544
      %v759 = vunpack.c.l.b16 %v545
      %v760 = vunpack.c.l.b16 %v546
      %v761 = vunpack.c.h.b16 %v546
      %v762 = vunpack.c.l.b16 %v547
      %v763 = vpack.c.b16 %v754, %v751
      %v764 = vpack.c.b16 %v755, %v752
      %v765 = vpack.c.b16 %v756, %v753
      %v766 = vpack.c.b16 %v760, %v757
      %v767 = vpack.c.b16 %v761, %v758
      %v768 = vpack.c.b16 %v762, %v759
      %777 = vrot.lane.b32.xlu0 %v567, 33
      %v778 = vpop.permute.xlu0 %777
      %779 = vrot.lane.b32.xlu0 %v568, 33
      %v780 = vpop.permute.xlu0 %779
      %781 = vrot.lane.b32.xlu0 %v569, 33
      %v782 = vpop.permute.xlu0 %781
      %783 = vrot.lane.b32.xlu0 %v570, 33
      %v784 = vpop.permute.xlu0 %783
      %785 = vrot.lane.b32.xlu0 %v629, 33
      %v786 = vpop.permute.xlu0 %785
      %787 = vrot.lane.b32.xlu0 %v623, 33
      %v788 = vpop.permute.xlu0 %787
      %789 = vrot.lane.b32.xlu0 %v630, 33
      %v790 = vpop.permute.xlu0 %789
      %791 = vrot.lane.b32.xlu0 %v627, 33
      %v792 = vpop.permute.xlu0 %791
      %793 = vrot.lane.b32.xlu0 %v644, 33
      %v794 = vpop.permute.xlu0 %793
      %795 = vrot.lane.b32.xlu0 %v638, 33
      %v796 = vpop.permute.xlu0 %795
      %797 = vrot.lane.b32.xlu0 %v645, 33
      %v798 = vpop.permute.xlu0 %797
      %799 = vrot.lane.b32.xlu0 %v642, 33
      %v800 = vpop.permute.xlu0 %799
      %801 = vrot.lane.b32.xlu0 %v659, 33
      %v802 = vpop.permute.xlu0 %801
      %803 = vrot.lane.b32.xlu0 %v653, 33
      %v804 = vpop.permute.xlu0 %803
      %805 = vrot.lane.b32.xlu0 %v660, 33
      %v806 = vpop.permute.xlu0 %805
      %807 = vrot.lane.b32.xlu0 %v657, 33
      %v808 = vpop.permute.xlu0 %807
      %809 = vrot.lane.b32.xlu0 %v662, 33
      %v810 = vpop.permute.xlu0 %809
      %811 = vrot.lane.b32.xlu0 %v664, 33
      %v812 = vpop.permute.xlu0 %811
      %813 = vrot.lane.b32.xlu0 %v670, 33
      %v814 = vpop.permute.xlu0 %813
      %815 = vrot.lane.b32.xlu0 %v678, 33
      %v816 = vpop.permute.xlu0 %815
      %817 = vrot.lane.b32.xlu0 %v674, 33
      %v818 = vpop.permute.xlu0 %817
      %819 = vrot.lane.b32.xlu0 %v679, 33
      %v820 = vpop.permute.xlu0 %819
      %821 = vrot.lane.b32.xlu0 %v685, 33
      %v822 = vpop.permute.xlu0 %821
      %823 = vrot.lane.b32.xlu0 %v693, 33
      %v824 = vpop.permute.xlu0 %823
      %825 = vrot.lane.b32.xlu0 %v689, 33
      %v826 = vpop.permute.xlu0 %825
      %827 = vrot.lane.b32.xlu0 %v694, 33
      %v828 = vpop.permute.xlu0 %827
      %829 = vrot.lane.b32.xlu0 %v698, 33
      %v830 = vpop.permute.xlu0 %829
      %831 = vrot.lane.b32.xlu0 %v706, 33
      %v832 = vpop.permute.xlu0 %831
      %833 = vrot.lane.b32.xlu0 %v702, 33
      %v834 = vpop.permute.xlu0 %833
      %835 = vrot.lane.b32.xlu0 %v707, 33
      %v836 = vpop.permute.xlu0 %835
      %837 = vrot.lane.b32.xlu0 %v713, 33
      %v838 = vpop.permute.xlu0 %837
      %839 = vrot.lane.b32.xlu0 %v721, 33
      %v840 = vpop.permute.xlu0 %839
      %841 = vrot.lane.b32.xlu0 %v717, 33
      %v842 = vpop.permute.xlu0 %841
      %843 = vrot.lane.b32.xlu0 %v722, 33
      %v844 = vpop.permute.xlu0 %843
      %vm845 = vcmask 269312
      %v846 = vsel %vm845, %v778, %v780
      %v847 = vsel %vm845, %v782, %v784
      %v848 = vsel %vm845, %v786, %v788
      %v849 = vsel %vm845, %v790, %v792
      %v850 = vsel %vm845, %v794, %v796
      %v851 = vsel %vm845, %v798, %v800
      %v852 = vsel %vm845, %v802, %v804
      %v853 = vsel %vm845, %v806, %v808
      %v854 = vsel %vm845, %v814, %v816
      %v855 = vsel %vm845, %v818, %v820
      %v856 = vsel %vm845, %v822, %v824
      %v857 = vsel %vm845, %v826, %v828
      %v858 = vsel %vm845, %v830, %v832
      %v859 = vsel %vm845, %v834, %v836
      %v860 = vsel %vm845, %v838, %v840
      %v861 = vsel %vm845, %v842, %v844
      %vm880 = vcmask 261120
      %v882 = vsel %vm880, %v765, 0
      %v885 = vsel %vm880, %v768, 0
      %887 = vmatprep.subr.bf16.mxu0 0
      %888 = vmatpush1.bf16.msra.mxu0 %v846
      %889 = vmatprep.subr.bf16.mxu0 0
      %890 = vmatpush1.bf16.msra.mxu0 %v847
      %891 = vmatprep.subr.bf16.mxu0 0
      %892 = vmatpush1.bf16.msra.mxu0 %v848
      %893 = vmatprep.subr.bf16.mxu0 0
      %894 = vmatpush1.bf16.msra.mxu0 %v849
      %895 = vmatprep.subr.bf16.mxu0 0
      %896 = vmatpush1.bf16.msra.mxu0 %v850
      %897 = vmatprep.subr.bf16.mxu0 0
      %898 = vmatpush1.bf16.msra.mxu0 %v851
      %899 = vmatprep.subr.bf16.mxu0 0
      %900 = vmatpush1.bf16.msra.mxu0 %v852
      %901 = vmatprep.subr.bf16.mxu0 0
      %902 = vmatpush1.bf16.msra.mxu0 %v853
      %903 = vmatprep.subr.bf16.mxu0 0
      %904 = vmatpush1.bf16.msra.mxu0 %v810
      %905 = vmatprep.subr.bf16.mxu0 0
      %906 = vmatpush1.bf16.msra.mxu0 %v812
      %907 = vmatprep.subr.bf16.mxu0 0
      %908 = vmatpush1.bf16.msra.mxu0 %v854
      %909 = vmatprep.subr.bf16.mxu0 0
      %910 = vmatpush1.bf16.msra.mxu0 %v855
      %911 = vmatprep.subr.bf16.mxu0 0
      %912 = vmatpush1.bf16.msra.mxu0 %v856
      %913 = vmatprep.subr.bf16.mxu0 0
      %914 = vmatpush1.bf16.msra.mxu0 %v857
      %915 = vmatprep.subr.bf16.mxu0 0
      %916 = vmatpush1.bf16.msra.mxu0 %v858
      %917 = vmatprep.subr.bf16.mxu0 0
      %918 = vmatpush1.bf16.msra.mxu0 %v859
      %919 = vmatprep.mubr.bf16.mxu0 %v764
      %920 = vmatmul.mubr.bf16.gmra.mrb[0].mxu0 %v763
      %v921 = vpop.f32.mrb[0].mxu0
      %v922 = vadd.f32 %v726, %v921
      %v923 = vpop.f32.mrb[0].mxu0
      %v924 = vpop.f32.mrb[0].mxu0
      %v925 = vadd.f32 %v731, %v924
      %v926 = vpop.f32.mrb[0].mxu0
      %927 = vmatprep.mubr.bf16.mxu0 %v767
      %928 = vmatmul.mubr.bf16.gmra.mrb[0].mxu0 %v766
      %v929 = vpop.f32.mrb[0].mxu0
      %v930 = vadd.f32 %v736, %v929
      %v931 = vpop.f32.mrb[0].mxu0
      %v932 = vpop.f32.mrb[0].mxu0
      %v933 = vadd.f32 %v741, %v932
      %v934 = vpop.f32.mrb[0].mxu0
      %935 = vdwg.mxu0
      %936 = vmatprep.subr.bf16.mxu0 0
      %937 = vmatpush1.bf16.msra.mxu0 %v860
      %938 = vmatprep.subr.bf16.mxu0 0
      %939 = vmatpush1.bf16.msra.mxu0 %v861
      %940 = vmatprep.subr.bf16.mxu0 0
      %941 = vmatpush1.bf16.msra.mxu0 0
      %942 = vmatprep.subr.bf16.mxu0 0
      %943 = vmatpush1.bf16.msra.mxu0 0
      %944 = vmatprep.subr.bf16.mxu0 0
      %945 = vmatpush1.bf16.msra.mxu0 0
      %946 = vmatprep.subr.bf16.mxu0 0
      %947 = vmatpush1.bf16.msra.mxu0 0
      %948 = vmatprep.subr.bf16.mxu0 0
      %949 = vmatpush1.bf16.msra.mxu0 0
      %950 = vmatprep.subr.bf16.mxu0 0
      %951 = vmatpush1.bf16.msra.mxu0 0
      %952 = vmatprep.subr.bf16.mxu0 0
      %953 = vmatpush1.bf16.msra.mxu0 0
      %954 = vmatprep.subr.bf16.mxu0 0
      %955 = vmatpush1.bf16.msra.mxu0 0
      %956 = vmatprep.subr.bf16.mxu0 0
      %957 = vmatpush1.bf16.msra.mxu0 0
      %958 = vmatprep.subr.bf16.mxu0 0
      %959 = vmatpush1.bf16.msra.mxu0 0
      %960 = vmatprep.subr.bf16.mxu0 0
      %961 = vmatpush1.bf16.msra.mxu0 0
      %962 = vmatprep.subr.bf16.mxu0 0
      %963 = vmatpush1.bf16.msra.mxu0 0
      %964 = vmatprep.subr.bf16.mxu0 0
      %965 = vmatpush1.bf16.msra.mxu0 0
      %966 = vmatprep.subr.bf16.mxu0 0
      %967 = vmatpush1.bf16.msra.mxu0 0
      %968 = vmatprep.mubr.bf16.mxu0 0
      %969 = vmatmul.mubr.bf16.gmra.mrb[0].mxu0 %v882
      %v970 = vpop.f32.mrb[0].mxu0
      %v971 = vadd.f32 %v922, %v970
      %v972 = vpop.f32.mrb[0].mxu0
      %v973 = vpop.f32.mrb[0].mxu0
      %v974 = vadd.f32 %v925, %v973
      %v975 = vpop.f32.mrb[0].mxu0
      %976 = vmatprep.mubr.bf16.mxu0 0
      %977 = vmatmul.mubr.bf16.gmra.mrb[0].mxu0 %v885
      %v978 = vpop.f32.mrb[0].mxu0
      %v979 = vadd.f32 %v930, %v978
      %v980 = vpop.f32.mrb[0].mxu0
      %v981 = vpop.f32.mrb[0].mxu0
      %v982 = vadd.f32 %v933, %v981
      %v983 = vpop.f32.mrb[0].mxu0
      %984 = vdwg.mxu0
      %985 = vst [vmem:[%s278] sm:$0xff] %v971
      %986 = vst [vmem:[%s278 + $0x40] sm:$0xff] %v974
      %987 = vst [vmem:[%s278 + $0x80] sm:$0xff] %v979
      %988 = vst [vmem:[%s278 + $0xc0] sm:$0xff] %v982
      %v989 = vld [vmem:[#allocation2 + $0x8] sm:$0xff]
      %v990 = vld [vmem:[#allocation2 + $0x10] sm:$0xff]
      %v991 = vld [vmem:[#allocation2 + $0x58] sm:$0xff]
      %v992 = vld [vmem:[#allocation2 + $0x60] sm:$0xff]
      %v993 = vsel %vm566, 0, %v989
      %v994 = vsel %vm566, 0, %v990
      %v995 = vsel %vm566, 0, %v991
      %v996 = vsel %vm566, 0, %v992
      %v997 = vsel %vm581, 0, %v989
      %v998 = vsel %vm581, 0, %v990
      %v999 = vsel %vm581, 0, %v991
      %v1000 = vsel %vm581, 0, %v992
      %v1001 = vsel %vm588, 0, %v989
      %v1002 = vsel %vm588, 0, %v990
      %v1003 = vsel %vm588, 0, %v991
      %v1004 = vsel %vm588, 0, %v992
      %v1005 = vld [vmem:[#allocation2 + $0x18] sm:$0xff]
      %v1006 = vld [vmem:[#allocation2 + $0x68] sm:$0xff]
      %v1007 = vsel %vm597, 0, %v990
      %v1008 = vsel %vm597, 0, %v1005
      %v1009 = vsel %vm597, 0, %v992
      %v1010 = vsel %vm597, 0, %v1006
      %v1011 = vsel %vm604, 0, %v990
      %v1012 = vsel %vm604, 0, %v1005
      %v1013 = vsel %vm604, 0, %v992
      %v1014 = vsel %vm604, 0, %v1006
      %v1015 = vsel %vm611, 0, %v990
      %v1016 = vsel %vm611, 0, %v1005
      %v1017 = vsel %vm611, 0, %v992
      %v1018 = vsel %vm611, 0, %v1006
      %1023 = vrot.lane.b32.xlu0 %v989, 127
      %v1024 = vpop.permute.xlu0 %1023
      %1025 = vrot.lane.b32.xlu0 %v990, 127
      %v1026 = vpop.permute.xlu0 %1025
      %1027 = vrot.lane.b32.xlu0 %v991, 127
      %v1028 = vpop.permute.xlu0 %1027
      %1029 = vrot.lane.b32.xlu0 %v992, 127
      %v1030 = vpop.permute.xlu0 %1029
      %v1031 = vsel %vm628, %v1024, %v1026
      %v1032 = vsel %vm628, %v1028, %v1030
      %1037 = vrot.lane.b32.xlu0 %v997, 126
      %v1038 = vpop.permute.xlu0 %1037
      %1039 = vrot.lane.b32.xlu0 %v998, 126
      %v1040 = vpop.permute.xlu0 %1039
      %1041 = vrot.lane.b32.xlu0 %v999, 126
      %v1042 = vpop.permute.xlu0 %1041
      %1043 = vrot.lane.b32.xlu0 %v1000, 126
      %v1044 = vpop.permute.xlu0 %1043
      %v1045 = vsel %vm643, %v1038, %v1040
      %v1046 = vsel %vm643, %v1042, %v1044
      %1051 = vrot.lane.b32.xlu0 %v1001, 96
      %v1052 = vpop.permute.xlu0 %1051
      %1053 = vrot.lane.b32.xlu0 %v1002, 96
      %v1054 = vpop.permute.xlu0 %1053
      %1055 = vrot.lane.b32.xlu0 %v1003, 96
      %v1056 = vpop.permute.xlu0 %1055
      %1057 = vrot.lane.b32.xlu0 %v1004, 96
      %v1058 = vpop.permute.xlu0 %1057
      %v1059 = vsel %vm658, %v1052, %v1054
      %v1060 = vsel %vm658, %v1056, %v1058
      %1061 = vrot.lane.b32.xlu0 %v990, 95
      %v1062 = vpop.permute.xlu0 %1061
      %1063 = vrot.lane.b32.xlu0 %v992, 95
      %v1064 = vpop.permute.xlu0 %1063
      %1069 = vrot.lane.b32.xlu0 %v1007, 94
      %v1070 = vpop.permute.xlu0 %1069
      %1071 = vrot.lane.b32.xlu0 %v1008, 94
      %v1072 = vpop.permute.xlu0 %1071
      %1073 = vrot.lane.b32.xlu0 %v1009, 94
      %v1074 = vpop.permute.xlu0 %1073
      %1075 = vrot.lane.b32.xlu0 %v1010, 94
      %v1076 = vpop.permute.xlu0 %1075
      %v1077 = vsel %vm677, %v1070, %v1072
      %v1078 = vsel %vm677, %v1074, %v1076
      %1083 = vrot.lane.b32.xlu0 %v1011, 64
      %v1084 = vpop.permute.xlu0 %1083
      %1085 = vrot.lane.b32.xlu0 %v1012, 64
      %v1086 = vpop.permute.xlu0 %1085
      %1087 = vrot.lane.b32.xlu0 %v1013, 64
      %v1088 = vpop.permute.xlu0 %1087
      %1089 = vrot.lane.b32.xlu0 %v1014, 64
      %v1090 = vpop.permute.xlu0 %1089
      %v1091 = vsel %vm692, %v1084, %v1086
      %v1092 = vsel %vm692, %v1088, %v1090
      %1095 = vrot.lane.b32.xlu0 %v990, 63
      %v1096 = vpop.permute.xlu0 %1095
      %1097 = vrot.lane.b32.xlu0 %v1005, 63
      %v1098 = vpop.permute.xlu0 %1097
      %1099 = vrot.lane.b32.xlu0 %v992, 63
      %v1100 = vpop.permute.xlu0 %1099
      %1101 = vrot.lane.b32.xlu0 %v1006, 63
      %v1102 = vpop.permute.xlu0 %1101
      %v1103 = vsel %vm705, %v1096, %v1098
      %v1104 = vsel %vm705, %v1100, %v1102
      %1109 = vrot.lane.b32.xlu0 %v1015, 62
      %v1110 = vpop.permute.xlu0 %1109
      %1111 = vrot.lane.b32.xlu0 %v1016, 62
      %v1112 = vpop.permute.xlu0 %1111
      %1113 = vrot.lane.b32.xlu0 %v1017, 62
      %v1114 = vpop.permute.xlu0 %1113
      %1115 = vrot.lane.b32.xlu0 %v1018, 62
      %v1116 = vpop.permute.xlu0 %1115
      %v1117 = vsel %vm720, %v1110, %v1112
      %v1118 = vsel %vm720, %v1114, %v1116
      %1123 = vrot.lane.b32.xlu0 %v993, 33
      %v1124 = vpop.permute.xlu0 %1123
      %1125 = vrot.lane.b32.xlu0 %v994, 33
      %v1126 = vpop.permute.xlu0 %1125
      %1127 = vrot.lane.b32.xlu0 %v995, 33
      %v1128 = vpop.permute.xlu0 %1127
      %1129 = vrot.lane.b32.xlu0 %v996, 33
      %v1130 = vpop.permute.xlu0 %1129
      %1131 = vrot.lane.b32.xlu0 %v1031, 33
      %v1132 = vpop.permute.xlu0 %1131
      %1133 = vrot.lane.b32.xlu0 %v1026, 33
      %v1134 = vpop.permute.xlu0 %1133
      %1135 = vrot.lane.b32.xlu0 %v1032, 33
      %v1136 = vpop.permute.xlu0 %1135
      %1137 = vrot.lane.b32.xlu0 %v1030, 33
      %v1138 = vpop.permute.xlu0 %1137
      %1139 = vrot.lane.b32.xlu0 %v1045, 33
      %v1140 = vpop.permute.xlu0 %1139
      %1141 = vrot.lane.b32.xlu0 %v1040, 33
      %v1142 = vpop.permute.xlu0 %1141
      %1143 = vrot.lane.b32.xlu0 %v1046, 33
      %v1144 = vpop.permute.xlu0 %1143
      %1145 = vrot.lane.b32.xlu0 %v1044, 33
      %v1146 = vpop.permute.xlu0 %1145
      %1147 = vrot.lane.b32.xlu0 %v1059, 33
      %v1148 = vpop.permute.xlu0 %1147
      %1149 = vrot.lane.b32.xlu0 %v1054, 33
      %v1150 = vpop.permute.xlu0 %1149
      %1151 = vrot.lane.b32.xlu0 %v1060, 33
      %v1152 = vpop.permute.xlu0 %1151
      %1153 = vrot.lane.b32.xlu0 %v1058, 33
      %v1154 = vpop.permute.xlu0 %1153
      %1155 = vrot.lane.b32.xlu0 %v1062, 33
      %v1156 = vpop.permute.xlu0 %1155
      %1157 = vrot.lane.b32.xlu0 %v1064, 33
      %v1158 = vpop.permute.xlu0 %1157
      %1159 = vrot.lane.b32.xlu0 %v1070, 33
      %v1160 = vpop.permute.xlu0 %1159
      %1161 = vrot.lane.b32.xlu0 %v1077, 33
      %v1162 = vpop.permute.xlu0 %1161
      %1163 = vrot.lane.b32.xlu0 %v1074, 33
      %v1164 = vpop.permute.xlu0 %1163
      %1165 = vrot.lane.b32.xlu0 %v1078, 33
      %v1166 = vpop.permute.xlu0 %1165
      %1167 = vrot.lane.b32.xlu0 %v1084, 33
      %v1168 = vpop.permute.xlu0 %1167
      %1169 = vrot.lane.b32.xlu0 %v1091, 33
      %v1170 = vpop.permute.xlu0 %1169
      %1171 = vrot.lane.b32.xlu0 %v1088, 33
      %v1172 = vpop.permute.xlu0 %1171
      %1173 = vrot.lane.b32.xlu0 %v1092, 33
      %v1174 = vpop.permute.xlu0 %1173
      %1175 = vrot.lane.b32.xlu0 %v1096, 33
      %v1176 = vpop.permute.xlu0 %1175
      %1177 = vrot.lane.b32.xlu0 %v1103, 33
      %v1178 = vpop.permute.xlu0 %1177
      %1179 = vrot.lane.b32.xlu0 %v1100, 33
      %v1180 = vpop.permute.xlu0 %1179
      %1181 = vrot.lane.b32.xlu0 %v1104, 33
      %v1182 = vpop.permute.xlu0 %1181
      %1183 = vrot.lane.b32.xlu0 %v1110, 33
      %v1184 = vpop.permute.xlu0 %1183
      %1185 = vrot.lane.b32.xlu0 %v1117, 33
      %v1186 = vpop.permute.xlu0 %1185
      %1187 = vrot.lane.b32.xlu0 %v1114, 33
      %v1188 = vpop.permute.xlu0 %1187
      %1189 = vrot.lane.b32.xlu0 %v1118, 33
      %v1190 = vpop.permute.xlu0 %1189
      %v1191 = vsel %vm845, %v1124, %v1126
      %v1192 = vsel %vm845, %v1128, %v1130
      %v1193 = vsel %vm845, %v1132, %v1134
      %v1194 = vsel %vm845, %v1136, %v1138
      %v1195 = vsel %vm845, %v1140, %v1142
      %v1196 = vsel %vm845, %v1144, %v1146
      %v1197 = vsel %vm845, %v1148, %v1150
      %v1198 = vsel %vm845, %v1152, %v1154
      %v1199 = vsel %vm845, %v1160, %v1162
      %v1200 = vsel %vm845, %v1164, %v1166
      %v1201 = vsel %vm845, %v1168, %v1170
      %v1202 = vsel %vm845, %v1172, %v1174
      %v1203 = vsel %vm845, %v1176, %v1178
      %v1204 = vsel %vm845, %v1180, %v1182
      %v1205 = vsel %vm845, %v1184, %v1186
      %v1206 = vsel %vm845, %v1188, %v1190
      %1225 = vmatprep.subr.bf16.mxu0 0
      %1226 = vmatpush1.bf16.msra.mxu0 %v1191
      %1227 = vmatprep.subr.bf16.mxu0 0
      %1228 = vmatpush1.bf16.msra.mxu0 %v1192
      %1229 = vmatprep.subr.bf16.mxu0 0
      %1230 = vmatpush1.bf16.msra.mxu0 %v1193
      %1231 = vmatprep.subr.bf16.mxu0 0
      %1232 = vmatpush1.bf16.msra.mxu0 %v1194
      %1233 = vmatprep.subr.bf16.mxu0 0
      %1234 = vmatpush1.bf16.msra.mxu0 %v1195
      %1235 = vmatprep.subr.bf16.mxu0 0
      %1236 = vmatpush1.bf16.msra.mxu0 %v1196
      %1237 = vmatprep.subr.bf16.mxu0 0
      %1238 = vmatpush1.bf16.msra.mxu0 %v1197
      %1239 = vmatprep.subr.bf16.mxu0 0
      %1240 = vmatpush1.bf16.msra.mxu0 %v1198
      %1241 = vmatprep.subr.bf16.mxu0 0
      %1242 = vmatpush1.bf16.msra.mxu0 %v1156
      %1243 = vmatprep.subr.bf16.mxu0 0
      %1244 = vmatpush1.bf16.msra.mxu0 %v1158
      %1245 = vmatprep.subr.bf16.mxu0 0
      %1246 = vmatpush1.bf16.msra.mxu0 %v1199
      %1247 = vmatprep.subr.bf16.mxu0 0
      %1248 = vmatpush1.bf16.msra.mxu0 %v1200
      %1249 = vmatprep.subr.bf16.mxu0 0
      %1250 = vmatpush1.bf16.msra.mxu0 %v1201
      %1251 = vmatprep.subr.bf16.mxu0 0
      %1252 = vmatpush1.bf16.msra.mxu0 %v1202
      %1253 = vmatprep.subr.bf16.mxu0 0
      %1254 = vmatpush1.bf16.msra.mxu0 %v1203
      %1255 = vmatprep.subr.bf16.mxu0 0
      %1256 = vmatpush1.bf16.msra.mxu0 %v1204
      %1257 = vmatprep.mubr.bf16.mxu0 %v764
      %1258 = vmatmul.mubr.bf16.gmra.mrb[0].mxu0 %v763
      %v1259 = vpop.f32.mrb[0].mxu0
      %v1260 = vadd.f32 %v726, %v1259
      %v1261 = vpop.f32.mrb[0].mxu0
      %v1262 = vpop.f32.mrb[0].mxu0
      %v1263 = vadd.f32 %v731, %v1262
      %v1264 = vpop.f32.mrb[0].mxu0
      %1265 = vmatprep.mubr.bf16.mxu0 %v767
      %1266 = vmatmul.mubr.bf16.gmra.mrb[0].mxu0 %v766
      %v1267 = vpop.f32.mrb[0].mxu0
      %v1268 = vadd.f32 %v736, %v1267
      %v1269 = vpop.f32.mrb[0].mxu0
      %v1270 = vpop.f32.mrb[0].mxu0
      %v1271 = vadd.f32 %v741, %v1270
      %v1272 = vpop.f32.mrb[0].mxu0
      %1273 = vdwg.mxu0
      %1274 = vmatprep.subr.bf16.mxu0 0
      %1275 = vmatpush1.bf16.msra.mxu0 %v1205
      %1276 = vmatprep.subr.bf16.mxu0 0
      %1277 = vmatpush1.bf16.msra.mxu0 %v1206
      %1278 = vmatprep.subr.bf16.mxu0 0
      %1279 = vmatpush1.bf16.msra.mxu0 0
      %1280 = vmatprep.subr.bf16.mxu0 0
      %1281 = vmatpush1.bf16.msra.mxu0 0
      %1282 = vmatprep.subr.bf16.mxu0 0
      %1283 = vmatpush1.bf16.msra.mxu0 0
      %1284 = vmatprep.subr.bf16.mxu0 0
      %1285 = vmatpush1.bf16.msra.mxu0 0
      %1286 = vmatprep.subr.bf16.mxu0 0
      %1287 = vmatpush1.bf16.msra.mxu0 0
      %1288 = vmatprep.subr.bf16.mxu0 0
      %1289 = vmatpush1.bf16.msra.mxu0 0
      %1290 = vmatprep.subr.bf16.mxu0 0
      %1291 = vmatpush1.bf16.msra.mxu0 0
      %1292 = vmatprep.subr.bf16.mxu0 0
      %1293 = vmatpush1.bf16.msra.mxu0 0
      %1294 = vmatprep.subr.bf16.mxu0 0
      %1295 = vmatpush1.bf16.msra.mxu0 0
      %1296 = vmatprep.subr.bf16.mxu0 0
      %1297 = vmatpush1.bf16.msra.mxu0 0
      %1298 = vmatprep.subr.bf16.mxu0 0
      %1299 = vmatpush1.bf16.msra.mxu0 0
      %1300 = vmatprep.subr.bf16.mxu0 0
      %1301 = vmatpush1.bf16.msra.mxu0 0
      %1302 = vmatprep.subr.bf16.mxu0 0
      %1303 = vmatpush1.bf16.msra.mxu0 0
      %1304 = vmatprep.subr.bf16.mxu0 0
      %1305 = vmatpush1.bf16.msra.mxu0 0
      %1306 = vmatprep.mubr.bf16.mxu0 0
      %1307 = vmatmul.mubr.bf16.gmra.mrb[0].mxu0 %v882
      %v1308 = vpop.f32.mrb[0].mxu0
      %v1309 = vadd.f32 %v1260, %v1308
      %v1310 = vpop.f32.mrb[0].mxu0
      %v1311 = vpop.f32.mrb[0].mxu0
      %v1312 = vadd.f32 %v1263, %v1311
      %v1313 = vpop.f32.mrb[0].mxu0
      %1314 = vmatprep.mubr.bf16.mxu0 0
      %1315 = vmatmul.mubr.bf16.gmra.mrb[0].mxu0 %v885
      %v1316 = vpop.f32.mrb[0].mxu0
      %v1317 = vadd.f32 %v1268, %v1316
      %v1318 = vpop.f32.mrb[0].mxu0
      %v1319 = vpop.f32.mrb[0].mxu0
      %v1320 = vadd.f32 %v1271, %v1319
      %v1321 = vpop.f32.mrb[0].mxu0
      %1322 = vdwg.mxu0
      %1323 = vst [vmem:[%s278 + $0x8] sm:$0xff] %v1309
      %1324 = vst [vmem:[%s278 + $0x48] sm:$0xff] %v1312
      %1325 = vst [vmem:[%s278 + $0x88] sm:$0xff] %v1317
      %1326 = vst [vmem:[%s278 + $0xc8] sm:$0xff] %v1320
      %v1327 = vld [vmem:[#allocation2 + $0x10] sm:$0xff]
      %v1328 = vld [vmem:[#allocation2 + $0x18] sm:$0xff]
      %v1329 = vld [vmem:[#allocation2 + $0x60] sm:$0xff]
      %v1330 = vld [vmem:[#allocation2 + $0x68] sm:$0xff]
      %v1331 = vsel %vm566, 0, %v1327
      %v1332 = vsel %vm566, 0, %v1328
      %v1333 = vsel %vm566, 0, %v1329
      %v1334 = vsel %vm566, 0, %v1330
      %v1335 = vsel %vm581, 0, %v1327
      %v1336 = vsel %vm581, 0, %v1328
      %v1337 = vsel %vm581, 0, %v1329
      %v1338 = vsel %vm581, 0, %v1330
      %v1339 = vsel %vm588, 0, %v1327
      %v1340 = vsel %vm588, 0, %v1328
      %v1341 = vsel %vm588, 0, %v1329
      %v1342 = vsel %vm588, 0, %v1330
      %v1343 = vld [vmem:[#allocation2 + $0x20] sm:$0xff]
      %v1344 = vld [vmem:[#allocation2 + $0x70] sm:$0xff]
      %v1345 = vsel %vm597, 0, %v1328
      %v1346 = vsel %vm597, 0, %v1343
      %v1347 = vsel %vm597, 0, %v1330
      %v1348 = vsel %vm597, 0, %v1344
      %v1349 = vsel %vm604, 0, %v1328
      %v1350 = vsel %vm604, 0, %v1343
      %v1351 = vsel %vm604, 0, %v1330
      %v1352 = vsel %vm604, 0, %v1344
      %v1353 = vsel %vm611, 0, %v1328
      %v1354 = vsel %vm611, 0, %v1343
      %v1355 = vsel %vm611, 0, %v1330
      %v1356 = vsel %vm611, 0, %v1344
      %1361 = vrot.lane.b32.xlu0 %v1327, 127
      %v1362 = vpop.permute.xlu0 %1361
      %1363 = vrot.lane.b32.xlu0 %v1328, 127
      %v1364 = vpop.permute.xlu0 %1363
      %1365 = vrot.lane.b32.xlu0 %v1329, 127
      %v1366 = vpop.permute.xlu0 %1365
      %1367 = vrot.lane.b32.xlu0 %v1330, 127
      %v1368 = vpop.permute.xlu0 %1367
      %v1369 = vsel %vm628, %v1362, %v1364
      %v1370 = vsel %vm628, %v1366, %v1368
      %1375 = vrot.lane.b32.xlu0 %v1335, 126
      %v1376 = vpop.permute.xlu0 %1375
      %1377 = vrot.lane.b32.xlu0 %v1336, 126
      %v1378 = vpop.permute.xlu0 %1377
      %1379 = vrot.lane.b32.xlu0 %v1337, 126
      %v1380 = vpop.permute.xlu0 %1379
      %1381 = vrot.lane.b32.xlu0 %v1338, 126
      %v1382 = vpop.permute.xlu0 %1381
      %v1383 = vsel %vm643, %v1376, %v1378
      %v1384 = vsel %vm643, %v1380, %v1382
      %1389 = vrot.lane.b32.xlu0 %v1339, 96
      %v1390 = vpop.permute.xlu0 %1389
      %1391 = vrot.lane.b32.xlu0 %v1340, 96
      %v1392 = vpop.permute.xlu0 %1391
      %1393 = vrot.lane.b32.xlu0 %v1341, 96
      %v1394 = vpop.permute.xlu0 %1393
      %1395 = vrot.lane.b32.xlu0 %v1342, 96
      %v1396 = vpop.permute.xlu0 %1395
      %v1397 = vsel %vm658, %v1390, %v1392
      %v1398 = vsel %vm658, %v1394, %v1396
      %1399 = vrot.lane.b32.xlu0 %v1328, 95
      %v1400 = vpop.permute.xlu0 %1399
      %1401 = vrot.lane.b32.xlu0 %v1330, 95
      %v1402 = vpop.permute.xlu0 %1401
      %1407 = vrot.lane.b32.xlu0 %v1345, 94
      %v1408 = vpop.permute.xlu0 %1407
      %1409 = vrot.lane.b32.xlu0 %v1346, 94
      %v1410 = vpop.permute.xlu0 %1409
      %1411 = vrot.lane.b32.xlu0 %v1347, 94
      %v1412 = vpop.permute.xlu0 %1411
      %1413 = vrot.lane.b32.xlu0 %v1348, 94
      %v1414 = vpop.permute.xlu0 %1413
      %v1415 = vsel %vm677, %v1408, %v1410
      %v1416 = vsel %vm677, %v1412, %v1414
      %1421 = vrot.lane.b32.xlu0 %v1349, 64
      %v1422 = vpop.permute.xlu0 %1421
      %1423 = vrot.lane.b32.xlu0 %v1350, 64
      %v1424 = vpop.permute.xlu0 %1423
      %1425 = vrot.lane.b32.xlu0 %v1351, 64
      %v1426 = vpop.permute.xlu0 %1425
      %1427 = vrot.lane.b32.xlu0 %v1352, 64
      %v1428 = vpop.permute.xlu0 %1427
      %v1429 = vsel %vm692, %v1422, %v1424
      %v1430 = vsel %vm692, %v1426, %v1428
      %1433 = vrot.lane.b32.xlu0 %v1328, 63
      %v1434 = vpop.permute.xlu0 %1433
      %1435 = vrot.lane.b32.xlu0 %v1343, 63
      %v1436 = vpop.permute.xlu0 %1435
      %1437 = vrot.lane.b32.xlu0 %v1330, 63
      %v1438 = vpop.permute.xlu0 %1437
      %1439 = vrot.lane.b32.xlu0 %v1344, 63
      %v1440 = vpop.permute.xlu0 %1439
      %v1441 = vsel %vm705, %v1434, %v1436
      %v1442 = vsel %vm705, %v1438, %v1440
      %1447 = vrot.lane.b32.xlu0 %v1353, 62
      %v1448 = vpop.permute.xlu0 %1447
      %1449 = vrot.lane.b32.xlu0 %v1354, 62
      %v1450 = vpop.permute.xlu0 %1449
      %1451 = vrot.lane.b32.xlu0 %v1355, 62
      %v1452 = vpop.permute.xlu0 %1451
      %1453 = vrot.lane.b32.xlu0 %v1356, 62
      %v1454 = vpop.permute.xlu0 %1453
      %v1455 = vsel %vm720, %v1448, %v1450
      %v1456 = vsel %vm720, %v1452, %v1454
      %1461 = vrot.lane.b32.xlu0 %v1331, 33
      %v1462 = vpop.permute.xlu0 %1461
      %1463 = vrot.lane.b32.xlu0 %v1332, 33
      %v1464 = vpop.permute.xlu0 %1463
      %1465 = vrot.lane.b32.xlu0 %v1333, 33
      %v1466 = vpop.permute.xlu0 %1465
      %1467 = vrot.lane.b32.xlu0 %v1334, 33
      %v1468 = vpop.permute.xlu0 %1467
      %1469 = vrot.lane.b32.xlu0 %v1369, 33
      %v1470 = vpop.permute.xlu0 %1469
      %1471 = vrot.lane.b32.xlu0 %v1364, 33
      %v1472 = vpop.permute.xlu0 %1471
      %1473 = vrot.lane.b32.xlu0 %v1370, 33
      %v1474 = vpop.permute.xlu0 %1473
      %1475 = vrot.lane.b32.xlu0 %v1368, 33
      %v1476 = vpop.permute.xlu0 %1475
      %1477 = vrot.lane.b32.xlu0 %v1383, 33
      %v1478 = vpop.permute.xlu0 %1477
      %1479 = vrot.lane.b32.xlu0 %v1378, 33
      %v1480 = vpop.permute.xlu0 %1479
      %1481 = vrot.lane.b32.xlu0 %v1384, 33
      %v1482 = vpop.permute.xlu0 %1481
      %1483 = vrot.lane.b32.xlu0 %v1382, 33
      %v1484 = vpop.permute.xlu0 %1483
      %1485 = vrot.lane.b32.xlu0 %v1397, 33
      %v1486 = vpop.permute.xlu0 %1485
      %1487 = vrot.lane.b32.xlu0 %v1392, 33
      %v1488 = vpop.permute.xlu0 %1487
      %1489 = vrot.lane.b32.xlu0 %v1398, 33
      %v1490 = vpop.permute.xlu0 %1489
      %1491 = vrot.lane.b32.xlu0 %v1396, 33
      %v1492 = vpop.permute.xlu0 %1491
      %1493 = vrot.lane.b32.xlu0 %v1400, 33
      %v1494 = vpop.permute.xlu0 %1493
      %1495 = vrot.lane.b32.xlu0 %v1402, 33
      %v1496 = vpop.permute.xlu0 %1495
      %1497 = vrot.lane.b32.xlu0 %v1408, 33
      %v1498 = vpop.permute.xlu0 %1497
      %1499 = vrot.lane.b32.xlu0 %v1415, 33
      %v1500 = vpop.permute.xlu0 %1499
      %1501 = vrot.lane.b32.xlu0 %v1412, 33
      %v1502 = vpop.permute.xlu0 %1501
      %1503 = vrot.lane.b32.xlu0 %v1416, 33
      %v1504 = vpop.permute.xlu0 %1503
      %1505 = vrot.lane.b32.xlu0 %v1422, 33
      %v1506 = vpop.permute.xlu0 %1505
      %1507 = vrot.lane.b32.xlu0 %v1429, 33
      %v1508 = vpop.permute.xlu0 %1507
      %1509 = vrot.lane.b32.xlu0 %v1426, 33
      %v1510 = vpop.permute.xlu0 %1509
      %1511 = vrot.lane.b32.xlu0 %v1430, 33
      %v1512 = vpop.permute.xlu0 %1511
      %1513 = vrot.lane.b32.xlu0 %v1434, 33
      %v1514 = vpop.permute.xlu0 %1513
      %1515 = vrot.lane.b32.xlu0 %v1441, 33
      %v1516 = vpop.permute.xlu0 %1515
      %1517 = vrot.lane.b32.xlu0 %v1438, 33
      %v1518 = vpop.permute.xlu0 %1517
      %1519 = vrot.lane.b32.xlu0 %v1442, 33
      %v1520 = vpop.permute.xlu0 %1519
      %1521 = vrot.lane.b32.xlu0 %v1448, 33
      %v1522 = vpop.permute.xlu0 %1521
      %1523 = vrot.lane.b32.xlu0 %v1455, 33
      %v1524 = vpop.permute.xlu0 %1523
      %1525 = vrot.lane.b32.xlu0 %v1452, 33
      %v1526 = vpop.permute.xlu0 %1525
      %1527 = vrot.lane.b32.xlu0 %v1456, 33
      %v1528 = vpop.permute.xlu0 %1527
      %v1529 = vsel %vm845, %v1462, %v1464
      %v1530 = vsel %vm845, %v1466, %v1468
      %v1531 = vsel %vm845, %v1470, %v1472
      %v1532 = vsel %vm845, %v1474, %v1476
      %v1533 = vsel %vm845, %v1478, %v1480
      %v1534 = vsel %vm845, %v1482, %v1484
      %v1535 = vsel %vm845, %v1486, %v1488
      %v1536 = vsel %vm845, %v1490, %v1492
      %v1537 = vsel %vm845, %v1498, %v1500
      %v1538 = vsel %vm845, %v1502, %v1504
      %v1539 = vsel %vm845, %v1506, %v1508
      %v1540 = vsel %vm845, %v1510, %v1512
      %v1541 = vsel %vm845, %v1514, %v1516
      %v1542 = vsel %vm845, %v1518, %v1520
      %v1543 = vsel %vm845, %v1522, %v1524
      %v1544 = vsel %vm845, %v1526, %v1528
      %1563 = vmatprep.subr.bf16.mxu0 0
      %1564 = vmatpush1.bf16.msra.mxu0 %v1529
      %1565 = vmatprep.subr.bf16.mxu0 0
      %1566 = vmatpush1.bf16.msra.mxu0 %v1530
      %1567 = vmatprep.subr.bf16.mxu0 0
      %1568 = vmatpush1.bf16.msra.mxu0 %v1531
      %1569 = vmatprep.subr.bf16.mxu0 0
      %1570 = vmatpush1.bf16.msra.mxu0 %v1532
      %1571 = vmatprep.subr.bf16.mxu0 0
      %1572 = vmatpush1.bf16.msra.mxu0 %v1533
      %1573 = vmatprep.subr.bf16.mxu0 0
      %1574 = vmatpush1.bf16.msra.mxu0 %v1534
      %1575 = vmatprep.subr.bf16.mxu0 0
      %1576 = vmatpush1.bf16.msra.mxu0 %v1535
      %1577 = vmatprep.subr.bf16.mxu0 0
      %1578 = vmatpush1.bf16.msra.mxu0 %v1536
      %1579 = vmatprep.subr.bf16.mxu0 0
      %1580 = vmatpush1.bf16.msra.mxu0 %v1494
      %1581 = vmatprep.subr.bf16.mxu0 0
      %1582 = vmatpush1.bf16.msra.mxu0 %v1496
      %1583 = vmatprep.subr.bf16.mxu0 0
      %1584 = vmatpush1.bf16.msra.mxu0 %v1537
      %1585 = vmatprep.subr.bf16.mxu0 0
      %1586 = vmatpush1.bf16.msra.mxu0 %v1538
      %1587 = vmatprep.subr.bf16.mxu0 0
      %1588 = vmatpush1.bf16.msra.mxu0 %v1539
      %1589 = vmatprep.subr.bf16.mxu0 0
      %1590 = vmatpush1.bf16.msra.mxu0 %v1540
      %1591 = vmatprep.subr.bf16.mxu0 0
      %1592 = vmatpush1.bf16.msra.mxu0 %v1541
      %1593 = vmatprep.subr.bf16.mxu0 0
      %1594 = vmatpush1.bf16.msra.mxu0 %v1542
      %1595 = vmatprep.mubr.bf16.mxu0 %v764
      %1596 = vmatmul.mubr.bf16.gmra.mrb[0].mxu0 %v763
      %v1597 = vpop.f32.mrb[0].mxu0
      %v1598 = vadd.f32 %v726, %v1597
      %v1599 = vpop.f32.mrb[0].mxu0
      %v1600 = vpop.f32.mrb[0].mxu0
      %v1601 = vadd.f32 %v731, %v1600
      %v1602 = vpop.f32.mrb[0].mxu0
      %1603 = vmatprep.mubr.bf16.mxu0 %v767
      %1604 = vmatmul.mubr.bf16.gmra.mrb[0].mxu0 %v766
      %v1605 = vpop.f32.mrb[0].mxu0
      %v1606 = vadd.f32 %v736, %v1605
      %v1607 = vpop.f32.mrb[0].mxu0
      %v1608 = vpop.f32.mrb[0].mxu0
      %v1609 = vadd.f32 %v741, %v1608
      %v1610 = vpop.f32.mrb[0].mxu0
      %1611 = vdwg.mxu0
      %1612 = vmatprep.subr.bf16.mxu0 0
      %1613 = vmatpush1.bf16.msra.mxu0 %v1543
      %1614 = vmatprep.subr.bf16.mxu0 0
      %1615 = vmatpush1.bf16.msra.mxu0 %v1544
      %1616 = vmatprep.subr.bf16.mxu0 0
      %1617 = vmatpush1.bf16.msra.mxu0 0
      %1618 = vmatprep.subr.bf16.mxu0 0
      %1619 = vmatpush1.bf16.msra.mxu0 0
      %1620 = vmatprep.subr.bf16.mxu0 0
      %1621 = vmatpush1.bf16.msra.mxu0 0
      %1622 = vmatprep.subr.bf16.mxu0 0
      %1623 = vmatpush1.bf16.msra.mxu0 0
      %1624 = vmatprep.subr.bf16.mxu0 0
      %1625 = vmatpush1.bf16.msra.mxu0 0
      %1626 = vmatprep.subr.bf16.mxu0 0
      %1627 = vmatpush1.bf16.msra.mxu0 0
      %1628 = vmatprep.subr.bf16.mxu0 0
      %1629 = vmatpush1.bf16.msra.mxu0 0
      %1630 = vmatprep.subr.bf16.mxu0 0
      %1631 = vmatpush1.bf16.msra.mxu0 0
      %1632 = vmatprep.subr.bf16.mxu0 0
      %1633 = vmatpush1.bf16.msra.mxu0 0
      %1634 = vmatprep.subr.bf16.mxu0 0
      %1635 = vmatpush1.bf16.msra.mxu0 0
      %1636 = vmatprep.subr.bf16.mxu0 0
      %1637 = vmatpush1.bf16.msra.mxu0 0
      %1638 = vmatprep.subr.bf16.mxu0 0
      %1639 = vmatpush1.bf16.msra.mxu0 0
      %1640 = vmatprep.subr.bf16.mxu0 0
      %1641 = vmatpush1.bf16.msra.mxu0 0
      %1642 = vmatprep.subr.bf16.mxu0 0
      %1643 = vmatpush1.bf16.msra.mxu0 0
      %1644 = vmatprep.mubr.bf16.mxu0 0
      %1645 = vmatmul.mubr.bf16.gmra.mrb[0].mxu0 %v882
      %v1646 = vpop.f32.mrb[0].mxu0
      %v1647 = vadd.f32 %v1598, %v1646
      %v1648 = vpop.f32.mrb[0].mxu0
      %v1649 = vpop.f32.mrb[0].mxu0
      %v1650 = vadd.f32 %v1601, %v1649
      %v1651 = vpop.f32.mrb[0].mxu0
      %1652 = vmatprep.mubr.bf16.mxu0 0
      %1653 = vmatmul.mubr.bf16.gmra.mrb[0].mxu0 %v885
      %v1654 = vpop.f32.mrb[0].mxu0
      %v1655 = vadd.f32 %v1606, %v1654
      %v1656 = vpop.f32.mrb[0].mxu0
      %v1657 = vpop.f32.mrb[0].mxu0
      %v1658 = vadd.f32 %v1609, %v1657
      %v1659 = vpop.f32.mrb[0].mxu0
      %1660 = vdwg.mxu0
      %1661 = vst [vmem:[%s278 + $0x10] sm:$0xff] %v1647
      %1662 = vst [vmem:[%s278 + $0x50] sm:$0xff] %v1650
      %1663 = vst [vmem:[%s278 + $0x90] sm:$0xff] %v1655
      %1664 = vst [vmem:[%s278 + $0xd0] sm:$0xff] %v1658
      %v1665 = vld [vmem:[#allocation2 + $0x18] sm:$0xff]
      %v1666 = vld [vmem:[#allocation2 + $0x20] sm:$0xff]
      %v1667 = vld [vmem:[#allocation2 + $0x68] sm:$0xff]
      %v1668 = vld [vmem:[#allocation2 + $0x70] sm:$0xff]
      %v1669 = vsel %vm566, 0, %v1665
      %v1670 = vsel %vm566, 0, %v1666
      %v1671 = vsel %vm566, 0, %v1667
      %v1672 = vsel %vm566, 0, %v1668
      %v1673 = vsel %vm581, 0, %v1665
      %v1674 = vsel %vm581, 0, %v1666
      %v1675 = vsel %vm581, 0, %v1667
      %v1676 = vsel %vm581, 0, %v1668
      %v1677 = vsel %vm588, 0, %v1665
      %v1678 = vsel %vm588, 0, %v1666
      %v1679 = vsel %vm588, 0, %v1667
      %v1680 = vsel %vm588, 0, %v1668
      %v1681 = vld [vmem:[#allocation2 + $0x28] sm:$0xff]
      %v1682 = vld [vmem:[#allocation2 + $0x78] sm:$0xff]
      %v1683 = vsel %vm597, 0, %v1666
      %v1684 = vsel %vm597, 0, %v1681
      %v1685 = vsel %vm597, 0, %v1668
      %v1686 = vsel %vm597, 0, %v1682
      %v1687 = vsel %vm604, 0, %v1666
      %v1688 = vsel %vm604, 0, %v1681
      %v1689 = vsel %vm604, 0, %v1668
      %v1690 = vsel %vm604, 0, %v1682
      %v1691 = vsel %vm611, 0, %v1666
      %v1692 = vsel %vm611, 0, %v1681
      %v1693 = vsel %vm611, 0, %v1668
      %v1694 = vsel %vm611, 0, %v1682
      %1699 = vrot.lane.b32.xlu0 %v1665, 127
      %v1700 = vpop.permute.xlu0 %1699
      %1701 = vrot.lane.b32.xlu0 %v1666, 127
      %v1702 = vpop.permute.xlu0 %1701
      %1703 = vrot.lane.b32.xlu0 %v1667, 127
      %v1704 = vpop.permute.xlu0 %1703
      %1705 = vrot.lane.b32.xlu0 %v1668, 127
      %v1706 = vpop.permute.xlu0 %1705
      %v1707 = vsel %vm628, %v1700, %v1702
      %v1708 = vsel %vm628, %v1704, %v1706
      %1713 = vrot.lane.b32.xlu0 %v1673, 126
      %v1714 = vpop.permute.xlu0 %1713
      %1715 = vrot.lane.b32.xlu0 %v1674, 126
      %v1716 = vpop.permute.xlu0 %1715
      %1717 = vrot.lane.b32.xlu0 %v1675, 126
      %v1718 = vpop.permute.xlu0 %1717
      %1719 = vrot.lane.b32.xlu0 %v1676, 126
      %v1720 = vpop.permute.xlu0 %1719
      %v1721 = vsel %vm643, %v1714, %v1716
      %v1722 = vsel %vm643, %v1718, %v1720
      %1727 = vrot.lane.b32.xlu0 %v1677, 96
      %v1728 = vpop.permute.xlu0 %1727
      %1729 = vrot.lane.b32.xlu0 %v1678, 96
      %v1730 = vpop.permute.xlu0 %1729
      %1731 = vrot.lane.b32.xlu0 %v1679, 96
      %v1732 = vpop.permute.xlu0 %1731
      %1733 = vrot.lane.b32.xlu0 %v1680, 96
      %v1734 = vpop.permute.xlu0 %1733
      %v1735 = vsel %vm658, %v1728, %v1730
      %v1736 = vsel %vm658, %v1732, %v1734
      %1737 = vrot.lane.b32.xlu0 %v1666, 95
      %v1738 = vpop.permute.xlu0 %1737
      %1739 = vrot.lane.b32.xlu0 %v1668, 95
      %v1740 = vpop.permute.xlu0 %1739
      %1745 = vrot.lane.b32.xlu0 %v1683, 94
      %v1746 = vpop.permute.xlu0 %1745
      %1747 = vrot.lane.b32.xlu0 %v1684, 94
      %v1748 = vpop.permute.xlu0 %1747
      %1749 = vrot.lane.b32.xlu0 %v1685, 94
      %v1750 = vpop.permute.xlu0 %1749
      %1751 = vrot.lane.b32.xlu0 %v1686, 94
      %v1752 = vpop.permute.xlu0 %1751
      %v1753 = vsel %vm677, %v1746, %v1748
      %v1754 = vsel %vm677, %v1750, %v1752
      %1759 = vrot.lane.b32.xlu0 %v1687, 64
      %v1760 = vpop.permute.xlu0 %1759
      %1761 = vrot.lane.b32.xlu0 %v1688, 64
      %v1762 = vpop.permute.xlu0 %1761
      %1763 = vrot.lane.b32.xlu0 %v1689, 64
      %v1764 = vpop.permute.xlu0 %1763
      %1765 = vrot.lane.b32.xlu0 %v1690, 64
      %v1766 = vpop.permute.xlu0 %1765
      %v1767 = vsel %vm692, %v1760, %v1762
      %v1768 = vsel %vm692, %v1764, %v1766
      %1771 = vrot.lane.b32.xlu0 %v1666, 63
      %v1772 = vpop.permute.xlu0 %1771
      %1773 = vrot.lane.b32.xlu0 %v1681, 63
      %v1774 = vpop.permute.xlu0 %1773
      %1775 = vrot.lane.b32.xlu0 %v1668, 63
      %v1776 = vpop.permute.xlu0 %1775
      %1777 = vrot.lane.b32.xlu0 %v1682, 63
      %v1778 = vpop.permute.xlu0 %1777
      %v1779 = vsel %vm705, %v1772, %v1774
      %v1780 = vsel %vm705, %v1776, %v1778
      %1785 = vrot.lane.b32.xlu0 %v1691, 62
      %v1786 = vpop.permute.xlu0 %1785
      %1787 = vrot.lane.b32.xlu0 %v1692, 62
      %v1788 = vpop.permute.xlu0 %1787
      %1789 = vrot.lane.b32.xlu0 %v1693, 62
      %v1790 = vpop.permute.xlu0 %1789
      %1791 = vrot.lane.b32.xlu0 %v1694, 62
      %v1792 = vpop.permute.xlu0 %1791
      %v1793 = vsel %vm720, %v1786, %v1788
      %v1794 = vsel %vm720, %v1790, %v1792
      %1799 = vrot.lane.b32.xlu0 %v1669, 33
      %v1800 = vpop.permute.xlu0 %1799
      %1801 = vrot.lane.b32.xlu0 %v1670, 33
      %v1802 = vpop.permute.xlu0 %1801
      %1803 = vrot.lane.b32.xlu0 %v1671, 33
      %v1804 = vpop.permute.xlu0 %1803
      %1805 = vrot.lane.b32.xlu0 %v1672, 33
      %v1806 = vpop.permute.xlu0 %1805
      %1807 = vrot.lane.b32.xlu0 %v1707, 33
      %v1808 = vpop.permute.xlu0 %1807
      %1809 = vrot.lane.b32.xlu0 %v1702, 33
      %v1810 = vpop.permute.xlu0 %1809
      %1811 = vrot.lane.b32.xlu0 %v1708, 33
      %v1812 = vpop.permute.xlu0 %1811
      %1813 = vrot.lane.b32.xlu0 %v1706, 33
      %v1814 = vpop.permute.xlu0 %1813
      %1815 = vrot.lane.b32.xlu0 %v1721, 33
      %v1816 = vpop.permute.xlu0 %1815
      %1817 = vrot.lane.b32.xlu0 %v1716, 33
      %v1818 = vpop.permute.xlu0 %1817
      %1819 = vrot.lane.b32.xlu0 %v1722, 33
      %v1820 = vpop.permute.xlu0 %1819
      %1821 = vrot.lane.b32.xlu0 %v1720, 33
      %v1822 = vpop.permute.xlu0 %1821
      %1823 = vrot.lane.b32.xlu0 %v1735, 33
      %v1824 = vpop.permute.xlu0 %1823
      %1825 = vrot.lane.b32.xlu0 %v1730, 33
      %v1826 = vpop.permute.xlu0 %1825
      %1827 = vrot.lane.b32.xlu0 %v1736, 33
      %v1828 = vpop.permute.xlu0 %1827
      %1829 = vrot.lane.b32.xlu0 %v1734, 33
      %v1830 = vpop.permute.xlu0 %1829
      %1831 = vrot.lane.b32.xlu0 %v1738, 33
      %v1832 = vpop.permute.xlu0 %1831
      %1833 = vrot.lane.b32.xlu0 %v1740, 33
      %v1834 = vpop.permute.xlu0 %1833
      %1835 = vrot.lane.b32.xlu0 %v1746, 33
      %v1836 = vpop.permute.xlu0 %1835
      %1837 = vrot.lane.b32.xlu0 %v1753, 33
      %v1838 = vpop.permute.xlu0 %1837
      %1839 = vrot.lane.b32.xlu0 %v1750, 33
      %v1840 = vpop.permute.xlu0 %1839
      %1841 = vrot.lane.b32.xlu0 %v1754, 33
      %v1842 = vpop.permute.xlu0 %1841
      %1843 = vrot.lane.b32.xlu0 %v1760, 33
      %v1844 = vpop.permute.xlu0 %1843
      %1845 = vrot.lane.b32.xlu0 %v1767, 33
      %v1846 = vpop.permute.xlu0 %1845
      %1847 = vrot.lane.b32.xlu0 %v1764, 33
      %v1848 = vpop.permute.xlu0 %1847
      %1849 = vrot.lane.b32.xlu0 %v1768, 33
      %v1850 = vpop.permute.xlu0 %1849
      %1851 = vrot.lane.b32.xlu0 %v1772, 33
      %v1852 = vpop.permute.xlu0 %1851
      %1853 = vrot.lane.b32.xlu0 %v1779, 33
      %v1854 = vpop.permute.xlu0 %1853
      %1855 = vrot.lane.b32.xlu0 %v1776, 33
      %v1856 = vpop.permute.xlu0 %1855
      %1857 = vrot.lane.b32.xlu0 %v1780, 33
      %v1858 = vpop.permute.xlu0 %1857
      %1859 = vrot.lane.b32.xlu0 %v1786, 33
      %v1860 = vpop.permute.xlu0 %1859
      %1861 = vrot.lane.b32.xlu0 %v1793, 33
      %v1862 = vpop.permute.xlu0 %1861
      %1863 = vrot.lane.b32.xlu0 %v1790, 33
      %v1864 = vpop.permute.xlu0 %1863
      %1865 = vrot.lane.b32.xlu0 %v1794, 33
      %v1866 = vpop.permute.xlu0 %1865
      %v1867 = vsel %vm845, %v1800, %v1802
      %v1868 = vsel %vm845, %v1804, %v1806
      %v1869 = vsel %vm845, %v1808, %v1810
      %v1870 = vsel %vm845, %v1812, %v1814
      %v1871 = vsel %vm845, %v1816, %v1818
      %v1872 = vsel %vm845, %v1820, %v1822
      %v1873 = vsel %vm845, %v1824, %v1826
      %v1874 = vsel %vm845, %v1828, %v1830
      %v1875 = vsel %vm845, %v1836, %v1838
      %v1876 = vsel %vm845, %v1840, %v1842
      %v1877 = vsel %vm845, %v1844, %v1846
      %v1878 = vsel %vm845, %v1848, %v1850
      %v1879 = vsel %vm845, %v1852, %v1854
      %v1880 = vsel %vm845, %v1856, %v1858
      %v1881 = vsel %vm845, %v1860, %v1862
      %v1882 = vsel %vm845, %v1864, %v1866
      %1901 = vmatprep.subr.bf16.mxu0 0
      %1902 = vmatpush1.bf16.msra.mxu0 %v1867
      %1903 = vmatprep.subr.bf16.mxu0 0
      %1904 = vmatpush1.bf16.msra.mxu0 %v1868
      %1905 = vmatprep.subr.bf16.mxu0 0
      %1906 = vmatpush1.bf16.msra.mxu0 %v1869
      %1907 = vmatprep.subr.bf16.mxu0 0
      %1908 = vmatpush1.bf16.msra.mxu0 %v1870
      %1909 = vmatprep.subr.bf16.mxu0 0
      %1910 = vmatpush1.bf16.msra.mxu0 %v1871
      %1911 = vmatprep.subr.bf16.mxu0 0
      %1912 = vmatpush1.bf16.msra.mxu0 %v1872
      %1913 = vmatprep.subr.bf16.mxu0 0
      %1914 = vmatpush1.bf16.msra.mxu0 %v1873
      %1915 = vmatprep.subr.bf16.mxu0 0
      %1916 = vmatpush1.bf16.msra.mxu0 %v1874
      %1917 = vmatprep.subr.bf16.mxu0 0
      %1918 = vmatpush1.bf16.msra.mxu0 %v1832
      %1919 = vmatprep.subr.bf16.mxu0 0
      %1920 = vmatpush1.bf16.msra.mxu0 %v1834
      %1921 = vmatprep.subr.bf16.mxu0 0
      %1922 = vmatpush1.bf16.msra.mxu0 %v1875
      %1923 = vmatprep.subr.bf16.mxu0 0
      %1924 = vmatpush1.bf16.msra.mxu0 %v1876
      %1925 = vmatprep.subr.bf16.mxu0 0
      %1926 = vmatpush1.bf16.msra.mxu0 %v1877
      %1927 = vmatprep.subr.bf16.mxu0 0
      %1928 = vmatpush1.bf16.msra.mxu0 %v1878
      %1929 = vmatprep.subr.bf16.mxu0 0
      %1930 = vmatpush1.bf16.msra.mxu0 %v1879
      %1931 = vmatprep.subr.bf16.mxu0 0
      %1932 = vmatpush1.bf16.msra.mxu0 %v1880
      %1933 = vmatprep.mubr.bf16.mxu0 %v764
      %1934 = vmatmul.mubr.bf16.gmra.mrb[0].mxu0 %v763
      %v1935 = vpop.f32.mrb[0].mxu0
      %v1936 = vadd.f32 %v726, %v1935
      %v1937 = vpop.f32.mrb[0].mxu0
      %v1938 = vpop.f32.mrb[0].mxu0
      %v1939 = vadd.f32 %v731, %v1938
      %v1940 = vpop.f32.mrb[0].mxu0
      %1941 = vmatprep.mubr.bf16.mxu0 %v767
      %1942 = vmatmul.mubr.bf16.gmra.mrb[0].mxu0 %v766
      %v1943 = vpop.f32.mrb[0].mxu0
      %v1944 = vadd.f32 %v736, %v1943
      %v1945 = vpop.f32.mrb[0].mxu0
      %v1946 = vpop.f32.mrb[0].mxu0
      %v1947 = vadd.f32 %v741, %v1946
      %v1948 = vpop.f32.mrb[0].mxu0
      %1949 = vdwg.mxu0
      %1950 = vmatprep.subr.bf16.mxu0 0
      %1951 = vmatpush1.bf16.msra.mxu0 %v1881
      %1952 = vmatprep.subr.bf16.mxu0 0
      %1953 = vmatpush1.bf16.msra.mxu0 %v1882
      %1954 = vmatprep.subr.bf16.mxu0 0
      %1955 = vmatpush1.bf16.msra.mxu0 0
      %1956 = vmatprep.subr.bf16.mxu0 0
      %1957 = vmatpush1.bf16.msra.mxu0 0
      %1958 = vmatprep.subr.bf16.mxu0 0
      %1959 = vmatpush1.bf16.msra.mxu0 0
      %1960 = vmatprep.subr.bf16.mxu0 0
      %1961 = vmatpush1.bf16.msra.mxu0 0
      %1962 = vmatprep.subr.bf16.mxu0 0
      %1963 = vmatpush1.bf16.msra.mxu0 0
      %1964 = vmatprep.subr.bf16.mxu0 0
      %1965 = vmatpush1.bf16.msra.mxu0 0
      %1966 = vmatprep.subr.bf16.mxu0 0
      %1967 = vmatpush1.bf16.msra.mxu0 0
      %1968 = vmatprep.subr.bf16.mxu0 0
      %1969 = vmatpush1.bf16.msra.mxu0 0
      %1970 = vmatprep.subr.bf16.mxu0 0
      %1971 = vmatpush1.bf16.msra.mxu0 0
      %1972 = vmatprep.subr.bf16.mxu0 0
      %1973 = vmatpush1.bf16.msra.mxu0 0
      %1974 = vmatprep.subr.bf16.mxu0 0
      %1975 = vmatpush1.bf16.msra.mxu0 0
      %1976 = vmatprep.subr.bf16.mxu0 0
      %1977 = vmatpush1.bf16.msra.mxu0 0
      %1978 = vmatprep.subr.bf16.mxu0 0
      %1979 = vmatpush1.bf16.msra.mxu0 0
      %1980 = vmatprep.subr.bf16.mxu0 0
      %1981 = vmatpush1.bf16.msra.mxu0 0
      %1982 = vmatprep.mubr.bf16.mxu0 0
      %1983 = vmatmul.mubr.bf16.gmra.mrb[0].mxu0 %v882
      %v1984 = vpop.f32.mrb[0].mxu0
      %v1985 = vadd.f32 %v1936, %v1984
      %v1986 = vpop.f32.mrb[0].mxu0
      %v1987 = vpop.f32.mrb[0].mxu0
      %v1988 = vadd.f32 %v1939, %v1987
      %v1989 = vpop.f32.mrb[0].mxu0
      %1990 = vmatprep.mubr.bf16.mxu0 0
      %1991 = vmatmul.mubr.bf16.gmra.mrb[0].mxu0 %v885
      %v1992 = vpop.f32.mrb[0].mxu0
      %v1993 = vadd.f32 %v1944, %v1992
      %v1994 = vpop.f32.mrb[0].mxu0
      %v1995 = vpop.f32.mrb[0].mxu0
      %v1996 = vadd.f32 %v1947, %v1995
      %v1997 = vpop.f32.mrb[0].mxu0
      %1998 = vdwg.mxu0
      %1999 = vst [vmem:[%s278 + $0x18] sm:$0xff] %v1985
      %2000 = vst [vmem:[%s278 + $0x58] sm:$0xff] %v1988
      %2001 = vst [vmem:[%s278 + $0x98] sm:$0xff] %v1993
      %2002 = vst [vmem:[%s278 + $0xd8] sm:$0xff] %v1996
      %v2003 = vld [vmem:[#allocation2 + $0x20] sm:$0xff]
      %v2004 = vld [vmem:[#allocation2 + $0x28] sm:$0xff]
      %v2005 = vld [vmem:[#allocation2 + $0x70] sm:$0xff]
      %v2006 = vld [vmem:[#allocation2 + $0x78] sm:$0xff]
      %v2007 = vsel %vm566, 0, %v2003
      %v2008 = vsel %vm566, 0, %v2004
      %v2009 = vsel %vm566, 0, %v2005
      %v2010 = vsel %vm566, 0, %v2006
      %v2011 = vsel %vm581, 0, %v2003
      %v2012 = vsel %vm581, 0, %v2004
      %v2013 = vsel %vm581, 0, %v2005
      %v2014 = vsel %vm581, 0, %v2006
      %v2015 = vsel %vm588, 0, %v2003
      %v2016 = vsel %vm588, 0, %v2004
      %v2017 = vsel %vm588, 0, %v2005
      %v2018 = vsel %vm588, 0, %v2006
      %v2019 = vld [vmem:[#allocation2 + $0x30] sm:$0xff]
      %v2020 = vld [vmem:[#allocation2 + $0x80] sm:$0xff]
      %v2021 = vsel %vm597, 0, %v2004
      %v2022 = vsel %vm597, 0, %v2019
      %v2023 = vsel %vm597, 0, %v2006
      %v2024 = vsel %vm597, 0, %v2020
      %v2025 = vsel %vm604, 0, %v2004
      %v2026 = vsel %vm604, 0, %v2019
      %v2027 = vsel %vm604, 0, %v2006
      %v2028 = vsel %vm604, 0, %v2020
      %v2029 = vsel %vm611, 0, %v2004
      %v2030 = vsel %vm611, 0, %v2019
      %v2031 = vsel %vm611, 0, %v2006
      %v2032 = vsel %vm611, 0, %v2020
      %2037 = vrot.lane.b32.xlu0 %v2003, 127
      %v2038 = vpop.permute.xlu0 %2037
      %2039 = vrot.lane.b32.xlu0 %v2004, 127
      %v2040 = vpop.permute.xlu0 %2039
      %2041 = vrot.lane.b32.xlu0 %v2005, 127
      %v2042 = vpop.permute.xlu0 %2041
      %2043 = vrot.lane.b32.xlu0 %v2006, 127
      %v2044 = vpop.permute.xlu0 %2043
      %v2045 = vsel %vm628, %v2038, %v2040
      %v2046 = vsel %vm628, %v2042, %v2044
      %2051 = vrot.lane.b32.xlu0 %v2011, 126
      %v2052 = vpop.permute.xlu0 %2051
      %2053 = vrot.lane.b32.xlu0 %v2012, 126
      %v2054 = vpop.permute.xlu0 %2053
      %2055 = vrot.lane.b32.xlu0 %v2013, 126
      %v2056 = vpop.permute.xlu0 %2055
      %2057 = vrot.lane.b32.xlu0 %v2014, 126
      %v2058 = vpop.permute.xlu0 %2057
      %v2059 = vsel %vm643, %v2052, %v2054
      %v2060 = vsel %vm643, %v2056, %v2058
      %2065 = vrot.lane.b32.xlu0 %v2015, 96
      %v2066 = vpop.permute.xlu0 %2065
      %2067 = vrot.lane.b32.xlu0 %v2016, 96
      %v2068 = vpop.permute.xlu0 %2067
      %2069 = vrot.lane.b32.xlu0 %v2017, 96
      %v2070 = vpop.permute.xlu0 %2069
      %2071 = vrot.lane.b32.xlu0 %v2018, 96
      %v2072 = vpop.permute.xlu0 %2071
      %v2073 = vsel %vm658, %v2066, %v2068
      %v2074 = vsel %vm658, %v2070, %v2072
      %2075 = vrot.lane.b32.xlu0 %v2004, 95
      %v2076 = vpop.permute.xlu0 %2075
      %2077 = vrot.lane.b32.xlu0 %v2006, 95
      %v2078 = vpop.permute.xlu0 %2077
      %2083 = vrot.lane.b32.xlu0 %v2021, 94
      %v2084 = vpop.permute.xlu0 %2083
      %2085 = vrot.lane.b32.xlu0 %v2022, 94
      %v2086 = vpop.permute.xlu0 %2085
      %2087 = vrot.lane.b32.xlu0 %v2023, 94
      %v2088 = vpop.permute.xlu0 %2087
      %2089 = vrot.lane.b32.xlu0 %v2024, 94
      %v2090 = vpop.permute.xlu0 %2089
      %v2091 = vsel %vm677, %v2084, %v2086
      %v2092 = vsel %vm677, %v2088, %v2090
      %2097 = vrot.lane.b32.xlu0 %v2025, 64
      %v2098 = vpop.permute.xlu0 %2097
      %2099 = vrot.lane.b32.xlu0 %v2026, 64
      %v2100 = vpop.permute.xlu0 %2099
      %2101 = vrot.lane.b32.xlu0 %v2027, 64
      %v2102 = vpop.permute.xlu0 %2101
      %2103 = vrot.lane.b32.xlu0 %v2028, 64
      %v2104 = vpop.permute.xlu0 %2103
      %v2105 = vsel %vm692, %v2098, %v2100
      %v2106 = vsel %vm692, %v2102, %v2104
      %2109 = vrot.lane.b32.xlu0 %v2004, 63
      %v2110 = vpop.permute.xlu0 %2109
      %2111 = vrot.lane.b32.xlu0 %v2019, 63
      %v2112 = vpop.permute.xlu0 %2111
      %2113 = vrot.lane.b32.xlu0 %v2006, 63
      %v2114 = vpop.permute.xlu0 %2113
      %2115 = vrot.lane.b32.xlu0 %v2020, 63
      %v2116 = vpop.permute.xlu0 %2115
      %v2117 = vsel %vm705, %v2110, %v2112
      %v2118 = vsel %vm705, %v2114, %v2116
      %2123 = vrot.lane.b32.xlu0 %v2029, 62
      %v2124 = vpop.permute.xlu0 %2123
      %2125 = vrot.lane.b32.xlu0 %v2030, 62
      %v2126 = vpop.permute.xlu0 %2125
      %2127 = vrot.lane.b32.xlu0 %v2031, 62
      %v2128 = vpop.permute.xlu0 %2127
      %2129 = vrot.lane.b32.xlu0 %v2032, 62
      %v2130 = vpop.permute.xlu0 %2129
      %v2131 = vsel %vm720, %v2124, %v2126
      %v2132 = vsel %vm720, %v2128, %v2130
      %2137 = vrot.lane.b32.xlu0 %v2007, 33
      %v2138 = vpop.permute.xlu0 %2137
      %2139 = vrot.lane.b32.xlu0 %v2008, 33
      %v2140 = vpop.permute.xlu0 %2139
      %2141 = vrot.lane.b32.xlu0 %v2009, 33
      %v2142 = vpop.permute.xlu0 %2141
      %2143 = vrot.lane.b32.xlu0 %v2010, 33
      %v2144 = vpop.permute.xlu0 %2143
      %2145 = vrot.lane.b32.xlu0 %v2045, 33
      %v2146 = vpop.permute.xlu0 %2145
      %2147 = vrot.lane.b32.xlu0 %v2040, 33
      %v2148 = vpop.permute.xlu0 %2147
      %2149 = vrot.lane.b32.xlu0 %v2046, 33
      %v2150 = vpop.permute.xlu0 %2149
      %2151 = vrot.lane.b32.xlu0 %v2044, 33
      %v2152 = vpop.permute.xlu0 %2151
      %2153 = vrot.lane.b32.xlu0 %v2059, 33
      %v2154 = vpop.permute.xlu0 %2153
      %2155 = vrot.lane.b32.xlu0 %v2054, 33
      %v2156 = vpop.permute.xlu0 %2155
      %2157 = vrot.lane.b32.xlu0 %v2060, 33
      %v2158 = vpop.permute.xlu0 %2157
      %2159 = vrot.lane.b32.xlu0 %v2058, 33
      %v2160 = vpop.permute.xlu0 %2159
      %2161 = vrot.lane.b32.xlu0 %v2073, 33
      %v2162 = vpop.permute.xlu0 %2161
      %2163 = vrot.lane.b32.xlu0 %v2068, 33
      %v2164 = vpop.permute.xlu0 %2163
      %2165 = vrot.lane.b32.xlu0 %v2074, 33
      %v2166 = vpop.permute.xlu0 %2165
      %2167 = vrot.lane.b32.xlu0 %v2072, 33
      %v2168 = vpop.permute.xlu0 %2167
      %2169 = vrot.lane.b32.xlu0 %v2076, 33
      %v2170 = vpop.permute.xlu0 %2169
      %2171 = vrot.lane.b32.xlu0 %v2078, 33
      %v2172 = vpop.permute.xlu0 %2171
      %2173 = vrot.lane.b32.xlu0 %v2084, 33
      %v2174 = vpop.permute.xlu0 %2173
      %2175 = vrot.lane.b32.xlu0 %v2091, 33
      %v2176 = vpop.permute.xlu0 %2175
      %2177 = vrot.lane.b32.xlu0 %v2088, 33
      %v2178 = vpop.permute.xlu0 %2177
      %2179 = vrot.lane.b32.xlu0 %v2092, 33
      %v2180 = vpop.permute.xlu0 %2179
      %2181 = vrot.lane.b32.xlu0 %v2098, 33
      %v2182 = vpop.permute.xlu0 %2181
      %2183 = vrot.lane.b32.xlu0 %v2105, 33
      %v2184 = vpop.permute.xlu0 %2183
      %2185 = vrot.lane.b32.xlu0 %v2102, 33
      %v2186 = vpop.permute.xlu0 %2185
      %2187 = vrot.lane.b32.xlu0 %v2106, 33
      %v2188 = vpop.permute.xlu0 %2187
      %2189 = vrot.lane.b32.xlu0 %v2110, 33
      %v2190 = vpop.permute.xlu0 %2189
      %2191 = vrot.lane.b32.xlu0 %v2117, 33
      %v2192 = vpop.permute.xlu0 %2191
      %2193 = vrot.lane.b32.xlu0 %v2114, 33
      %v2194 = vpop.permute.xlu0 %2193
      %2195 = vrot.lane.b32.xlu0 %v2118, 33
      %v2196 = vpop.permute.xlu0 %2195
      %2197 = vrot.lane.b32.xlu0 %v2124, 33
      %v2198 = vpop.permute.xlu0 %2197
      %2199 = vrot.lane.b32.xlu0 %v2131, 33
      %v2200 = vpop.permute.xlu0 %2199
      %2201 = vrot.lane.b32.xlu0 %v2128, 33
      %v2202 = vpop.permute.xlu0 %2201
      %2203 = vrot.lane.b32.xlu0 %v2132, 33
      %v2204 = vpop.permute.xlu0 %2203
      %v2205 = vsel %vm845, %v2138, %v2140
      %v2206 = vsel %vm845, %v2142, %v2144
      %v2207 = vsel %vm845, %v2146, %v2148
      %v2208 = vsel %vm845, %v2150, %v2152
      %v2209 = vsel %vm845, %v2154, %v2156
      %v2210 = vsel %vm845, %v2158, %v2160
      %v2211 = vsel %vm845, %v2162, %v2164
      %v2212 = vsel %vm845, %v2166, %v2168
      %v2213 = vsel %vm845, %v2174, %v2176
      %v2214 = vsel %vm845, %v2178, %v2180
      %v2215 = vsel %vm845, %v2182, %v2184
      %v2216 = vsel %vm845, %v2186, %v2188
      %v2217 = vsel %vm845, %v2190, %v2192
      %v2218 = vsel %vm845, %v2194, %v2196
      %v2219 = vsel %vm845, %v2198, %v2200
      %v2220 = vsel %vm845, %v2202, %v2204
      %2239 = vmatprep.subr.bf16.mxu0 0
      %2240 = vmatpush1.bf16.msra.mxu0 %v2205
      %2241 = vmatprep.subr.bf16.mxu0 0
      %2242 = vmatpush1.bf16.msra.mxu0 %v2206
      %2243 = vmatprep.subr.bf16.mxu0 0
      %2244 = vmatpush1.bf16.msra.mxu0 %v2207
      %2245 = vmatprep.subr.bf16.mxu0 0
      %2246 = vmatpush1.bf16.msra.mxu0 %v2208
      %2247 = vmatprep.subr.bf16.mxu0 0
      %2248 = vmatpush1.bf16.msra.mxu0 %v2209
      %2249 = vmatprep.subr.bf16.mxu0 0
      %2250 = vmatpush1.bf16.msra.mxu0 %v2210
      %2251 = vmatprep.subr.bf16.mxu0 0
      %2252 = vmatpush1.bf16.msra.mxu0 %v2211
      %2253 = vmatprep.subr.bf16.mxu0 0
      %2254 = vmatpush1.bf16.msra.mxu0 %v2212
      %2255 = vmatprep.subr.bf16.mxu0 0
      %2256 = vmatpush1.bf16.msra.mxu0 %v2170
      %2257 = vmatprep.subr.bf16.mxu0 0
      %2258 = vmatpush1.bf16.msra.mxu0 %v2172
      %2259 = vmatprep.subr.bf16.mxu0 0
      %2260 = vmatpush1.bf16.msra.mxu0 %v2213
      %2261 = vmatprep.subr.bf16.mxu0 0
      %2262 = vmatpush1.bf16.msra.mxu0 %v2214
      %2263 = vmatprep.subr.bf16.mxu0 0
      %2264 = vmatpush1.bf16.msra.mxu0 %v2215
      %2265 = vmatprep.subr.bf16.mxu0 0
      %2266 = vmatpush1.bf16.msra.mxu0 %v2216
      %2267 = vmatprep.subr.bf16.mxu0 0
      %2268 = vmatpush1.bf16.msra.mxu0 %v2217
      %2269 = vmatprep.subr.bf16.mxu0 0
      %2270 = vmatpush1.bf16.msra.mxu0 %v2218
      %2271 = vmatprep.mubr.bf16.mxu0 %v764
      %2272 = vmatmul.mubr.bf16.gmra.mrb[0].mxu0 %v763
      %v2273 = vpop.f32.mrb[0].mxu0
      %v2274 = vadd.f32 %v726, %v2273
      %v2275 = vpop.f32.mrb[0].mxu0
      %v2276 = vpop.f32.mrb[0].mxu0
      %v2277 = vadd.f32 %v731, %v2276
      %v2278 = vpop.f32.mrb[0].mxu0
      %2279 = vmatprep.mubr.bf16.mxu0 %v767
      %2280 = vmatmul.mubr.bf16.gmra.mrb[0].mxu0 %v766
      %v2281 = vpop.f32.mrb[0].mxu0
      %v2282 = vadd.f32 %v736, %v2281
      %v2283 = vpop.f32.mrb[0].mxu0
      %v2284 = vpop.f32.mrb[0].mxu0
      %v2285 = vadd.f32 %v741, %v2284
      %v2286 = vpop.f32.mrb[0].mxu0
      %2287 = vdwg.mxu0
      %2288 = vmatprep.subr.bf16.mxu0 0
      %2289 = vmatpush1.bf16.msra.mxu0 %v2219
      %2290 = vmatprep.subr.bf16.mxu0 0
      %2291 = vmatpush1.bf16.msra.mxu0 %v2220
      %2292 = vmatprep.subr.bf16.mxu0 0
      %2293 = vmatpush1.bf16.msra.mxu0 0
      %2294 = vmatprep.subr.bf16.mxu0 0
      %2295 = vmatpush1.bf16.msra.mxu0 0
      %2296 = vmatprep.subr.bf16.mxu0 0
      %2297 = vmatpush1.bf16.msra.mxu0 0
      %2298 = vmatprep.subr.bf16.mxu0 0
      %2299 = vmatpush1.bf16.msra.mxu0 0
      %2300 = vmatprep.subr.bf16.mxu0 0
      %2301 = vmatpush1.bf16.msra.mxu0 0
      %2302 = vmatprep.subr.bf16.mxu0 0
      %2303 = vmatpush1.bf16.msra.mxu0 0
      %2304 = vmatprep.subr.bf16.mxu0 0
      %2305 = vmatpush1.bf16.msra.mxu0 0
      %2306 = vmatprep.subr.bf16.mxu0 0
      %2307 = vmatpush1.bf16.msra.mxu0 0
      %2308 = vmatprep.subr.bf16.mxu0 0
      %2309 = vmatpush1.bf16.msra.mxu0 0
      %2310 = vmatprep.subr.bf16.mxu0 0
      %2311 = vmatpush1.bf16.msra.mxu0 0
      %2312 = vmatprep.subr.bf16.mxu0 0
      %2313 = vmatpush1.bf16.msra.mxu0 0
      %2314 = vmatprep.subr.bf16.mxu0 0
      %2315 = vmatpush1.bf16.msra.mxu0 0
      %2316 = vmatprep.subr.bf16.mxu0 0
      %2317 = vmatpush1.bf16.msra.mxu0 0
      %2318 = vmatprep.subr.bf16.mxu0 0
      %2319 = vmatpush1.bf16.msra.mxu0 0
      %2320 = vmatprep.mubr.bf16.mxu0 0
      %2321 = vmatmul.mubr.bf16.gmra.mrb[0].mxu0 %v882
      %v2322 = vpop.f32.mrb[0].mxu0
      %v2323 = vadd.f32 %v2274, %v2322
      %v2324 = vpop.f32.mrb[0].mxu0
      %v2325 = vpop.f32.mrb[0].mxu0
      %v2326 = vadd.f32 %v2277, %v2325
      %v2327 = vpop.f32.mrb[0].mxu0
      %2328 = vmatprep.mubr.bf16.mxu0 0
      %2329 = vmatmul.mubr.bf16.gmra.mrb[0].mxu0 %v885
      %v2330 = vpop.f32.mrb[0].mxu0
      %v2331 = vadd.f32 %v2282, %v2330
      %v2332 = vpop.f32.mrb[0].mxu0
      %v2333 = vpop.f32.mrb[0].mxu0
      %v2334 = vadd.f32 %v2285, %v2333
      %v2335 = vpop.f32.mrb[0].mxu0
      %2336 = vdwg.mxu0
      %2337 = vst [vmem:[%s278 + $0x20] sm:$0xff] %v2323
      %2338 = vst [vmem:[%s278 + $0x60] sm:$0xff] %v2326
      %2339 = vst [vmem:[%s278 + $0xa0] sm:$0xff] %v2331
      %2340 = vst [vmem:[%s278 + $0xe0] sm:$0xff] %v2334
      %v2341 = vld [vmem:[#allocation2 + $0x28] sm:$0xff]
      %v2342 = vld [vmem:[#allocation2 + $0x30] sm:$0xff]
      %v2343 = vld [vmem:[#allocation2 + $0x78] sm:$0xff]
      %v2344 = vld [vmem:[#allocation2 + $0x80] sm:$0xff]
      %v2345 = vsel %vm566, 0, %v2341
      %v2346 = vsel %vm566, 0, %v2342
      %v2347 = vsel %vm566, 0, %v2343
      %v2348 = vsel %vm566, 0, %v2344
      %v2349 = vsel %vm581, 0, %v2341
      %v2350 = vsel %vm581, 0, %v2342
      %v2351 = vsel %vm581, 0, %v2343
      %v2352 = vsel %vm581, 0, %v2344
      %v2353 = vsel %vm588, 0, %v2341
      %v2354 = vsel %vm588, 0, %v2342
      %v2355 = vsel %vm588, 0, %v2343
      %v2356 = vsel %vm588, 0, %v2344
      %v2357 = vld [vmem:[#allocation2 + $0x38] sm:$0xff]
      %v2358 = vld [vmem:[#allocation2 + $0x88] sm:$0xff]
      %v2359 = vsel %vm597, 0, %v2342
      %v2360 = vsel %vm597, 0, %v2357
      %v2361 = vsel %vm597, 0, %v2344
      %v2362 = vsel %vm597, 0, %v2358
      %v2363 = vsel %vm604, 0, %v2342
      %v2364 = vsel %vm604, 0, %v2357
      %v2365 = vsel %vm604, 0, %v2344
      %v2366 = vsel %vm604, 0, %v2358
      %v2367 = vsel %vm611, 0, %v2342
      %v2368 = vsel %vm611, 0, %v2357
      %v2369 = vsel %vm611, 0, %v2344
      %v2370 = vsel %vm611, 0, %v2358
      %2375 = vrot.lane.b32.xlu0 %v2341, 127
      %v2376 = vpop.permute.xlu0 %2375
      %2377 = vrot.lane.b32.xlu0 %v2342, 127
      %v2378 = vpop.permute.xlu0 %2377
      %2379 = vrot.lane.b32.xlu0 %v2343, 127
      %v2380 = vpop.permute.xlu0 %2379
      %2381 = vrot.lane.b32.xlu0 %v2344, 127
      %v2382 = vpop.permute.xlu0 %2381
      %v2383 = vsel %vm628, %v2376, %v2378
      %v2384 = vsel %vm628, %v2380, %v2382
      %2389 = vrot.lane.b32.xlu0 %v2349, 126
      %v2390 = vpop.permute.xlu0 %2389
      %2391 = vrot.lane.b32.xlu0 %v2350, 126
      %v2392 = vpop.permute.xlu0 %2391
      %2393 = vrot.lane.b32.xlu0 %v2351, 126
      %v2394 = vpop.permute.xlu0 %2393
      %2395 = vrot.lane.b32.xlu0 %v2352, 126
      %v2396 = vpop.permute.xlu0 %2395
      %v2397 = vsel %vm643, %v2390, %v2392
      %v2398 = vsel %vm643, %v2394, %v2396
      %2403 = vrot.lane.b32.xlu0 %v2353, 96
      %v2404 = vpop.permute.xlu0 %2403
      %2405 = vrot.lane.b32.xlu0 %v2354, 96
      %v2406 = vpop.permute.xlu0 %2405
      %2407 = vrot.lane.b32.xlu0 %v2355, 96
      %v2408 = vpop.permute.xlu0 %2407
      %2409 = vrot.lane.b32.xlu0 %v2356, 96
      %v2410 = vpop.permute.xlu0 %2409
      %v2411 = vsel %vm658, %v2404, %v2406
      %v2412 = vsel %vm658, %v2408, %v2410
      %2413 = vrot.lane.b32.xlu0 %v2342, 95
      %v2414 = vpop.permute.xlu0 %2413
      %2415 = vrot.lane.b32.xlu0 %v2344, 95
      %v2416 = vpop.permute.xlu0 %2415
      %2421 = vrot.lane.b32.xlu0 %v2359, 94
      %v2422 = vpop.permute.xlu0 %2421
      %2423 = vrot.lane.b32.xlu0 %v2360, 94
      %v2424 = vpop.permute.xlu0 %2423
      %2425 = vrot.lane.b32.xlu0 %v2361, 94
      %v2426 = vpop.permute.xlu0 %2425
      %2427 = vrot.lane.b32.xlu0 %v2362, 94
      %v2428 = vpop.permute.xlu0 %2427
      %v2429 = vsel %vm677, %v2422, %v2424
      %v2430 = vsel %vm677, %v2426, %v2428
      %2435 = vrot.lane.b32.xlu0 %v2363, 64
      %v2436 = vpop.permute.xlu0 %2435
      %2437 = vrot.lane.b32.xlu0 %v2364, 64
      %v2438 = vpop.permute.xlu0 %2437
      %2439 = vrot.lane.b32.xlu0 %v2365, 64
      %v2440 = vpop.permute.xlu0 %2439
      %2441 = vrot.lane.b32.xlu0 %v2366, 64
      %v2442 = vpop.permute.xlu0 %2441
      %v2443 = vsel %vm692, %v2436, %v2438
      %v2444 = vsel %vm692, %v2440, %v2442
      %2447 = vrot.lane.b32.xlu0 %v2342, 63
      %v2448 = vpop.permute.xlu0 %2447
      %2449 = vrot.lane.b32.xlu0 %v2357, 63
      %v2450 = vpop.permute.xlu0 %2449
      %2451 = vrot.lane.b32.xlu0 %v2344, 63
      %v2452 = vpop.permute.xlu0 %2451
      %2453 = vrot.lane.b32.xlu0 %v2358, 63
      %v2454 = vpop.permute.xlu0 %2453
      %v2455 = vsel %vm705, %v2448, %v2450
      %v2456 = vsel %vm705, %v2452, %v2454
      %2461 = vrot.lane.b32.xlu0 %v2367, 62
      %v2462 = vpop.permute.xlu0 %2461
      %2463 = vrot.lane.b32.xlu0 %v2368, 62
      %v2464 = vpop.permute.xlu0 %2463
      %2465 = vrot.lane.b32.xlu0 %v2369, 62
      %v2466 = vpop.permute.xlu0 %2465
      %2467 = vrot.lane.b32.xlu0 %v2370, 62
      %v2468 = vpop.permute.xlu0 %2467
      %v2469 = vsel %vm720, %v2462, %v2464
      %v2470 = vsel %vm720, %v2466, %v2468
      %2475 = vrot.lane.b32.xlu0 %v2345, 33
      %v2476 = vpop.permute.xlu0 %2475
      %2477 = vrot.lane.b32.xlu0 %v2346, 33
      %v2478 = vpop.permute.xlu0 %2477
      %2479 = vrot.lane.b32.xlu0 %v2347, 33
      %v2480 = vpop.permute.xlu0 %2479
      %2481 = vrot.lane.b32.xlu0 %v2348, 33
      %v2482 = vpop.permute.xlu0 %2481
      %2483 = vrot.lane.b32.xlu0 %v2383, 33
      %v2484 = vpop.permute.xlu0 %2483
      %2485 = vrot.lane.b32.xlu0 %v2378, 33
      %v2486 = vpop.permute.xlu0 %2485
      %2487 = vrot.lane.b32.xlu0 %v2384, 33
      %v2488 = vpop.permute.xlu0 %2487
      %2489 = vrot.lane.b32.xlu0 %v2382, 33
      %v2490 = vpop.permute.xlu0 %2489
      %2491 = vrot.lane.b32.xlu0 %v2397, 33
      %v2492 = vpop.permute.xlu0 %2491
      %2493 = vrot.lane.b32.xlu0 %v2392, 33
      %v2494 = vpop.permute.xlu0 %2493
      %2495 = vrot.lane.b32.xlu0 %v2398, 33
      %v2496 = vpop.permute.xlu0 %2495
      %2497 = vrot.lane.b32.xlu0 %v2396, 33
      %v2498 = vpop.permute.xlu0 %2497
      %2499 = vrot.lane.b32.xlu0 %v2411, 33
      %v2500 = vpop.permute.xlu0 %2499
      %2501 = vrot.lane.b32.xlu0 %v2406, 33
      %v2502 = vpop.permute.xlu0 %2501
      %2503 = vrot.lane.b32.xlu0 %v2412, 33
      %v2504 = vpop.permute.xlu0 %2503
      %2505 = vrot.lane.b32.xlu0 %v2410, 33
      %v2506 = vpop.permute.xlu0 %2505
      %2507 = vrot.lane.b32.xlu0 %v2414, 33
      %v2508 = vpop.permute.xlu0 %2507
      %2509 = vrot.lane.b32.xlu0 %v2416, 33
      %v2510 = vpop.permute.xlu0 %2509
      %2511 = vrot.lane.b32.xlu0 %v2422, 33
      %v2512 = vpop.permute.xlu0 %2511
      %2513 = vrot.lane.b32.xlu0 %v2429, 33
      %v2514 = vpop.permute.xlu0 %2513
      %2515 = vrot.lane.b32.xlu0 %v2426, 33
      %v2516 = vpop.permute.xlu0 %2515
      %2517 = vrot.lane.b32.xlu0 %v2430, 33
      %v2518 = vpop.permute.xlu0 %2517
      %2519 = vrot.lane.b32.xlu0 %v2436, 33
      %v2520 = vpop.permute.xlu0 %2519
      %2521 = vrot.lane.b32.xlu0 %v2443, 33
      %v2522 = vpop.permute.xlu0 %2521
      %2523 = vrot.lane.b32.xlu0 %v2440, 33
      %v2524 = vpop.permute.xlu0 %2523
      %2525 = vrot.lane.b32.xlu0 %v2444, 33
      %v2526 = vpop.permute.xlu0 %2525
      %2527 = vrot.lane.b32.xlu0 %v2448, 33
      %v2528 = vpop.permute.xlu0 %2527
      %2529 = vrot.lane.b32.xlu0 %v2455, 33
      %v2530 = vpop.permute.xlu0 %2529
      %2531 = vrot.lane.b32.xlu0 %v2452, 33
      %v2532 = vpop.permute.xlu0 %2531
      %2533 = vrot.lane.b32.xlu0 %v2456, 33
      %v2534 = vpop.permute.xlu0 %2533
      %2535 = vrot.lane.b32.xlu0 %v2462, 33
      %v2536 = vpop.permute.xlu0 %2535
      %2537 = vrot.lane.b32.xlu0 %v2469, 33
      %v2538 = vpop.permute.xlu0 %2537
      %2539 = vrot.lane.b32.xlu0 %v2466, 33
      %v2540 = vpop.permute.xlu0 %2539
      %2541 = vrot.lane.b32.xlu0 %v2470, 33
      %v2542 = vpop.permute.xlu0 %2541
      %v2543 = vsel %vm845, %v2476, %v2478
      %v2544 = vsel %vm845, %v2480, %v2482
      %v2545 = vsel %vm845, %v2484, %v2486
      %v2546 = vsel %vm845, %v2488, %v2490
      %v2547 = vsel %vm845, %v2492, %v2494
      %v2548 = vsel %vm845, %v2496, %v2498
      %v2549 = vsel %vm845, %v2500, %v2502
      %v2550 = vsel %vm845, %v2504, %v2506
      %v2551 = vsel %vm845, %v2512, %v2514
      %v2552 = vsel %vm845, %v2516, %v2518
      %v2553 = vsel %vm845, %v2520, %v2522
      %v2554 = vsel %vm845, %v2524, %v2526
      %v2555 = vsel %vm845, %v2528, %v2530
      %v2556 = vsel %vm845, %v2532, %v2534
      %v2557 = vsel %vm845, %v2536, %v2538
      %v2558 = vsel %vm845, %v2540, %v2542
      %2577 = vmatprep.subr.bf16.mxu0 0
      %2578 = vmatpush1.bf16.msra.mxu0 %v2543
      %2579 = vmatprep.subr.bf16.mxu0 0
      %2580 = vmatpush1.bf16.msra.mxu0 %v2544
      %2581 = vmatprep.subr.bf16.mxu0 0
      %2582 = vmatpush1.bf16.msra.mxu0 %v2545
      %2583 = vmatprep.subr.bf16.mxu0 0
      %2584 = vmatpush1.bf16.msra.mxu0 %v2546
      %2585 = vmatprep.subr.bf16.mxu0 0
      %2586 = vmatpush1.bf16.msra.mxu0 %v2547
      %2587 = vmatprep.subr.bf16.mxu0 0
      %2588 = vmatpush1.bf16.msra.mxu0 %v2548
      %2589 = vmatprep.subr.bf16.mxu0 0
      %2590 = vmatpush1.bf16.msra.mxu0 %v2549
      %2591 = vmatprep.subr.bf16.mxu0 0
      %2592 = vmatpush1.bf16.msra.mxu0 %v2550
      %2593 = vmatprep.subr.bf16.mxu0 0
      %2594 = vmatpush1.bf16.msra.mxu0 %v2508
      %2595 = vmatprep.subr.bf16.mxu0 0
      %2596 = vmatpush1.bf16.msra.mxu0 %v2510
      %2597 = vmatprep.subr.bf16.mxu0 0
      %2598 = vmatpush1.bf16.msra.mxu0 %v2551
      %2599 = vmatprep.subr.bf16.mxu0 0
      %2600 = vmatpush1.bf16.msra.mxu0 %v2552
      %2601 = vmatprep.subr.bf16.mxu0 0
      %2602 = vmatpush1.bf16.msra.mxu0 %v2553
      %2603 = vmatprep.subr.bf16.mxu0 0
      %2604 = vmatpush1.bf16.msra.mxu0 %v2554
      %2605 = vmatprep.subr.bf16.mxu0 0
      %2606 = vmatpush1.bf16.msra.mxu0 %v2555
      %2607 = vmatprep.subr.bf16.mxu0 0
      %2608 = vmatpush1.bf16.msra.mxu0 %v2556
      %2609 = vmatprep.mubr.bf16.mxu0 %v764
      %2610 = vmatmul.mubr.bf16.gmra.mrb[0].mxu0 %v763
      %v2611 = vpop.f32.mrb[0].mxu0
      %v2612 = vadd.f32 %v726, %v2611
      %v2613 = vpop.f32.mrb[0].mxu0
      %v2614 = vpop.f32.mrb[0].mxu0
      %v2615 = vadd.f32 %v731, %v2614
      %v2616 = vpop.f32.mrb[0].mxu0
      %2617 = vmatprep.mubr.bf16.mxu0 %v767
      %2618 = vmatmul.mubr.bf16.gmra.mrb[0].mxu0 %v766
      %v2619 = vpop.f32.mrb[0].mxu0
      %v2620 = vadd.f32 %v736, %v2619
      %v2621 = vpop.f32.mrb[0].mxu0
      %v2622 = vpop.f32.mrb[0].mxu0
      %v2623 = vadd.f32 %v741, %v2622
      %v2624 = vpop.f32.mrb[0].mxu0
      %2625 = vdwg.mxu0
      %2626 = vmatprep.subr.bf16.mxu0 0
      %2627 = vmatpush1.bf16.msra.mxu0 %v2557
      %2628 = vmatprep.subr.bf16.mxu0 0
      %2629 = vmatpush1.bf16.msra.mxu0 %v2558
      %2630 = vmatprep.subr.bf16.mxu0 0
      %2631 = vmatpush1.bf16.msra.mxu0 0
      %2632 = vmatprep.subr.bf16.mxu0 0
      %2633 = vmatpush1.bf16.msra.mxu0 0
      %2634 = vmatprep.subr.bf16.mxu0 0
      %2635 = vmatpush1.bf16.msra.mxu0 0
      %2636 = vmatprep.subr.bf16.mxu0 0
      %2637 = vmatpush1.bf16.msra.mxu0 0
      %2638 = vmatprep.subr.bf16.mxu0 0
      %2639 = vmatpush1.bf16.msra.mxu0 0
      %2640 = vmatprep.subr.bf16.mxu0 0
      %2641 = vmatpush1.bf16.msra.mxu0 0
      %2642 = vmatprep.subr.bf16.mxu0 0
      %2643 = vmatpush1.bf16.msra.mxu0 0
      %2644 = vmatprep.subr.bf16.mxu0 0
      %2645 = vmatpush1.bf16.msra.mxu0 0
      %2646 = vmatprep.subr.bf16.mxu0 0
      %2647 = vmatpush1.bf16.msra.mxu0 0
      %2648 = vmatprep.subr.bf16.mxu0 0
      %2649 = vmatpush1.bf16.msra.mxu0 0
      %2650 = vmatprep.subr.bf16.mxu0 0
      %2651 = vmatpush1.bf16.msra.mxu0 0
      %2652 = vmatprep.subr.bf16.mxu0 0
      %2653 = vmatpush1.bf16.msra.mxu0 0
      %2654 = vmatprep.subr.bf16.mxu0 0
      %2655 = vmatpush1.bf16.msra.mxu0 0
      %2656 = vmatprep.subr.bf16.mxu0 0
      %2657 = vmatpush1.bf16.msra.mxu0 0
      %2658 = vmatprep.mubr.bf16.mxu0 0
      %2659 = vmatmul.mubr.bf16.gmra.mrb[0].mxu0 %v882
      %v2660 = vpop.f32.mrb[0].mxu0
      %v2661 = vadd.f32 %v2612, %v2660
      %v2662 = vpop.f32.mrb[0].mxu0
      %v2663 = vpop.f32.mrb[0].mxu0
      %v2664 = vadd.f32 %v2615, %v2663
      %v2665 = vpop.f32.mrb[0].mxu0
      %2666 = vmatprep.mubr.bf16.mxu0 0
      %2667 = vmatmul.mubr.bf16.gmra.mrb[0].mxu0 %v885
      %v2668 = vpop.f32.mrb[0].mxu0
      %v2669 = vadd.f32 %v2620, %v2668
      %v2670 = vpop.f32.mrb[0].mxu0
      %v2671 = vpop.f32.mrb[0].mxu0
      %v2672 = vadd.f32 %v2623, %v2671
      %v2673 = vpop.f32.mrb[0].mxu0
      %2674 = vdwg.mxu0
      %2675 = vst [vmem:[%s278 + $0x28] sm:$0xff] %v2661
      %2676 = vst [vmem:[%s278 + $0x68] sm:$0xff] %v2664
      %2677 = vst [vmem:[%s278 + $0xa8] sm:$0xff] %v2669
      %2678 = vst [vmem:[%s278 + $0xe8] sm:$0xff] %v2672
      %v2679 = vld [vmem:[#allocation2 + $0x30] sm:$0xff]
      %v2680 = vld [vmem:[#allocation2 + $0x38] sm:$0xff]
      %v2681 = vld [vmem:[#allocation2 + $0x80] sm:$0xff]
      %v2682 = vld [vmem:[#allocation2 + $0x88] sm:$0xff]
      %v2683 = vsel %vm566, 0, %v2679
      %v2684 = vsel %vm566, 0, %v2680
      %v2685 = vsel %vm566, 0, %v2681
      %v2686 = vsel %vm566, 0, %v2682
      %v2687 = vsel %vm581, 0, %v2679
      %v2688 = vsel %vm581, 0, %v2680
      %v2689 = vsel %vm581, 0, %v2681
      %v2690 = vsel %vm581, 0, %v2682
      %v2691 = vsel %vm588, 0, %v2679
      %v2692 = vsel %vm588, 0, %v2680
      %v2693 = vsel %vm588, 0, %v2681
      %v2694 = vsel %vm588, 0, %v2682
      %v2695 = vld [vmem:[#allocation2 + $0x40] sm:$0xff]
      %v2696 = vld [vmem:[#allocation2 + $0x90] sm:$0xff]
      %v2697 = vsel %vm597, 0, %v2680
      %v2698 = vsel %vm597, 0, %v2695
      %v2699 = vsel %vm597, 0, %v2682
      %v2700 = vsel %vm597, 0, %v2696
      %v2701 = vsel %vm604, 0, %v2680
      %v2702 = vsel %vm604, 0, %v2695
      %v2703 = vsel %vm604, 0, %v2682
      %v2704 = vsel %vm604, 0, %v2696
      %v2705 = vsel %vm611, 0, %v2680
      %v2706 = vsel %vm611, 0, %v2695
      %v2707 = vsel %vm611, 0, %v2682
      %v2708 = vsel %vm611, 0, %v2696
      %2713 = vrot.lane.b32.xlu0 %v2679, 127
      %v2714 = vpop.permute.xlu0 %2713
      %2715 = vrot.lane.b32.xlu0 %v2680, 127
      %v2716 = vpop.permute.xlu0 %2715
      %2717 = vrot.lane.b32.xlu0 %v2681, 127
      %v2718 = vpop.permute.xlu0 %2717
      %2719 = vrot.lane.b32.xlu0 %v2682, 127
      %v2720 = vpop.permute.xlu0 %2719
      %v2721 = vsel %vm628, %v2714, %v2716
      %v2722 = vsel %vm628, %v2718, %v2720
      %2727 = vrot.lane.b32.xlu0 %v2687, 126
      %v2728 = vpop.permute.xlu0 %2727
      %2729 = vrot.lane.b32.xlu0 %v2688, 126
      %v2730 = vpop.permute.xlu0 %2729
      %2731 = vrot.lane.b32.xlu0 %v2689, 126
      %v2732 = vpop.permute.xlu0 %2731
      %2733 = vrot.lane.b32.xlu0 %v2690, 126
      %v2734 = vpop.permute.xlu0 %2733
      %v2735 = vsel %vm643, %v2728, %v2730
      %v2736 = vsel %vm643, %v2732, %v2734
      %2741 = vrot.lane.b32.xlu0 %v2691, 96
      %v2742 = vpop.permute.xlu0 %2741
      %2743 = vrot.lane.b32.xlu0 %v2692, 96
      %v2744 = vpop.permute.xlu0 %2743
      %2745 = vrot.lane.b32.xlu0 %v2693, 96
      %v2746 = vpop.permute.xlu0 %2745
      %2747 = vrot.lane.b32.xlu0 %v2694, 96
      %v2748 = vpop.permute.xlu0 %2747
      %v2749 = vsel %vm658, %v2742, %v2744
      %v2750 = vsel %vm658, %v2746, %v2748
      %2751 = vrot.lane.b32.xlu0 %v2680, 95
      %v2752 = vpop.permute.xlu0 %2751
      %2753 = vrot.lane.b32.xlu0 %v2682, 95
      %v2754 = vpop.permute.xlu0 %2753
      %2759 = vrot.lane.b32.xlu0 %v2697, 94
      %v2760 = vpop.permute.xlu0 %2759
      %2761 = vrot.lane.b32.xlu0 %v2698, 94
      %v2762 = vpop.permute.xlu0 %2761
      %2763 = vrot.lane.b32.xlu0 %v2699, 94
      %v2764 = vpop.permute.xlu0 %2763
      %2765 = vrot.lane.b32.xlu0 %v2700, 94
      %v2766 = vpop.permute.xlu0 %2765
      %v2767 = vsel %vm677, %v2760, %v2762
      %v2768 = vsel %vm677, %v2764, %v2766
      %2773 = vrot.lane.b32.xlu0 %v2701, 64
      %v2774 = vpop.permute.xlu0 %2773
      %2775 = vrot.lane.b32.xlu0 %v2702, 64
      %v2776 = vpop.permute.xlu0 %2775
      %2777 = vrot.lane.b32.xlu0 %v2703, 64
      %v2778 = vpop.permute.xlu0 %2777
      %2779 = vrot.lane.b32.xlu0 %v2704, 64
      %v2780 = vpop.permute.xlu0 %2779
      %v2781 = vsel %vm692, %v2774, %v2776
      %v2782 = vsel %vm692, %v2778, %v2780
      %2785 = vrot.lane.b32.xlu0 %v2680, 63
      %v2786 = vpop.permute.xlu0 %2785
      %2787 = vrot.lane.b32.xlu0 %v2695, 63
      %v2788 = vpop.permute.xlu0 %2787
      %2789 = vrot.lane.b32.xlu0 %v2682, 63
      %v2790 = vpop.permute.xlu0 %2789
      %2791 = vrot.lane.b32.xlu0 %v2696, 63
      %v2792 = vpop.permute.xlu0 %2791
      %v2793 = vsel %vm705, %v2786, %v2788
      %v2794 = vsel %vm705, %v2790, %v2792
      %2799 = vrot.lane.b32.xlu0 %v2705, 62
      %v2800 = vpop.permute.xlu0 %2799
      %2801 = vrot.lane.b32.xlu0 %v2706, 62
      %v2802 = vpop.permute.xlu0 %2801
      %2803 = vrot.lane.b32.xlu0 %v2707, 62
      %v2804 = vpop.permute.xlu0 %2803
      %2805 = vrot.lane.b32.xlu0 %v2708, 62
      %v2806 = vpop.permute.xlu0 %2805
      %v2807 = vsel %vm720, %v2800, %v2802
      %v2808 = vsel %vm720, %v2804, %v2806
      %2813 = vrot.lane.b32.xlu0 %v2683, 33
      %v2814 = vpop.permute.xlu0 %2813
      %2815 = vrot.lane.b32.xlu0 %v2684, 33
      %v2816 = vpop.permute.xlu0 %2815
      %2817 = vrot.lane.b32.xlu0 %v2685, 33
      %v2818 = vpop.permute.xlu0 %2817
      %2819 = vrot.lane.b32.xlu0 %v2686, 33
      %v2820 = vpop.permute.xlu0 %2819
      %2821 = vrot.lane.b32.xlu0 %v2721, 33
      %v2822 = vpop.permute.xlu0 %2821
      %2823 = vrot.lane.b32.xlu0 %v2716, 33
      %v2824 = vpop.permute.xlu0 %2823
      %2825 = vrot.lane.b32.xlu0 %v2722, 33
      %v2826 = vpop.permute.xlu0 %2825
      %2827 = vrot.lane.b32.xlu0 %v2720, 33
      %v2828 = vpop.permute.xlu0 %2827
      %2829 = vrot.lane.b32.xlu0 %v2735, 33
      %v2830 = vpop.permute.xlu0 %2829
      %2831 = vrot.lane.b32.xlu0 %v2730, 33
      %v2832 = vpop.permute.xlu0 %2831
      %2833 = vrot.lane.b32.xlu0 %v2736, 33
      %v2834 = vpop.permute.xlu0 %2833
      %2835 = vrot.lane.b32.xlu0 %v2734, 33
      %v2836 = vpop.permute.xlu0 %2835
      %2837 = vrot.lane.b32.xlu0 %v2749, 33
      %v2838 = vpop.permute.xlu0 %2837
      %2839 = vrot.lane.b32.xlu0 %v2744, 33
      %v2840 = vpop.permute.xlu0 %2839
      %2841 = vrot.lane.b32.xlu0 %v2750, 33
      %v2842 = vpop.permute.xlu0 %2841
      %2843 = vrot.lane.b32.xlu0 %v2748, 33
      %v2844 = vpop.permute.xlu0 %2843
      %2845 = vrot.lane.b32.xlu0 %v2752, 33
      %v2846 = vpop.permute.xlu0 %2845
      %2847 = vrot.lane.b32.xlu0 %v2754, 33
      %v2848 = vpop.permute.xlu0 %2847
      %2849 = vrot.lane.b32.xlu0 %v2760, 33
      %v2850 = vpop.permute.xlu0 %2849
      %2851 = vrot.lane.b32.xlu0 %v2767, 33
      %v2852 = vpop.permute.xlu0 %2851
      %2853 = vrot.lane.b32.xlu0 %v2764, 33
      %v2854 = vpop.permute.xlu0 %2853
      %2855 = vrot.lane.b32.xlu0 %v2768, 33
      %v2856 = vpop.permute.xlu0 %2855
      %2857 = vrot.lane.b32.xlu0 %v2774, 33
      %v2858 = vpop.permute.xlu0 %2857
      %2859 = vrot.lane.b32.xlu0 %v2781, 33
      %v2860 = vpop.permute.xlu0 %2859
      %2861 = vrot.lane.b32.xlu0 %v2778, 33
      %v2862 = vpop.permute.xlu0 %2861
      %2863 = vrot.lane.b32.xlu0 %v2782, 33
      %v2864 = vpop.permute.xlu0 %2863
      %2865 = vrot.lane.b32.xlu0 %v2786, 33
      %v2866 = vpop.permute.xlu0 %2865
      %2867 = vrot.lane.b32.xlu0 %v2793, 33
      %v2868 = vpop.permute.xlu0 %2867
      %2869 = vrot.lane.b32.xlu0 %v2790, 33
      %v2870 = vpop.permute.xlu0 %2869
      %2871 = vrot.lane.b32.xlu0 %v2794, 33
      %v2872 = vpop.permute.xlu0 %2871
      %2873 = vrot.lane.b32.xlu0 %v2800, 33
      %v2874 = vpop.permute.xlu0 %2873
      %2875 = vrot.lane.b32.xlu0 %v2807, 33
      %v2876 = vpop.permute.xlu0 %2875
      %2877 = vrot.lane.b32.xlu0 %v2804, 33
      %v2878 = vpop.permute.xlu0 %2877
      %2879 = vrot.lane.b32.xlu0 %v2808, 33
      %v2880 = vpop.permute.xlu0 %2879
      %v2881 = vsel %vm845, %v2814, %v2816
      %v2882 = vsel %vm845, %v2818, %v2820
      %v2883 = vsel %vm845, %v2822, %v2824
      %v2884 = vsel %vm845, %v2826, %v2828
      %v2885 = vsel %vm845, %v2830, %v2832
      %v2886 = vsel %vm845, %v2834, %v2836
      %v2887 = vsel %vm845, %v2838, %v2840
      %v2888 = vsel %vm845, %v2842, %v2844
      %v2889 = vsel %vm845, %v2850, %v2852
      %v2890 = vsel %vm845, %v2854, %v2856
      %v2891 = vsel %vm845, %v2858, %v2860
      %v2892 = vsel %vm845, %v2862, %v2864
      %v2893 = vsel %vm845, %v2866, %v2868
      %v2894 = vsel %vm845, %v2870, %v2872
      %v2895 = vsel %vm845, %v2874, %v2876
      %v2896 = vsel %vm845, %v2878, %v2880
      %2915 = vmatprep.subr.bf16.mxu0 0
      %2916 = vmatpush1.bf16.msra.mxu0 %v2881
      %2917 = vmatprep.subr.bf16.mxu0 0
      %2918 = vmatpush1.bf16.msra.mxu0 %v2882
      %2919 = vmatprep.subr.bf16.mxu0 0
      %2920 = vmatpush1.bf16.msra.mxu0 %v2883
      %2921 = vmatprep.subr.bf16.mxu0 0
      %2922 = vmatpush1.bf16.msra.mxu0 %v2884
      %2923 = vmatprep.subr.bf16.mxu0 0
      %2924 = vmatpush1.bf16.msra.mxu0 %v2885
      %2925 = vmatprep.subr.bf16.mxu0 0
      %2926 = vmatpush1.bf16.msra.mxu0 %v2886
      %2927 = vmatprep.subr.bf16.mxu0 0
      %2928 = vmatpush1.bf16.msra.mxu0 %v2887
      %2929 = vmatprep.subr.bf16.mxu0 0
      %2930 = vmatpush1.bf16.msra.mxu0 %v2888
      %2931 = vmatprep.subr.bf16.mxu0 0
      %2932 = vmatpush1.bf16.msra.mxu0 %v2846
      %2933 = vmatprep.subr.bf16.mxu0 0
      %2934 = vmatpush1.bf16.msra.mxu0 %v2848
      %2935 = vmatprep.subr.bf16.mxu0 0
      %2936 = vmatpush1.bf16.msra.mxu0 %v2889
      %2937 = vmatprep.subr.bf16.mxu0 0
      %2938 = vmatpush1.bf16.msra.mxu0 %v2890
      %2939 = vmatprep.subr.bf16.mxu0 0
      %2940 = vmatpush1.bf16.msra.mxu0 %v2891
      %2941 = vmatprep.subr.bf16.mxu0 0
      %2942 = vmatpush1.bf16.msra.mxu0 %v2892
      %2943 = vmatprep.subr.bf16.mxu0 0
      %2944 = vmatpush1.bf16.msra.mxu0 %v2893
      %2945 = vmatprep.subr.bf16.mxu0 0
      %2946 = vmatpush1.bf16.msra.mxu0 %v2894
      %2947 = vmatprep.mubr.bf16.mxu0 %v764
      %2948 = vmatmul.mubr.bf16.gmra.mrb[0].mxu0 %v763
      %v2949 = vpop.f32.mrb[0].mxu0
      %v2950 = vadd.f32 %v726, %v2949
      %v2951 = vpop.f32.mrb[0].mxu0
      %v2952 = vpop.f32.mrb[0].mxu0
      %v2953 = vadd.f32 %v731, %v2952
      %v2954 = vpop.f32.mrb[0].mxu0
      %2955 = vmatprep.mubr.bf16.mxu0 %v767
      %2956 = vmatmul.mubr.bf16.gmra.mrb[0].mxu0 %v766
      %v2957 = vpop.f32.mrb[0].mxu0
      %v2958 = vadd.f32 %v736, %v2957
      %v2959 = vpop.f32.mrb[0].mxu0
      %v2960 = vpop.f32.mrb[0].mxu0
      %v2961 = vadd.f32 %v741, %v2960
      %v2962 = vpop.f32.mrb[0].mxu0
      %2963 = vdwg.mxu0
      %2964 = vmatprep.subr.bf16.mxu0 0
      %2965 = vmatpush1.bf16.msra.mxu0 %v2895
      %2966 = vmatprep.subr.bf16.mxu0 0
      %2967 = vmatpush1.bf16.msra.mxu0 %v2896
      %2968 = vmatprep.subr.bf16.mxu0 0
      %2969 = vmatpush1.bf16.msra.mxu0 0
      %2970 = vmatprep.subr.bf16.mxu0 0
      %2971 = vmatpush1.bf16.msra.mxu0 0
      %2972 = vmatprep.subr.bf16.mxu0 0
      %2973 = vmatpush1.bf16.msra.mxu0 0
      %2974 = vmatprep.subr.bf16.mxu0 0
      %2975 = vmatpush1.bf16.msra.mxu0 0
      %2976 = vmatprep.subr.bf16.mxu0 0
      %2977 = vmatpush1.bf16.msra.mxu0 0
      %2978 = vmatprep.subr.bf16.mxu0 0
      %2979 = vmatpush1.bf16.msra.mxu0 0
      %2980 = vmatprep.subr.bf16.mxu0 0
      %2981 = vmatpush1.bf16.msra.mxu0 0
      %2982 = vmatprep.subr.bf16.mxu0 0
      %2983 = vmatpush1.bf16.msra.mxu0 0
      %2984 = vmatprep.subr.bf16.mxu0 0
      %2985 = vmatpush1.bf16.msra.mxu0 0
      %2986 = vmatprep.subr.bf16.mxu0 0
      %2987 = vmatpush1.bf16.msra.mxu0 0
      %2988 = vmatprep.subr.bf16.mxu0 0
      %2989 = vmatpush1.bf16.msra.mxu0 0
      %2990 = vmatprep.subr.bf16.mxu0 0
      %2991 = vmatpush1.bf16.msra.mxu0 0
      %2992 = vmatprep.subr.bf16.mxu0 0
      %2993 = vmatpush1.bf16.msra.mxu0 0
      %2994 = vmatprep.subr.bf16.mxu0 0
      %2995 = vmatpush1.bf16.msra.mxu0 0
      %2996 = vmatprep.mubr.bf16.mxu0 0
      %2997 = vmatmul.mubr.bf16.gmra.mrb[0].mxu0 %v882
      %v2998 = vpop.f32.mrb[0].mxu0
      %v2999 = vadd.f32 %v2950, %v2998
      %v3000 = vpop.f32.mrb[0].mxu0
      %v3001 = vpop.f32.mrb[0].mxu0
      %v3002 = vadd.f32 %v2953, %v3001
      %v3003 = vpop.f32.mrb[0].mxu0
      %3004 = vmatprep.mubr.bf16.mxu0 0
      %3005 = vmatmul.mubr.bf16.gmra.mrb[0].mxu0 %v885
      %v3006 = vpop.f32.mrb[0].mxu0
      %v3007 = vadd.f32 %v2958, %v3006
      %v3008 = vpop.f32.mrb[0].mxu0
      %v3009 = vpop.f32.mrb[0].mxu0
      %v3010 = vadd.f32 %v2961, %v3009
      %v3011 = vpop.f32.mrb[0].mxu0
      %3012 = vdwg.mxu0
      %3013 = vst [vmem:[%s278 + $0x30] sm:$0xff] %v2999
      %3014 = vst [vmem:[%s278 + $0x70] sm:$0xff] %v3002
      %3015 = vst [vmem:[%s278 + $0xb0] sm:$0xff] %v3007
      %3016 = vst [vmem:[%s278 + $0xf0] sm:$0xff] %v3010
      %v3017 = vld [vmem:[#allocation2 + $0x38] sm:$0xff]
      %v3018 = vld [vmem:[#allocation2 + $0x40] sm:$0xff]
      %v3019 = vld [vmem:[#allocation2 + $0x88] sm:$0xff]
      %v3020 = vld [vmem:[#allocation2 + $0x90] sm:$0xff]
      %v3021 = vsel %vm566, 0, %v3017
      %v3022 = vsel %vm566, 0, %v3018
      %v3023 = vsel %vm566, 0, %v3019
      %v3024 = vsel %vm566, 0, %v3020
      %v3025 = vsel %vm581, 0, %v3017
      %v3026 = vsel %vm581, 0, %v3018
      %v3027 = vsel %vm581, 0, %v3019
      %v3028 = vsel %vm581, 0, %v3020
      %v3029 = vsel %vm588, 0, %v3017
      %v3030 = vsel %vm588, 0, %v3018
      %v3031 = vsel %vm588, 0, %v3019
      %v3032 = vsel %vm588, 0, %v3020
      %v3033 = vld [vmem:[#allocation2 + $0x40] sm:$0xff]
      %v3034 = vld [vmem:[#allocation2 + $0x48] sm:$0xff]
      %v3035 = vld [vmem:[#allocation2 + $0x90] sm:$0xff]
      %v3036 = vld [vmem:[#allocation2 + $0x98] sm:$0xff]
      %v3037 = vsel %vm597, 0, %v3033
      %v3038 = vsel %vm597, 0, %v3034
      %v3039 = vsel %vm597, 0, %v3035
      %v3040 = vsel %vm597, 0, %v3036
      %v3041 = vsel %vm604, 0, %v3033
      %v3042 = vsel %vm604, 0, %v3034
      %v3043 = vsel %vm604, 0, %v3035
      %v3044 = vsel %vm604, 0, %v3036
      %v3045 = vsel %vm611, 0, %v3033
      %v3046 = vsel %vm611, 0, %v3034
      %v3047 = vsel %vm611, 0, %v3035
      %v3048 = vsel %vm611, 0, %v3036
      %3053 = vrot.lane.b32.xlu0 %v3017, 127
      %v3054 = vpop.permute.xlu0 %3053
      %3055 = vrot.lane.b32.xlu0 %v3018, 127
      %v3056 = vpop.permute.xlu0 %3055
      %3057 = vrot.lane.b32.xlu0 %v3019, 127
      %v3058 = vpop.permute.xlu0 %3057
      %3059 = vrot.lane.b32.xlu0 %v3020, 127
      %v3060 = vpop.permute.xlu0 %3059
      %v3061 = vsel %vm628, %v3054, %v3056
      %v3062 = vsel %vm628, %v3058, %v3060
      %3067 = vrot.lane.b32.xlu0 %v3025, 126
      %v3068 = vpop.permute.xlu0 %3067
      %3069 = vrot.lane.b32.xlu0 %v3026, 126
      %v3070 = vpop.permute.xlu0 %3069
      %3071 = vrot.lane.b32.xlu0 %v3027, 126
      %v3072 = vpop.permute.xlu0 %3071
      %3073 = vrot.lane.b32.xlu0 %v3028, 126
      %v3074 = vpop.permute.xlu0 %3073
      %v3075 = vsel %vm643, %v3068, %v3070
      %v3076 = vsel %vm643, %v3072, %v3074
      %3081 = vrot.lane.b32.xlu0 %v3029, 96
      %v3082 = vpop.permute.xlu0 %3081
      %3083 = vrot.lane.b32.xlu0 %v3030, 96
      %v3084 = vpop.permute.xlu0 %3083
      %3085 = vrot.lane.b32.xlu0 %v3031, 96
      %v3086 = vpop.permute.xlu0 %3085
      %3087 = vrot.lane.b32.xlu0 %v3032, 96
      %v3088 = vpop.permute.xlu0 %3087
      %v3089 = vsel %vm658, %v3082, %v3084
      %v3090 = vsel %vm658, %v3086, %v3088
      %3091 = vrot.lane.b32.xlu0 %v3018, 95
      %v3092 = vpop.permute.xlu0 %3091
      %3093 = vrot.lane.b32.xlu0 %v3020, 95
      %v3094 = vpop.permute.xlu0 %3093
      %3099 = vrot.lane.b32.xlu0 %v3037, 94
      %v3100 = vpop.permute.xlu0 %3099
      %3101 = vrot.lane.b32.xlu0 %v3038, 94
      %v3102 = vpop.permute.xlu0 %3101
      %3103 = vrot.lane.b32.xlu0 %v3039, 94
      %v3104 = vpop.permute.xlu0 %3103
      %3105 = vrot.lane.b32.xlu0 %v3040, 94
      %v3106 = vpop.permute.xlu0 %3105
      %v3107 = vsel %vm677, %v3100, %v3102
      %v3108 = vsel %vm677, %v3104, %v3106
      %3113 = vrot.lane.b32.xlu0 %v3041, 64
      %v3114 = vpop.permute.xlu0 %3113
      %3115 = vrot.lane.b32.xlu0 %v3042, 64
      %v3116 = vpop.permute.xlu0 %3115
      %3117 = vrot.lane.b32.xlu0 %v3043, 64
      %v3118 = vpop.permute.xlu0 %3117
      %3119 = vrot.lane.b32.xlu0 %v3044, 64
      %v3120 = vpop.permute.xlu0 %3119
      %v3121 = vsel %vm692, %v3114, %v3116
      %v3122 = vsel %vm692, %v3118, %v3120
      %3127 = vrot.lane.b32.xlu0 %v3033, 63
      %v3128 = vpop.permute.xlu0 %3127
      %3129 = vrot.lane.b32.xlu0 %v3034, 63
      %v3130 = vpop.permute.xlu0 %3129
      %3131 = vrot.lane.b32.xlu0 %v3035, 63
      %v3132 = vpop.permute.xlu0 %3131
      %3133 = vrot.lane.b32.xlu0 %v3036, 63
      %v3134 = vpop.permute.xlu0 %3133
      %v3135 = vsel %vm705, %v3128, %v3130
      %v3136 = vsel %vm705, %v3132, %v3134
      %3141 = vrot.lane.b32.xlu0 %v3045, 62
      %v3142 = vpop.permute.xlu0 %3141
      %3143 = vrot.lane.b32.xlu0 %v3046, 62
      %v3144 = vpop.permute.xlu0 %3143
      %3145 = vrot.lane.b32.xlu0 %v3047, 62
      %v3146 = vpop.permute.xlu0 %3145
      %3147 = vrot.lane.b32.xlu0 %v3048, 62
      %v3148 = vpop.permute.xlu0 %3147
      %v3149 = vsel %vm720, %v3142, %v3144
      %v3150 = vsel %vm720, %v3146, %v3148
      %3155 = vrot.lane.b32.xlu0 %v3021, 33
      %v3156 = vpop.permute.xlu0 %3155
      %3157 = vrot.lane.b32.xlu0 %v3022, 33
      %v3158 = vpop.permute.xlu0 %3157
      %3159 = vrot.lane.b32.xlu0 %v3023, 33
      %v3160 = vpop.permute.xlu0 %3159
      %3161 = vrot.lane.b32.xlu0 %v3024, 33
      %v3162 = vpop.permute.xlu0 %3161
      %3163 = vrot.lane.b32.xlu0 %v3061, 33
      %v3164 = vpop.permute.xlu0 %3163
      %3165 = vrot.lane.b32.xlu0 %v3056, 33
      %v3166 = vpop.permute.xlu0 %3165
      %3167 = vrot.lane.b32.xlu0 %v3062, 33
      %v3168 = vpop.permute.xlu0 %3167
      %3169 = vrot.lane.b32.xlu0 %v3060, 33
      %v3170 = vpop.permute.xlu0 %3169
      %3171 = vrot.lane.b32.xlu0 %v3075, 33
      %v3172 = vpop.permute.xlu0 %3171
      %3173 = vrot.lane.b32.xlu0 %v3070, 33
      %v3174 = vpop.permute.xlu0 %3173
      %3175 = vrot.lane.b32.xlu0 %v3076, 33
      %v3176 = vpop.permute.xlu0 %3175
      %3177 = vrot.lane.b32.xlu0 %v3074, 33
      %v3178 = vpop.permute.xlu0 %3177
      %3179 = vrot.lane.b32.xlu0 %v3089, 33
      %v3180 = vpop.permute.xlu0 %3179
      %3181 = vrot.lane.b32.xlu0 %v3084, 33
      %v3182 = vpop.permute.xlu0 %3181
      %3183 = vrot.lane.b32.xlu0 %v3090, 33
      %v3184 = vpop.permute.xlu0 %3183
      %3185 = vrot.lane.b32.xlu0 %v3088, 33
      %v3186 = vpop.permute.xlu0 %3185
      %3187 = vrot.lane.b32.xlu0 %v3092, 33
      %v3188 = vpop.permute.xlu0 %3187
      %3189 = vrot.lane.b32.xlu0 %v3094, 33
      %v3190 = vpop.permute.xlu0 %3189
      %3191 = vrot.lane.b32.xlu0 %v3100, 33
      %v3192 = vpop.permute.xlu0 %3191
      %3193 = vrot.lane.b32.xlu0 %v3107, 33
      %v3194 = vpop.permute.xlu0 %3193
      %3195 = vrot.lane.b32.xlu0 %v3104, 33
      %v3196 = vpop.permute.xlu0 %3195
      %3197 = vrot.lane.b32.xlu0 %v3108, 33
      %v3198 = vpop.permute.xlu0 %3197
      %3199 = vrot.lane.b32.xlu0 %v3114, 33
      %v3200 = vpop.permute.xlu0 %3199
      %3201 = vrot.lane.b32.xlu0 %v3121, 33
      %v3202 = vpop.permute.xlu0 %3201
      %3203 = vrot.lane.b32.xlu0 %v3118, 33
      %v3204 = vpop.permute.xlu0 %3203
      %3205 = vrot.lane.b32.xlu0 %v3122, 33
      %v3206 = vpop.permute.xlu0 %3205
      %3207 = vrot.lane.b32.xlu0 %v3128, 33
      %v3208 = vpop.permute.xlu0 %3207
      %3209 = vrot.lane.b32.xlu0 %v3135, 33
      %v3210 = vpop.permute.xlu0 %3209
      %3211 = vrot.lane.b32.xlu0 %v3132, 33
      %v3212 = vpop.permute.xlu0 %3211
      %3213 = vrot.lane.b32.xlu0 %v3136, 33
      %v3214 = vpop.permute.xlu0 %3213
      %3215 = vrot.lane.b32.xlu0 %v3142, 33
      %v3216 = vpop.permute.xlu0 %3215
      %3217 = vrot.lane.b32.xlu0 %v3149, 33
      %v3218 = vpop.permute.xlu0 %3217
      %3219 = vrot.lane.b32.xlu0 %v3146, 33
      %v3220 = vpop.permute.xlu0 %3219
      %3221 = vrot.lane.b32.xlu0 %v3150, 33
      %v3222 = vpop.permute.xlu0 %3221
      %v3223 = vsel %vm845, %v3156, %v3158
      %v3224 = vsel %vm845, %v3160, %v3162
      %v3225 = vsel %vm845, %v3164, %v3166
      %v3226 = vsel %vm845, %v3168, %v3170
      %v3227 = vsel %vm845, %v3172, %v3174
      %v3228 = vsel %vm845, %v3176, %v3178
      %v3229 = vsel %vm845, %v3180, %v3182
      %v3230 = vsel %vm845, %v3184, %v3186
      %v3231 = vsel %vm845, %v3192, %v3194
      %v3232 = vsel %vm845, %v3196, %v3198
      %v3233 = vsel %vm845, %v3200, %v3202
      %v3234 = vsel %vm845, %v3204, %v3206
      %v3235 = vsel %vm845, %v3208, %v3210
      %v3236 = vsel %vm845, %v3212, %v3214
      %v3237 = vsel %vm845, %v3216, %v3218
      %v3238 = vsel %vm845, %v3220, %v3222
      %3257 = vmatprep.subr.bf16.mxu0 0
      %3258 = vmatpush1.bf16.msra.mxu0 %v3223
      %3259 = vmatprep.subr.bf16.mxu0 0
      %3260 = vmatpush1.bf16.msra.mxu0 %v3224
      %3261 = vmatprep.subr.bf16.mxu0 0
      %3262 = vmatpush1.bf16.msra.mxu0 %v3225
      %3263 = vmatprep.subr.bf16.mxu0 0
      %3264 = vmatpush1.bf16.msra.mxu0 %v3226
      %3265 = vmatprep.subr.bf16.mxu0 0
      %3266 = vmatpush1.bf16.msra.mxu0 %v3227
      %3267 = vmatprep.subr.bf16.mxu0 0
      %3268 = vmatpush1.bf16.msra.mxu0 %v3228
      %3269 = vmatprep.subr.bf16.mxu0 0
      %3270 = vmatpush1.bf16.msra.mxu0 %v3229
      %3271 = vmatprep.subr.bf16.mxu0 0
      %3272 = vmatpush1.bf16.msra.mxu0 %v3230
      %3273 = vmatprep.subr.bf16.mxu0 0
      %3274 = vmatpush1.bf16.msra.mxu0 %v3188
      %3275 = vmatprep.subr.bf16.mxu0 0
      %3276 = vmatpush1.bf16.msra.mxu0 %v3190
      %3277 = vmatprep.subr.bf16.mxu0 0
      %3278 = vmatpush1.bf16.msra.mxu0 %v3231
      %3279 = vmatprep.subr.bf16.mxu0 0
      %3280 = vmatpush1.bf16.msra.mxu0 %v3232
      %3281 = vmatprep.subr.bf16.mxu0 0
      %3282 = vmatpush1.bf16.msra.mxu0 %v3233
      %3283 = vmatprep.subr.bf16.mxu0 0
      %3284 = vmatpush1.bf16.msra.mxu0 %v3234
      %3285 = vmatprep.subr.bf16.mxu0 0
      %3286 = vmatpush1.bf16.msra.mxu0 %v3235
      %3287 = vmatprep.subr.bf16.mxu0 0
      %3288 = vmatpush1.bf16.msra.mxu0 %v3236
      %3289 = vmatprep.mubr.bf16.mxu0 %v764
      %3290 = vmatmul.mubr.bf16.gmra.mrb[0].mxu0 %v763
      %v3291 = vpop.f32.mrb[0].mxu0
      %v3292 = vadd.f32 %v726, %v3291
      %v3293 = vpop.f32.mrb[0].mxu0
      %v3294 = vpop.f32.mrb[0].mxu0
      %v3295 = vadd.f32 %v731, %v3294
      %v3296 = vpop.f32.mrb[0].mxu0
      %3297 = vmatprep.mubr.bf16.mxu0 %v767
      %3298 = vmatmul.mubr.bf16.gmra.mrb[0].mxu0 %v766
      %v3299 = vpop.f32.mrb[0].mxu0
      %v3300 = vadd.f32 %v736, %v3299
      %v3301 = vpop.f32.mrb[0].mxu0
      %v3302 = vpop.f32.mrb[0].mxu0
      %v3303 = vadd.f32 %v741, %v3302
      %v3304 = vpop.f32.mrb[0].mxu0
      %3305 = vdwg.mxu0
      %3306 = vmatprep.subr.bf16.mxu0 0
      %3307 = vmatpush1.bf16.msra.mxu0 %v3237
      %3308 = vmatprep.subr.bf16.mxu0 0
      %3309 = vmatpush1.bf16.msra.mxu0 %v3238
      %3310 = vmatprep.subr.bf16.mxu0 0
      %3311 = vmatpush1.bf16.msra.mxu0 0
      %3312 = vmatprep.subr.bf16.mxu0 0
      %3313 = vmatpush1.bf16.msra.mxu0 0
      %3314 = vmatprep.subr.bf16.mxu0 0
      %3315 = vmatpush1.bf16.msra.mxu0 0
      %3316 = vmatprep.subr.bf16.mxu0 0
      %3317 = vmatpush1.bf16.msra.mxu0 0
      %3318 = vmatprep.subr.bf16.mxu0 0
      %3319 = vmatpush1.bf16.msra.mxu0 0
      %3320 = vmatprep.subr.bf16.mxu0 0
      %3321 = vmatpush1.bf16.msra.mxu0 0
      %3322 = vmatprep.subr.bf16.mxu0 0
      %3323 = vmatpush1.bf16.msra.mxu0 0
      %3324 = vmatprep.subr.bf16.mxu0 0
      %3325 = vmatpush1.bf16.msra.mxu0 0
      %3326 = vmatprep.subr.bf16.mxu0 0
      %3327 = vmatpush1.bf16.msra.mxu0 0
      %3328 = vmatprep.subr.bf16.mxu0 0
      %3329 = vmatpush1.bf16.msra.mxu0 0
      %3330 = vmatprep.subr.bf16.mxu0 0
      %3331 = vmatpush1.bf16.msra.mxu0 0
      %3332 = vmatprep.subr.bf16.mxu0 0
      %3333 = vmatpush1.bf16.msra.mxu0 0
      %3334 = vmatprep.subr.bf16.mxu0 0
      %3335 = vmatpush1.bf16.msra.mxu0 0
      %3336 = vmatprep.subr.bf16.mxu0 0
      %3337 = vmatpush1.bf16.msra.mxu0 0
      %3338 = vmatprep.mubr.bf16.mxu0 0
      %3339 = vmatmul.mubr.bf16.gmra.mrb[0].mxu0 %v882
      %v3340 = vpop.f32.mrb[0].mxu0
      %v3341 = vadd.f32 %v3292, %v3340
      %v3342 = vpop.f32.mrb[0].mxu0
      %v3343 = vpop.f32.mrb[0].mxu0
      %v3344 = vadd.f32 %v3295, %v3343
      %v3345 = vpop.f32.mrb[0].mxu0
      %3346 = vmatprep.mubr.bf16.mxu0 0
      %3347 = vmatmul.mubr.bf16.gmra.mrb[0].mxu0 %v885
      %v3348 = vpop.f32.mrb[0].mxu0
      %v3349 = vadd.f32 %v3300, %v3348
      %v3350 = vpop.f32.mrb[0].mxu0
      %v3351 = vpop.f32.mrb[0].mxu0
      %v3352 = vadd.f32 %v3303, %v3351
      %v3353 = vpop.f32.mrb[0].mxu0
      %3354 = vdwg.mxu0
      %3355 = vst [vmem:[%s278 + $0x38] sm:$0xff] %v3341
      %3356 = vst [vmem:[%s278 + $0x78] sm:$0xff] %v3344
      %3357 = vst [vmem:[%s278 + $0xb8] sm:$0xff] %v3349
      %3358 = vst [vmem:[%s278 + $0xf8] sm:$0xff] %v3352
      %p3359 = scmp.lt.s32.totalorder %s18, 1
      %s3360 = scalar_select %p3359, %s18, 1
      %s3361 = smul.addr %s3360, 32
      %s3362 = smul.addr %s3361, 8
      %s3363 = scalar_lea.vmem %s7, %s3362
      // Predicated region
      $region49: #{mblock.5} parent=47 // pred_check
        %p3364 = pneg %p188
      $region50: #{mblock.5} parent=47 // pred_check_branch
        %3366 = sbr.rel (%p3364) target = $region52
      $region51: #{mblock.5} parent=47 // pred_region
        _
      $region52: #{mblock.5} parent=47 // pred_fallthru
        _
    $region48: #{mblock.5} parent=5 // pred_fallthru
      _
    %p3367 = scmp.le.s32.totalorder 2, %s13
    // Predicated region
    $region53: #{mblock.5} parent=5 // pred_check
      %p3368 = pneg %p3367
    $region54: #{mblock.5} parent=5 // pred_check_branch
      %3370 = sbr.rel (%p3368) target = $region56
    $region55: #{mblock.5} parent=5 // pred_region
      %s3371 = ssub.s32 %s13, 2
      // Predicated region
      $region57: #{mblock.5} parent=55 // pred_check
        %p3372 = pneg %p194
      $region58: #{mblock.5} parent=55 // pred_check_branch
        %3374 = sbr.rel (%p3372) target = $region60
      $region59: #{mblock.5} parent=55 // pred_region
        %p3375 = scmp.lt.s32.totalorder %s19, 1
        %s3376 = scalar_select %p3375, %s19, 1
        %s3377 = smul.addr %s3376, 32
        %s3378 = smul.addr %s3377, 8
        %s3379 = scalar_lea.vmem %s7, %s3378
      $region60: #{mblock.5} parent=55 // pred_fallthru
        _
    $region56: #{mblock.5} parent=5 // pred_fallthru
      _
  $region6: #{mblock.5} parent=0 // loop_footer
    %s17 = sadd.s32 1, %s13
  $region7: #{mblock.5} parent=0 // loop_footer_branch
    %12 = sbr.rel target = $region3
  $region8: #{mblock.5} parent=0 // loop_exit
    _

</llo_original>
